<compile_context>
chip_gen: v7x
topology: tpu7x:2x2x1
jax: 0.10.0
libtpu: 0.0.40
codegen_flags: <defaults>
</compile_context>

<pallas_src>
import functools

import jax
import jax.numpy as jnp
from jax.experimental import pallas as pl
from jax.experimental.pallas import tpu as pltpu

N_DRUG = 572      # num_embeddings of drug_embed / ent_embed / W1 / W2
N_REL = 67        # num_embeddings of rela_embed
EMB = 32          # args.embedding_num
NEIGH = 8         # args.neighbor_sample_size
BLOCK = 128       # drugs (lanes) per grid step
N_PAD = 640       # 572 padded up to a multiple of 128 (lane tile)
BN_EPS = 1e-5     # nn.BatchNorm1d default eps


def gnn3_kernel(drug_ref, rela_ref, ent_ref, w1_ref, w2rs_ref,
                b1_ref, b2s_ref, wlin_ref, blin_ref, out_ref):
    """One BLOCK-wide slab of drugs; drug axis is the last (lane) axis.

    Shapes seen by the kernel (B = BLOCK):
      drug_ref  (EMB, B)          drug embeddings, transposed
      rela_ref  (NEIGH, EMB, B)   relation embeddings of the 8 neighbours
      ent_ref   (NEIGH, EMB, B)   entity   embeddings of the 8 neighbours
      w1_ref    (EMB, EMB, B)     w1_ref[e, f, b] = W1[b, e, f]
      w2rs_ref  (EMB, B)          sum_g W2[b, f, g]   (row-sum of W2)
      b1_ref    (EMB, NEIGH)      b1 transposed
      b2s_ref   (NEIGH, 1)        sum_f b2[k, f]
      wlin_ref  (EMB, 2*EMB)      Linear1 weight (out, in), used directly
      blin_ref  (EMB, 1)          Linear1 bias
      out_ref   (EMB, B)          relu(Linear1(...)) before BatchNorm
    """
    drug = drug_ref[...]            # (E, B)
    w2rs = w2rs_ref[...]            # (E, B)
    b1t = b1_ref[...]               # (E, K)
    b2s = b2s_ref[...]              # (K, 1)

    # --- per-neighbour score: sum_f relu(drug_rel @ W1 + b1)[f] * rowsumW2[f]
    # Lane-dense VPU multiply-accumulate instead of 128 tiny per-drug MXU
    # matmuls (which re-staged a 32x32 RHS per drug at ~1-2% occupancy).
    score_rows = []
    for k in range(NEIGH):                        # unrolled: 8 neighbours
        dr_k = drug * rela_ref[k]                 # (E, B)  drug_rel for k
        acc = jnp.zeros_like(drug)                # (F, B)  h1 accumulator
        for e in range(EMB):                      # unrolled contraction over e
            acc = acc + dr_k[e:e + 1, :] * w1_ref[e]   # (1,B) bcast * (F,B)
        h1_k = jnp.maximum(acc + b1t[:, k:k + 1], 0.0)
        score_rows.append(jnp.sum(h1_k * w2rs, axis=0, keepdims=True))  # (1,B)
    score = jnp.concatenate(score_rows, axis=0) + b2s          # (K, B)

    # --- softmax over the 8 neighbours (drugs stay on lanes: one dense vreg) -
    score = score - jnp.max(score, axis=0, keepdims=True)
    p = jnp.exp(score)
    # Exact divide: approx reciprocal blew the 5e-3 budget once amplified by BN.
    p = p / jnp.sum(p, axis=0, keepdims=True)

    # --- attention-weighted entity aggregation, unrolled over neighbours -----
    weighted = jnp.zeros_like(drug)               # (E, B)
    for k in range(NEIGH):
        weighted = weighted + p[k:k + 1, :] * ent_ref[k]

    # --- concat + Linear + ReLU: one merged (E, 2E) @ (2E, B) MXU pass -------
    xcat = jnp.concatenate([weighted, drug], axis=0)            # (2E, B)
    lin = jnp.dot(wlin_ref[...], xcat,
                  preferred_element_type=jnp.float32) + blin_ref[...]
    out_ref[...] = jnp.maximum(lin, 0.0)


def gnn3_forward(drug_T, rela_T, ent_T, w1_T, w2rs_T, b1_T, b2s, wlin, blin,
                 gamma, beta, *, n_valid=N_DRUG, block=BLOCK):
    e, n_pad = drug_T.shape
    k = rela_T.shape[0]
    assert n_pad % block == 0 and block % 128 == 0

    pre_bn_T = pl.pallas_call(
        gnn3_kernel,
        out_shape=jax.ShapeDtypeStruct((e, n_pad), jnp.float32),
        grid_spec=pltpu.PrefetchScalarGridSpec(
            num_scalar_prefetch=0,
            grid=(n_pad // block,),
            in_specs=[
                pl.BlockSpec((e, block), lambda i: (0, i)),         # drug_T
                pl.BlockSpec((k, e, block), lambda i: (0, 0, i)),   # rela_T
                pl.BlockSpec((k, e, block), lambda i: (0, 0, i)),   # ent_T
                pl.BlockSpec((e, e, block), lambda i: (0, 0, i)),   # w1_T
                pl.BlockSpec((e, block), lambda i: (0, i)),         # w2rs_T
                pl.BlockSpec((e, k), lambda i: (0, 0)),             # b1_T
                pl.BlockSpec((k, 1), lambda i: (0, 0)),             # b2 rowsum
                pl.BlockSpec((e, 2 * e), lambda i: (0, 0)),         # Wlin
                pl.BlockSpec((e, 1), lambda i: (0, 0)),             # blin
            ],
            out_specs=pl.BlockSpec((e, block), lambda i: (0, i)),
        ),
        compiler_params=pltpu.CompilerParams(
            dimension_semantics=("parallel",)),
    )(drug_T, rela_T, ent_T, w1_T, w2rs_T, b1_T, b2s, wlin, blin)

    # BatchNorm1d (training mode, biased variance) finished in plain XLA:
    # the tensor is only ~72 KiB and a second pallas_call's launch overhead
    # rivals the whole main kernel.  Padded drugs are dropped before the
    # statistics; exact sqrt keeps the error budget intact.
    lin = pre_bn_T[:, :n_valid]                                  # (E, n_valid)
    mean = jnp.mean(lin, axis=1, keepdims=True)
    var = jnp.mean((lin - mean) ** 2, axis=1, keepdims=True)
    y = (lin - mean) / jnp.sqrt(var + BN_EPS) * gamma[:, None] + beta[:, None]
    return y.T                                                   # (n_valid, E)


if __name__ == "__main__":
    key = jax.random.PRNGKey(0)
    keys = jax.random.split(key, 10)
    pad = N_PAD - N_DRUG

    # --- deterministic synthetic parameters (shapes from GNN3.__init__) ----
    drug_table = 0.5 * jax.random.normal(keys[0], (N_DRUG, EMB), jnp.float32)
    rela_table = 0.5 * jax.random.normal(keys[1], (N_REL, EMB), jnp.float32)
    ent_table = 0.5 * jax.random.normal(keys[2], (N_DRUG, EMB), jnp.float32)
    W1 = 0.1 * jax.random.normal(keys[3], (N_DRUG, EMB, EMB), jnp.float32)
    b1 = 0.1 * jax.random.normal(keys[4], (NEIGH, EMB), jnp.float32)
    W2 = 0.1 * jax.random.normal(keys[5], (N_DRUG, EMB, EMB), jnp.float32)
    b2 = 0.1 * jax.random.normal(keys[6], (NEIGH, EMB), jnp.float32)
    # Linear1: xavier_uniform weight (EMB, 2*EMB), zero bias; BN gamma=1, beta=0
    bound = (6.0 / (2 * EMB + EMB)) ** 0.5
    Wlin = jax.random.uniform(keys[7], (EMB, 2 * EMB), jnp.float32, -bound, bound)
    blin = jnp.zeros((EMB,), jnp.float32)
    gamma = jnp.ones((EMB,), jnp.float32)
    beta = jnp.zeros((EMB,), jnp.float32)

    # --- graph structure (stand-in for arrge(): neighbour tails / relations) -
    # TODO(synk): arrge() does host-side dict/np.random neighbour sampling; we
    # synthesize deterministic adjacency tensors of the same shape instead.
    adj_tail = jax.random.randint(keys[8], (N_DRUG, NEIGH), 0, N_DRUG, jnp.int32)
    adj_relation = jax.random.randint(keys[9], (N_DRUG, NEIGH), 0, N_REL, jnp.int32)

    # --- one-time prep: embedding gathers + drugs-on-lanes transposes -------
    drug_embedding = drug_table                      # drug_name == arange(572)
    rela_embedding = rela_table[adj_relation]        # (572, 8, 32)
    ent_embedding = ent_table[adj_tail]              # (572, 8, 32)

    drug_T = jnp.pad(drug_embedding, ((0, pad), (0, 0))).T                          # (32, 640)
    rela_T = jnp.pad(rela_embedding, ((0, pad), (0, 0), (0, 0))).transpose(1, 2, 0)  # (8, 32, 640)
    ent_T = jnp.pad(ent_embedding, ((0, pad), (0, 0), (0, 0))).transpose(1, 2, 0)    # (8, 32, 640)
    w1_T = jnp.pad(W1, ((0, pad), (0, 0), (0, 0))).transpose(1, 2, 0)                # (32, 32, 640)
    w2rs_T = jnp.pad(jnp.sum(W2, axis=-1), ((0, pad), (0, 0))).T                     # (32, 640)
    b1_T = b1.T                                                                      # (32, 8)
    b2s = jnp.sum(b2, axis=-1)[:, None]                                              # (8, 1)
    blin_col = blin[:, None]                                                         # (32, 1)

    # TODO(synk): train_or_test==1 branch (dict-driven row averaging over
    # test_adj[3]) is host-side python over dict keys; only the train path
    # (train_or_test==0) is implemented here.
    fwd = jax.jit(functools.partial(gnn3_forward, n_valid=N_DRUG, block=BLOCK))
    drug_f = fwd(drug_T, rela_T, ent_T, w1_T, w2rs_T, b1_T, b2s, Wlin, blin_col,
                 gamma, beta)
    drug_f = jax.block_until_ready(drug_f)

    # --- pure-JAX reference (original, uncollapsed formulation) -------------
    drug_rel = drug_embedding[:, None, :] * rela_embedding
    h = jnp.einsum('bke,bef->bkf', drug_rel, W1, precision='highest') + b1
    h = jnp.maximum(h, 0.0)
    h = jnp.einsum('bke,bef->bkf', h, W2, precision='highest') + b2
    att = jax.nn.softmax(jnp.sum(h, axis=-1, keepdims=True), axis=1)
    weighted = jnp.sum(att * ent_embedding, axis=1)
    drug_e = jnp.concatenate([weighted, drug_embedding], axis=1)
    lin = jnp.maximum(jnp.dot(drug_e, Wlin.T, precision='highest') + blin, 0.0)
    mean = jnp.mean(lin, axis=0, keepdims=True)
    var = jnp.mean((lin - mean) ** 2, axis=0, keepdims=True)
    ref = (lin - mean) / jnp.sqrt(var + BN_EPS) * gamma + beta

    err = float(jnp.max(jnp.abs(drug_f - ref)))
    assert jnp.allclose(drug_f, ref, rtol=5e-3, atol=5e-3), f"max abs err {err}"
    print("KERNEL_OK")
</pallas_src>

<mosaic_0001>
module attributes {stable_mosaic.version = 11 : i64} {
  func.func @gnn3_kernel(%arg0: i32, %arg1: memref<32x128xf32, #tpu.memory_space<vmem>>, %arg2: memref<8x32x128xf32, #tpu.memory_space<vmem>>, %arg3: memref<8x32x128xf32, #tpu.memory_space<vmem>>, %arg4: memref<32x32x128xf32, #tpu.memory_space<vmem>>, %arg5: memref<32x128xf32, #tpu.memory_space<vmem>>, %arg6: memref<32x8xf32, #tpu.memory_space<vmem>>, %arg7: memref<8x1xf32, #tpu.memory_space<vmem>>, %arg8: memref<32x64xf32, #tpu.memory_space<vmem>>, %arg9: memref<32x1xf32, #tpu.memory_space<vmem>>, %arg10: memref<32x128xf32, #tpu.memory_space<vmem>>) attributes {dimension_semantics = [#tpu.dimension_semantics<parallel>], iteration_bounds = array<i64: 5>, scalar_prefetch = 0 : i64, scratch_operands = 0 : i64, tpu.core_type = #tpu.core_type<tc>, window_params = [{transform_indices = @transform_0, window_bounds = array<i64: 32, 128>}, {transform_indices = @transform_1, window_bounds = array<i64: 8, 32, 128>}, {transform_indices = @transform_2, window_bounds = array<i64: 8, 32, 128>}, {transform_indices = @transform_3, window_bounds = array<i64: 32, 32, 128>}, {transform_indices = @transform_4, window_bounds = array<i64: 32, 128>}, {pipeline_mode = #tpu.pipeline_mode<synchronous>, transform_indices = @transform_5, window_bounds = array<i64: 32, 8>}, {pipeline_mode = #tpu.pipeline_mode<synchronous>, transform_indices = @transform_6, window_bounds = array<i64: 8, 1>}, {pipeline_mode = #tpu.pipeline_mode<synchronous>, transform_indices = @transform_7, window_bounds = array<i64: 32, 64>}, {pipeline_mode = #tpu.pipeline_mode<synchronous>, transform_indices = @transform_8, window_bounds = array<i64: 32, 1>}, {transform_indices = @transform_9, window_bounds = array<i64: 32, 128>}]} {
    %c0 = arith.constant 0 : index
    %c0_0 = arith.constant 0 : index
    %0 = vector.load %arg1[%c0, %c0_0] : memref<32x128xf32, #tpu.memory_space<vmem>>, vector<32x128xf32>
    %c0_1 = arith.constant 0 : index
    %c0_2 = arith.constant 0 : index
    %1 = vector.load %arg5[%c0_1, %c0_2] : memref<32x128xf32, #tpu.memory_space<vmem>>, vector<32x128xf32>
    %c0_3 = arith.constant 0 : index
    %c0_4 = arith.constant 0 : index
    %2 = vector.load %arg6[%c0_3, %c0_4] : memref<32x8xf32, #tpu.memory_space<vmem>>, vector<32x8xf32>
    %c0_5 = arith.constant 0 : index
    %c0_6 = arith.constant 0 : index
    %3 = vector.load %arg7[%c0_5, %c0_6] : memref<8x1xf32, #tpu.memory_space<vmem>>, vector<8x1xf32>
    %c0_7 = arith.constant 0 : index
    %c0_8 = arith.constant 0 : index
    %c0_9 = arith.constant 0 : index
    %4 = vector.load %arg2[%c0_7, %c0_8, %c0_9] : memref<8x32x128xf32, #tpu.memory_space<vmem>>, vector<1x32x128xf32>
    %5 = vector.shape_cast %4 : vector<1x32x128xf32> to vector<32x128xf32>
    %6 = arith.mulf %0, %5 : vector<32x128xf32>
    %cst = arith.constant 0.000000e+00 : f32
    %7 = vector.broadcast %cst : f32 to vector<32x128xf32>
    %8 = vector.extract_strided_slice %6 {offsets = [0, 0], sizes = [1, 128], strides = [1, 1]} : vector<32x128xf32> to vector<1x128xf32>
    %c0_10 = arith.constant 0 : index
    %c0_11 = arith.constant 0 : index
    %c0_12 = arith.constant 0 : index
    %9 = vector.load %arg4[%c0_10, %c0_11, %c0_12] : memref<32x32x128xf32, #tpu.memory_space<vmem>>, vector<1x32x128xf32>
    %10 = vector.shape_cast %9 : vector<1x32x128xf32> to vector<32x128xf32>
    %11 = vector.broadcast %8 : vector<1x128xf32> to vector<32x128xf32>
    %12 = arith.mulf %11, %10 : vector<32x128xf32>
    %13 = arith.addf %7, %12 : vector<32x128xf32>
    %14 = vector.extract_strided_slice %6 {offsets = [1, 0], sizes = [1, 128], strides = [1, 1]} : vector<32x128xf32> to vector<1x128xf32>
    %c1 = arith.constant 1 : index
    %c0_13 = arith.constant 0 : index
    %c0_14 = arith.constant 0 : index
    %15 = vector.load %arg4[%c1, %c0_13, %c0_14] : memref<32x32x128xf32, #tpu.memory_space<vmem>>, vector<1x32x128xf32>
    %16 = vector.shape_cast %15 : vector<1x32x128xf32> to vector<32x128xf32>
    %17 = vector.broadcast %14 : vector<1x128xf32> to vector<32x128xf32>
    %18 = arith.mulf %17, %16 : vector<32x128xf32>
    %19 = arith.addf %13, %18 : vector<32x128xf32>
    %20 = vector.extract_strided_slice %6 {offsets = [2, 0], sizes = [1, 128], strides = [1, 1]} : vector<32x128xf32> to vector<1x128xf32>
    %c2 = arith.constant 2 : index
    %c0_15 = arith.constant 0 : index
    %c0_16 = arith.constant 0 : index
    %21 = vector.load %arg4[%c2, %c0_15, %c0_16] : memref<32x32x128xf32, #tpu.memory_space<vmem>>, vector<1x32x128xf32>
    %22 = vector.shape_cast %21 : vector<1x32x128xf32> to vector<32x128xf32>
    %23 = vector.broadcast %20 : vector<1x128xf32> to vector<32x128xf32>
    %24 = arith.mulf %23, %22 : vector<32x128xf32>
    %25 = arith.addf %19, %24 : vector<32x128xf32>
    %26 = vector.extract_strided_slice %6 {offsets = [3, 0], sizes = [1, 128], strides = [1, 1]} : vector<32x128xf32> to vector<1x128xf32>
    %c3 = arith.constant 3 : index
    %c0_17 = arith.constant 0 : index
    %c0_18 = arith.constant 0 : index
    %27 = vector.load %arg4[%c3, %c0_17, %c0_18] : memref<32x32x128xf32, #tpu.memory_space<vmem>>, vector<1x32x128xf32>
    %28 = vector.shape_cast %27 : vector<1x32x128xf32> to vector<32x128xf32>
    %29 = vector.broadcast %26 : vector<1x128xf32> to vector<32x128xf32>
    %30 = arith.mulf %29, %28 : vector<32x128xf32>
    %31 = arith.addf %25, %30 : vector<32x128xf32>
    %32 = vector.extract_strided_slice %6 {offsets = [4, 0], sizes = [1, 128], strides = [1, 1]} : vector<32x128xf32> to vector<1x128xf32>
    %c4 = arith.constant 4 : index
    %c0_19 = arith.constant 0 : index
    %c0_20 = arith.constant 0 : index
    %33 = vector.load %arg4[%c4, %c0_19, %c0_20] : memref<32x32x128xf32, #tpu.memory_space<vmem>>, vector<1x32x128xf32>
    %34 = vector.shape_cast %33 : vector<1x32x128xf32> to vector<32x128xf32>
    %35 = vector.broadcast %32 : vector<1x128xf32> to vector<32x128xf32>
    %36 = arith.mulf %35, %34 : vector<32x128xf32>
    %37 = arith.addf %31, %36 : vector<32x128xf32>
    %38 = vector.extract_strided_slice %6 {offsets = [5, 0], sizes = [1, 128], strides = [1, 1]} : vector<32x128xf32> to vector<1x128xf32>
    %c5 = arith.constant 5 : index
    %c0_21 = arith.constant 0 : index
    %c0_22 = arith.constant 0 : index
    %39 = vector.load %arg4[%c5, %c0_21, %c0_22] : memref<32x32x128xf32, #tpu.memory_space<vmem>>, vector<1x32x128xf32>
    %40 = vector.shape_cast %39 : vector<1x32x128xf32> to vector<32x128xf32>
    %41 = vector.broadcast %38 : vector<1x128xf32> to vector<32x128xf32>
    %42 = arith.mulf %41, %40 : vector<32x128xf32>
    %43 = arith.addf %37, %42 : vector<32x128xf32>
    %44 = vector.extract_strided_slice %6 {offsets = [6, 0], sizes = [1, 128], strides = [1, 1]} : vector<32x128xf32> to vector<1x128xf32>
    %c6 = arith.constant 6 : index
    %c0_23 = arith.constant 0 : index
    %c0_24 = arith.constant 0 : index
    %45 = vector.load %arg4[%c6, %c0_23, %c0_24] : memref<32x32x128xf32, #tpu.memory_space<vmem>>, vector<1x32x128xf32>
    %46 = vector.shape_cast %45 : vector<1x32x128xf32> to vector<32x128xf32>
    %47 = vector.broadcast %44 : vector<1x128xf32> to vector<32x128xf32>
    %48 = arith.mulf %47, %46 : vector<32x128xf32>
    %49 = arith.addf %43, %48 : vector<32x128xf32>
    %50 = vector.extract_strided_slice %6 {offsets = [7, 0], sizes = [1, 128], strides = [1, 1]} : vector<32x128xf32> to vector<1x128xf32>
    %c7 = arith.constant 7 : index
    %c0_25 = arith.constant 0 : index
    %c0_26 = arith.constant 0 : index
    %51 = vector.load %arg4[%c7, %c0_25, %c0_26] : memref<32x32x128xf32, #tpu.memory_space<vmem>>, vector<1x32x128xf32>
    %52 = vector.shape_cast %51 : vector<1x32x128xf32> to vector<32x128xf32>
    %53 = vector.broadcast %50 : vector<1x128xf32> to vector<32x128xf32>
    %54 = arith.mulf %53, %52 : vector<32x128xf32>
    %55 = arith.addf %49, %54 : vector<32x128xf32>
    %56 = vector.extract_strided_slice %6 {offsets = [8, 0], sizes = [1, 128], strides = [1, 1]} : vector<32x128xf32> to vector<1x128xf32>
    %c8 = arith.constant 8 : index
    %c0_27 = arith.constant 0 : index
    %c0_28 = arith.constant 0 : index
    %57 = vector.load %arg4[%c8, %c0_27, %c0_28] : memref<32x32x128xf32, #tpu.memory_space<vmem>>, vector<1x32x128xf32>
    %58 = vector.shape_cast %57 : vector<1x32x128xf32> to vector<32x128xf32>
    %59 = vector.broadcast %56 : vector<1x128xf32> to vector<32x128xf32>
    %60 = arith.mulf %59, %58 : vector<32x128xf32>
    %61 = arith.addf %55, %60 : vector<32x128xf32>
    %62 = vector.extract_strided_slice %6 {offsets = [9, 0], sizes = [1, 128], strides = [1, 1]} : vector<32x128xf32> to vector<1x128xf32>
    %c9 = arith.constant 9 : index
    %c0_29 = arith.constant 0 : index
    %c0_30 = arith.constant 0 : index
    %63 = vector.load %arg4[%c9, %c0_29, %c0_30] : memref<32x32x128xf32, #tpu.memory_space<vmem>>, vector<1x32x128xf32>
    %64 = vector.shape_cast %63 : vector<1x32x128xf32> to vector<32x128xf32>
    %65 = vector.broadcast %62 : vector<1x128xf32> to vector<32x128xf32>
    %66 = arith.mulf %65, %64 : vector<32x128xf32>
    %67 = arith.addf %61, %66 : vector<32x128xf32>
    %68 = vector.extract_strided_slice %6 {offsets = [10, 0], sizes = [1, 128], strides = [1, 1]} : vector<32x128xf32> to vector<1x128xf32>
    %c10 = arith.constant 10 : index
    %c0_31 = arith.constant 0 : index
    %c0_32 = arith.constant 0 : index
    %69 = vector.load %arg4[%c10, %c0_31, %c0_32] : memref<32x32x128xf32, #tpu.memory_space<vmem>>, vector<1x32x128xf32>
    %70 = vector.shape_cast %69 : vector<1x32x128xf32> to vector<32x128xf32>
    %71 = vector.broadcast %68 : vector<1x128xf32> to vector<32x128xf32>
    %72 = arith.mulf %71, %70 : vector<32x128xf32>
    %73 = arith.addf %67, %72 : vector<32x128xf32>
    %74 = vector.extract_strided_slice %6 {offsets = [11, 0], sizes = [1, 128], strides = [1, 1]} : vector<32x128xf32> to vector<1x128xf32>
    %c11 = arith.constant 11 : index
    %c0_33 = arith.constant 0 : index
    %c0_34 = arith.constant 0 : index
    %75 = vector.load %arg4[%c11, %c0_33, %c0_34] : memref<32x32x128xf32, #tpu.memory_space<vmem>>, vector<1x32x128xf32>
    %76 = vector.shape_cast %75 : vector<1x32x128xf32> to vector<32x128xf32>
    %77 = vector.broadcast %74 : vector<1x128xf32> to vector<32x128xf32>
    %78 = arith.mulf %77, %76 : vector<32x128xf32>
    %79 = arith.addf %73, %78 : vector<32x128xf32>
    %80 = vector.extract_strided_slice %6 {offsets = [12, 0], sizes = [1, 128], strides = [1, 1]} : vector<32x128xf32> to vector<1x128xf32>
    %c12 = arith.constant 12 : index
    %c0_35 = arith.constant 0 : index
    %c0_36 = arith.constant 0 : index
    %81 = vector.load %arg4[%c12, %c0_35, %c0_36] : memref<32x32x128xf32, #tpu.memory_space<vmem>>, vector<1x32x128xf32>
    %82 = vector.shape_cast %81 : vector<1x32x128xf32> to vector<32x128xf32>
    %83 = vector.broadcast %80 : vector<1x128xf32> to vector<32x128xf32>
    %84 = arith.mulf %83, %82 : vector<32x128xf32>
    %85 = arith.addf %79, %84 : vector<32x128xf32>
    %86 = vector.extract_strided_slice %6 {offsets = [13, 0], sizes = [1, 128], strides = [1, 1]} : vector<32x128xf32> to vector<1x128xf32>
    %c13 = arith.constant 13 : index
    %c0_37 = arith.constant 0 : index
    %c0_38 = arith.constant 0 : index
    %87 = vector.load %arg4[%c13, %c0_37, %c0_38] : memref<32x32x128xf32, #tpu.memory_space<vmem>>, vector<1x32x128xf32>
    %88 = vector.shape_cast %87 : vector<1x32x128xf32> to vector<32x128xf32>
    %89 = vector.broadcast %86 : vector<1x128xf32> to vector<32x128xf32>
    %90 = arith.mulf %89, %88 : vector<32x128xf32>
    %91 = arith.addf %85, %90 : vector<32x128xf32>
    %92 = vector.extract_strided_slice %6 {offsets = [14, 0], sizes = [1, 128], strides = [1, 1]} : vector<32x128xf32> to vector<1x128xf32>
    %c14 = arith.constant 14 : index
    %c0_39 = arith.constant 0 : index
    %c0_40 = arith.constant 0 : index
    %93 = vector.load %arg4[%c14, %c0_39, %c0_40] : memref<32x32x128xf32, #tpu.memory_space<vmem>>, vector<1x32x128xf32>
    %94 = vector.shape_cast %93 : vector<1x32x128xf32> to vector<32x128xf32>
    %95 = vector.broadcast %92 : vector<1x128xf32> to vector<32x128xf32>
    %96 = arith.mulf %95, %94 : vector<32x128xf32>
    %97 = arith.addf %91, %96 : vector<32x128xf32>
    %98 = vector.extract_strided_slice %6 {offsets = [15, 0], sizes = [1, 128], strides = [1, 1]} : vector<32x128xf32> to vector<1x128xf32>
    %c15 = arith.constant 15 : index
    %c0_41 = arith.constant 0 : index
    %c0_42 = arith.constant 0 : index
    %99 = vector.load %arg4[%c15, %c0_41, %c0_42] : memref<32x32x128xf32, #tpu.memory_space<vmem>>, vector<1x32x128xf32>
    %100 = vector.shape_cast %99 : vector<1x32x128xf32> to vector<32x128xf32>
    %101 = vector.broadcast %98 : vector<1x128xf32> to vector<32x128xf32>
    %102 = arith.mulf %101, %100 : vector<32x128xf32>
    %103 = arith.addf %97, %102 : vector<32x128xf32>
    %104 = vector.extract_strided_slice %6 {offsets = [16, 0], sizes = [1, 128], strides = [1, 1]} : vector<32x128xf32> to vector<1x128xf32>
    %c16 = arith.constant 16 : index
    %c0_43 = arith.constant 0 : index
    %c0_44 = arith.constant 0 : index
    %105 = vector.load %arg4[%c16, %c0_43, %c0_44] : memref<32x32x128xf32, #tpu.memory_space<vmem>>, vector<1x32x128xf32>
    %106 = vector.shape_cast %105 : vector<1x32x128xf32> to vector<32x128xf32>
    %107 = vector.broadcast %104 : vector<1x128xf32> to vector<32x128xf32>
    %108 = arith.mulf %107, %106 : vector<32x128xf32>
    %109 = arith.addf %103, %108 : vector<32x128xf32>
    %110 = vector.extract_strided_slice %6 {offsets = [17, 0], sizes = [1, 128], strides = [1, 1]} : vector<32x128xf32> to vector<1x128xf32>
    %c17 = arith.constant 17 : index
    %c0_45 = arith.constant 0 : index
    %c0_46 = arith.constant 0 : index
    %111 = vector.load %arg4[%c17, %c0_45, %c0_46] : memref<32x32x128xf32, #tpu.memory_space<vmem>>, vector<1x32x128xf32>
    %112 = vector.shape_cast %111 : vector<1x32x128xf32> to vector<32x128xf32>
    %113 = vector.broadcast %110 : vector<1x128xf32> to vector<32x128xf32>
    %114 = arith.mulf %113, %112 : vector<32x128xf32>
    %115 = arith.addf %109, %114 : vector<32x128xf32>
    %116 = vector.extract_strided_slice %6 {offsets = [18, 0], sizes = [1, 128], strides = [1, 1]} : vector<32x128xf32> to vector<1x128xf32>
    %c18 = arith.constant 18 : index
    %c0_47 = arith.constant 0 : index
    %c0_48 = arith.constant 0 : index
    %117 = vector.load %arg4[%c18, %c0_47, %c0_48] : memref<32x32x128xf32, #tpu.memory_space<vmem>>, vector<1x32x128xf32>
    %118 = vector.shape_cast %117 : vector<1x32x128xf32> to vector<32x128xf32>
    %119 = vector.broadcast %116 : vector<1x128xf32> to vector<32x128xf32>
    %120 = arith.mulf %119, %118 : vector<32x128xf32>
    %121 = arith.addf %115, %120 : vector<32x128xf32>
    %122 = vector.extract_strided_slice %6 {offsets = [19, 0], sizes = [1, 128], strides = [1, 1]} : vector<32x128xf32> to vector<1x128xf32>
    %c19 = arith.constant 19 : index
    %c0_49 = arith.constant 0 : index
    %c0_50 = arith.constant 0 : index
    %123 = vector.load %arg4[%c19, %c0_49, %c0_50] : memref<32x32x128xf32, #tpu.memory_space<vmem>>, vector<1x32x128xf32>
    %124 = vector.shape_cast %123 : vector<1x32x128xf32> to vector<32x128xf32>
    %125 = vector.broadcast %122 : vector<1x128xf32> to vector<32x128xf32>
    %126 = arith.mulf %125, %124 : vector<32x128xf32>
    %127 = arith.addf %121, %126 : vector<32x128xf32>
    %128 = vector.extract_strided_slice %6 {offsets = [20, 0], sizes = [1, 128], strides = [1, 1]} : vector<32x128xf32> to vector<1x128xf32>
    %c20 = arith.constant 20 : index
    %c0_51 = arith.constant 0 : index
    %c0_52 = arith.constant 0 : index
    %129 = vector.load %arg4[%c20, %c0_51, %c0_52] : memref<32x32x128xf32, #tpu.memory_space<vmem>>, vector<1x32x128xf32>
    %130 = vector.shape_cast %129 : vector<1x32x128xf32> to vector<32x128xf32>
    %131 = vector.broadcast %128 : vector<1x128xf32> to vector<32x128xf32>
    %132 = arith.mulf %131, %130 : vector<32x128xf32>
    %133 = arith.addf %127, %132 : vector<32x128xf32>
    %134 = vector.extract_strided_slice %6 {offsets = [21, 0], sizes = [1, 128], strides = [1, 1]} : vector<32x128xf32> to vector<1x128xf32>
    %c21 = arith.constant 21 : index
    %c0_53 = arith.constant 0 : index
    %c0_54 = arith.constant 0 : index
    %135 = vector.load %arg4[%c21, %c0_53, %c0_54] : memref<32x32x128xf32, #tpu.memory_space<vmem>>, vector<1x32x128xf32>
    %136 = vector.shape_cast %135 : vector<1x32x128xf32> to vector<32x128xf32>
    %137 = vector.broadcast %134 : vector<1x128xf32> to vector<32x128xf32>
    %138 = arith.mulf %137, %136 : vector<32x128xf32>
    %139 = arith.addf %133, %138 : vector<32x128xf32>
    %140 = vector.extract_strided_slice %6 {offsets = [22, 0], sizes = [1, 128], strides = [1, 1]} : vector<32x128xf32> to vector<1x128xf32>
    %c22 = arith.constant 22 : index
    %c0_55 = arith.constant 0 : index
    %c0_56 = arith.constant 0 : index
    %141 = vector.load %arg4[%c22, %c0_55, %c0_56] : memref<32x32x128xf32, #tpu.memory_space<vmem>>, vector<1x32x128xf32>
    %142 = vector.shape_cast %141 : vector<1x32x128xf32> to vector<32x128xf32>
    %143 = vector.broadcast %140 : vector<1x128xf32> to vector<32x128xf32>
    %144 = arith.mulf %143, %142 : vector<32x128xf32>
    %145 = arith.addf %139, %144 : vector<32x128xf32>
    %146 = vector.extract_strided_slice %6 {offsets = [23, 0], sizes = [1, 128], strides = [1, 1]} : vector<32x128xf32> to vector<1x128xf32>
    %c23 = arith.constant 23 : index
    %c0_57 = arith.constant 0 : index
    %c0_58 = arith.constant 0 : index
    %147 = vector.load %arg4[%c23, %c0_57, %c0_58] : memref<32x32x128xf32, #tpu.memory_space<vmem>>, vector<1x32x128xf32>
    %148 = vector.shape_cast %147 : vector<1x32x128xf32> to vector<32x128xf32>
    %149 = vector.broadcast %146 : vector<1x128xf32> to vector<32x128xf32>
    %150 = arith.mulf %149, %148 : vector<32x128xf32>
    %151 = arith.addf %145, %150 : vector<32x128xf32>
    %152 = vector.extract_strided_slice %6 {offsets = [24, 0], sizes = [1, 128], strides = [1, 1]} : vector<32x128xf32> to vector<1x128xf32>
    %c24 = arith.constant 24 : index
    %c0_59 = arith.constant 0 : index
    %c0_60 = arith.constant 0 : index
    %153 = vector.load %arg4[%c24, %c0_59, %c0_60] : memref<32x32x128xf32, #tpu.memory_space<vmem>>, vector<1x32x128xf32>
    %154 = vector.shape_cast %153 : vector<1x32x128xf32> to vector<32x128xf32>
    %155 = vector.broadcast %152 : vector<1x128xf32> to vector<32x128xf32>
    %156 = arith.mulf %155, %154 : vector<32x128xf32>
    %157 = arith.addf %151, %156 : vector<32x128xf32>
    %158 = vector.extract_strided_slice %6 {offsets = [25, 0], sizes = [1, 128], strides = [1, 1]} : vector<32x128xf32> to vector<1x128xf32>
    %c25 = arith.constant 25 : index
    %c0_61 = arith.constant 0 : index
    %c0_62 = arith.constant 0 : index
    %159 = vector.load %arg4[%c25, %c0_61, %c0_62] : memref<32x32x128xf32, #tpu.memory_space<vmem>>, vector<1x32x128xf32>
    %160 = vector.shape_cast %159 : vector<1x32x128xf32> to vector<32x128xf32>
    %161 = vector.broadcast %158 : vector<1x128xf32> to vector<32x128xf32>
    %162 = arith.mulf %161, %160 : vector<32x128xf32>
    %163 = arith.addf %157, %162 : vector<32x128xf32>
    %164 = vector.extract_strided_slice %6 {offsets = [26, 0], sizes = [1, 128], strides = [1, 1]} : vector<32x128xf32> to vector<1x128xf32>
    %c26 = arith.constant 26 : index
    %c0_63 = arith.constant 0 : index
    %c0_64 = arith.constant 0 : index
    %165 = vector.load %arg4[%c26, %c0_63, %c0_64] : memref<32x32x128xf32, #tpu.memory_space<vmem>>, vector<1x32x128xf32>
    %166 = vector.shape_cast %165 : vector<1x32x128xf32> to vector<32x128xf32>
    %167 = vector.broadcast %164 : vector<1x128xf32> to vector<32x128xf32>
    %168 = arith.mulf %167, %166 : vector<32x128xf32>
    %169 = arith.addf %163, %168 : vector<32x128xf32>
    %170 = vector.extract_strided_slice %6 {offsets = [27, 0], sizes = [1, 128], strides = [1, 1]} : vector<32x128xf32> to vector<1x128xf32>
    %c27 = arith.constant 27 : index
    %c0_65 = arith.constant 0 : index
    %c0_66 = arith.constant 0 : index
    %171 = vector.load %arg4[%c27, %c0_65, %c0_66] : memref<32x32x128xf32, #tpu.memory_space<vmem>>, vector<1x32x128xf32>
    %172 = vector.shape_cast %171 : vector<1x32x128xf32> to vector<32x128xf32>
    %173 = vector.broadcast %170 : vector<1x128xf32> to vector<32x128xf32>
    %174 = arith.mulf %173, %172 : vector<32x128xf32>
    %175 = arith.addf %169, %174 : vector<32x128xf32>
    %176 = vector.extract_strided_slice %6 {offsets = [28, 0], sizes = [1, 128], strides = [1, 1]} : vector<32x128xf32> to vector<1x128xf32>
    %c28 = arith.constant 28 : index
    %c0_67 = arith.constant 0 : index
    %c0_68 = arith.constant 0 : index
    %177 = vector.load %arg4[%c28, %c0_67, %c0_68] : memref<32x32x128xf32, #tpu.memory_space<vmem>>, vector<1x32x128xf32>
    %178 = vector.shape_cast %177 : vector<1x32x128xf32> to vector<32x128xf32>
    %179 = vector.broadcast %176 : vector<1x128xf32> to vector<32x128xf32>
    %180 = arith.mulf %179, %178 : vector<32x128xf32>
    %181 = arith.addf %175, %180 : vector<32x128xf32>
    %182 = vector.extract_strided_slice %6 {offsets = [29, 0], sizes = [1, 128], strides = [1, 1]} : vector<32x128xf32> to vector<1x128xf32>
    %c29 = arith.constant 29 : index
    %c0_69 = arith.constant 0 : index
    %c0_70 = arith.constant 0 : index
    %183 = vector.load %arg4[%c29, %c0_69, %c0_70] : memref<32x32x128xf32, #tpu.memory_space<vmem>>, vector<1x32x128xf32>
    %184 = vector.shape_cast %183 : vector<1x32x128xf32> to vector<32x128xf32>
    %185 = vector.broadcast %182 : vector<1x128xf32> to vector<32x128xf32>
    %186 = arith.mulf %185, %184 : vector<32x128xf32>
    %187 = arith.addf %181, %186 : vector<32x128xf32>
    %188 = vector.extract_strided_slice %6 {offsets = [30, 0], sizes = [1, 128], strides = [1, 1]} : vector<32x128xf32> to vector<1x128xf32>
    %c30 = arith.constant 30 : index
    %c0_71 = arith.constant 0 : index
    %c0_72 = arith.constant 0 : index
    %189 = vector.load %arg4[%c30, %c0_71, %c0_72] : memref<32x32x128xf32, #tpu.memory_space<vmem>>, vector<1x32x128xf32>
    %190 = vector.shape_cast %189 : vector<1x32x128xf32> to vector<32x128xf32>
    %191 = vector.broadcast %188 : vector<1x128xf32> to vector<32x128xf32>
    %192 = arith.mulf %191, %190 : vector<32x128xf32>
    %193 = arith.addf %187, %192 : vector<32x128xf32>
    %194 = vector.extract_strided_slice %6 {offsets = [31, 0], sizes = [1, 128], strides = [1, 1]} : vector<32x128xf32> to vector<1x128xf32>
    %c31 = arith.constant 31 : index
    %c0_73 = arith.constant 0 : index
    %c0_74 = arith.constant 0 : index
    %195 = vector.load %arg4[%c31, %c0_73, %c0_74] : memref<32x32x128xf32, #tpu.memory_space<vmem>>, vector<1x32x128xf32>
    %196 = vector.shape_cast %195 : vector<1x32x128xf32> to vector<32x128xf32>
    %197 = vector.broadcast %194 : vector<1x128xf32> to vector<32x128xf32>
    %198 = arith.mulf %197, %196 : vector<32x128xf32>
    %199 = arith.addf %193, %198 : vector<32x128xf32>
    %200 = vector.extract_strided_slice %2 {offsets = [0, 0], sizes = [32, 1], strides = [1, 1]} : vector<32x8xf32> to vector<32x1xf32>
    %201 = vector.broadcast %200 : vector<32x1xf32> to vector<32x128xf32>
    %202 = arith.addf %199, %201 : vector<32x128xf32>
    %cst_75 = arith.constant 0.000000e+00 : f32
    %203 = vector.broadcast %cst_75 : f32 to vector<32x128xf32>
    %204 = arith.maximumf %202, %203 : vector<32x128xf32>
    %205 = arith.mulf %204, %1 : vector<32x128xf32>
    %cst_76 = arith.constant dense<0.000000e+00> : vector<128xf32>
    %206 = vector.multi_reduction <add>, %205, %cst_76 [0] : vector<32x128xf32> to vector<128xf32>
    %207 = vector.shape_cast %206 : vector<128xf32> to vector<1x128xf32>
    %c1_77 = arith.constant 1 : index
    %c0_78 = arith.constant 0 : index
    %c0_79 = arith.constant 0 : index
    %208 = vector.load %arg2[%c1_77, %c0_78, %c0_79] : memref<8x32x128xf32, #tpu.memory_space<vmem>>, vector<1x32x128xf32>
    %209 = vector.shape_cast %208 : vector<1x32x128xf32> to vector<32x128xf32>
    %210 = arith.mulf %0, %209 : vector<32x128xf32>
    %cst_80 = arith.constant 0.000000e+00 : f32
    %211 = vector.broadcast %cst_80 : f32 to vector<32x128xf32>
    %212 = vector.extract_strided_slice %210 {offsets = [0, 0], sizes = [1, 128], strides = [1, 1]} : vector<32x128xf32> to vector<1x128xf32>
    %c0_81 = arith.constant 0 : index
    %c0_82 = arith.constant 0 : index
    %c0_83 = arith.constant 0 : index
    %213 = vector.load %arg4[%c0_81, %c0_82, %c0_83] : memref<32x32x128xf32, #tpu.memory_space<vmem>>, vector<1x32x128xf32>
    %214 = vector.shape_cast %213 : vector<1x32x128xf32> to vector<32x128xf32>
    %215 = vector.broadcast %212 : vector<1x128xf32> to vector<32x128xf32>
    %216 = arith.mulf %215, %214 : vector<32x128xf32>
    %217 = arith.addf %211, %216 : vector<32x128xf32>
    %218 = vector.extract_strided_slice %210 {offsets = [1, 0], sizes = [1, 128], strides = [1, 1]} : vector<32x128xf32> to vector<1x128xf32>
    %c1_84 = arith.constant 1 : index
    %c0_85 = arith.constant 0 : index
    %c0_86 = arith.constant 0 : index
    %219 = vector.load %arg4[%c1_84, %c0_85, %c0_86] : memref<32x32x128xf32, #tpu.memory_space<vmem>>, vector<1x32x128xf32>
    %220 = vector.shape_cast %219 : vector<1x32x128xf32> to vector<32x128xf32>
    %221 = vector.broadcast %218 : vector<1x128xf32> to vector<32x128xf32>
    %222 = arith.mulf %221, %220 : vector<32x128xf32>
    %223 = arith.addf %217, %222 : vector<32x128xf32>
    %224 = vector.extract_strided_slice %210 {offsets = [2, 0], sizes = [1, 128], strides = [1, 1]} : vector<32x128xf32> to vector<1x128xf32>
    %c2_87 = arith.constant 2 : index
    %c0_88 = arith.constant 0 : index
    %c0_89 = arith.constant 0 : index
    %225 = vector.load %arg4[%c2_87, %c0_88, %c0_89] : memref<32x32x128xf32, #tpu.memory_space<vmem>>, vector<1x32x128xf32>
    %226 = vector.shape_cast %225 : vector<1x32x128xf32> to vector<32x128xf32>
    %227 = vector.broadcast %224 : vector<1x128xf32> to vector<32x128xf32>
    %228 = arith.mulf %227, %226 : vector<32x128xf32>
    %229 = arith.addf %223, %228 : vector<32x128xf32>
    %230 = vector.extract_strided_slice %210 {offsets = [3, 0], sizes = [1, 128], strides = [1, 1]} : vector<32x128xf32> to vector<1x128xf32>
    %c3_90 = arith.constant 3 : index
    %c0_91 = arith.constant 0 : index
    %c0_92 = arith.constant 0 : index
    %231 = vector.load %arg4[%c3_90, %c0_91, %c0_92] : memref<32x32x128xf32, #tpu.memory_space<vmem>>, vector<1x32x128xf32>
    %232 = vector.shape_cast %231 : vector<1x32x128xf32> to vector<32x128xf32>
    %233 = vector.broadcast %230 : vector<1x128xf32> to vector<32x128xf32>
    %234 = arith.mulf %233, %232 : vector<32x128xf32>
    %235 = arith.addf %229, %234 : vector<32x128xf32>
    %236 = vector.extract_strided_slice %210 {offsets = [4, 0], sizes = [1, 128], strides = [1, 1]} : vector<32x128xf32> to vector<1x128xf32>
    %c4_93 = arith.constant 4 : index
    %c0_94 = arith.constant 0 : index
    %c0_95 = arith.constant 0 : index
    %237 = vector.load %arg4[%c4_93, %c0_94, %c0_95] : memref<32x32x128xf32, #tpu.memory_space<vmem>>, vector<1x32x128xf32>
    %238 = vector.shape_cast %237 : vector<1x32x128xf32> to vector<32x128xf32>
    %239 = vector.broadcast %236 : vector<1x128xf32> to vector<32x128xf32>
    %240 = arith.mulf %239, %238 : vector<32x128xf32>
    %241 = arith.addf %235, %240 : vector<32x128xf32>
    %242 = vector.extract_strided_slice %210 {offsets = [5, 0], sizes = [1, 128], strides = [1, 1]} : vector<32x128xf32> to vector<1x128xf32>
    %c5_96 = arith.constant 5 : index
    %c0_97 = arith.constant 0 : index
    %c0_98 = arith.constant 0 : index
    %243 = vector.load %arg4[%c5_96, %c0_97, %c0_98] : memref<32x32x128xf32, #tpu.memory_space<vmem>>, vector<1x32x128xf32>
    %244 = vector.shape_cast %243 : vector<1x32x128xf32> to vector<32x128xf32>
    %245 = vector.broadcast %242 : vector<1x128xf32> to vector<32x128xf32>
    %246 = arith.mulf %245, %244 : vector<32x128xf32>
    %247 = arith.addf %241, %246 : vector<32x128xf32>
    %248 = vector.extract_strided_slice %210 {offsets = [6, 0], sizes = [1, 128], strides = [1, 1]} : vector<32x128xf32> to vector<1x128xf32>
    %c6_99 = arith.constant 6 : index
    %c0_100 = arith.constant 0 : index
    %c0_101 = arith.constant 0 : index
    %249 = vector.load %arg4[%c6_99, %c0_100, %c0_101] : memref<32x32x128xf32, #tpu.memory_space<vmem>>, vector<1x32x128xf32>
    %250 = vector.shape_cast %249 : vector<1x32x128xf32> to vector<32x128xf32>
    %251 = vector.broadcast %248 : vector<1x128xf32> to vector<32x128xf32>
    %252 = arith.mulf %251, %250 : vector<32x128xf32>
    %253 = arith.addf %247, %252 : vector<32x128xf32>
    %254 = vector.extract_strided_slice %210 {offsets = [7, 0], sizes = [1, 128], strides = [1, 1]} : vector<32x128xf32> to vector<1x128xf32>
    %c7_102 = arith.constant 7 : index
    %c0_103 = arith.constant 0 : index
    %c0_104 = arith.constant 0 : index
    %255 = vector.load %arg4[%c7_102, %c0_103, %c0_104] : memref<32x32x128xf32, #tpu.memory_space<vmem>>, vector<1x32x128xf32>
    %256 = vector.shape_cast %255 : vector<1x32x128xf32> to vector<32x128xf32>
    %257 = vector.broadcast %254 : vector<1x128xf32> to vector<32x128xf32>
    %258 = arith.mulf %257, %256 : vector<32x128xf32>
    %259 = arith.addf %253, %258 : vector<32x128xf32>
    %260 = vector.extract_strided_slice %210 {offsets = [8, 0], sizes = [1, 128], strides = [1, 1]} : vector<32x128xf32> to vector<1x128xf32>
    %c8_105 = arith.constant 8 : index
    %c0_106 = arith.constant 0 : index
    %c0_107 = arith.constant 0 : index
    %261 = vector.load %arg4[%c8_105, %c0_106, %c0_107] : memref<32x32x128xf32, #tpu.memory_space<vmem>>, vector<1x32x128xf32>
    %262 = vector.shape_cast %261 : vector<1x32x128xf32> to vector<32x128xf32>
    %263 = vector.broadcast %260 : vector<1x128xf32> to vector<32x128xf32>
    %264 = arith.mulf %263, %262 : vector<32x128xf32>
    %265 = arith.addf %259, %264 : vector<32x128xf32>
    %266 = vector.extract_strided_slice %210 {offsets = [9, 0], sizes = [1, 128], strides = [1, 1]} : vector<32x128xf32> to vector<1x128xf32>
    %c9_108 = arith.constant 9 : index
    %c0_109 = arith.constant 0 : index
    %c0_110 = arith.constant 0 : index
    %267 = vector.load %arg4[%c9_108, %c0_109, %c0_110] : memref<32x32x128xf32, #tpu.memory_space<vmem>>, vector<1x32x128xf32>
    %268 = vector.shape_cast %267 : vector<1x32x128xf32> to vector<32x128xf32>
    %269 = vector.broadcast %266 : vector<1x128xf32> to vector<32x128xf32>
    %270 = arith.mulf %269, %268 : vector<32x128xf32>
    %271 = arith.addf %265, %270 : vector<32x128xf32>
    %272 = vector.extract_strided_slice %210 {offsets = [10, 0], sizes = [1, 128], strides = [1, 1]} : vector<32x128xf32> to vector<1x128xf32>
    %c10_111 = arith.constant 10 : index
    %c0_112 = arith.constant 0 : index
    %c0_113 = arith.constant 0 : index
    %273 = vector.load %arg4[%c10_111, %c0_112, %c0_113] : memref<32x32x128xf32, #tpu.memory_space<vmem>>, vector<1x32x128xf32>
    %274 = vector.shape_cast %273 : vector<1x32x128xf32> to vector<32x128xf32>
    %275 = vector.broadcast %272 : vector<1x128xf32> to vector<32x128xf32>
    %276 = arith.mulf %275, %274 : vector<32x128xf32>
    %277 = arith.addf %271, %276 : vector<32x128xf32>
    %278 = vector.extract_strided_slice %210 {offsets = [11, 0], sizes = [1, 128], strides = [1, 1]} : vector<32x128xf32> to vector<1x128xf32>
    %c11_114 = arith.constant 11 : index
    %c0_115 = arith.constant 0 : index
    %c0_116 = arith.constant 0 : index
    %279 = vector.load %arg4[%c11_114, %c0_115, %c0_116] : memref<32x32x128xf32, #tpu.memory_space<vmem>>, vector<1x32x128xf32>
    %280 = vector.shape_cast %279 : vector<1x32x128xf32> to vector<32x128xf32>
    %281 = vector.broadcast %278 : vector<1x128xf32> to vector<32x128xf32>
    %282 = arith.mulf %281, %280 : vector<32x128xf32>
    %283 = arith.addf %277, %282 : vector<32x128xf32>
    %284 = vector.extract_strided_slice %210 {offsets = [12, 0], sizes = [1, 128], strides = [1, 1]} : vector<32x128xf32> to vector<1x128xf32>
    %c12_117 = arith.constant 12 : index
    %c0_118 = arith.constant 0 : index
    %c0_119 = arith.constant 0 : index
    %285 = vector.load %arg4[%c12_117, %c0_118, %c0_119] : memref<32x32x128xf32, #tpu.memory_space<vmem>>, vector<1x32x128xf32>
    %286 = vector.shape_cast %285 : vector<1x32x128xf32> to vector<32x128xf32>
    %287 = vector.broadcast %284 : vector<1x128xf32> to vector<32x128xf32>
    %288 = arith.mulf %287, %286 : vector<32x128xf32>
    %289 = arith.addf %283, %288 : vector<32x128xf32>
    %290 = vector.extract_strided_slice %210 {offsets = [13, 0], sizes = [1, 128], strides = [1, 1]} : vector<32x128xf32> to vector<1x128xf32>
    %c13_120 = arith.constant 13 : index
    %c0_121 = arith.constant 0 : index
    %c0_122 = arith.constant 0 : index
    %291 = vector.load %arg4[%c13_120, %c0_121, %c0_122] : memref<32x32x128xf32, #tpu.memory_space<vmem>>, vector<1x32x128xf32>
    %292 = vector.shape_cast %291 : vector<1x32x128xf32> to vector<32x128xf32>
    %293 = vector.broadcast %290 : vector<1x128xf32> to vector<32x128xf32>
    %294 = arith.mulf %293, %292 : vector<32x128xf32>
    %295 = arith.addf %289, %294 : vector<32x128xf32>
    %296 = vector.extract_strided_slice %210 {offsets = [14, 0], sizes = [1, 128], strides = [1, 1]} : vector<32x128xf32> to vector<1x128xf32>
    %c14_123 = arith.constant 14 : index
    %c0_124 = arith.constant 0 : index
    %c0_125 = arith.constant 0 : index
    %297 = vector.load %arg4[%c14_123, %c0_124, %c0_125] : memref<32x32x128xf32, #tpu.memory_space<vmem>>, vector<1x32x128xf32>
    %298 = vector.shape_cast %297 : vector<1x32x128xf32> to vector<32x128xf32>
    %299 = vector.broadcast %296 : vector<1x128xf32> to vector<32x128xf32>
    %300 = arith.mulf %299, %298 : vector<32x128xf32>
    %301 = arith.addf %295, %300 : vector<32x128xf32>
    %302 = vector.extract_strided_slice %210 {offsets = [15, 0], sizes = [1, 128], strides = [1, 1]} : vector<32x128xf32> to vector<1x128xf32>
    %c15_126 = arith.constant 15 : index
    %c0_127 = arith.constant 0 : index
    %c0_128 = arith.constant 0 : index
    %303 = vector.load %arg4[%c15_126, %c0_127, %c0_128] : memref<32x32x128xf32, #tpu.memory_space<vmem>>, vector<1x32x128xf32>
    %304 = vector.shape_cast %303 : vector<1x32x128xf32> to vector<32x128xf32>
    %305 = vector.broadcast %302 : vector<1x128xf32> to vector<32x128xf32>
    %306 = arith.mulf %305, %304 : vector<32x128xf32>
    %307 = arith.addf %301, %306 : vector<32x128xf32>
    %308 = vector.extract_strided_slice %210 {offsets = [16, 0], sizes = [1, 128], strides = [1, 1]} : vector<32x128xf32> to vector<1x128xf32>
    %c16_129 = arith.constant 16 : index
    %c0_130 = arith.constant 0 : index
    %c0_131 = arith.constant 0 : index
    %309 = vector.load %arg4[%c16_129, %c0_130, %c0_131] : memref<32x32x128xf32, #tpu.memory_space<vmem>>, vector<1x32x128xf32>
    %310 = vector.shape_cast %309 : vector<1x32x128xf32> to vector<32x128xf32>
    %311 = vector.broadcast %308 : vector<1x128xf32> to vector<32x128xf32>
    %312 = arith.mulf %311, %310 : vector<32x128xf32>
    %313 = arith.addf %307, %312 : vector<32x128xf32>
    %314 = vector.extract_strided_slice %210 {offsets = [17, 0], sizes = [1, 128], strides = [1, 1]} : vector<32x128xf32> to vector<1x128xf32>
    %c17_132 = arith.constant 17 : index
    %c0_133 = arith.constant 0 : index
    %c0_134 = arith.constant 0 : index
    %315 = vector.load %arg4[%c17_132, %c0_133, %c0_134] : memref<32x32x128xf32, #tpu.memory_space<vmem>>, vector<1x32x128xf32>
    %316 = vector.shape_cast %315 : vector<1x32x128xf32> to vector<32x128xf32>
    %317 = vector.broadcast %314 : vector<1x128xf32> to vector<32x128xf32>
    %318 = arith.mulf %317, %316 : vector<32x128xf32>
    %319 = arith.addf %313, %318 : vector<32x128xf32>
    %320 = vector.extract_strided_slice %210 {offsets = [18, 0], sizes = [1, 128], strides = [1, 1]} : vector<32x128xf32> to vector<1x128xf32>
    %c18_135 = arith.constant 18 : index
    %c0_136 = arith.constant 0 : index
    %c0_137 = arith.constant 0 : index
    %321 = vector.load %arg4[%c18_135, %c0_136, %c0_137] : memref<32x32x128xf32, #tpu.memory_space<vmem>>, vector<1x32x128xf32>
    %322 = vector.shape_cast %321 : vector<1x32x128xf32> to vector<32x128xf32>
    %323 = vector.broadcast %320 : vector<1x128xf32> to vector<32x128xf32>
    %324 = arith.mulf %323, %322 : vector<32x128xf32>
    %325 = arith.addf %319, %324 : vector<32x128xf32>
    %326 = vector.extract_strided_slice %210 {offsets = [19, 0], sizes = [1, 128], strides = [1, 1]} : vector<32x128xf32> to vector<1x128xf32>
    %c19_138 = arith.constant 19 : index
    %c0_139 = arith.constant 0 : index
    %c0_140 = arith.constant 0 : index
    %327 = vector.load %arg4[%c19_138, %c0_139, %c0_140] : memref<32x32x128xf32, #tpu.memory_space<vmem>>, vector<1x32x128xf32>
    %328 = vector.shape_cast %327 : vector<1x32x128xf32> to vector<32x128xf32>
    %329 = vector.broadcast %326 : vector<1x128xf32> to vector<32x128xf32>
    %330 = arith.mulf %329, %328 : vector<32x128xf32>
    %331 = arith.addf %325, %330 : vector<32x128xf32>
    %332 = vector.extract_strided_slice %210 {offsets = [20, 0], sizes = [1, 128], strides = [1, 1]} : vector<32x128xf32> to vector<1x128xf32>
    %c20_141 = arith.constant 20 : index
    %c0_142 = arith.constant 0 : index
    %c0_143 = arith.constant 0 : index
    %333 = vector.load %arg4[%c20_141, %c0_142, %c0_143] : memref<32x32x128xf32, #tpu.memory_space<vmem>>, vector<1x32x128xf32>
    %334 = vector.shape_cast %333 : vector<1x32x128xf32> to vector<32x128xf32>
    %335 = vector.broadcast %332 : vector<1x128xf32> to vector<32x128xf32>
    %336 = arith.mulf %335, %334 : vector<32x128xf32>
    %337 = arith.addf %331, %336 : vector<32x128xf32>
    %338 = vector.extract_strided_slice %210 {offsets = [21, 0], sizes = [1, 128], strides = [1, 1]} : vector<32x128xf32> to vector<1x128xf32>
    %c21_144 = arith.constant 21 : index
    %c0_145 = arith.constant 0 : index
    %c0_146 = arith.constant 0 : index
    %339 = vector.load %arg4[%c21_144, %c0_145, %c0_146] : memref<32x32x128xf32, #tpu.memory_space<vmem>>, vector<1x32x128xf32>
    %340 = vector.shape_cast %339 : vector<1x32x128xf32> to vector<32x128xf32>
    %341 = vector.broadcast %338 : vector<1x128xf32> to vector<32x128xf32>
    %342 = arith.mulf %341, %340 : vector<32x128xf32>
    %343 = arith.addf %337, %342 : vector<32x128xf32>
    %344 = vector.extract_strided_slice %210 {offsets = [22, 0], sizes = [1, 128], strides = [1, 1]} : vector<32x128xf32> to vector<1x128xf32>
    %c22_147 = arith.constant 22 : index
    %c0_148 = arith.constant 0 : index
    %c0_149 = arith.constant 0 : index
    %345 = vector.load %arg4[%c22_147, %c0_148, %c0_149] : memref<32x32x128xf32, #tpu.memory_space<vmem>>, vector<1x32x128xf32>
    %346 = vector.shape_cast %345 : vector<1x32x128xf32> to vector<32x128xf32>
    %347 = vector.broadcast %344 : vector<1x128xf32> to vector<32x128xf32>
    %348 = arith.mulf %347, %346 : vector<32x128xf32>
    %349 = arith.addf %343, %348 : vector<32x128xf32>
    %350 = vector.extract_strided_slice %210 {offsets = [23, 0], sizes = [1, 128], strides = [1, 1]} : vector<32x128xf32> to vector<1x128xf32>
    %c23_150 = arith.constant 23 : index
    %c0_151 = arith.constant 0 : index
    %c0_152 = arith.constant 0 : index
    %351 = vector.load %arg4[%c23_150, %c0_151, %c0_152] : memref<32x32x128xf32, #tpu.memory_space<vmem>>, vector<1x32x128xf32>
    %352 = vector.shape_cast %351 : vector<1x32x128xf32> to vector<32x128xf32>
    %353 = vector.broadcast %350 : vector<1x128xf32> to vector<32x128xf32>
    %354 = arith.mulf %353, %352 : vector<32x128xf32>
    %355 = arith.addf %349, %354 : vector<32x128xf32>
    %356 = vector.extract_strided_slice %210 {offsets = [24, 0], sizes = [1, 128], strides = [1, 1]} : vector<32x128xf32> to vector<1x128xf32>
    %c24_153 = arith.constant 24 : index
    %c0_154 = arith.constant 0 : index
    %c0_155 = arith.constant 0 : index
    %357 = vector.load %arg4[%c24_153, %c0_154, %c0_155] : memref<32x32x128xf32, #tpu.memory_space<vmem>>, vector<1x32x128xf32>
    %358 = vector.shape_cast %357 : vector<1x32x128xf32> to vector<32x128xf32>
    %359 = vector.broadcast %356 : vector<1x128xf32> to vector<32x128xf32>
    %360 = arith.mulf %359, %358 : vector<32x128xf32>
    %361 = arith.addf %355, %360 : vector<32x128xf32>
    %362 = vector.extract_strided_slice %210 {offsets = [25, 0], sizes = [1, 128], strides = [1, 1]} : vector<32x128xf32> to vector<1x128xf32>
    %c25_156 = arith.constant 25 : index
    %c0_157 = arith.constant 0 : index
    %c0_158 = arith.constant 0 : index
    %363 = vector.load %arg4[%c25_156, %c0_157, %c0_158] : memref<32x32x128xf32, #tpu.memory_space<vmem>>, vector<1x32x128xf32>
    %364 = vector.shape_cast %363 : vector<1x32x128xf32> to vector<32x128xf32>
    %365 = vector.broadcast %362 : vector<1x128xf32> to vector<32x128xf32>
    %366 = arith.mulf %365, %364 : vector<32x128xf32>
    %367 = arith.addf %361, %366 : vector<32x128xf32>
    %368 = vector.extract_strided_slice %210 {offsets = [26, 0], sizes = [1, 128], strides = [1, 1]} : vector<32x128xf32> to vector<1x128xf32>
    %c26_159 = arith.constant 26 : index
    %c0_160 = arith.constant 0 : index
    %c0_161 = arith.constant 0 : index
    %369 = vector.load %arg4[%c26_159, %c0_160, %c0_161] : memref<32x32x128xf32, #tpu.memory_space<vmem>>, vector<1x32x128xf32>
    %370 = vector.shape_cast %369 : vector<1x32x128xf32> to vector<32x128xf32>
    %371 = vector.broadcast %368 : vector<1x128xf32> to vector<32x128xf32>
    %372 = arith.mulf %371, %370 : vector<32x128xf32>
    %373 = arith.addf %367, %372 : vector<32x128xf32>
    %374 = vector.extract_strided_slice %210 {offsets = [27, 0], sizes = [1, 128], strides = [1, 1]} : vector<32x128xf32> to vector<1x128xf32>
    %c27_162 = arith.constant 27 : index
    %c0_163 = arith.constant 0 : index
    %c0_164 = arith.constant 0 : index
    %375 = vector.load %arg4[%c27_162, %c0_163, %c0_164] : memref<32x32x128xf32, #tpu.memory_space<vmem>>, vector<1x32x128xf32>
    %376 = vector.shape_cast %375 : vector<1x32x128xf32> to vector<32x128xf32>
    %377 = vector.broadcast %374 : vector<1x128xf32> to vector<32x128xf32>
    %378 = arith.mulf %377, %376 : vector<32x128xf32>
    %379 = arith.addf %373, %378 : vector<32x128xf32>
    %380 = vector.extract_strided_slice %210 {offsets = [28, 0], sizes = [1, 128], strides = [1, 1]} : vector<32x128xf32> to vector<1x128xf32>
    %c28_165 = arith.constant 28 : index
    %c0_166 = arith.constant 0 : index
    %c0_167 = arith.constant 0 : index
    %381 = vector.load %arg4[%c28_165, %c0_166, %c0_167] : memref<32x32x128xf32, #tpu.memory_space<vmem>>, vector<1x32x128xf32>
    %382 = vector.shape_cast %381 : vector<1x32x128xf32> to vector<32x128xf32>
    %383 = vector.broadcast %380 : vector<1x128xf32> to vector<32x128xf32>
    %384 = arith.mulf %383, %382 : vector<32x128xf32>
    %385 = arith.addf %379, %384 : vector<32x128xf32>
    %386 = vector.extract_strided_slice %210 {offsets = [29, 0], sizes = [1, 128], strides = [1, 1]} : vector<32x128xf32> to vector<1x128xf32>
    %c29_168 = arith.constant 29 : index
    %c0_169 = arith.constant 0 : index
    %c0_170 = arith.constant 0 : index
    %387 = vector.load %arg4[%c29_168, %c0_169, %c0_170] : memref<32x32x128xf32, #tpu.memory_space<vmem>>, vector<1x32x128xf32>
    %388 = vector.shape_cast %387 : vector<1x32x128xf32> to vector<32x128xf32>
    %389 = vector.broadcast %386 : vector<1x128xf32> to vector<32x128xf32>
    %390 = arith.mulf %389, %388 : vector<32x128xf32>
    %391 = arith.addf %385, %390 : vector<32x128xf32>
    %392 = vector.extract_strided_slice %210 {offsets = [30, 0], sizes = [1, 128], strides = [1, 1]} : vector<32x128xf32> to vector<1x128xf32>
    %c30_171 = arith.constant 30 : index
    %c0_172 = arith.constant 0 : index
    %c0_173 = arith.constant 0 : index
    %393 = vector.load %arg4[%c30_171, %c0_172, %c0_173] : memref<32x32x128xf32, #tpu.memory_space<vmem>>, vector<1x32x128xf32>
    %394 = vector.shape_cast %393 : vector<1x32x128xf32> to vector<32x128xf32>
    %395 = vector.broadcast %392 : vector<1x128xf32> to vector<32x128xf32>
    %396 = arith.mulf %395, %394 : vector<32x128xf32>
    %397 = arith.addf %391, %396 : vector<32x128xf32>
    %398 = vector.extract_strided_slice %210 {offsets = [31, 0], sizes = [1, 128], strides = [1, 1]} : vector<32x128xf32> to vector<1x128xf32>
    %c31_174 = arith.constant 31 : index
    %c0_175 = arith.constant 0 : index
    %c0_176 = arith.constant 0 : index
    %399 = vector.load %arg4[%c31_174, %c0_175, %c0_176] : memref<32x32x128xf32, #tpu.memory_space<vmem>>, vector<1x32x128xf32>
    %400 = vector.shape_cast %399 : vector<1x32x128xf32> to vector<32x128xf32>
    %401 = vector.broadcast %398 : vector<1x128xf32> to vector<32x128xf32>
    %402 = arith.mulf %401, %400 : vector<32x128xf32>
    %403 = arith.addf %397, %402 : vector<32x128xf32>
    %404 = vector.extract_strided_slice %2 {offsets = [0, 1], sizes = [32, 1], strides = [1, 1]} : vector<32x8xf32> to vector<32x1xf32>
    %405 = vector.broadcast %404 : vector<32x1xf32> to vector<32x128xf32>
    %406 = arith.addf %403, %405 : vector<32x128xf32>
    %cst_177 = arith.constant 0.000000e+00 : f32
    %407 = vector.broadcast %cst_177 : f32 to vector<32x128xf32>
    %408 = arith.maximumf %406, %407 : vector<32x128xf32>
    %409 = arith.mulf %408, %1 : vector<32x128xf32>
    %cst_178 = arith.constant dense<0.000000e+00> : vector<128xf32>
    %410 = vector.multi_reduction <add>, %409, %cst_178 [0] : vector<32x128xf32> to vector<128xf32>
    %411 = vector.shape_cast %410 : vector<128xf32> to vector<1x128xf32>
    %c2_179 = arith.constant 2 : index
    %c0_180 = arith.constant 0 : index
    %c0_181 = arith.constant 0 : index
    %412 = vector.load %arg2[%c2_179, %c0_180, %c0_181] : memref<8x32x128xf32, #tpu.memory_space<vmem>>, vector<1x32x128xf32>
    %413 = vector.shape_cast %412 : vector<1x32x128xf32> to vector<32x128xf32>
    %414 = arith.mulf %0, %413 : vector<32x128xf32>
    %cst_182 = arith.constant 0.000000e+00 : f32
    %415 = vector.broadcast %cst_182 : f32 to vector<32x128xf32>
    %416 = vector.extract_strided_slice %414 {offsets = [0, 0], sizes = [1, 128], strides = [1, 1]} : vector<32x128xf32> to vector<1x128xf32>
    %c0_183 = arith.constant 0 : index
    %c0_184 = arith.constant 0 : index
    %c0_185 = arith.constant 0 : index
    %417 = vector.load %arg4[%c0_183, %c0_184, %c0_185] : memref<32x32x128xf32, #tpu.memory_space<vmem>>, vector<1x32x128xf32>
    %418 = vector.shape_cast %417 : vector<1x32x128xf32> to vector<32x128xf32>
    %419 = vector.broadcast %416 : vector<1x128xf32> to vector<32x128xf32>
    %420 = arith.mulf %419, %418 : vector<32x128xf32>
    %421 = arith.addf %415, %420 : vector<32x128xf32>
    %422 = vector.extract_strided_slice %414 {offsets = [1, 0], sizes = [1, 128], strides = [1, 1]} : vector<32x128xf32> to vector<1x128xf32>
    %c1_186 = arith.constant 1 : index
    %c0_187 = arith.constant 0 : index
    %c0_188 = arith.constant 0 : index
    %423 = vector.load %arg4[%c1_186, %c0_187, %c0_188] : memref<32x32x128xf32, #tpu.memory_space<vmem>>, vector<1x32x128xf32>
    %424 = vector.shape_cast %423 : vector<1x32x128xf32> to vector<32x128xf32>
    %425 = vector.broadcast %422 : vector<1x128xf32> to vector<32x128xf32>
    %426 = arith.mulf %425, %424 : vector<32x128xf32>
    %427 = arith.addf %421, %426 : vector<32x128xf32>
    %428 = vector.extract_strided_slice %414 {offsets = [2, 0], sizes = [1, 128], strides = [1, 1]} : vector<32x128xf32> to vector<1x128xf32>
    %c2_189 = arith.constant 2 : index
    %c0_190 = arith.constant 0 : index
    %c0_191 = arith.constant 0 : index
    %429 = vector.load %arg4[%c2_189, %c0_190, %c0_191] : memref<32x32x128xf32, #tpu.memory_space<vmem>>, vector<1x32x128xf32>
    %430 = vector.shape_cast %429 : vector<1x32x128xf32> to vector<32x128xf32>
    %431 = vector.broadcast %428 : vector<1x128xf32> to vector<32x128xf32>
    %432 = arith.mulf %431, %430 : vector<32x128xf32>
    %433 = arith.addf %427, %432 : vector<32x128xf32>
    %434 = vector.extract_strided_slice %414 {offsets = [3, 0], sizes = [1, 128], strides = [1, 1]} : vector<32x128xf32> to vector<1x128xf32>
    %c3_192 = arith.constant 3 : index
    %c0_193 = arith.constant 0 : index
    %c0_194 = arith.constant 0 : index
    %435 = vector.load %arg4[%c3_192, %c0_193, %c0_194] : memref<32x32x128xf32, #tpu.memory_space<vmem>>, vector<1x32x128xf32>
    %436 = vector.shape_cast %435 : vector<1x32x128xf32> to vector<32x128xf32>
    %437 = vector.broadcast %434 : vector<1x128xf32> to vector<32x128xf32>
    %438 = arith.mulf %437, %436 : vector<32x128xf32>
    %439 = arith.addf %433, %438 : vector<32x128xf32>
    %440 = vector.extract_strided_slice %414 {offsets = [4, 0], sizes = [1, 128], strides = [1, 1]} : vector<32x128xf32> to vector<1x128xf32>
    %c4_195 = arith.constant 4 : index
    %c0_196 = arith.constant 0 : index
    %c0_197 = arith.constant 0 : index
    %441 = vector.load %arg4[%c4_195, %c0_196, %c0_197] : memref<32x32x128xf32, #tpu.memory_space<vmem>>, vector<1x32x128xf32>
    %442 = vector.shape_cast %441 : vector<1x32x128xf32> to vector<32x128xf32>
    %443 = vector.broadcast %440 : vector<1x128xf32> to vector<32x128xf32>
    %444 = arith.mulf %443, %442 : vector<32x128xf32>
    %445 = arith.addf %439, %444 : vector<32x128xf32>
    %446 = vector.extract_strided_slice %414 {offsets = [5, 0], sizes = [1, 128], strides = [1, 1]} : vector<32x128xf32> to vector<1x128xf32>
    %c5_198 = arith.constant 5 : index
    %c0_199 = arith.constant 0 : index
    %c0_200 = arith.constant 0 : index
    %447 = vector.load %arg4[%c5_198, %c0_199, %c0_200] : memref<32x32x128xf32, #tpu.memory_space<vmem>>, vector<1x32x128xf32>
    %448 = vector.shape_cast %447 : vector<1x32x128xf32> to vector<32x128xf32>
    %449 = vector.broadcast %446 : vector<1x128xf32> to vector<32x128xf32>
    %450 = arith.mulf %449, %448 : vector<32x128xf32>
    %451 = arith.addf %445, %450 : vector<32x128xf32>
    %452 = vector.extract_strided_slice %414 {offsets = [6, 0], sizes = [1, 128], strides = [1, 1]} : vector<32x128xf32> to vector<1x128xf32>
    %c6_201 = arith.constant 6 : index
    %c0_202 = arith.constant 0 : index
    %c0_203 = arith.constant 0 : index
    %453 = vector.load %arg4[%c6_201, %c0_202, %c0_203] : memref<32x32x128xf32, #tpu.memory_space<vmem>>, vector<1x32x128xf32>
    %454 = vector.shape_cast %453 : vector<1x32x128xf32> to vector<32x128xf32>
    %455 = vector.broadcast %452 : vector<1x128xf32> to vector<32x128xf32>
    %456 = arith.mulf %455, %454 : vector<32x128xf32>
    %457 = arith.addf %451, %456 : vector<32x128xf32>
    %458 = vector.extract_strided_slice %414 {offsets = [7, 0], sizes = [1, 128], strides = [1, 1]} : vector<32x128xf32> to vector<1x128xf32>
    %c7_204 = arith.constant 7 : index
    %c0_205 = arith.constant 0 : index
    %c0_206 = arith.constant 0 : index
    %459 = vector.load %arg4[%c7_204, %c0_205, %c0_206] : memref<32x32x128xf32, #tpu.memory_space<vmem>>, vector<1x32x128xf32>
    %460 = vector.shape_cast %459 : vector<1x32x128xf32> to vector<32x128xf32>
    %461 = vector.broadcast %458 : vector<1x128xf32> to vector<32x128xf32>
    %462 = arith.mulf %461, %460 : vector<32x128xf32>
    %463 = arith.addf %457, %462 : vector<32x128xf32>
    %464 = vector.extract_strided_slice %414 {offsets = [8, 0], sizes = [1, 128], strides = [1, 1]} : vector<32x128xf32> to vector<1x128xf32>
    %c8_207 = arith.constant 8 : index
    %c0_208 = arith.constant 0 : index
    %c0_209 = arith.constant 0 : index
    %465 = vector.load %arg4[%c8_207, %c0_208, %c0_209] : memref<32x32x128xf32, #tpu.memory_space<vmem>>, vector<1x32x128xf32>
    %466 = vector.shape_cast %465 : vector<1x32x128xf32> to vector<32x128xf32>
    %467 = vector.broadcast %464 : vector<1x128xf32> to vector<32x128xf32>
    %468 = arith.mulf %467, %466 : vector<32x128xf32>
    %469 = arith.addf %463, %468 : vector<32x128xf32>
    %470 = vector.extract_strided_slice %414 {offsets = [9, 0], sizes = [1, 128], strides = [1, 1]} : vector<32x128xf32> to vector<1x128xf32>
    %c9_210 = arith.constant 9 : index
    %c0_211 = arith.constant 0 : index
    %c0_212 = arith.constant 0 : index
    %471 = vector.load %arg4[%c9_210, %c0_211, %c0_212] : memref<32x32x128xf32, #tpu.memory_space<vmem>>, vector<1x32x128xf32>
    %472 = vector.shape_cast %471 : vector<1x32x128xf32> to vector<32x128xf32>
    %473 = vector.broadcast %470 : vector<1x128xf32> to vector<32x128xf32>
    %474 = arith.mulf %473, %472 : vector<32x128xf32>
    %475 = arith.addf %469, %474 : vector<32x128xf32>
    %476 = vector.extract_strided_slice %414 {offsets = [10, 0], sizes = [1, 128], strides = [1, 1]} : vector<32x128xf32> to vector<1x128xf32>
    %c10_213 = arith.constant 10 : index
    %c0_214 = arith.constant 0 : index
    %c0_215 = arith.constant 0 : index
    %477 = vector.load %arg4[%c10_213, %c0_214, %c0_215] : memref<32x32x128xf32, #tpu.memory_space<vmem>>, vector<1x32x128xf32>
    %478 = vector.shape_cast %477 : vector<1x32x128xf32> to vector<32x128xf32>
    %479 = vector.broadcast %476 : vector<1x128xf32> to vector<32x128xf32>
    %480 = arith.mulf %479, %478 : vector<32x128xf32>
    %481 = arith.addf %475, %480 : vector<32x128xf32>
    %482 = vector.extract_strided_slice %414 {offsets = [11, 0], sizes = [1, 128], strides = [1, 1]} : vector<32x128xf32> to vector<1x128xf32>
    %c11_216 = arith.constant 11 : index
    %c0_217 = arith.constant 0 : index
    %c0_218 = arith.constant 0 : index
    %483 = vector.load %arg4[%c11_216, %c0_217, %c0_218] : memref<32x32x128xf32, #tpu.memory_space<vmem>>, vector<1x32x128xf32>
    %484 = vector.shape_cast %483 : vector<1x32x128xf32> to vector<32x128xf32>
    %485 = vector.broadcast %482 : vector<1x128xf32> to vector<32x128xf32>
    %486 = arith.mulf %485, %484 : vector<32x128xf32>
    %487 = arith.addf %481, %486 : vector<32x128xf32>
    %488 = vector.extract_strided_slice %414 {offsets = [12, 0], sizes = [1, 128], strides = [1, 1]} : vector<32x128xf32> to vector<1x128xf32>
    %c12_219 = arith.constant 12 : index
    %c0_220 = arith.constant 0 : index
    %c0_221 = arith.constant 0 : index
    %489 = vector.load %arg4[%c12_219, %c0_220, %c0_221] : memref<32x32x128xf32, #tpu.memory_space<vmem>>, vector<1x32x128xf32>
    %490 = vector.shape_cast %489 : vector<1x32x128xf32> to vector<32x128xf32>
    %491 = vector.broadcast %488 : vector<1x128xf32> to vector<32x128xf32>
    %492 = arith.mulf %491, %490 : vector<32x128xf32>
    %493 = arith.addf %487, %492 : vector<32x128xf32>
    %494 = vector.extract_strided_slice %414 {offsets = [13, 0], sizes = [1, 128], strides = [1, 1]} : vector<32x128xf32> to vector<1x128xf32>
    %c13_222 = arith.constant 13 : index
    %c0_223 = arith.constant 0 : index
    %c0_224 = arith.constant 0 : index
    %495 = vector.load %arg4[%c13_222, %c0_223, %c0_224] : memref<32x32x128xf32, #tpu.memory_space<vmem>>, vector<1x32x128xf32>
    %496 = vector.shape_cast %495 : vector<1x32x128xf32> to vector<32x128xf32>
    %497 = vector.broadcast %494 : vector<1x128xf32> to vector<32x128xf32>
    %498 = arith.mulf %497, %496 : vector<32x128xf32>
    %499 = arith.addf %493, %498 : vector<32x128xf32>
    %500 = vector.extract_strided_slice %414 {offsets = [14, 0], sizes = [1, 128], strides = [1, 1]} : vector<32x128xf32> to vector<1x128xf32>
    %c14_225 = arith.constant 14 : index
    %c0_226 = arith.constant 0 : index
    %c0_227 = arith.constant 0 : index
    %501 = vector.load %arg4[%c14_225, %c0_226, %c0_227] : memref<32x32x128xf32, #tpu.memory_space<vmem>>, vector<1x32x128xf32>
    %502 = vector.shape_cast %501 : vector<1x32x128xf32> to vector<32x128xf32>
    %503 = vector.broadcast %500 : vector<1x128xf32> to vector<32x128xf32>
    %504 = arith.mulf %503, %502 : vector<32x128xf32>
    %505 = arith.addf %499, %504 : vector<32x128xf32>
    %506 = vector.extract_strided_slice %414 {offsets = [15, 0], sizes = [1, 128], strides = [1, 1]} : vector<32x128xf32> to vector<1x128xf32>
    %c15_228 = arith.constant 15 : index
    %c0_229 = arith.constant 0 : index
    %c0_230 = arith.constant 0 : index
    %507 = vector.load %arg4[%c15_228, %c0_229, %c0_230] : memref<32x32x128xf32, #tpu.memory_space<vmem>>, vector<1x32x128xf32>
    %508 = vector.shape_cast %507 : vector<1x32x128xf32> to vector<32x128xf32>
    %509 = vector.broadcast %506 : vector<1x128xf32> to vector<32x128xf32>
    %510 = arith.mulf %509, %508 : vector<32x128xf32>
    %511 = arith.addf %505, %510 : vector<32x128xf32>
    %512 = vector.extract_strided_slice %414 {offsets = [16, 0], sizes = [1, 128], strides = [1, 1]} : vector<32x128xf32> to vector<1x128xf32>
    %c16_231 = arith.constant 16 : index
    %c0_232 = arith.constant 0 : index
    %c0_233 = arith.constant 0 : index
    %513 = vector.load %arg4[%c16_231, %c0_232, %c0_233] : memref<32x32x128xf32, #tpu.memory_space<vmem>>, vector<1x32x128xf32>
    %514 = vector.shape_cast %513 : vector<1x32x128xf32> to vector<32x128xf32>
    %515 = vector.broadcast %512 : vector<1x128xf32> to vector<32x128xf32>
    %516 = arith.mulf %515, %514 : vector<32x128xf32>
    %517 = arith.addf %511, %516 : vector<32x128xf32>
    %518 = vector.extract_strided_slice %414 {offsets = [17, 0], sizes = [1, 128], strides = [1, 1]} : vector<32x128xf32> to vector<1x128xf32>
    %c17_234 = arith.constant 17 : index
    %c0_235 = arith.constant 0 : index
    %c0_236 = arith.constant 0 : index
    %519 = vector.load %arg4[%c17_234, %c0_235, %c0_236] : memref<32x32x128xf32, #tpu.memory_space<vmem>>, vector<1x32x128xf32>
    %520 = vector.shape_cast %519 : vector<1x32x128xf32> to vector<32x128xf32>
    %521 = vector.broadcast %518 : vector<1x128xf32> to vector<32x128xf32>
    %522 = arith.mulf %521, %520 : vector<32x128xf32>
    %523 = arith.addf %517, %522 : vector<32x128xf32>
    %524 = vector.extract_strided_slice %414 {offsets = [18, 0], sizes = [1, 128], strides = [1, 1]} : vector<32x128xf32> to vector<1x128xf32>
    %c18_237 = arith.constant 18 : index
    %c0_238 = arith.constant 0 : index
    %c0_239 = arith.constant 0 : index
    %525 = vector.load %arg4[%c18_237, %c0_238, %c0_239] : memref<32x32x128xf32, #tpu.memory_space<vmem>>, vector<1x32x128xf32>
    %526 = vector.shape_cast %525 : vector<1x32x128xf32> to vector<32x128xf32>
    %527 = vector.broadcast %524 : vector<1x128xf32> to vector<32x128xf32>
    %528 = arith.mulf %527, %526 : vector<32x128xf32>
    %529 = arith.addf %523, %528 : vector<32x128xf32>
    %530 = vector.extract_strided_slice %414 {offsets = [19, 0], sizes = [1, 128], strides = [1, 1]} : vector<32x128xf32> to vector<1x128xf32>
    %c19_240 = arith.constant 19 : index
    %c0_241 = arith.constant 0 : index
    %c0_242 = arith.constant 0 : index
    %531 = vector.load %arg4[%c19_240, %c0_241, %c0_242] : memref<32x32x128xf32, #tpu.memory_space<vmem>>, vector<1x32x128xf32>
    %532 = vector.shape_cast %531 : vector<1x32x128xf32> to vector<32x128xf32>
    %533 = vector.broadcast %530 : vector<1x128xf32> to vector<32x128xf32>
    %534 = arith.mulf %533, %532 : vector<32x128xf32>
    %535 = arith.addf %529, %534 : vector<32x128xf32>
    %536 = vector.extract_strided_slice %414 {offsets = [20, 0], sizes = [1, 128], strides = [1, 1]} : vector<32x128xf32> to vector<1x128xf32>
    %c20_243 = arith.constant 20 : index
    %c0_244 = arith.constant 0 : index
    %c0_245 = arith.constant 0 : index
    %537 = vector.load %arg4[%c20_243, %c0_244, %c0_245] : memref<32x32x128xf32, #tpu.memory_space<vmem>>, vector<1x32x128xf32>
    %538 = vector.shape_cast %537 : vector<1x32x128xf32> to vector<32x128xf32>
    %539 = vector.broadcast %536 : vector<1x128xf32> to vector<32x128xf32>
    %540 = arith.mulf %539, %538 : vector<32x128xf32>
    %541 = arith.addf %535, %540 : vector<32x128xf32>
    %542 = vector.extract_strided_slice %414 {offsets = [21, 0], sizes = [1, 128], strides = [1, 1]} : vector<32x128xf32> to vector<1x128xf32>
    %c21_246 = arith.constant 21 : index
    %c0_247 = arith.constant 0 : index
    %c0_248 = arith.constant 0 : index
    %543 = vector.load %arg4[%c21_246, %c0_247, %c0_248] : memref<32x32x128xf32, #tpu.memory_space<vmem>>, vector<1x32x128xf32>
    %544 = vector.shape_cast %543 : vector<1x32x128xf32> to vector<32x128xf32>
    %545 = vector.broadcast %542 : vector<1x128xf32> to vector<32x128xf32>
    %546 = arith.mulf %545, %544 : vector<32x128xf32>
    %547 = arith.addf %541, %546 : vector<32x128xf32>
    %548 = vector.extract_strided_slice %414 {offsets = [22, 0], sizes = [1, 128], strides = [1, 1]} : vector<32x128xf32> to vector<1x128xf32>
    %c22_249 = arith.constant 22 : index
    %c0_250 = arith.constant 0 : index
    %c0_251 = arith.constant 0 : index
    %549 = vector.load %arg4[%c22_249, %c0_250, %c0_251] : memref<32x32x128xf32, #tpu.memory_space<vmem>>, vector<1x32x128xf32>
    %550 = vector.shape_cast %549 : vector<1x32x128xf32> to vector<32x128xf32>
    %551 = vector.broadcast %548 : vector<1x128xf32> to vector<32x128xf32>
    %552 = arith.mulf %551, %550 : vector<32x128xf32>
    %553 = arith.addf %547, %552 : vector<32x128xf32>
    %554 = vector.extract_strided_slice %414 {offsets = [23, 0], sizes = [1, 128], strides = [1, 1]} : vector<32x128xf32> to vector<1x128xf32>
    %c23_252 = arith.constant 23 : index
    %c0_253 = arith.constant 0 : index
    %c0_254 = arith.constant 0 : index
    %555 = vector.load %arg4[%c23_252, %c0_253, %c0_254] : memref<32x32x128xf32, #tpu.memory_space<vmem>>, vector<1x32x128xf32>
    %556 = vector.shape_cast %555 : vector<1x32x128xf32> to vector<32x128xf32>
    %557 = vector.broadcast %554 : vector<1x128xf32> to vector<32x128xf32>
    %558 = arith.mulf %557, %556 : vector<32x128xf32>
    %559 = arith.addf %553, %558 : vector<32x128xf32>
    %560 = vector.extract_strided_slice %414 {offsets = [24, 0], sizes = [1, 128], strides = [1, 1]} : vector<32x128xf32> to vector<1x128xf32>
    %c24_255 = arith.constant 24 : index
    %c0_256 = arith.constant 0 : index
    %c0_257 = arith.constant 0 : index
    %561 = vector.load %arg4[%c24_255, %c0_256, %c0_257] : memref<32x32x128xf32, #tpu.memory_space<vmem>>, vector<1x32x128xf32>
    %562 = vector.shape_cast %561 : vector<1x32x128xf32> to vector<32x128xf32>
    %563 = vector.broadcast %560 : vector<1x128xf32> to vector<32x128xf32>
    %564 = arith.mulf %563, %562 : vector<32x128xf32>
    %565 = arith.addf %559, %564 : vector<32x128xf32>
    %566 = vector.extract_strided_slice %414 {offsets = [25, 0], sizes = [1, 128], strides = [1, 1]} : vector<32x128xf32> to vector<1x128xf32>
    %c25_258 = arith.constant 25 : index
    %c0_259 = arith.constant 0 : index
    %c0_260 = arith.constant 0 : index
    %567 = vector.load %arg4[%c25_258, %c0_259, %c0_260] : memref<32x32x128xf32, #tpu.memory_space<vmem>>, vector<1x32x128xf32>
    %568 = vector.shape_cast %567 : vector<1x32x128xf32> to vector<32x128xf32>
    %569 = vector.broadcast %566 : vector<1x128xf32> to vector<32x128xf32>
    %570 = arith.mulf %569, %568 : vector<32x128xf32>
    %571 = arith.addf %565, %570 : vector<32x128xf32>
    %572 = vector.extract_strided_slice %414 {offsets = [26, 0], sizes = [1, 128], strides = [1, 1]} : vector<32x128xf32> to vector<1x128xf32>
    %c26_261 = arith.constant 26 : index
    %c0_262 = arith.constant 0 : index
    %c0_263 = arith.constant 0 : index
    %573 = vector.load %arg4[%c26_261, %c0_262, %c0_263] : memref<32x32x128xf32, #tpu.memory_space<vmem>>, vector<1x32x128xf32>
    %574 = vector.shape_cast %573 : vector<1x32x128xf32> to vector<32x128xf32>
    %575 = vector.broadcast %572 : vector<1x128xf32> to vector<32x128xf32>
    %576 = arith.mulf %575, %574 : vector<32x128xf32>
    %577 = arith.addf %571, %576 : vector<32x128xf32>
    %578 = vector.extract_strided_slice %414 {offsets = [27, 0], sizes = [1, 128], strides = [1, 1]} : vector<32x128xf32> to vector<1x128xf32>
    %c27_264 = arith.constant 27 : index
    %c0_265 = arith.constant 0 : index
    %c0_266 = arith.constant 0 : index
    %579 = vector.load %arg4[%c27_264, %c0_265, %c0_266] : memref<32x32x128xf32, #tpu.memory_space<vmem>>, vector<1x32x128xf32>
    %580 = vector.shape_cast %579 : vector<1x32x128xf32> to vector<32x128xf32>
    %581 = vector.broadcast %578 : vector<1x128xf32> to vector<32x128xf32>
    %582 = arith.mulf %581, %580 : vector<32x128xf32>
    %583 = arith.addf %577, %582 : vector<32x128xf32>
    %584 = vector.extract_strided_slice %414 {offsets = [28, 0], sizes = [1, 128], strides = [1, 1]} : vector<32x128xf32> to vector<1x128xf32>
    %c28_267 = arith.constant 28 : index
    %c0_268 = arith.constant 0 : index
    %c0_269 = arith.constant 0 : index
    %585 = vector.load %arg4[%c28_267, %c0_268, %c0_269] : memref<32x32x128xf32, #tpu.memory_space<vmem>>, vector<1x32x128xf32>
    %586 = vector.shape_cast %585 : vector<1x32x128xf32> to vector<32x128xf32>
    %587 = vector.broadcast %584 : vector<1x128xf32> to vector<32x128xf32>
    %588 = arith.mulf %587, %586 : vector<32x128xf32>
    %589 = arith.addf %583, %588 : vector<32x128xf32>
    %590 = vector.extract_strided_slice %414 {offsets = [29, 0], sizes = [1, 128], strides = [1, 1]} : vector<32x128xf32> to vector<1x128xf32>
    %c29_270 = arith.constant 29 : index
    %c0_271 = arith.constant 0 : index
    %c0_272 = arith.constant 0 : index
    %591 = vector.load %arg4[%c29_270, %c0_271, %c0_272] : memref<32x32x128xf32, #tpu.memory_space<vmem>>, vector<1x32x128xf32>
    %592 = vector.shape_cast %591 : vector<1x32x128xf32> to vector<32x128xf32>
    %593 = vector.broadcast %590 : vector<1x128xf32> to vector<32x128xf32>
    %594 = arith.mulf %593, %592 : vector<32x128xf32>
    %595 = arith.addf %589, %594 : vector<32x128xf32>
    %596 = vector.extract_strided_slice %414 {offsets = [30, 0], sizes = [1, 128], strides = [1, 1]} : vector<32x128xf32> to vector<1x128xf32>
    %c30_273 = arith.constant 30 : index
    %c0_274 = arith.constant 0 : index
    %c0_275 = arith.constant 0 : index
    %597 = vector.load %arg4[%c30_273, %c0_274, %c0_275] : memref<32x32x128xf32, #tpu.memory_space<vmem>>, vector<1x32x128xf32>
    %598 = vector.shape_cast %597 : vector<1x32x128xf32> to vector<32x128xf32>
    %599 = vector.broadcast %596 : vector<1x128xf32> to vector<32x128xf32>
    %600 = arith.mulf %599, %598 : vector<32x128xf32>
    %601 = arith.addf %595, %600 : vector<32x128xf32>
    %602 = vector.extract_strided_slice %414 {offsets = [31, 0], sizes = [1, 128], strides = [1, 1]} : vector<32x128xf32> to vector<1x128xf32>
    %c31_276 = arith.constant 31 : index
    %c0_277 = arith.constant 0 : index
    %c0_278 = arith.constant 0 : index
    %603 = vector.load %arg4[%c31_276, %c0_277, %c0_278] : memref<32x32x128xf32, #tpu.memory_space<vmem>>, vector<1x32x128xf32>
    %604 = vector.shape_cast %603 : vector<1x32x128xf32> to vector<32x128xf32>
    %605 = vector.broadcast %602 : vector<1x128xf32> to vector<32x128xf32>
    %606 = arith.mulf %605, %604 : vector<32x128xf32>
    %607 = arith.addf %601, %606 : vector<32x128xf32>
    %608 = vector.extract_strided_slice %2 {offsets = [0, 2], sizes = [32, 1], strides = [1, 1]} : vector<32x8xf32> to vector<32x1xf32>
    %609 = vector.broadcast %608 : vector<32x1xf32> to vector<32x128xf32>
    %610 = arith.addf %607, %609 : vector<32x128xf32>
    %cst_279 = arith.constant 0.000000e+00 : f32
    %611 = vector.broadcast %cst_279 : f32 to vector<32x128xf32>
    %612 = arith.maximumf %610, %611 : vector<32x128xf32>
    %613 = arith.mulf %612, %1 : vector<32x128xf32>
    %cst_280 = arith.constant dense<0.000000e+00> : vector<128xf32>
    %614 = vector.multi_reduction <add>, %613, %cst_280 [0] : vector<32x128xf32> to vector<128xf32>
    %615 = vector.shape_cast %614 : vector<128xf32> to vector<1x128xf32>
    %c3_281 = arith.constant 3 : index
    %c0_282 = arith.constant 0 : index
    %c0_283 = arith.constant 0 : index
    %616 = vector.load %arg2[%c3_281, %c0_282, %c0_283] : memref<8x32x128xf32, #tpu.memory_space<vmem>>, vector<1x32x128xf32>
    %617 = vector.shape_cast %616 : vector<1x32x128xf32> to vector<32x128xf32>
    %618 = arith.mulf %0, %617 : vector<32x128xf32>
    %cst_284 = arith.constant 0.000000e+00 : f32
    %619 = vector.broadcast %cst_284 : f32 to vector<32x128xf32>
    %620 = vector.extract_strided_slice %618 {offsets = [0, 0], sizes = [1, 128], strides = [1, 1]} : vector<32x128xf32> to vector<1x128xf32>
    %c0_285 = arith.constant 0 : index
    %c0_286 = arith.constant 0 : index
    %c0_287 = arith.constant 0 : index
    %621 = vector.load %arg4[%c0_285, %c0_286, %c0_287] : memref<32x32x128xf32, #tpu.memory_space<vmem>>, vector<1x32x128xf32>
    %622 = vector.shape_cast %621 : vector<1x32x128xf32> to vector<32x128xf32>
    %623 = vector.broadcast %620 : vector<1x128xf32> to vector<32x128xf32>
    %624 = arith.mulf %623, %622 : vector<32x128xf32>
    %625 = arith.addf %619, %624 : vector<32x128xf32>
    %626 = vector.extract_strided_slice %618 {offsets = [1, 0], sizes = [1, 128], strides = [1, 1]} : vector<32x128xf32> to vector<1x128xf32>
    %c1_288 = arith.constant 1 : index
    %c0_289 = arith.constant 0 : index
    %c0_290 = arith.constant 0 : index
    %627 = vector.load %arg4[%c1_288, %c0_289, %c0_290] : memref<32x32x128xf32, #tpu.memory_space<vmem>>, vector<1x32x128xf32>
    %628 = vector.shape_cast %627 : vector<1x32x128xf32> to vector<32x128xf32>
    %629 = vector.broadcast %626 : vector<1x128xf32> to vector<32x128xf32>
    %630 = arith.mulf %629, %628 : vector<32x128xf32>
    %631 = arith.addf %625, %630 : vector<32x128xf32>
    %632 = vector.extract_strided_slice %618 {offsets = [2, 0], sizes = [1, 128], strides = [1, 1]} : vector<32x128xf32> to vector<1x128xf32>
    %c2_291 = arith.constant 2 : index
    %c0_292 = arith.constant 0 : index
    %c0_293 = arith.constant 0 : index
    %633 = vector.load %arg4[%c2_291, %c0_292, %c0_293] : memref<32x32x128xf32, #tpu.memory_space<vmem>>, vector<1x32x128xf32>
    %634 = vector.shape_cast %633 : vector<1x32x128xf32> to vector<32x128xf32>
    %635 = vector.broadcast %632 : vector<1x128xf32> to vector<32x128xf32>
    %636 = arith.mulf %635, %634 : vector<32x128xf32>
    %637 = arith.addf %631, %636 : vector<32x128xf32>
    %638 = vector.extract_strided_slice %618 {offsets = [3, 0], sizes = [1, 128], strides = [1, 1]} : vector<32x128xf32> to vector<1x128xf32>
    %c3_294 = arith.constant 3 : index
    %c0_295 = arith.constant 0 : index
    %c0_296 = arith.constant 0 : index
    %639 = vector.load %arg4[%c3_294, %c0_295, %c0_296] : memref<32x32x128xf32, #tpu.memory_space<vmem>>, vector<1x32x128xf32>
    %640 = vector.shape_cast %639 : vector<1x32x128xf32> to vector<32x128xf32>
    %641 = vector.broadcast %638 : vector<1x128xf32> to vector<32x128xf32>
    %642 = arith.mulf %641, %640 : vector<32x128xf32>
    %643 = arith.addf %637, %642 : vector<32x128xf32>
    %644 = vector.extract_strided_slice %618 {offsets = [4, 0], sizes = [1, 128], strides = [1, 1]} : vector<32x128xf32> to vector<1x128xf32>
    %c4_297 = arith.constant 4 : index
    %c0_298 = arith.constant 0 : index
    %c0_299 = arith.constant 0 : index
    %645 = vector.load %arg4[%c4_297, %c0_298, %c0_299] : memref<32x32x128xf32, #tpu.memory_space<vmem>>, vector<1x32x128xf32>
    %646 = vector.shape_cast %645 : vector<1x32x128xf32> to vector<32x128xf32>
    %647 = vector.broadcast %644 : vector<1x128xf32> to vector<32x128xf32>
    %648 = arith.mulf %647, %646 : vector<32x128xf32>
    %649 = arith.addf %643, %648 : vector<32x128xf32>
    %650 = vector.extract_strided_slice %618 {offsets = [5, 0], sizes = [1, 128], strides = [1, 1]} : vector<32x128xf32> to vector<1x128xf32>
    %c5_300 = arith.constant 5 : index
    %c0_301 = arith.constant 0 : index
    %c0_302 = arith.constant 0 : index
    %651 = vector.load %arg4[%c5_300, %c0_301, %c0_302] : memref<32x32x128xf32, #tpu.memory_space<vmem>>, vector<1x32x128xf32>
    %652 = vector.shape_cast %651 : vector<1x32x128xf32> to vector<32x128xf32>
    %653 = vector.broadcast %650 : vector<1x128xf32> to vector<32x128xf32>
    %654 = arith.mulf %653, %652 : vector<32x128xf32>
    %655 = arith.addf %649, %654 : vector<32x128xf32>
    %656 = vector.extract_strided_slice %618 {offsets = [6, 0], sizes = [1, 128], strides = [1, 1]} : vector<32x128xf32> to vector<1x128xf32>
    %c6_303 = arith.constant 6 : index
    %c0_304 = arith.constant 0 : index
    %c0_305 = arith.constant 0 : index
    %657 = vector.load %arg4[%c6_303, %c0_304, %c0_305] : memref<32x32x128xf32, #tpu.memory_space<vmem>>, vector<1x32x128xf32>
    %658 = vector.shape_cast %657 : vector<1x32x128xf32> to vector<32x128xf32>
    %659 = vector.broadcast %656 : vector<1x128xf32> to vector<32x128xf32>
    %660 = arith.mulf %659, %658 : vector<32x128xf32>
    %661 = arith.addf %655, %660 : vector<32x128xf32>
    %662 = vector.extract_strided_slice %618 {offsets = [7, 0], sizes = [1, 128], strides = [1, 1]} : vector<32x128xf32> to vector<1x128xf32>
    %c7_306 = arith.constant 7 : index
    %c0_307 = arith.constant 0 : index
    %c0_308 = arith.constant 0 : index
    %663 = vector.load %arg4[%c7_306, %c0_307, %c0_308] : memref<32x32x128xf32, #tpu.memory_space<vmem>>, vector<1x32x128xf32>
    %664 = vector.shape_cast %663 : vector<1x32x128xf32> to vector<32x128xf32>
    %665 = vector.broadcast %662 : vector<1x128xf32> to vector<32x128xf32>
    %666 = arith.mulf %665, %664 : vector<32x128xf32>
    %667 = arith.addf %661, %666 : vector<32x128xf32>
    %668 = vector.extract_strided_slice %618 {offsets = [8, 0], sizes = [1, 128], strides = [1, 1]} : vector<32x128xf32> to vector<1x128xf32>
    %c8_309 = arith.constant 8 : index
    %c0_310 = arith.constant 0 : index
    %c0_311 = arith.constant 0 : index
    %669 = vector.load %arg4[%c8_309, %c0_310, %c0_311] : memref<32x32x128xf32, #tpu.memory_space<vmem>>, vector<1x32x128xf32>
    %670 = vector.shape_cast %669 : vector<1x32x128xf32> to vector<32x128xf32>
    %671 = vector.broadcast %668 : vector<1x128xf32> to vector<32x128xf32>
    %672 = arith.mulf %671, %670 : vector<32x128xf32>
    %673 = arith.addf %667, %672 : vector<32x128xf32>
    %674 = vector.extract_strided_slice %618 {offsets = [9, 0], sizes = [1, 128], strides = [1, 1]} : vector<32x128xf32> to vector<1x128xf32>
    %c9_312 = arith.constant 9 : index
    %c0_313 = arith.constant 0 : index
    %c0_314 = arith.constant 0 : index
    %675 = vector.load %arg4[%c9_312, %c0_313, %c0_314] : memref<32x32x128xf32, #tpu.memory_space<vmem>>, vector<1x32x128xf32>
    %676 = vector.shape_cast %675 : vector<1x32x128xf32> to vector<32x128xf32>
    %677 = vector.broadcast %674 : vector<1x128xf32> to vector<32x128xf32>
    %678 = arith.mulf %677, %676 : vector<32x128xf32>
    %679 = arith.addf %673, %678 : vector<32x128xf32>
    %680 = vector.extract_strided_slice %618 {offsets = [10, 0], sizes = [1, 128], strides = [1, 1]} : vector<32x128xf32> to vector<1x128xf32>
    %c10_315 = arith.constant 10 : index
    %c0_316 = arith.constant 0 : index
    %c0_317 = arith.constant 0 : index
    %681 = vector.load %arg4[%c10_315, %c0_316, %c0_317] : memref<32x32x128xf32, #tpu.memory_space<vmem>>, vector<1x32x128xf32>
    %682 = vector.shape_cast %681 : vector<1x32x128xf32> to vector<32x128xf32>
    %683 = vector.broadcast %680 : vector<1x128xf32> to vector<32x128xf32>
    %684 = arith.mulf %683, %682 : vector<32x128xf32>
    %685 = arith.addf %679, %684 : vector<32x128xf32>
    %686 = vector.extract_strided_slice %618 {offsets = [11, 0], sizes = [1, 128], strides = [1, 1]} : vector<32x128xf32> to vector<1x128xf32>
    %c11_318 = arith.constant 11 : index
    %c0_319 = arith.constant 0 : index
    %c0_320 = arith.constant 0 : index
    %687 = vector.load %arg4[%c11_318, %c0_319, %c0_320] : memref<32x32x128xf32, #tpu.memory_space<vmem>>, vector<1x32x128xf32>
    %688 = vector.shape_cast %687 : vector<1x32x128xf32> to vector<32x128xf32>
    %689 = vector.broadcast %686 : vector<1x128xf32> to vector<32x128xf32>
    %690 = arith.mulf %689, %688 : vector<32x128xf32>
    %691 = arith.addf %685, %690 : vector<32x128xf32>
    %692 = vector.extract_strided_slice %618 {offsets = [12, 0], sizes = [1, 128], strides = [1, 1]} : vector<32x128xf32> to vector<1x128xf32>
    %c12_321 = arith.constant 12 : index
    %c0_322 = arith.constant 0 : index
    %c0_323 = arith.constant 0 : index
    %693 = vector.load %arg4[%c12_321, %c0_322, %c0_323] : memref<32x32x128xf32, #tpu.memory_space<vmem>>, vector<1x32x128xf32>
    %694 = vector.shape_cast %693 : vector<1x32x128xf32> to vector<32x128xf32>
    %695 = vector.broadcast %692 : vector<1x128xf32> to vector<32x128xf32>
    %696 = arith.mulf %695, %694 : vector<32x128xf32>
    %697 = arith.addf %691, %696 : vector<32x128xf32>
    %698 = vector.extract_strided_slice %618 {offsets = [13, 0], sizes = [1, 128], strides = [1, 1]} : vector<32x128xf32> to vector<1x128xf32>
    %c13_324 = arith.constant 13 : index
    %c0_325 = arith.constant 0 : index
    %c0_326 = arith.constant 0 : index
    %699 = vector.load %arg4[%c13_324, %c0_325, %c0_326] : memref<32x32x128xf32, #tpu.memory_space<vmem>>, vector<1x32x128xf32>
    %700 = vector.shape_cast %699 : vector<1x32x128xf32> to vector<32x128xf32>
    %701 = vector.broadcast %698 : vector<1x128xf32> to vector<32x128xf32>
    %702 = arith.mulf %701, %700 : vector<32x128xf32>
    %703 = arith.addf %697, %702 : vector<32x128xf32>
    %704 = vector.extract_strided_slice %618 {offsets = [14, 0], sizes = [1, 128], strides = [1, 1]} : vector<32x128xf32> to vector<1x128xf32>
    %c14_327 = arith.constant 14 : index
    %c0_328 = arith.constant 0 : index
    %c0_329 = arith.constant 0 : index
    %705 = vector.load %arg4[%c14_327, %c0_328, %c0_329] : memref<32x32x128xf32, #tpu.memory_space<vmem>>, vector<1x32x128xf32>
    %706 = vector.shape_cast %705 : vector<1x32x128xf32> to vector<32x128xf32>
    %707 = vector.broadcast %704 : vector<1x128xf32> to vector<32x128xf32>
    %708 = arith.mulf %707, %706 : vector<32x128xf32>
    %709 = arith.addf %703, %708 : vector<32x128xf32>
    %710 = vector.extract_strided_slice %618 {offsets = [15, 0], sizes = [1, 128], strides = [1, 1]} : vector<32x128xf32> to vector<1x128xf32>
    %c15_330 = arith.constant 15 : index
    %c0_331 = arith.constant 0 : index
    %c0_332 = arith.constant 0 : index
    %711 = vector.load %arg4[%c15_330, %c0_331, %c0_332] : memref<32x32x128xf32, #tpu.memory_space<vmem>>, vector<1x32x128xf32>
    %712 = vector.shape_cast %711 : vector<1x32x128xf32> to vector<32x128xf32>
    %713 = vector.broadcast %710 : vector<1x128xf32> to vector<32x128xf32>
    %714 = arith.mulf %713, %712 : vector<32x128xf32>
    %715 = arith.addf %709, %714 : vector<32x128xf32>
    %716 = vector.extract_strided_slice %618 {offsets = [16, 0], sizes = [1, 128], strides = [1, 1]} : vector<32x128xf32> to vector<1x128xf32>
    %c16_333 = arith.constant 16 : index
    %c0_334 = arith.constant 0 : index
    %c0_335 = arith.constant 0 : index
    %717 = vector.load %arg4[%c16_333, %c0_334, %c0_335] : memref<32x32x128xf32, #tpu.memory_space<vmem>>, vector<1x32x128xf32>
    %718 = vector.shape_cast %717 : vector<1x32x128xf32> to vector<32x128xf32>
    %719 = vector.broadcast %716 : vector<1x128xf32> to vector<32x128xf32>
    %720 = arith.mulf %719, %718 : vector<32x128xf32>
    %721 = arith.addf %715, %720 : vector<32x128xf32>
    %722 = vector.extract_strided_slice %618 {offsets = [17, 0], sizes = [1, 128], strides = [1, 1]} : vector<32x128xf32> to vector<1x128xf32>
    %c17_336 = arith.constant 17 : index
    %c0_337 = arith.constant 0 : index
    %c0_338 = arith.constant 0 : index
    %723 = vector.load %arg4[%c17_336, %c0_337, %c0_338] : memref<32x32x128xf32, #tpu.memory_space<vmem>>, vector<1x32x128xf32>
    %724 = vector.shape_cast %723 : vector<1x32x128xf32> to vector<32x128xf32>
    %725 = vector.broadcast %722 : vector<1x128xf32> to vector<32x128xf32>
    %726 = arith.mulf %725, %724 : vector<32x128xf32>
    %727 = arith.addf %721, %726 : vector<32x128xf32>
    %728 = vector.extract_strided_slice %618 {offsets = [18, 0], sizes = [1, 128], strides = [1, 1]} : vector<32x128xf32> to vector<1x128xf32>
    %c18_339 = arith.constant 18 : index
    %c0_340 = arith.constant 0 : index
    %c0_341 = arith.constant 0 : index
    %729 = vector.load %arg4[%c18_339, %c0_340, %c0_341] : memref<32x32x128xf32, #tpu.memory_space<vmem>>, vector<1x32x128xf32>
    %730 = vector.shape_cast %729 : vector<1x32x128xf32> to vector<32x128xf32>
    %731 = vector.broadcast %728 : vector<1x128xf32> to vector<32x128xf32>
    %732 = arith.mulf %731, %730 : vector<32x128xf32>
    %733 = arith.addf %727, %732 : vector<32x128xf32>
    %734 = vector.extract_strided_slice %618 {offsets = [19, 0], sizes = [1, 128], strides = [1, 1]} : vector<32x128xf32> to vector<1x128xf32>
    %c19_342 = arith.constant 19 : index
    %c0_343 = arith.constant 0 : index
    %c0_344 = arith.constant 0 : index
    %735 = vector.load %arg4[%c19_342, %c0_343, %c0_344] : memref<32x32x128xf32, #tpu.memory_space<vmem>>, vector<1x32x128xf32>
    %736 = vector.shape_cast %735 : vector<1x32x128xf32> to vector<32x128xf32>
    %737 = vector.broadcast %734 : vector<1x128xf32> to vector<32x128xf32>
    %738 = arith.mulf %737, %736 : vector<32x128xf32>
    %739 = arith.addf %733, %738 : vector<32x128xf32>
    %740 = vector.extract_strided_slice %618 {offsets = [20, 0], sizes = [1, 128], strides = [1, 1]} : vector<32x128xf32> to vector<1x128xf32>
    %c20_345 = arith.constant 20 : index
    %c0_346 = arith.constant 0 : index
    %c0_347 = arith.constant 0 : index
    %741 = vector.load %arg4[%c20_345, %c0_346, %c0_347] : memref<32x32x128xf32, #tpu.memory_space<vmem>>, vector<1x32x128xf32>
    %742 = vector.shape_cast %741 : vector<1x32x128xf32> to vector<32x128xf32>
    %743 = vector.broadcast %740 : vector<1x128xf32> to vector<32x128xf32>
    %744 = arith.mulf %743, %742 : vector<32x128xf32>
    %745 = arith.addf %739, %744 : vector<32x128xf32>
    %746 = vector.extract_strided_slice %618 {offsets = [21, 0], sizes = [1, 128], strides = [1, 1]} : vector<32x128xf32> to vector<1x128xf32>
    %c21_348 = arith.constant 21 : index
    %c0_349 = arith.constant 0 : index
    %c0_350 = arith.constant 0 : index
    %747 = vector.load %arg4[%c21_348, %c0_349, %c0_350] : memref<32x32x128xf32, #tpu.memory_space<vmem>>, vector<1x32x128xf32>
    %748 = vector.shape_cast %747 : vector<1x32x128xf32> to vector<32x128xf32>
    %749 = vector.broadcast %746 : vector<1x128xf32> to vector<32x128xf32>
    %750 = arith.mulf %749, %748 : vector<32x128xf32>
    %751 = arith.addf %745, %750 : vector<32x128xf32>
    %752 = vector.extract_strided_slice %618 {offsets = [22, 0], sizes = [1, 128], strides = [1, 1]} : vector<32x128xf32> to vector<1x128xf32>
    %c22_351 = arith.constant 22 : index
    %c0_352 = arith.constant 0 : index
    %c0_353 = arith.constant 0 : index
    %753 = vector.load %arg4[%c22_351, %c0_352, %c0_353] : memref<32x32x128xf32, #tpu.memory_space<vmem>>, vector<1x32x128xf32>
    %754 = vector.shape_cast %753 : vector<1x32x128xf32> to vector<32x128xf32>
    %755 = vector.broadcast %752 : vector<1x128xf32> to vector<32x128xf32>
    %756 = arith.mulf %755, %754 : vector<32x128xf32>
    %757 = arith.addf %751, %756 : vector<32x128xf32>
    %758 = vector.extract_strided_slice %618 {offsets = [23, 0], sizes = [1, 128], strides = [1, 1]} : vector<32x128xf32> to vector<1x128xf32>
    %c23_354 = arith.constant 23 : index
    %c0_355 = arith.constant 0 : index
    %c0_356 = arith.constant 0 : index
    %759 = vector.load %arg4[%c23_354, %c0_355, %c0_356] : memref<32x32x128xf32, #tpu.memory_space<vmem>>, vector<1x32x128xf32>
    %760 = vector.shape_cast %759 : vector<1x32x128xf32> to vector<32x128xf32>
    %761 = vector.broadcast %758 : vector<1x128xf32> to vector<32x128xf32>
    %762 = arith.mulf %761, %760 : vector<32x128xf32>
    %763 = arith.addf %757, %762 : vector<32x128xf32>
    %764 = vector.extract_strided_slice %618 {offsets = [24, 0], sizes = [1, 128], strides = [1, 1]} : vector<32x128xf32> to vector<1x128xf32>
    %c24_357 = arith.constant 24 : index
    %c0_358 = arith.constant 0 : index
    %c0_359 = arith.constant 0 : index
    %765 = vector.load %arg4[%c24_357, %c0_358, %c0_359] : memref<32x32x128xf32, #tpu.memory_space<vmem>>, vector<1x32x128xf32>
    %766 = vector.shape_cast %765 : vector<1x32x128xf32> to vector<32x128xf32>
    %767 = vector.broadcast %764 : vector<1x128xf32> to vector<32x128xf32>
    %768 = arith.mulf %767, %766 : vector<32x128xf32>
    %769 = arith.addf %763, %768 : vector<32x128xf32>
    %770 = vector.extract_strided_slice %618 {offsets = [25, 0], sizes = [1, 128], strides = [1, 1]} : vector<32x128xf32> to vector<1x128xf32>
    %c25_360 = arith.constant 25 : index
    %c0_361 = arith.constant 0 : index
    %c0_362 = arith.constant 0 : index
    %771 = vector.load %arg4[%c25_360, %c0_361, %c0_362] : memref<32x32x128xf32, #tpu.memory_space<vmem>>, vector<1x32x128xf32>
    %772 = vector.shape_cast %771 : vector<1x32x128xf32> to vector<32x128xf32>
    %773 = vector.broadcast %770 : vector<1x128xf32> to vector<32x128xf32>
    %774 = arith.mulf %773, %772 : vector<32x128xf32>
    %775 = arith.addf %769, %774 : vector<32x128xf32>
    %776 = vector.extract_strided_slice %618 {offsets = [26, 0], sizes = [1, 128], strides = [1, 1]} : vector<32x128xf32> to vector<1x128xf32>
    %c26_363 = arith.constant 26 : index
    %c0_364 = arith.constant 0 : index
    %c0_365 = arith.constant 0 : index
    %777 = vector.load %arg4[%c26_363, %c0_364, %c0_365] : memref<32x32x128xf32, #tpu.memory_space<vmem>>, vector<1x32x128xf32>
    %778 = vector.shape_cast %777 : vector<1x32x128xf32> to vector<32x128xf32>
    %779 = vector.broadcast %776 : vector<1x128xf32> to vector<32x128xf32>
    %780 = arith.mulf %779, %778 : vector<32x128xf32>
    %781 = arith.addf %775, %780 : vector<32x128xf32>
    %782 = vector.extract_strided_slice %618 {offsets = [27, 0], sizes = [1, 128], strides = [1, 1]} : vector<32x128xf32> to vector<1x128xf32>
    %c27_366 = arith.constant 27 : index
    %c0_367 = arith.constant 0 : index
    %c0_368 = arith.constant 0 : index
    %783 = vector.load %arg4[%c27_366, %c0_367, %c0_368] : memref<32x32x128xf32, #tpu.memory_space<vmem>>, vector<1x32x128xf32>
    %784 = vector.shape_cast %783 : vector<1x32x128xf32> to vector<32x128xf32>
    %785 = vector.broadcast %782 : vector<1x128xf32> to vector<32x128xf32>
    %786 = arith.mulf %785, %784 : vector<32x128xf32>
    %787 = arith.addf %781, %786 : vector<32x128xf32>
    %788 = vector.extract_strided_slice %618 {offsets = [28, 0], sizes = [1, 128], strides = [1, 1]} : vector<32x128xf32> to vector<1x128xf32>
    %c28_369 = arith.constant 28 : index
    %c0_370 = arith.constant 0 : index
    %c0_371 = arith.constant 0 : index
    %789 = vector.load %arg4[%c28_369, %c0_370, %c0_371] : memref<32x32x128xf32, #tpu.memory_space<vmem>>, vector<1x32x128xf32>
    %790 = vector.shape_cast %789 : vector<1x32x128xf32> to vector<32x128xf32>
    %791 = vector.broadcast %788 : vector<1x128xf32> to vector<32x128xf32>
    %792 = arith.mulf %791, %790 : vector<32x128xf32>
    %793 = arith.addf %787, %792 : vector<32x128xf32>
    %794 = vector.extract_strided_slice %618 {offsets = [29, 0], sizes = [1, 128], strides = [1, 1]} : vector<32x128xf32> to vector<1x128xf32>
    %c29_372 = arith.constant 29 : index
    %c0_373 = arith.constant 0 : index
    %c0_374 = arith.constant 0 : index
    %795 = vector.load %arg4[%c29_372, %c0_373, %c0_374] : memref<32x32x128xf32, #tpu.memory_space<vmem>>, vector<1x32x128xf32>
    %796 = vector.shape_cast %795 : vector<1x32x128xf32> to vector<32x128xf32>
    %797 = vector.broadcast %794 : vector<1x128xf32> to vector<32x128xf32>
    %798 = arith.mulf %797, %796 : vector<32x128xf32>
    %799 = arith.addf %793, %798 : vector<32x128xf32>
    %800 = vector.extract_strided_slice %618 {offsets = [30, 0], sizes = [1, 128], strides = [1, 1]} : vector<32x128xf32> to vector<1x128xf32>
    %c30_375 = arith.constant 30 : index
    %c0_376 = arith.constant 0 : index
    %c0_377 = arith.constant 0 : index
    %801 = vector.load %arg4[%c30_375, %c0_376, %c0_377] : memref<32x32x128xf32, #tpu.memory_space<vmem>>, vector<1x32x128xf32>
    %802 = vector.shape_cast %801 : vector<1x32x128xf32> to vector<32x128xf32>
    %803 = vector.broadcast %800 : vector<1x128xf32> to vector<32x128xf32>
    %804 = arith.mulf %803, %802 : vector<32x128xf32>
    %805 = arith.addf %799, %804 : vector<32x128xf32>
    %806 = vector.extract_strided_slice %618 {offsets = [31, 0], sizes = [1, 128], strides = [1, 1]} : vector<32x128xf32> to vector<1x128xf32>
    %c31_378 = arith.constant 31 : index
    %c0_379 = arith.constant 0 : index
    %c0_380 = arith.constant 0 : index
    %807 = vector.load %arg4[%c31_378, %c0_379, %c0_380] : memref<32x32x128xf32, #tpu.memory_space<vmem>>, vector<1x32x128xf32>
    %808 = vector.shape_cast %807 : vector<1x32x128xf32> to vector<32x128xf32>
    %809 = vector.broadcast %806 : vector<1x128xf32> to vector<32x128xf32>
    %810 = arith.mulf %809, %808 : vector<32x128xf32>
    %811 = arith.addf %805, %810 : vector<32x128xf32>
    %812 = vector.extract_strided_slice %2 {offsets = [0, 3], sizes = [32, 1], strides = [1, 1]} : vector<32x8xf32> to vector<32x1xf32>
    %813 = vector.broadcast %812 : vector<32x1xf32> to vector<32x128xf32>
    %814 = arith.addf %811, %813 : vector<32x128xf32>
    %cst_381 = arith.constant 0.000000e+00 : f32
    %815 = vector.broadcast %cst_381 : f32 to vector<32x128xf32>
    %816 = arith.maximumf %814, %815 : vector<32x128xf32>
    %817 = arith.mulf %816, %1 : vector<32x128xf32>
    %cst_382 = arith.constant dense<0.000000e+00> : vector<128xf32>
    %818 = vector.multi_reduction <add>, %817, %cst_382 [0] : vector<32x128xf32> to vector<128xf32>
    %819 = vector.shape_cast %818 : vector<128xf32> to vector<1x128xf32>
    %c4_383 = arith.constant 4 : index
    %c0_384 = arith.constant 0 : index
    %c0_385 = arith.constant 0 : index
    %820 = vector.load %arg2[%c4_383, %c0_384, %c0_385] : memref<8x32x128xf32, #tpu.memory_space<vmem>>, vector<1x32x128xf32>
    %821 = vector.shape_cast %820 : vector<1x32x128xf32> to vector<32x128xf32>
    %822 = arith.mulf %0, %821 : vector<32x128xf32>
    %cst_386 = arith.constant 0.000000e+00 : f32
    %823 = vector.broadcast %cst_386 : f32 to vector<32x128xf32>
    %824 = vector.extract_strided_slice %822 {offsets = [0, 0], sizes = [1, 128], strides = [1, 1]} : vector<32x128xf32> to vector<1x128xf32>
    %c0_387 = arith.constant 0 : index
    %c0_388 = arith.constant 0 : index
    %c0_389 = arith.constant 0 : index
    %825 = vector.load %arg4[%c0_387, %c0_388, %c0_389] : memref<32x32x128xf32, #tpu.memory_space<vmem>>, vector<1x32x128xf32>
    %826 = vector.shape_cast %825 : vector<1x32x128xf32> to vector<32x128xf32>
    %827 = vector.broadcast %824 : vector<1x128xf32> to vector<32x128xf32>
    %828 = arith.mulf %827, %826 : vector<32x128xf32>
    %829 = arith.addf %823, %828 : vector<32x128xf32>
    %830 = vector.extract_strided_slice %822 {offsets = [1, 0], sizes = [1, 128], strides = [1, 1]} : vector<32x128xf32> to vector<1x128xf32>
    %c1_390 = arith.constant 1 : index
    %c0_391 = arith.constant 0 : index
    %c0_392 = arith.constant 0 : index
    %831 = vector.load %arg4[%c1_390, %c0_391, %c0_392] : memref<32x32x128xf32, #tpu.memory_space<vmem>>, vector<1x32x128xf32>
    %832 = vector.shape_cast %831 : vector<1x32x128xf32> to vector<32x128xf32>
    %833 = vector.broadcast %830 : vector<1x128xf32> to vector<32x128xf32>
    %834 = arith.mulf %833, %832 : vector<32x128xf32>
    %835 = arith.addf %829, %834 : vector<32x128xf32>
    %836 = vector.extract_strided_slice %822 {offsets = [2, 0], sizes = [1, 128], strides = [1, 1]} : vector<32x128xf32> to vector<1x128xf32>
    %c2_393 = arith.constant 2 : index
    %c0_394 = arith.constant 0 : index
    %c0_395 = arith.constant 0 : index
    %837 = vector.load %arg4[%c2_393, %c0_394, %c0_395] : memref<32x32x128xf32, #tpu.memory_space<vmem>>, vector<1x32x128xf32>
    %838 = vector.shape_cast %837 : vector<1x32x128xf32> to vector<32x128xf32>
    %839 = vector.broadcast %836 : vector<1x128xf32> to vector<32x128xf32>
    %840 = arith.mulf %839, %838 : vector<32x128xf32>
    %841 = arith.addf %835, %840 : vector<32x128xf32>
    %842 = vector.extract_strided_slice %822 {offsets = [3, 0], sizes = [1, 128], strides = [1, 1]} : vector<32x128xf32> to vector<1x128xf32>
    %c3_396 = arith.constant 3 : index
    %c0_397 = arith.constant 0 : index
    %c0_398 = arith.constant 0 : index
    %843 = vector.load %arg4[%c3_396, %c0_397, %c0_398] : memref<32x32x128xf32, #tpu.memory_space<vmem>>, vector<1x32x128xf32>
    %844 = vector.shape_cast %843 : vector<1x32x128xf32> to vector<32x128xf32>
    %845 = vector.broadcast %842 : vector<1x128xf32> to vector<32x128xf32>
    %846 = arith.mulf %845, %844 : vector<32x128xf32>
    %847 = arith.addf %841, %846 : vector<32x128xf32>
    %848 = vector.extract_strided_slice %822 {offsets = [4, 0], sizes = [1, 128], strides = [1, 1]} : vector<32x128xf32> to vector<1x128xf32>
    %c4_399 = arith.constant 4 : index
    %c0_400 = arith.constant 0 : index
    %c0_401 = arith.constant 0 : index
    %849 = vector.load %arg4[%c4_399, %c0_400, %c0_401] : memref<32x32x128xf32, #tpu.memory_space<vmem>>, vector<1x32x128xf32>
    %850 = vector.shape_cast %849 : vector<1x32x128xf32> to vector<32x128xf32>
    %851 = vector.broadcast %848 : vector<1x128xf32> to vector<32x128xf32>
    %852 = arith.mulf %851, %850 : vector<32x128xf32>
    %853 = arith.addf %847, %852 : vector<32x128xf32>
    %854 = vector.extract_strided_slice %822 {offsets = [5, 0], sizes = [1, 128], strides = [1, 1]} : vector<32x128xf32> to vector<1x128xf32>
    %c5_402 = arith.constant 5 : index
    %c0_403 = arith.constant 0 : index
    %c0_404 = arith.constant 0 : index
    %855 = vector.load %arg4[%c5_402, %c0_403, %c0_404] : memref<32x32x128xf32, #tpu.memory_space<vmem>>, vector<1x32x128xf32>
    %856 = vector.shape_cast %855 : vector<1x32x128xf32> to vector<32x128xf32>
    %857 = vector.broadcast %854 : vector<1x128xf32> to vector<32x128xf32>
    %858 = arith.mulf %857, %856 : vector<32x128xf32>
    %859 = arith.addf %853, %858 : vector<32x128xf32>
    %860 = vector.extract_strided_slice %822 {offsets = [6, 0], sizes = [1, 128], strides = [1, 1]} : vector<32x128xf32> to vector<1x128xf32>
    %c6_405 = arith.constant 6 : index
    %c0_406 = arith.constant 0 : index
    %c0_407 = arith.constant 0 : index
    %861 = vector.load %arg4[%c6_405, %c0_406, %c0_407] : memref<32x32x128xf32, #tpu.memory_space<vmem>>, vector<1x32x128xf32>
    %862 = vector.shape_cast %861 : vector<1x32x128xf32> to vector<32x128xf32>
    %863 = vector.broadcast %860 : vector<1x128xf32> to vector<32x128xf32>
    %864 = arith.mulf %863, %862 : vector<32x128xf32>
    %865 = arith.addf %859, %864 : vector<32x128xf32>
    %866 = vector.extract_strided_slice %822 {offsets = [7, 0], sizes = [1, 128], strides = [1, 1]} : vector<32x128xf32> to vector<1x128xf32>
    %c7_408 = arith.constant 7 : index
    %c0_409 = arith.constant 0 : index
    %c0_410 = arith.constant 0 : index
    %867 = vector.load %arg4[%c7_408, %c0_409, %c0_410] : memref<32x32x128xf32, #tpu.memory_space<vmem>>, vector<1x32x128xf32>
    %868 = vector.shape_cast %867 : vector<1x32x128xf32> to vector<32x128xf32>
    %869 = vector.broadcast %866 : vector<1x128xf32> to vector<32x128xf32>
    %870 = arith.mulf %869, %868 : vector<32x128xf32>
    %871 = arith.addf %865, %870 : vector<32x128xf32>
    %872 = vector.extract_strided_slice %822 {offsets = [8, 0], sizes = [1, 128], strides = [1, 1]} : vector<32x128xf32> to vector<1x128xf32>
    %c8_411 = arith.constant 8 : index
    %c0_412 = arith.constant 0 : index
    %c0_413 = arith.constant 0 : index
    %873 = vector.load %arg4[%c8_411, %c0_412, %c0_413] : memref<32x32x128xf32, #tpu.memory_space<vmem>>, vector<1x32x128xf32>
    %874 = vector.shape_cast %873 : vector<1x32x128xf32> to vector<32x128xf32>
    %875 = vector.broadcast %872 : vector<1x128xf32> to vector<32x128xf32>
    %876 = arith.mulf %875, %874 : vector<32x128xf32>
    %877 = arith.addf %871, %876 : vector<32x128xf32>
    %878 = vector.extract_strided_slice %822 {offsets = [9, 0], sizes = [1, 128], strides = [1, 1]} : vector<32x128xf32> to vector<1x128xf32>
    %c9_414 = arith.constant 9 : index
    %c0_415 = arith.constant 0 : index
    %c0_416 = arith.constant 0 : index
    %879 = vector.load %arg4[%c9_414, %c0_415, %c0_416] : memref<32x32x128xf32, #tpu.memory_space<vmem>>, vector<1x32x128xf32>
    %880 = vector.shape_cast %879 : vector<1x32x128xf32> to vector<32x128xf32>
    %881 = vector.broadcast %878 : vector<1x128xf32> to vector<32x128xf32>
    %882 = arith.mulf %881, %880 : vector<32x128xf32>
    %883 = arith.addf %877, %882 : vector<32x128xf32>
    %884 = vector.extract_strided_slice %822 {offsets = [10, 0], sizes = [1, 128], strides = [1, 1]} : vector<32x128xf32> to vector<1x128xf32>
    %c10_417 = arith.constant 10 : index
    %c0_418 = arith.constant 0 : index
    %c0_419 = arith.constant 0 : index
    %885 = vector.load %arg4[%c10_417, %c0_418, %c0_419] : memref<32x32x128xf32, #tpu.memory_space<vmem>>, vector<1x32x128xf32>
    %886 = vector.shape_cast %885 : vector<1x32x128xf32> to vector<32x128xf32>
    %887 = vector.broadcast %884 : vector<1x128xf32> to vector<32x128xf32>
    %888 = arith.mulf %887, %886 : vector<32x128xf32>
    %889 = arith.addf %883, %888 : vector<32x128xf32>
    %890 = vector.extract_strided_slice %822 {offsets = [11, 0], sizes = [1, 128], strides = [1, 1]} : vector<32x128xf32> to vector<1x128xf32>
    %c11_420 = arith.constant 11 : index
    %c0_421 = arith.constant 0 : index
    %c0_422 = arith.constant 0 : index
    %891 = vector.load %arg4[%c11_420, %c0_421, %c0_422] : memref<32x32x128xf32, #tpu.memory_space<vmem>>, vector<1x32x128xf32>
    %892 = vector.shape_cast %891 : vector<1x32x128xf32> to vector<32x128xf32>
    %893 = vector.broadcast %890 : vector<1x128xf32> to vector<32x128xf32>
    %894 = arith.mulf %893, %892 : vector<32x128xf32>
    %895 = arith.addf %889, %894 : vector<32x128xf32>
    %896 = vector.extract_strided_slice %822 {offsets = [12, 0], sizes = [1, 128], strides = [1, 1]} : vector<32x128xf32> to vector<1x128xf32>
    %c12_423 = arith.constant 12 : index
    %c0_424 = arith.constant 0 : index
    %c0_425 = arith.constant 0 : index
    %897 = vector.load %arg4[%c12_423, %c0_424, %c0_425] : memref<32x32x128xf32, #tpu.memory_space<vmem>>, vector<1x32x128xf32>
    %898 = vector.shape_cast %897 : vector<1x32x128xf32> to vector<32x128xf32>
    %899 = vector.broadcast %896 : vector<1x128xf32> to vector<32x128xf32>
    %900 = arith.mulf %899, %898 : vector<32x128xf32>
    %901 = arith.addf %895, %900 : vector<32x128xf32>
    %902 = vector.extract_strided_slice %822 {offsets = [13, 0], sizes = [1, 128], strides = [1, 1]} : vector<32x128xf32> to vector<1x128xf32>
    %c13_426 = arith.constant 13 : index
    %c0_427 = arith.constant 0 : index
    %c0_428 = arith.constant 0 : index
    %903 = vector.load %arg4[%c13_426, %c0_427, %c0_428] : memref<32x32x128xf32, #tpu.memory_space<vmem>>, vector<1x32x128xf32>
    %904 = vector.shape_cast %903 : vector<1x32x128xf32> to vector<32x128xf32>
    %905 = vector.broadcast %902 : vector<1x128xf32> to vector<32x128xf32>
    %906 = arith.mulf %905, %904 : vector<32x128xf32>
    %907 = arith.addf %901, %906 : vector<32x128xf32>
    %908 = vector.extract_strided_slice %822 {offsets = [14, 0], sizes = [1, 128], strides = [1, 1]} : vector<32x128xf32> to vector<1x128xf32>
    %c14_429 = arith.constant 14 : index
    %c0_430 = arith.constant 0 : index
    %c0_431 = arith.constant 0 : index
    %909 = vector.load %arg4[%c14_429, %c0_430, %c0_431] : memref<32x32x128xf32, #tpu.memory_space<vmem>>, vector<1x32x128xf32>
    %910 = vector.shape_cast %909 : vector<1x32x128xf32> to vector<32x128xf32>
    %911 = vector.broadcast %908 : vector<1x128xf32> to vector<32x128xf32>
    %912 = arith.mulf %911, %910 : vector<32x128xf32>
    %913 = arith.addf %907, %912 : vector<32x128xf32>
    %914 = vector.extract_strided_slice %822 {offsets = [15, 0], sizes = [1, 128], strides = [1, 1]} : vector<32x128xf32> to vector<1x128xf32>
    %c15_432 = arith.constant 15 : index
    %c0_433 = arith.constant 0 : index
    %c0_434 = arith.constant 0 : index
    %915 = vector.load %arg4[%c15_432, %c0_433, %c0_434] : memref<32x32x128xf32, #tpu.memory_space<vmem>>, vector<1x32x128xf32>
    %916 = vector.shape_cast %915 : vector<1x32x128xf32> to vector<32x128xf32>
    %917 = vector.broadcast %914 : vector<1x128xf32> to vector<32x128xf32>
    %918 = arith.mulf %917, %916 : vector<32x128xf32>
    %919 = arith.addf %913, %918 : vector<32x128xf32>
    %920 = vector.extract_strided_slice %822 {offsets = [16, 0], sizes = [1, 128], strides = [1, 1]} : vector<32x128xf32> to vector<1x128xf32>
    %c16_435 = arith.constant 16 : index
    %c0_436 = arith.constant 0 : index
    %c0_437 = arith.constant 0 : index
    %921 = vector.load %arg4[%c16_435, %c0_436, %c0_437] : memref<32x32x128xf32, #tpu.memory_space<vmem>>, vector<1x32x128xf32>
    %922 = vector.shape_cast %921 : vector<1x32x128xf32> to vector<32x128xf32>
    %923 = vector.broadcast %920 : vector<1x128xf32> to vector<32x128xf32>
    %924 = arith.mulf %923, %922 : vector<32x128xf32>
    %925 = arith.addf %919, %924 : vector<32x128xf32>
    %926 = vector.extract_strided_slice %822 {offsets = [17, 0], sizes = [1, 128], strides = [1, 1]} : vector<32x128xf32> to vector<1x128xf32>
    %c17_438 = arith.constant 17 : index
    %c0_439 = arith.constant 0 : index
    %c0_440 = arith.constant 0 : index
    %927 = vector.load %arg4[%c17_438, %c0_439, %c0_440] : memref<32x32x128xf32, #tpu.memory_space<vmem>>, vector<1x32x128xf32>
    %928 = vector.shape_cast %927 : vector<1x32x128xf32> to vector<32x128xf32>
    %929 = vector.broadcast %926 : vector<1x128xf32> to vector<32x128xf32>
    %930 = arith.mulf %929, %928 : vector<32x128xf32>
    %931 = arith.addf %925, %930 : vector<32x128xf32>
    %932 = vector.extract_strided_slice %822 {offsets = [18, 0], sizes = [1, 128], strides = [1, 1]} : vector<32x128xf32> to vector<1x128xf32>
    %c18_441 = arith.constant 18 : index
    %c0_442 = arith.constant 0 : index
    %c0_443 = arith.constant 0 : index
    %933 = vector.load %arg4[%c18_441, %c0_442, %c0_443] : memref<32x32x128xf32, #tpu.memory_space<vmem>>, vector<1x32x128xf32>
    %934 = vector.shape_cast %933 : vector<1x32x128xf32> to vector<32x128xf32>
    %935 = vector.broadcast %932 : vector<1x128xf32> to vector<32x128xf32>
    %936 = arith.mulf %935, %934 : vector<32x128xf32>
    %937 = arith.addf %931, %936 : vector<32x128xf32>
    %938 = vector.extract_strided_slice %822 {offsets = [19, 0], sizes = [1, 128], strides = [1, 1]} : vector<32x128xf32> to vector<1x128xf32>
    %c19_444 = arith.constant 19 : index
    %c0_445 = arith.constant 0 : index
    %c0_446 = arith.constant 0 : index
    %939 = vector.load %arg4[%c19_444, %c0_445, %c0_446] : memref<32x32x128xf32, #tpu.memory_space<vmem>>, vector<1x32x128xf32>
    %940 = vector.shape_cast %939 : vector<1x32x128xf32> to vector<32x128xf32>
    %941 = vector.broadcast %938 : vector<1x128xf32> to vector<32x128xf32>
    %942 = arith.mulf %941, %940 : vector<32x128xf32>
    %943 = arith.addf %937, %942 : vector<32x128xf32>
    %944 = vector.extract_strided_slice %822 {offsets = [20, 0], sizes = [1, 128], strides = [1, 1]} : vector<32x128xf32> to vector<1x128xf32>
    %c20_447 = arith.constant 20 : index
    %c0_448 = arith.constant 0 : index
    %c0_449 = arith.constant 0 : index
    %945 = vector.load %arg4[%c20_447, %c0_448, %c0_449] : memref<32x32x128xf32, #tpu.memory_space<vmem>>, vector<1x32x128xf32>
    %946 = vector.shape_cast %945 : vector<1x32x128xf32> to vector<32x128xf32>
    %947 = vector.broadcast %944 : vector<1x128xf32> to vector<32x128xf32>
    %948 = arith.mulf %947, %946 : vector<32x128xf32>
    %949 = arith.addf %943, %948 : vector<32x128xf32>
    %950 = vector.extract_strided_slice %822 {offsets = [21, 0], sizes = [1, 128], strides = [1, 1]} : vector<32x128xf32> to vector<1x128xf32>
    %c21_450 = arith.constant 21 : index
    %c0_451 = arith.constant 0 : index
    %c0_452 = arith.constant 0 : index
    %951 = vector.load %arg4[%c21_450, %c0_451, %c0_452] : memref<32x32x128xf32, #tpu.memory_space<vmem>>, vector<1x32x128xf32>
    %952 = vector.shape_cast %951 : vector<1x32x128xf32> to vector<32x128xf32>
    %953 = vector.broadcast %950 : vector<1x128xf32> to vector<32x128xf32>
    %954 = arith.mulf %953, %952 : vector<32x128xf32>
    %955 = arith.addf %949, %954 : vector<32x128xf32>
    %956 = vector.extract_strided_slice %822 {offsets = [22, 0], sizes = [1, 128], strides = [1, 1]} : vector<32x128xf32> to vector<1x128xf32>
    %c22_453 = arith.constant 22 : index
    %c0_454 = arith.constant 0 : index
    %c0_455 = arith.constant 0 : index
    %957 = vector.load %arg4[%c22_453, %c0_454, %c0_455] : memref<32x32x128xf32, #tpu.memory_space<vmem>>, vector<1x32x128xf32>
    %958 = vector.shape_cast %957 : vector<1x32x128xf32> to vector<32x128xf32>
    %959 = vector.broadcast %956 : vector<1x128xf32> to vector<32x128xf32>
    %960 = arith.mulf %959, %958 : vector<32x128xf32>
    %961 = arith.addf %955, %960 : vector<32x128xf32>
    %962 = vector.extract_strided_slice %822 {offsets = [23, 0], sizes = [1, 128], strides = [1, 1]} : vector<32x128xf32> to vector<1x128xf32>
    %c23_456 = arith.constant 23 : index
    %c0_457 = arith.constant 0 : index
    %c0_458 = arith.constant 0 : index
    %963 = vector.load %arg4[%c23_456, %c0_457, %c0_458] : memref<32x32x128xf32, #tpu.memory_space<vmem>>, vector<1x32x128xf32>
    %964 = vector.shape_cast %963 : vector<1x32x128xf32> to vector<32x128xf32>
    %965 = vector.broadcast %962 : vector<1x128xf32> to vector<32x128xf32>
    %966 = arith.mulf %965, %964 : vector<32x128xf32>
    %967 = arith.addf %961, %966 : vector<32x128xf32>
    %968 = vector.extract_strided_slice %822 {offsets = [24, 0], sizes = [1, 128], strides = [1, 1]} : vector<32x128xf32> to vector<1x128xf32>
    %c24_459 = arith.constant 24 : index
    %c0_460 = arith.constant 0 : index
    %c0_461 = arith.constant 0 : index
    %969 = vector.load %arg4[%c24_459, %c0_460, %c0_461] : memref<32x32x128xf32, #tpu.memory_space<vmem>>, vector<1x32x128xf32>
    %970 = vector.shape_cast %969 : vector<1x32x128xf32> to vector<32x128xf32>
    %971 = vector.broadcast %968 : vector<1x128xf32> to vector<32x128xf32>
    %972 = arith.mulf %971, %970 : vector<32x128xf32>
    %973 = arith.addf %967, %972 : vector<32x128xf32>
    %974 = vector.extract_strided_slice %822 {offsets = [25, 0], sizes = [1, 128], strides = [1, 1]} : vector<32x128xf32> to vector<1x128xf32>
    %c25_462 = arith.constant 25 : index
    %c0_463 = arith.constant 0 : index
    %c0_464 = arith.constant 0 : index
    %975 = vector.load %arg4[%c25_462, %c0_463, %c0_464] : memref<32x32x128xf32, #tpu.memory_space<vmem>>, vector<1x32x128xf32>
    %976 = vector.shape_cast %975 : vector<1x32x128xf32> to vector<32x128xf32>
    %977 = vector.broadcast %974 : vector<1x128xf32> to vector<32x128xf32>
    %978 = arith.mulf %977, %976 : vector<32x128xf32>
    %979 = arith.addf %973, %978 : vector<32x128xf32>
    %980 = vector.extract_strided_slice %822 {offsets = [26, 0], sizes = [1, 128], strides = [1, 1]} : vector<32x128xf32> to vector<1x128xf32>
    %c26_465 = arith.constant 26 : index
    %c0_466 = arith.constant 0 : index
    %c0_467 = arith.constant 0 : index
    %981 = vector.load %arg4[%c26_465, %c0_466, %c0_467] : memref<32x32x128xf32, #tpu.memory_space<vmem>>, vector<1x32x128xf32>
    %982 = vector.shape_cast %981 : vector<1x32x128xf32> to vector<32x128xf32>
    %983 = vector.broadcast %980 : vector<1x128xf32> to vector<32x128xf32>
    %984 = arith.mulf %983, %982 : vector<32x128xf32>
    %985 = arith.addf %979, %984 : vector<32x128xf32>
    %986 = vector.extract_strided_slice %822 {offsets = [27, 0], sizes = [1, 128], strides = [1, 1]} : vector<32x128xf32> to vector<1x128xf32>
    %c27_468 = arith.constant 27 : index
    %c0_469 = arith.constant 0 : index
    %c0_470 = arith.constant 0 : index
    %987 = vector.load %arg4[%c27_468, %c0_469, %c0_470] : memref<32x32x128xf32, #tpu.memory_space<vmem>>, vector<1x32x128xf32>
    %988 = vector.shape_cast %987 : vector<1x32x128xf32> to vector<32x128xf32>
    %989 = vector.broadcast %986 : vector<1x128xf32> to vector<32x128xf32>
    %990 = arith.mulf %989, %988 : vector<32x128xf32>
    %991 = arith.addf %985, %990 : vector<32x128xf32>
    %992 = vector.extract_strided_slice %822 {offsets = [28, 0], sizes = [1, 128], strides = [1, 1]} : vector<32x128xf32> to vector<1x128xf32>
    %c28_471 = arith.constant 28 : index
    %c0_472 = arith.constant 0 : index
    %c0_473 = arith.constant 0 : index
    %993 = vector.load %arg4[%c28_471, %c0_472, %c0_473] : memref<32x32x128xf32, #tpu.memory_space<vmem>>, vector<1x32x128xf32>
    %994 = vector.shape_cast %993 : vector<1x32x128xf32> to vector<32x128xf32>
    %995 = vector.broadcast %992 : vector<1x128xf32> to vector<32x128xf32>
    %996 = arith.mulf %995, %994 : vector<32x128xf32>
    %997 = arith.addf %991, %996 : vector<32x128xf32>
    %998 = vector.extract_strided_slice %822 {offsets = [29, 0], sizes = [1, 128], strides = [1, 1]} : vector<32x128xf32> to vector<1x128xf32>
    %c29_474 = arith.constant 29 : index
    %c0_475 = arith.constant 0 : index
    %c0_476 = arith.constant 0 : index
    %999 = vector.load %arg4[%c29_474, %c0_475, %c0_476] : memref<32x32x128xf32, #tpu.memory_space<vmem>>, vector<1x32x128xf32>
    %1000 = vector.shape_cast %999 : vector<1x32x128xf32> to vector<32x128xf32>
    %1001 = vector.broadcast %998 : vector<1x128xf32> to vector<32x128xf32>
    %1002 = arith.mulf %1001, %1000 : vector<32x128xf32>
    %1003 = arith.addf %997, %1002 : vector<32x128xf32>
    %1004 = vector.extract_strided_slice %822 {offsets = [30, 0], sizes = [1, 128], strides = [1, 1]} : vector<32x128xf32> to vector<1x128xf32>
    %c30_477 = arith.constant 30 : index
    %c0_478 = arith.constant 0 : index
    %c0_479 = arith.constant 0 : index
    %1005 = vector.load %arg4[%c30_477, %c0_478, %c0_479] : memref<32x32x128xf32, #tpu.memory_space<vmem>>, vector<1x32x128xf32>
    %1006 = vector.shape_cast %1005 : vector<1x32x128xf32> to vector<32x128xf32>
    %1007 = vector.broadcast %1004 : vector<1x128xf32> to vector<32x128xf32>
    %1008 = arith.mulf %1007, %1006 : vector<32x128xf32>
    %1009 = arith.addf %1003, %1008 : vector<32x128xf32>
    %1010 = vector.extract_strided_slice %822 {offsets = [31, 0], sizes = [1, 128], strides = [1, 1]} : vector<32x128xf32> to vector<1x128xf32>
    %c31_480 = arith.constant 31 : index
    %c0_481 = arith.constant 0 : index
    %c0_482 = arith.constant 0 : index
    %1011 = vector.load %arg4[%c31_480, %c0_481, %c0_482] : memref<32x32x128xf32, #tpu.memory_space<vmem>>, vector<1x32x128xf32>
    %1012 = vector.shape_cast %1011 : vector<1x32x128xf32> to vector<32x128xf32>
    %1013 = vector.broadcast %1010 : vector<1x128xf32> to vector<32x128xf32>
    %1014 = arith.mulf %1013, %1012 : vector<32x128xf32>
    %1015 = arith.addf %1009, %1014 : vector<32x128xf32>
    %1016 = vector.extract_strided_slice %2 {offsets = [0, 4], sizes = [32, 1], strides = [1, 1]} : vector<32x8xf32> to vector<32x1xf32>
    %1017 = vector.broadcast %1016 : vector<32x1xf32> to vector<32x128xf32>
    %1018 = arith.addf %1015, %1017 : vector<32x128xf32>
    %cst_483 = arith.constant 0.000000e+00 : f32
    %1019 = vector.broadcast %cst_483 : f32 to vector<32x128xf32>
    %1020 = arith.maximumf %1018, %1019 : vector<32x128xf32>
    %1021 = arith.mulf %1020, %1 : vector<32x128xf32>
    %cst_484 = arith.constant dense<0.000000e+00> : vector<128xf32>
    %1022 = vector.multi_reduction <add>, %1021, %cst_484 [0] : vector<32x128xf32> to vector<128xf32>
    %1023 = vector.shape_cast %1022 : vector<128xf32> to vector<1x128xf32>
    %c5_485 = arith.constant 5 : index
    %c0_486 = arith.constant 0 : index
    %c0_487 = arith.constant 0 : index
    %1024 = vector.load %arg2[%c5_485, %c0_486, %c0_487] : memref<8x32x128xf32, #tpu.memory_space<vmem>>, vector<1x32x128xf32>
    %1025 = vector.shape_cast %1024 : vector<1x32x128xf32> to vector<32x128xf32>
    %1026 = arith.mulf %0, %1025 : vector<32x128xf32>
    %cst_488 = arith.constant 0.000000e+00 : f32
    %1027 = vector.broadcast %cst_488 : f32 to vector<32x128xf32>
    %1028 = vector.extract_strided_slice %1026 {offsets = [0, 0], sizes = [1, 128], strides = [1, 1]} : vector<32x128xf32> to vector<1x128xf32>
    %c0_489 = arith.constant 0 : index
    %c0_490 = arith.constant 0 : index
    %c0_491 = arith.constant 0 : index
    %1029 = vector.load %arg4[%c0_489, %c0_490, %c0_491] : memref<32x32x128xf32, #tpu.memory_space<vmem>>, vector<1x32x128xf32>
    %1030 = vector.shape_cast %1029 : vector<1x32x128xf32> to vector<32x128xf32>
    %1031 = vector.broadcast %1028 : vector<1x128xf32> to vector<32x128xf32>
    %1032 = arith.mulf %1031, %1030 : vector<32x128xf32>
    %1033 = arith.addf %1027, %1032 : vector<32x128xf32>
    %1034 = vector.extract_strided_slice %1026 {offsets = [1, 0], sizes = [1, 128], strides = [1, 1]} : vector<32x128xf32> to vector<1x128xf32>
    %c1_492 = arith.constant 1 : index
    %c0_493 = arith.constant 0 : index
    %c0_494 = arith.constant 0 : index
    %1035 = vector.load %arg4[%c1_492, %c0_493, %c0_494] : memref<32x32x128xf32, #tpu.memory_space<vmem>>, vector<1x32x128xf32>
    %1036 = vector.shape_cast %1035 : vector<1x32x128xf32> to vector<32x128xf32>
    %1037 = vector.broadcast %1034 : vector<1x128xf32> to vector<32x128xf32>
    %1038 = arith.mulf %1037, %1036 : vector<32x128xf32>
    %1039 = arith.addf %1033, %1038 : vector<32x128xf32>
    %1040 = vector.extract_strided_slice %1026 {offsets = [2, 0], sizes = [1, 128], strides = [1, 1]} : vector<32x128xf32> to vector<1x128xf32>
    %c2_495 = arith.constant 2 : index
    %c0_496 = arith.constant 0 : index
    %c0_497 = arith.constant 0 : index
    %1041 = vector.load %arg4[%c2_495, %c0_496, %c0_497] : memref<32x32x128xf32, #tpu.memory_space<vmem>>, vector<1x32x128xf32>
    %1042 = vector.shape_cast %1041 : vector<1x32x128xf32> to vector<32x128xf32>
    %1043 = vector.broadcast %1040 : vector<1x128xf32> to vector<32x128xf32>
    %1044 = arith.mulf %1043, %1042 : vector<32x128xf32>
    %1045 = arith.addf %1039, %1044 : vector<32x128xf32>
    %1046 = vector.extract_strided_slice %1026 {offsets = [3, 0], sizes = [1, 128], strides = [1, 1]} : vector<32x128xf32> to vector<1x128xf32>
    %c3_498 = arith.constant 3 : index
    %c0_499 = arith.constant 0 : index
    %c0_500 = arith.constant 0 : index
    %1047 = vector.load %arg4[%c3_498, %c0_499, %c0_500] : memref<32x32x128xf32, #tpu.memory_space<vmem>>, vector<1x32x128xf32>
    %1048 = vector.shape_cast %1047 : vector<1x32x128xf32> to vector<32x128xf32>
    %1049 = vector.broadcast %1046 : vector<1x128xf32> to vector<32x128xf32>
    %1050 = arith.mulf %1049, %1048 : vector<32x128xf32>
    %1051 = arith.addf %1045, %1050 : vector<32x128xf32>
    %1052 = vector.extract_strided_slice %1026 {offsets = [4, 0], sizes = [1, 128], strides = [1, 1]} : vector<32x128xf32> to vector<1x128xf32>
    %c4_501 = arith.constant 4 : index
    %c0_502 = arith.constant 0 : index
    %c0_503 = arith.constant 0 : index
    %1053 = vector.load %arg4[%c4_501, %c0_502, %c0_503] : memref<32x32x128xf32, #tpu.memory_space<vmem>>, vector<1x32x128xf32>
    %1054 = vector.shape_cast %1053 : vector<1x32x128xf32> to vector<32x128xf32>
    %1055 = vector.broadcast %1052 : vector<1x128xf32> to vector<32x128xf32>
    %1056 = arith.mulf %1055, %1054 : vector<32x128xf32>
    %1057 = arith.addf %1051, %1056 : vector<32x128xf32>
    %1058 = vector.extract_strided_slice %1026 {offsets = [5, 0], sizes = [1, 128], strides = [1, 1]} : vector<32x128xf32> to vector<1x128xf32>
    %c5_504 = arith.constant 5 : index
    %c0_505 = arith.constant 0 : index
    %c0_506 = arith.constant 0 : index
    %1059 = vector.load %arg4[%c5_504, %c0_505, %c0_506] : memref<32x32x128xf32, #tpu.memory_space<vmem>>, vector<1x32x128xf32>
    %1060 = vector.shape_cast %1059 : vector<1x32x128xf32> to vector<32x128xf32>
    %1061 = vector.broadcast %1058 : vector<1x128xf32> to vector<32x128xf32>
    %1062 = arith.mulf %1061, %1060 : vector<32x128xf32>
    %1063 = arith.addf %1057, %1062 : vector<32x128xf32>
    %1064 = vector.extract_strided_slice %1026 {offsets = [6, 0], sizes = [1, 128], strides = [1, 1]} : vector<32x128xf32> to vector<1x128xf32>
    %c6_507 = arith.constant 6 : index
    %c0_508 = arith.constant 0 : index
    %c0_509 = arith.constant 0 : index
    %1065 = vector.load %arg4[%c6_507, %c0_508, %c0_509] : memref<32x32x128xf32, #tpu.memory_space<vmem>>, vector<1x32x128xf32>
    %1066 = vector.shape_cast %1065 : vector<1x32x128xf32> to vector<32x128xf32>
    %1067 = vector.broadcast %1064 : vector<1x128xf32> to vector<32x128xf32>
    %1068 = arith.mulf %1067, %1066 : vector<32x128xf32>
    %1069 = arith.addf %1063, %1068 : vector<32x128xf32>
    %1070 = vector.extract_strided_slice %1026 {offsets = [7, 0], sizes = [1, 128], strides = [1, 1]} : vector<32x128xf32> to vector<1x128xf32>
    %c7_510 = arith.constant 7 : index
    %c0_511 = arith.constant 0 : index
    %c0_512 = arith.constant 0 : index
    %1071 = vector.load %arg4[%c7_510, %c0_511, %c0_512] : memref<32x32x128xf32, #tpu.memory_space<vmem>>, vector<1x32x128xf32>
    %1072 = vector.shape_cast %1071 : vector<1x32x128xf32> to vector<32x128xf32>
    %1073 = vector.broadcast %1070 : vector<1x128xf32> to vector<32x128xf32>
    %1074 = arith.mulf %1073, %1072 : vector<32x128xf32>
    %1075 = arith.addf %1069, %1074 : vector<32x128xf32>
    %1076 = vector.extract_strided_slice %1026 {offsets = [8, 0], sizes = [1, 128], strides = [1, 1]} : vector<32x128xf32> to vector<1x128xf32>
    %c8_513 = arith.constant 8 : index
    %c0_514 = arith.constant 0 : index
    %c0_515 = arith.constant 0 : index
    %1077 = vector.load %arg4[%c8_513, %c0_514, %c0_515] : memref<32x32x128xf32, #tpu.memory_space<vmem>>, vector<1x32x128xf32>
    %1078 = vector.shape_cast %1077 : vector<1x32x128xf32> to vector<32x128xf32>
    %1079 = vector.broadcast %1076 : vector<1x128xf32> to vector<32x128xf32>
    %1080 = arith.mulf %1079, %1078 : vector<32x128xf32>
    %1081 = arith.addf %1075, %1080 : vector<32x128xf32>
    %1082 = vector.extract_strided_slice %1026 {offsets = [9, 0], sizes = [1, 128], strides = [1, 1]} : vector<32x128xf32> to vector<1x128xf32>
    %c9_516 = arith.constant 9 : index
    %c0_517 = arith.constant 0 : index
    %c0_518 = arith.constant 0 : index
    %1083 = vector.load %arg4[%c9_516, %c0_517, %c0_518] : memref<32x32x128xf32, #tpu.memory_space<vmem>>, vector<1x32x128xf32>
    %1084 = vector.shape_cast %1083 : vector<1x32x128xf32> to vector<32x128xf32>
    %1085 = vector.broadcast %1082 : vector<1x128xf32> to vector<32x128xf32>
    %1086 = arith.mulf %1085, %1084 : vector<32x128xf32>
    %1087 = arith.addf %1081, %1086 : vector<32x128xf32>
    %1088 = vector.extract_strided_slice %1026 {offsets = [10, 0], sizes = [1, 128], strides = [1, 1]} : vector<32x128xf32> to vector<1x128xf32>
    %c10_519 = arith.constant 10 : index
    %c0_520 = arith.constant 0 : index
    %c0_521 = arith.constant 0 : index
    %1089 = vector.load %arg4[%c10_519, %c0_520, %c0_521] : memref<32x32x128xf32, #tpu.memory_space<vmem>>, vector<1x32x128xf32>
    %1090 = vector.shape_cast %1089 : vector<1x32x128xf32> to vector<32x128xf32>
    %1091 = vector.broadcast %1088 : vector<1x128xf32> to vector<32x128xf32>
    %1092 = arith.mulf %1091, %1090 : vector<32x128xf32>
    %1093 = arith.addf %1087, %1092 : vector<32x128xf32>
    %1094 = vector.extract_strided_slice %1026 {offsets = [11, 0], sizes = [1, 128], strides = [1, 1]} : vector<32x128xf32> to vector<1x128xf32>
    %c11_522 = arith.constant 11 : index
    %c0_523 = arith.constant 0 : index
    %c0_524 = arith.constant 0 : index
    %1095 = vector.load %arg4[%c11_522, %c0_523, %c0_524] : memref<32x32x128xf32, #tpu.memory_space<vmem>>, vector<1x32x128xf32>
    %1096 = vector.shape_cast %1095 : vector<1x32x128xf32> to vector<32x128xf32>
    %1097 = vector.broadcast %1094 : vector<1x128xf32> to vector<32x128xf32>
    %1098 = arith.mulf %1097, %1096 : vector<32x128xf32>
    %1099 = arith.addf %1093, %1098 : vector<32x128xf32>
    %1100 = vector.extract_strided_slice %1026 {offsets = [12, 0], sizes = [1, 128], strides = [1, 1]} : vector<32x128xf32> to vector<1x128xf32>
    %c12_525 = arith.constant 12 : index
    %c0_526 = arith.constant 0 : index
    %c0_527 = arith.constant 0 : index
    %1101 = vector.load %arg4[%c12_525, %c0_526, %c0_527] : memref<32x32x128xf32, #tpu.memory_space<vmem>>, vector<1x32x128xf32>
    %1102 = vector.shape_cast %1101 : vector<1x32x128xf32> to vector<32x128xf32>
    %1103 = vector.broadcast %1100 : vector<1x128xf32> to vector<32x128xf32>
    %1104 = arith.mulf %1103, %1102 : vector<32x128xf32>
    %1105 = arith.addf %1099, %1104 : vector<32x128xf32>
    %1106 = vector.extract_strided_slice %1026 {offsets = [13, 0], sizes = [1, 128], strides = [1, 1]} : vector<32x128xf32> to vector<1x128xf32>
    %c13_528 = arith.constant 13 : index
    %c0_529 = arith.constant 0 : index
    %c0_530 = arith.constant 0 : index
    %1107 = vector.load %arg4[%c13_528, %c0_529, %c0_530] : memref<32x32x128xf32, #tpu.memory_space<vmem>>, vector<1x32x128xf32>
    %1108 = vector.shape_cast %1107 : vector<1x32x128xf32> to vector<32x128xf32>
    %1109 = vector.broadcast %1106 : vector<1x128xf32> to vector<32x128xf32>
    %1110 = arith.mulf %1109, %1108 : vector<32x128xf32>
    %1111 = arith.addf %1105, %1110 : vector<32x128xf32>
    %1112 = vector.extract_strided_slice %1026 {offsets = [14, 0], sizes = [1, 128], strides = [1, 1]} : vector<32x128xf32> to vector<1x128xf32>
    %c14_531 = arith.constant 14 : index
    %c0_532 = arith.constant 0 : index
    %c0_533 = arith.constant 0 : index
    %1113 = vector.load %arg4[%c14_531, %c0_532, %c0_533] : memref<32x32x128xf32, #tpu.memory_space<vmem>>, vector<1x32x128xf32>
    %1114 = vector.shape_cast %1113 : vector<1x32x128xf32> to vector<32x128xf32>
    %1115 = vector.broadcast %1112 : vector<1x128xf32> to vector<32x128xf32>
    %1116 = arith.mulf %1115, %1114 : vector<32x128xf32>
    %1117 = arith.addf %1111, %1116 : vector<32x128xf32>
    %1118 = vector.extract_strided_slice %1026 {offsets = [15, 0], sizes = [1, 128], strides = [1, 1]} : vector<32x128xf32> to vector<1x128xf32>
    %c15_534 = arith.constant 15 : index
    %c0_535 = arith.constant 0 : index
    %c0_536 = arith.constant 0 : index
    %1119 = vector.load %arg4[%c15_534, %c0_535, %c0_536] : memref<32x32x128xf32, #tpu.memory_space<vmem>>, vector<1x32x128xf32>
    %1120 = vector.shape_cast %1119 : vector<1x32x128xf32> to vector<32x128xf32>
    %1121 = vector.broadcast %1118 : vector<1x128xf32> to vector<32x128xf32>
    %1122 = arith.mulf %1121, %1120 : vector<32x128xf32>
    %1123 = arith.addf %1117, %1122 : vector<32x128xf32>
    %1124 = vector.extract_strided_slice %1026 {offsets = [16, 0], sizes = [1, 128], strides = [1, 1]} : vector<32x128xf32> to vector<1x128xf32>
    %c16_537 = arith.constant 16 : index
    %c0_538 = arith.constant 0 : index
    %c0_539 = arith.constant 0 : index
    %1125 = vector.load %arg4[%c16_537, %c0_538, %c0_539] : memref<32x32x128xf32, #tpu.memory_space<vmem>>, vector<1x32x128xf32>
    %1126 = vector.shape_cast %1125 : vector<1x32x128xf32> to vector<32x128xf32>
    %1127 = vector.broadcast %1124 : vector<1x128xf32> to vector<32x128xf32>
    %1128 = arith.mulf %1127, %1126 : vector<32x128xf32>
    %1129 = arith.addf %1123, %1128 : vector<32x128xf32>
    %1130 = vector.extract_strided_slice %1026 {offsets = [17, 0], sizes = [1, 128], strides = [1, 1]} : vector<32x128xf32> to vector<1x128xf32>
    %c17_540 = arith.constant 17 : index
    %c0_541 = arith.constant 0 : index
    %c0_542 = arith.constant 0 : index
    %1131 = vector.load %arg4[%c17_540, %c0_541, %c0_542] : memref<32x32x128xf32, #tpu.memory_space<vmem>>, vector<1x32x128xf32>
    %1132 = vector.shape_cast %1131 : vector<1x32x128xf32> to vector<32x128xf32>
    %1133 = vector.broadcast %1130 : vector<1x128xf32> to vector<32x128xf32>
    %1134 = arith.mulf %1133, %1132 : vector<32x128xf32>
    %1135 = arith.addf %1129, %1134 : vector<32x128xf32>
    %1136 = vector.extract_strided_slice %1026 {offsets = [18, 0], sizes = [1, 128], strides = [1, 1]} : vector<32x128xf32> to vector<1x128xf32>
    %c18_543 = arith.constant 18 : index
    %c0_544 = arith.constant 0 : index
    %c0_545 = arith.constant 0 : index
    %1137 = vector.load %arg4[%c18_543, %c0_544, %c0_545] : memref<32x32x128xf32, #tpu.memory_space<vmem>>, vector<1x32x128xf32>
    %1138 = vector.shape_cast %1137 : vector<1x32x128xf32> to vector<32x128xf32>
    %1139 = vector.broadcast %1136 : vector<1x128xf32> to vector<32x128xf32>
    %1140 = arith.mulf %1139, %1138 : vector<32x128xf32>
    %1141 = arith.addf %1135, %1140 : vector<32x128xf32>
    %1142 = vector.extract_strided_slice %1026 {offsets = [19, 0], sizes = [1, 128], strides = [1, 1]} : vector<32x128xf32> to vector<1x128xf32>
    %c19_546 = arith.constant 19 : index
    %c0_547 = arith.constant 0 : index
    %c0_548 = arith.constant 0 : index
    %1143 = vector.load %arg4[%c19_546, %c0_547, %c0_548] : memref<32x32x128xf32, #tpu.memory_space<vmem>>, vector<1x32x128xf32>
    %1144 = vector.shape_cast %1143 : vector<1x32x128xf32> to vector<32x128xf32>
    %1145 = vector.broadcast %1142 : vector<1x128xf32> to vector<32x128xf32>
    %1146 = arith.mulf %1145, %1144 : vector<32x128xf32>
    %1147 = arith.addf %1141, %1146 : vector<32x128xf32>
    %1148 = vector.extract_strided_slice %1026 {offsets = [20, 0], sizes = [1, 128], strides = [1, 1]} : vector<32x128xf32> to vector<1x128xf32>
    %c20_549 = arith.constant 20 : index
    %c0_550 = arith.constant 0 : index
    %c0_551 = arith.constant 0 : index
    %1149 = vector.load %arg4[%c20_549, %c0_550, %c0_551] : memref<32x32x128xf32, #tpu.memory_space<vmem>>, vector<1x32x128xf32>
    %1150 = vector.shape_cast %1149 : vector<1x32x128xf32> to vector<32x128xf32>
    %1151 = vector.broadcast %1148 : vector<1x128xf32> to vector<32x128xf32>
    %1152 = arith.mulf %1151, %1150 : vector<32x128xf32>
    %1153 = arith.addf %1147, %1152 : vector<32x128xf32>
    %1154 = vector.extract_strided_slice %1026 {offsets = [21, 0], sizes = [1, 128], strides = [1, 1]} : vector<32x128xf32> to vector<1x128xf32>
    %c21_552 = arith.constant 21 : index
    %c0_553 = arith.constant 0 : index
    %c0_554 = arith.constant 0 : index
    %1155 = vector.load %arg4[%c21_552, %c0_553, %c0_554] : memref<32x32x128xf32, #tpu.memory_space<vmem>>, vector<1x32x128xf32>
    %1156 = vector.shape_cast %1155 : vector<1x32x128xf32> to vector<32x128xf32>
    %1157 = vector.broadcast %1154 : vector<1x128xf32> to vector<32x128xf32>
    %1158 = arith.mulf %1157, %1156 : vector<32x128xf32>
    %1159 = arith.addf %1153, %1158 : vector<32x128xf32>
    %1160 = vector.extract_strided_slice %1026 {offsets = [22, 0], sizes = [1, 128], strides = [1, 1]} : vector<32x128xf32> to vector<1x128xf32>
    %c22_555 = arith.constant 22 : index
    %c0_556 = arith.constant 0 : index
    %c0_557 = arith.constant 0 : index
    %1161 = vector.load %arg4[%c22_555, %c0_556, %c0_557] : memref<32x32x128xf32, #tpu.memory_space<vmem>>, vector<1x32x128xf32>
    %1162 = vector.shape_cast %1161 : vector<1x32x128xf32> to vector<32x128xf32>
    %1163 = vector.broadcast %1160 : vector<1x128xf32> to vector<32x128xf32>
    %1164 = arith.mulf %1163, %1162 : vector<32x128xf32>
    %1165 = arith.addf %1159, %1164 : vector<32x128xf32>
    %1166 = vector.extract_strided_slice %1026 {offsets = [23, 0], sizes = [1, 128], strides = [1, 1]} : vector<32x128xf32> to vector<1x128xf32>
    %c23_558 = arith.constant 23 : index
    %c0_559 = arith.constant 0 : index
    %c0_560 = arith.constant 0 : index
    %1167 = vector.load %arg4[%c23_558, %c0_559, %c0_560] : memref<32x32x128xf32, #tpu.memory_space<vmem>>, vector<1x32x128xf32>
    %1168 = vector.shape_cast %1167 : vector<1x32x128xf32> to vector<32x128xf32>
    %1169 = vector.broadcast %1166 : vector<1x128xf32> to vector<32x128xf32>
    %1170 = arith.mulf %1169, %1168 : vector<32x128xf32>
    %1171 = arith.addf %1165, %1170 : vector<32x128xf32>
    %1172 = vector.extract_strided_slice %1026 {offsets = [24, 0], sizes = [1, 128], strides = [1, 1]} : vector<32x128xf32> to vector<1x128xf32>
    %c24_561 = arith.constant 24 : index
    %c0_562 = arith.constant 0 : index
    %c0_563 = arith.constant 0 : index
    %1173 = vector.load %arg4[%c24_561, %c0_562, %c0_563] : memref<32x32x128xf32, #tpu.memory_space<vmem>>, vector<1x32x128xf32>
    %1174 = vector.shape_cast %1173 : vector<1x32x128xf32> to vector<32x128xf32>
    %1175 = vector.broadcast %1172 : vector<1x128xf32> to vector<32x128xf32>
    %1176 = arith.mulf %1175, %1174 : vector<32x128xf32>
    %1177 = arith.addf %1171, %1176 : vector<32x128xf32>
    %1178 = vector.extract_strided_slice %1026 {offsets = [25, 0], sizes = [1, 128], strides = [1, 1]} : vector<32x128xf32> to vector<1x128xf32>
    %c25_564 = arith.constant 25 : index
    %c0_565 = arith.constant 0 : index
    %c0_566 = arith.constant 0 : index
    %1179 = vector.load %arg4[%c25_564, %c0_565, %c0_566] : memref<32x32x128xf32, #tpu.memory_space<vmem>>, vector<1x32x128xf32>
    %1180 = vector.shape_cast %1179 : vector<1x32x128xf32> to vector<32x128xf32>
    %1181 = vector.broadcast %1178 : vector<1x128xf32> to vector<32x128xf32>
    %1182 = arith.mulf %1181, %1180 : vector<32x128xf32>
    %1183 = arith.addf %1177, %1182 : vector<32x128xf32>
    %1184 = vector.extract_strided_slice %1026 {offsets = [26, 0], sizes = [1, 128], strides = [1, 1]} : vector<32x128xf32> to vector<1x128xf32>
    %c26_567 = arith.constant 26 : index
    %c0_568 = arith.constant 0 : index
    %c0_569 = arith.constant 0 : index
    %1185 = vector.load %arg4[%c26_567, %c0_568, %c0_569] : memref<32x32x128xf32, #tpu.memory_space<vmem>>, vector<1x32x128xf32>
    %1186 = vector.shape_cast %1185 : vector<1x32x128xf32> to vector<32x128xf32>
    %1187 = vector.broadcast %1184 : vector<1x128xf32> to vector<32x128xf32>
    %1188 = arith.mulf %1187, %1186 : vector<32x128xf32>
    %1189 = arith.addf %1183, %1188 : vector<32x128xf32>
    %1190 = vector.extract_strided_slice %1026 {offsets = [27, 0], sizes = [1, 128], strides = [1, 1]} : vector<32x128xf32> to vector<1x128xf32>
    %c27_570 = arith.constant 27 : index
    %c0_571 = arith.constant 0 : index
    %c0_572 = arith.constant 0 : index
    %1191 = vector.load %arg4[%c27_570, %c0_571, %c0_572] : memref<32x32x128xf32, #tpu.memory_space<vmem>>, vector<1x32x128xf32>
    %1192 = vector.shape_cast %1191 : vector<1x32x128xf32> to vector<32x128xf32>
    %1193 = vector.broadcast %1190 : vector<1x128xf32> to vector<32x128xf32>
    %1194 = arith.mulf %1193, %1192 : vector<32x128xf32>
    %1195 = arith.addf %1189, %1194 : vector<32x128xf32>
    %1196 = vector.extract_strided_slice %1026 {offsets = [28, 0], sizes = [1, 128], strides = [1, 1]} : vector<32x128xf32> to vector<1x128xf32>
    %c28_573 = arith.constant 28 : index
    %c0_574 = arith.constant 0 : index
    %c0_575 = arith.constant 0 : index
    %1197 = vector.load %arg4[%c28_573, %c0_574, %c0_575] : memref<32x32x128xf32, #tpu.memory_space<vmem>>, vector<1x32x128xf32>
    %1198 = vector.shape_cast %1197 : vector<1x32x128xf32> to vector<32x128xf32>
    %1199 = vector.broadcast %1196 : vector<1x128xf32> to vector<32x128xf32>
    %1200 = arith.mulf %1199, %1198 : vector<32x128xf32>
    %1201 = arith.addf %1195, %1200 : vector<32x128xf32>
    %1202 = vector.extract_strided_slice %1026 {offsets = [29, 0], sizes = [1, 128], strides = [1, 1]} : vector<32x128xf32> to vector<1x128xf32>
    %c29_576 = arith.constant 29 : index
    %c0_577 = arith.constant 0 : index
    %c0_578 = arith.constant 0 : index
    %1203 = vector.load %arg4[%c29_576, %c0_577, %c0_578] : memref<32x32x128xf32, #tpu.memory_space<vmem>>, vector<1x32x128xf32>
    %1204 = vector.shape_cast %1203 : vector<1x32x128xf32> to vector<32x128xf32>
    %1205 = vector.broadcast %1202 : vector<1x128xf32> to vector<32x128xf32>
    %1206 = arith.mulf %1205, %1204 : vector<32x128xf32>
    %1207 = arith.addf %1201, %1206 : vector<32x128xf32>
    %1208 = vector.extract_strided_slice %1026 {offsets = [30, 0], sizes = [1, 128], strides = [1, 1]} : vector<32x128xf32> to vector<1x128xf32>
    %c30_579 = arith.constant 30 : index
    %c0_580 = arith.constant 0 : index
    %c0_581 = arith.constant 0 : index
    %1209 = vector.load %arg4[%c30_579, %c0_580, %c0_581] : memref<32x32x128xf32, #tpu.memory_space<vmem>>, vector<1x32x128xf32>
    %1210 = vector.shape_cast %1209 : vector<1x32x128xf32> to vector<32x128xf32>
    %1211 = vector.broadcast %1208 : vector<1x128xf32> to vector<32x128xf32>
    %1212 = arith.mulf %1211, %1210 : vector<32x128xf32>
    %1213 = arith.addf %1207, %1212 : vector<32x128xf32>
    %1214 = vector.extract_strided_slice %1026 {offsets = [31, 0], sizes = [1, 128], strides = [1, 1]} : vector<32x128xf32> to vector<1x128xf32>
    %c31_582 = arith.constant 31 : index
    %c0_583 = arith.constant 0 : index
    %c0_584 = arith.constant 0 : index
    %1215 = vector.load %arg4[%c31_582, %c0_583, %c0_584] : memref<32x32x128xf32, #tpu.memory_space<vmem>>, vector<1x32x128xf32>
    %1216 = vector.shape_cast %1215 : vector<1x32x128xf32> to vector<32x128xf32>
    %1217 = vector.broadcast %1214 : vector<1x128xf32> to vector<32x128xf32>
    %1218 = arith.mulf %1217, %1216 : vector<32x128xf32>
    %1219 = arith.addf %1213, %1218 : vector<32x128xf32>
    %1220 = vector.extract_strided_slice %2 {offsets = [0, 5], sizes = [32, 1], strides = [1, 1]} : vector<32x8xf32> to vector<32x1xf32>
    %1221 = vector.broadcast %1220 : vector<32x1xf32> to vector<32x128xf32>
    %1222 = arith.addf %1219, %1221 : vector<32x128xf32>
    %cst_585 = arith.constant 0.000000e+00 : f32
    %1223 = vector.broadcast %cst_585 : f32 to vector<32x128xf32>
    %1224 = arith.maximumf %1222, %1223 : vector<32x128xf32>
    %1225 = arith.mulf %1224, %1 : vector<32x128xf32>
    %cst_586 = arith.constant dense<0.000000e+00> : vector<128xf32>
    %1226 = vector.multi_reduction <add>, %1225, %cst_586 [0] : vector<32x128xf32> to vector<128xf32>
    %1227 = vector.shape_cast %1226 : vector<128xf32> to vector<1x128xf32>
    %c6_587 = arith.constant 6 : index
    %c0_588 = arith.constant 0 : index
    %c0_589 = arith.constant 0 : index
    %1228 = vector.load %arg2[%c6_587, %c0_588, %c0_589] : memref<8x32x128xf32, #tpu.memory_space<vmem>>, vector<1x32x128xf32>
    %1229 = vector.shape_cast %1228 : vector<1x32x128xf32> to vector<32x128xf32>
    %1230 = arith.mulf %0, %1229 : vector<32x128xf32>
    %cst_590 = arith.constant 0.000000e+00 : f32
    %1231 = vector.broadcast %cst_590 : f32 to vector<32x128xf32>
    %1232 = vector.extract_strided_slice %1230 {offsets = [0, 0], sizes = [1, 128], strides = [1, 1]} : vector<32x128xf32> to vector<1x128xf32>
    %c0_591 = arith.constant 0 : index
    %c0_592 = arith.constant 0 : index
    %c0_593 = arith.constant 0 : index
    %1233 = vector.load %arg4[%c0_591, %c0_592, %c0_593] : memref<32x32x128xf32, #tpu.memory_space<vmem>>, vector<1x32x128xf32>
    %1234 = vector.shape_cast %1233 : vector<1x32x128xf32> to vector<32x128xf32>
    %1235 = vector.broadcast %1232 : vector<1x128xf32> to vector<32x128xf32>
    %1236 = arith.mulf %1235, %1234 : vector<32x128xf32>
    %1237 = arith.addf %1231, %1236 : vector<32x128xf32>
    %1238 = vector.extract_strided_slice %1230 {offsets = [1, 0], sizes = [1, 128], strides = [1, 1]} : vector<32x128xf32> to vector<1x128xf32>
    %c1_594 = arith.constant 1 : index
    %c0_595 = arith.constant 0 : index
    %c0_596 = arith.constant 0 : index
    %1239 = vector.load %arg4[%c1_594, %c0_595, %c0_596] : memref<32x32x128xf32, #tpu.memory_space<vmem>>, vector<1x32x128xf32>
    %1240 = vector.shape_cast %1239 : vector<1x32x128xf32> to vector<32x128xf32>
    %1241 = vector.broadcast %1238 : vector<1x128xf32> to vector<32x128xf32>
    %1242 = arith.mulf %1241, %1240 : vector<32x128xf32>
    %1243 = arith.addf %1237, %1242 : vector<32x128xf32>
    %1244 = vector.extract_strided_slice %1230 {offsets = [2, 0], sizes = [1, 128], strides = [1, 1]} : vector<32x128xf32> to vector<1x128xf32>
    %c2_597 = arith.constant 2 : index
    %c0_598 = arith.constant 0 : index
    %c0_599 = arith.constant 0 : index
    %1245 = vector.load %arg4[%c2_597, %c0_598, %c0_599] : memref<32x32x128xf32, #tpu.memory_space<vmem>>, vector<1x32x128xf32>
    %1246 = vector.shape_cast %1245 : vector<1x32x128xf32> to vector<32x128xf32>
    %1247 = vector.broadcast %1244 : vector<1x128xf32> to vector<32x128xf32>
    %1248 = arith.mulf %1247, %1246 : vector<32x128xf32>
    %1249 = arith.addf %1243, %1248 : vector<32x128xf32>
    %1250 = vector.extract_strided_slice %1230 {offsets = [3, 0], sizes = [1, 128], strides = [1, 1]} : vector<32x128xf32> to vector<1x128xf32>
    %c3_600 = arith.constant 3 : index
    %c0_601 = arith.constant 0 : index
    %c0_602 = arith.constant 0 : index
    %1251 = vector.load %arg4[%c3_600, %c0_601, %c0_602] : memref<32x32x128xf32, #tpu.memory_space<vmem>>, vector<1x32x128xf32>
    %1252 = vector.shape_cast %1251 : vector<1x32x128xf32> to vector<32x128xf32>
    %1253 = vector.broadcast %1250 : vector<1x128xf32> to vector<32x128xf32>
    %1254 = arith.mulf %1253, %1252 : vector<32x128xf32>
    %1255 = arith.addf %1249, %1254 : vector<32x128xf32>
    %1256 = vector.extract_strided_slice %1230 {offsets = [4, 0], sizes = [1, 128], strides = [1, 1]} : vector<32x128xf32> to vector<1x128xf32>
    %c4_603 = arith.constant 4 : index
    %c0_604 = arith.constant 0 : index
    %c0_605 = arith.constant 0 : index
    %1257 = vector.load %arg4[%c4_603, %c0_604, %c0_605] : memref<32x32x128xf32, #tpu.memory_space<vmem>>, vector<1x32x128xf32>
    %1258 = vector.shape_cast %1257 : vector<1x32x128xf32> to vector<32x128xf32>
    %1259 = vector.broadcast %1256 : vector<1x128xf32> to vector<32x128xf32>
    %1260 = arith.mulf %1259, %1258 : vector<32x128xf32>
    %1261 = arith.addf %1255, %1260 : vector<32x128xf32>
    %1262 = vector.extract_strided_slice %1230 {offsets = [5, 0], sizes = [1, 128], strides = [1, 1]} : vector<32x128xf32> to vector<1x128xf32>
    %c5_606 = arith.constant 5 : index
    %c0_607 = arith.constant 0 : index
    %c0_608 = arith.constant 0 : index
    %1263 = vector.load %arg4[%c5_606, %c0_607, %c0_608] : memref<32x32x128xf32, #tpu.memory_space<vmem>>, vector<1x32x128xf32>
    %1264 = vector.shape_cast %1263 : vector<1x32x128xf32> to vector<32x128xf32>
    %1265 = vector.broadcast %1262 : vector<1x128xf32> to vector<32x128xf32>
    %1266 = arith.mulf %1265, %1264 : vector<32x128xf32>
    %1267 = arith.addf %1261, %1266 : vector<32x128xf32>
    %1268 = vector.extract_strided_slice %1230 {offsets = [6, 0], sizes = [1, 128], strides = [1, 1]} : vector<32x128xf32> to vector<1x128xf32>
    %c6_609 = arith.constant 6 : index
    %c0_610 = arith.constant 0 : index
    %c0_611 = arith.constant 0 : index
    %1269 = vector.load %arg4[%c6_609, %c0_610, %c0_611] : memref<32x32x128xf32, #tpu.memory_space<vmem>>, vector<1x32x128xf32>
    %1270 = vector.shape_cast %1269 : vector<1x32x128xf32> to vector<32x128xf32>
    %1271 = vector.broadcast %1268 : vector<1x128xf32> to vector<32x128xf32>
    %1272 = arith.mulf %1271, %1270 : vector<32x128xf32>
    %1273 = arith.addf %1267, %1272 : vector<32x128xf32>
    %1274 = vector.extract_strided_slice %1230 {offsets = [7, 0], sizes = [1, 128], strides = [1, 1]} : vector<32x128xf32> to vector<1x128xf32>
    %c7_612 = arith.constant 7 : index
    %c0_613 = arith.constant 0 : index
    %c0_614 = arith.constant 0 : index
    %1275 = vector.load %arg4[%c7_612, %c0_613, %c0_614] : memref<32x32x128xf32, #tpu.memory_space<vmem>>, vector<1x32x128xf32>
    %1276 = vector.shape_cast %1275 : vector<1x32x128xf32> to vector<32x128xf32>
    %1277 = vector.broadcast %1274 : vector<1x128xf32> to vector<32x128xf32>
    %1278 = arith.mulf %1277, %1276 : vector<32x128xf32>
    %1279 = arith.addf %1273, %1278 : vector<32x128xf32>
    %1280 = vector.extract_strided_slice %1230 {offsets = [8, 0], sizes = [1, 128], strides = [1, 1]} : vector<32x128xf32> to vector<1x128xf32>
    %c8_615 = arith.constant 8 : index
    %c0_616 = arith.constant 0 : index
    %c0_617 = arith.constant 0 : index
    %1281 = vector.load %arg4[%c8_615, %c0_616, %c0_617] : memref<32x32x128xf32, #tpu.memory_space<vmem>>, vector<1x32x128xf32>
    %1282 = vector.shape_cast %1281 : vector<1x32x128xf32> to vector<32x128xf32>
    %1283 = vector.broadcast %1280 : vector<1x128xf32> to vector<32x128xf32>
    %1284 = arith.mulf %1283, %1282 : vector<32x128xf32>
    %1285 = arith.addf %1279, %1284 : vector<32x128xf32>
    %1286 = vector.extract_strided_slice %1230 {offsets = [9, 0], sizes = [1, 128], strides = [1, 1]} : vector<32x128xf32> to vector<1x128xf32>
    %c9_618 = arith.constant 9 : index
    %c0_619 = arith.constant 0 : index
    %c0_620 = arith.constant 0 : index
    %1287 = vector.load %arg4[%c9_618, %c0_619, %c0_620] : memref<32x32x128xf32, #tpu.memory_space<vmem>>, vector<1x32x128xf32>
    %1288 = vector.shape_cast %1287 : vector<1x32x128xf32> to vector<32x128xf32>
    %1289 = vector.broadcast %1286 : vector<1x128xf32> to vector<32x128xf32>
    %1290 = arith.mulf %1289, %1288 : vector<32x128xf32>
    %1291 = arith.addf %1285, %1290 : vector<32x128xf32>
    %1292 = vector.extract_strided_slice %1230 {offsets = [10, 0], sizes = [1, 128], strides = [1, 1]} : vector<32x128xf32> to vector<1x128xf32>
    %c10_621 = arith.constant 10 : index
    %c0_622 = arith.constant 0 : index
    %c0_623 = arith.constant 0 : index
    %1293 = vector.load %arg4[%c10_621, %c0_622, %c0_623] : memref<32x32x128xf32, #tpu.memory_space<vmem>>, vector<1x32x128xf32>
    %1294 = vector.shape_cast %1293 : vector<1x32x128xf32> to vector<32x128xf32>
    %1295 = vector.broadcast %1292 : vector<1x128xf32> to vector<32x128xf32>
    %1296 = arith.mulf %1295, %1294 : vector<32x128xf32>
    %1297 = arith.addf %1291, %1296 : vector<32x128xf32>
    %1298 = vector.extract_strided_slice %1230 {offsets = [11, 0], sizes = [1, 128], strides = [1, 1]} : vector<32x128xf32> to vector<1x128xf32>
    %c11_624 = arith.constant 11 : index
    %c0_625 = arith.constant 0 : index
    %c0_626 = arith.constant 0 : index
    %1299 = vector.load %arg4[%c11_624, %c0_625, %c0_626] : memref<32x32x128xf32, #tpu.memory_space<vmem>>, vector<1x32x128xf32>
    %1300 = vector.shape_cast %1299 : vector<1x32x128xf32> to vector<32x128xf32>
    %1301 = vector.broadcast %1298 : vector<1x128xf32> to vector<32x128xf32>
    %1302 = arith.mulf %1301, %1300 : vector<32x128xf32>
    %1303 = arith.addf %1297, %1302 : vector<32x128xf32>
    %1304 = vector.extract_strided_slice %1230 {offsets = [12, 0], sizes = [1, 128], strides = [1, 1]} : vector<32x128xf32> to vector<1x128xf32>
    %c12_627 = arith.constant 12 : index
    %c0_628 = arith.constant 0 : index
    %c0_629 = arith.constant 0 : index
    %1305 = vector.load %arg4[%c12_627, %c0_628, %c0_629] : memref<32x32x128xf32, #tpu.memory_space<vmem>>, vector<1x32x128xf32>
    %1306 = vector.shape_cast %1305 : vector<1x32x128xf32> to vector<32x128xf32>
    %1307 = vector.broadcast %1304 : vector<1x128xf32> to vector<32x128xf32>
    %1308 = arith.mulf %1307, %1306 : vector<32x128xf32>
    %1309 = arith.addf %1303, %1308 : vector<32x128xf32>
    %1310 = vector.extract_strided_slice %1230 {offsets = [13, 0], sizes = [1, 128], strides = [1, 1]} : vector<32x128xf32> to vector<1x128xf32>
    %c13_630 = arith.constant 13 : index
    %c0_631 = arith.constant 0 : index
    %c0_632 = arith.constant 0 : index
    %1311 = vector.load %arg4[%c13_630, %c0_631, %c0_632] : memref<32x32x128xf32, #tpu.memory_space<vmem>>, vector<1x32x128xf32>
    %1312 = vector.shape_cast %1311 : vector<1x32x128xf32> to vector<32x128xf32>
    %1313 = vector.broadcast %1310 : vector<1x128xf32> to vector<32x128xf32>
    %1314 = arith.mulf %1313, %1312 : vector<32x128xf32>
    %1315 = arith.addf %1309, %1314 : vector<32x128xf32>
    %1316 = vector.extract_strided_slice %1230 {offsets = [14, 0], sizes = [1, 128], strides = [1, 1]} : vector<32x128xf32> to vector<1x128xf32>
    %c14_633 = arith.constant 14 : index
    %c0_634 = arith.constant 0 : index
    %c0_635 = arith.constant 0 : index
    %1317 = vector.load %arg4[%c14_633, %c0_634, %c0_635] : memref<32x32x128xf32, #tpu.memory_space<vmem>>, vector<1x32x128xf32>
    %1318 = vector.shape_cast %1317 : vector<1x32x128xf32> to vector<32x128xf32>
    %1319 = vector.broadcast %1316 : vector<1x128xf32> to vector<32x128xf32>
    %1320 = arith.mulf %1319, %1318 : vector<32x128xf32>
    %1321 = arith.addf %1315, %1320 : vector<32x128xf32>
    %1322 = vector.extract_strided_slice %1230 {offsets = [15, 0], sizes = [1, 128], strides = [1, 1]} : vector<32x128xf32> to vector<1x128xf32>
    %c15_636 = arith.constant 15 : index
    %c0_637 = arith.constant 0 : index
    %c0_638 = arith.constant 0 : index
    %1323 = vector.load %arg4[%c15_636, %c0_637, %c0_638] : memref<32x32x128xf32, #tpu.memory_space<vmem>>, vector<1x32x128xf32>
    %1324 = vector.shape_cast %1323 : vector<1x32x128xf32> to vector<32x128xf32>
    %1325 = vector.broadcast %1322 : vector<1x128xf32> to vector<32x128xf32>
    %1326 = arith.mulf %1325, %1324 : vector<32x128xf32>
    %1327 = arith.addf %1321, %1326 : vector<32x128xf32>
    %1328 = vector.extract_strided_slice %1230 {offsets = [16, 0], sizes = [1, 128], strides = [1, 1]} : vector<32x128xf32> to vector<1x128xf32>
    %c16_639 = arith.constant 16 : index
    %c0_640 = arith.constant 0 : index
    %c0_641 = arith.constant 0 : index
    %1329 = vector.load %arg4[%c16_639, %c0_640, %c0_641] : memref<32x32x128xf32, #tpu.memory_space<vmem>>, vector<1x32x128xf32>
    %1330 = vector.shape_cast %1329 : vector<1x32x128xf32> to vector<32x128xf32>
    %1331 = vector.broadcast %1328 : vector<1x128xf32> to vector<32x128xf32>
    %1332 = arith.mulf %1331, %1330 : vector<32x128xf32>
    %1333 = arith.addf %1327, %1332 : vector<32x128xf32>
    %1334 = vector.extract_strided_slice %1230 {offsets = [17, 0], sizes = [1, 128], strides = [1, 1]} : vector<32x128xf32> to vector<1x128xf32>
    %c17_642 = arith.constant 17 : index
    %c0_643 = arith.constant 0 : index
    %c0_644 = arith.constant 0 : index
    %1335 = vector.load %arg4[%c17_642, %c0_643, %c0_644] : memref<32x32x128xf32, #tpu.memory_space<vmem>>, vector<1x32x128xf32>
    %1336 = vector.shape_cast %1335 : vector<1x32x128xf32> to vector<32x128xf32>
    %1337 = vector.broadcast %1334 : vector<1x128xf32> to vector<32x128xf32>
    %1338 = arith.mulf %1337, %1336 : vector<32x128xf32>
    %1339 = arith.addf %1333, %1338 : vector<32x128xf32>
    %1340 = vector.extract_strided_slice %1230 {offsets = [18, 0], sizes = [1, 128], strides = [1, 1]} : vector<32x128xf32> to vector<1x128xf32>
    %c18_645 = arith.constant 18 : index
    %c0_646 = arith.constant 0 : index
    %c0_647 = arith.constant 0 : index
    %1341 = vector.load %arg4[%c18_645, %c0_646, %c0_647] : memref<32x32x128xf32, #tpu.memory_space<vmem>>, vector<1x32x128xf32>
    %1342 = vector.shape_cast %1341 : vector<1x32x128xf32> to vector<32x128xf32>
    %1343 = vector.broadcast %1340 : vector<1x128xf32> to vector<32x128xf32>
    %1344 = arith.mulf %1343, %1342 : vector<32x128xf32>
    %1345 = arith.addf %1339, %1344 : vector<32x128xf32>
    %1346 = vector.extract_strided_slice %1230 {offsets = [19, 0], sizes = [1, 128], strides = [1, 1]} : vector<32x128xf32> to vector<1x128xf32>
    %c19_648 = arith.constant 19 : index
    %c0_649 = arith.constant 0 : index
    %c0_650 = arith.constant 0 : index
    %1347 = vector.load %arg4[%c19_648, %c0_649, %c0_650] : memref<32x32x128xf32, #tpu.memory_space<vmem>>, vector<1x32x128xf32>
    %1348 = vector.shape_cast %1347 : vector<1x32x128xf32> to vector<32x128xf32>
    %1349 = vector.broadcast %1346 : vector<1x128xf32> to vector<32x128xf32>
    %1350 = arith.mulf %1349, %1348 : vector<32x128xf32>
    %1351 = arith.addf %1345, %1350 : vector<32x128xf32>
    %1352 = vector.extract_strided_slice %1230 {offsets = [20, 0], sizes = [1, 128], strides = [1, 1]} : vector<32x128xf32> to vector<1x128xf32>
    %c20_651 = arith.constant 20 : index
    %c0_652 = arith.constant 0 : index
    %c0_653 = arith.constant 0 : index
    %1353 = vector.load %arg4[%c20_651, %c0_652, %c0_653] : memref<32x32x128xf32, #tpu.memory_space<vmem>>, vector<1x32x128xf32>
    %1354 = vector.shape_cast %1353 : vector<1x32x128xf32> to vector<32x128xf32>
    %1355 = vector.broadcast %1352 : vector<1x128xf32> to vector<32x128xf32>
    %1356 = arith.mulf %1355, %1354 : vector<32x128xf32>
    %1357 = arith.addf %1351, %1356 : vector<32x128xf32>
    %1358 = vector.extract_strided_slice %1230 {offsets = [21, 0], sizes = [1, 128], strides = [1, 1]} : vector<32x128xf32> to vector<1x128xf32>
    %c21_654 = arith.constant 21 : index
    %c0_655 = arith.constant 0 : index
    %c0_656 = arith.constant 0 : index
    %1359 = vector.load %arg4[%c21_654, %c0_655, %c0_656] : memref<32x32x128xf32, #tpu.memory_space<vmem>>, vector<1x32x128xf32>
    %1360 = vector.shape_cast %1359 : vector<1x32x128xf32> to vector<32x128xf32>
    %1361 = vector.broadcast %1358 : vector<1x128xf32> to vector<32x128xf32>
    %1362 = arith.mulf %1361, %1360 : vector<32x128xf32>
    %1363 = arith.addf %1357, %1362 : vector<32x128xf32>
    %1364 = vector.extract_strided_slice %1230 {offsets = [22, 0], sizes = [1, 128], strides = [1, 1]} : vector<32x128xf32> to vector<1x128xf32>
    %c22_657 = arith.constant 22 : index
    %c0_658 = arith.constant 0 : index
    %c0_659 = arith.constant 0 : index
    %1365 = vector.load %arg4[%c22_657, %c0_658, %c0_659] : memref<32x32x128xf32, #tpu.memory_space<vmem>>, vector<1x32x128xf32>
    %1366 = vector.shape_cast %1365 : vector<1x32x128xf32> to vector<32x128xf32>
    %1367 = vector.broadcast %1364 : vector<1x128xf32> to vector<32x128xf32>
    %1368 = arith.mulf %1367, %1366 : vector<32x128xf32>
    %1369 = arith.addf %1363, %1368 : vector<32x128xf32>
    %1370 = vector.extract_strided_slice %1230 {offsets = [23, 0], sizes = [1, 128], strides = [1, 1]} : vector<32x128xf32> to vector<1x128xf32>
    %c23_660 = arith.constant 23 : index
    %c0_661 = arith.constant 0 : index
    %c0_662 = arith.constant 0 : index
    %1371 = vector.load %arg4[%c23_660, %c0_661, %c0_662] : memref<32x32x128xf32, #tpu.memory_space<vmem>>, vector<1x32x128xf32>
    %1372 = vector.shape_cast %1371 : vector<1x32x128xf32> to vector<32x128xf32>
    %1373 = vector.broadcast %1370 : vector<1x128xf32> to vector<32x128xf32>
    %1374 = arith.mulf %1373, %1372 : vector<32x128xf32>
    %1375 = arith.addf %1369, %1374 : vector<32x128xf32>
    %1376 = vector.extract_strided_slice %1230 {offsets = [24, 0], sizes = [1, 128], strides = [1, 1]} : vector<32x128xf32> to vector<1x128xf32>
    %c24_663 = arith.constant 24 : index
    %c0_664 = arith.constant 0 : index
    %c0_665 = arith.constant 0 : index
    %1377 = vector.load %arg4[%c24_663, %c0_664, %c0_665] : memref<32x32x128xf32, #tpu.memory_space<vmem>>, vector<1x32x128xf32>
    %1378 = vector.shape_cast %1377 : vector<1x32x128xf32> to vector<32x128xf32>
    %1379 = vector.broadcast %1376 : vector<1x128xf32> to vector<32x128xf32>
    %1380 = arith.mulf %1379, %1378 : vector<32x128xf32>
    %1381 = arith.addf %1375, %1380 : vector<32x128xf32>
    %1382 = vector.extract_strided_slice %1230 {offsets = [25, 0], sizes = [1, 128], strides = [1, 1]} : vector<32x128xf32> to vector<1x128xf32>
    %c25_666 = arith.constant 25 : index
    %c0_667 = arith.constant 0 : index
    %c0_668 = arith.constant 0 : index
    %1383 = vector.load %arg4[%c25_666, %c0_667, %c0_668] : memref<32x32x128xf32, #tpu.memory_space<vmem>>, vector<1x32x128xf32>
    %1384 = vector.shape_cast %1383 : vector<1x32x128xf32> to vector<32x128xf32>
    %1385 = vector.broadcast %1382 : vector<1x128xf32> to vector<32x128xf32>
    %1386 = arith.mulf %1385, %1384 : vector<32x128xf32>
    %1387 = arith.addf %1381, %1386 : vector<32x128xf32>
    %1388 = vector.extract_strided_slice %1230 {offsets = [26, 0], sizes = [1, 128], strides = [1, 1]} : vector<32x128xf32> to vector<1x128xf32>
    %c26_669 = arith.constant 26 : index
    %c0_670 = arith.constant 0 : index
    %c0_671 = arith.constant 0 : index
    %1389 = vector.load %arg4[%c26_669, %c0_670, %c0_671] : memref<32x32x128xf32, #tpu.memory_space<vmem>>, vector<1x32x128xf32>
    %1390 = vector.shape_cast %1389 : vector<1x32x128xf32> to vector<32x128xf32>
    %1391 = vector.broadcast %1388 : vector<1x128xf32> to vector<32x128xf32>
    %1392 = arith.mulf %1391, %1390 : vector<32x128xf32>
    %1393 = arith.addf %1387, %1392 : vector<32x128xf32>
    %1394 = vector.extract_strided_slice %1230 {offsets = [27, 0], sizes = [1, 128], strides = [1, 1]} : vector<32x128xf32> to vector<1x128xf32>
    %c27_672 = arith.constant 27 : index
    %c0_673 = arith.constant 0 : index
    %c0_674 = arith.constant 0 : index
    %1395 = vector.load %arg4[%c27_672, %c0_673, %c0_674] : memref<32x32x128xf32, #tpu.memory_space<vmem>>, vector<1x32x128xf32>
    %1396 = vector.shape_cast %1395 : vector<1x32x128xf32> to vector<32x128xf32>
    %1397 = vector.broadcast %1394 : vector<1x128xf32> to vector<32x128xf32>
    %1398 = arith.mulf %1397, %1396 : vector<32x128xf32>
    %1399 = arith.addf %1393, %1398 : vector<32x128xf32>
    %1400 = vector.extract_strided_slice %1230 {offsets = [28, 0], sizes = [1, 128], strides = [1, 1]} : vector<32x128xf32> to vector<1x128xf32>
    %c28_675 = arith.constant 28 : index
    %c0_676 = arith.constant 0 : index
    %c0_677 = arith.constant 0 : index
    %1401 = vector.load %arg4[%c28_675, %c0_676, %c0_677] : memref<32x32x128xf32, #tpu.memory_space<vmem>>, vector<1x32x128xf32>
    %1402 = vector.shape_cast %1401 : vector<1x32x128xf32> to vector<32x128xf32>
    %1403 = vector.broadcast %1400 : vector<1x128xf32> to vector<32x128xf32>
    %1404 = arith.mulf %1403, %1402 : vector<32x128xf32>
    %1405 = arith.addf %1399, %1404 : vector<32x128xf32>
    %1406 = vector.extract_strided_slice %1230 {offsets = [29, 0], sizes = [1, 128], strides = [1, 1]} : vector<32x128xf32> to vector<1x128xf32>
    %c29_678 = arith.constant 29 : index
    %c0_679 = arith.constant 0 : index
    %c0_680 = arith.constant 0 : index
    %1407 = vector.load %arg4[%c29_678, %c0_679, %c0_680] : memref<32x32x128xf32, #tpu.memory_space<vmem>>, vector<1x32x128xf32>
    %1408 = vector.shape_cast %1407 : vector<1x32x128xf32> to vector<32x128xf32>
    %1409 = vector.broadcast %1406 : vector<1x128xf32> to vector<32x128xf32>
    %1410 = arith.mulf %1409, %1408 : vector<32x128xf32>
    %1411 = arith.addf %1405, %1410 : vector<32x128xf32>
    %1412 = vector.extract_strided_slice %1230 {offsets = [30, 0], sizes = [1, 128], strides = [1, 1]} : vector<32x128xf32> to vector<1x128xf32>
    %c30_681 = arith.constant 30 : index
    %c0_682 = arith.constant 0 : index
    %c0_683 = arith.constant 0 : index
    %1413 = vector.load %arg4[%c30_681, %c0_682, %c0_683] : memref<32x32x128xf32, #tpu.memory_space<vmem>>, vector<1x32x128xf32>
    %1414 = vector.shape_cast %1413 : vector<1x32x128xf32> to vector<32x128xf32>
    %1415 = vector.broadcast %1412 : vector<1x128xf32> to vector<32x128xf32>
    %1416 = arith.mulf %1415, %1414 : vector<32x128xf32>
    %1417 = arith.addf %1411, %1416 : vector<32x128xf32>
    %1418 = vector.extract_strided_slice %1230 {offsets = [31, 0], sizes = [1, 128], strides = [1, 1]} : vector<32x128xf32> to vector<1x128xf32>
    %c31_684 = arith.constant 31 : index
    %c0_685 = arith.constant 0 : index
    %c0_686 = arith.constant 0 : index
    %1419 = vector.load %arg4[%c31_684, %c0_685, %c0_686] : memref<32x32x128xf32, #tpu.memory_space<vmem>>, vector<1x32x128xf32>
    %1420 = vector.shape_cast %1419 : vector<1x32x128xf32> to vector<32x128xf32>
    %1421 = vector.broadcast %1418 : vector<1x128xf32> to vector<32x128xf32>
    %1422 = arith.mulf %1421, %1420 : vector<32x128xf32>
    %1423 = arith.addf %1417, %1422 : vector<32x128xf32>
    %1424 = vector.extract_strided_slice %2 {offsets = [0, 6], sizes = [32, 1], strides = [1, 1]} : vector<32x8xf32> to vector<32x1xf32>
    %1425 = vector.broadcast %1424 : vector<32x1xf32> to vector<32x128xf32>
    %1426 = arith.addf %1423, %1425 : vector<32x128xf32>
    %cst_687 = arith.constant 0.000000e+00 : f32
    %1427 = vector.broadcast %cst_687 : f32 to vector<32x128xf32>
    %1428 = arith.maximumf %1426, %1427 : vector<32x128xf32>
    %1429 = arith.mulf %1428, %1 : vector<32x128xf32>
    %cst_688 = arith.constant dense<0.000000e+00> : vector<128xf32>
    %1430 = vector.multi_reduction <add>, %1429, %cst_688 [0] : vector<32x128xf32> to vector<128xf32>
    %1431 = vector.shape_cast %1430 : vector<128xf32> to vector<1x128xf32>
    %c7_689 = arith.constant 7 : index
    %c0_690 = arith.constant 0 : index
    %c0_691 = arith.constant 0 : index
    %1432 = vector.load %arg2[%c7_689, %c0_690, %c0_691] : memref<8x32x128xf32, #tpu.memory_space<vmem>>, vector<1x32x128xf32>
    %1433 = vector.shape_cast %1432 : vector<1x32x128xf32> to vector<32x128xf32>
    %1434 = arith.mulf %0, %1433 : vector<32x128xf32>
    %cst_692 = arith.constant 0.000000e+00 : f32
    %1435 = vector.broadcast %cst_692 : f32 to vector<32x128xf32>
    %1436 = vector.extract_strided_slice %1434 {offsets = [0, 0], sizes = [1, 128], strides = [1, 1]} : vector<32x128xf32> to vector<1x128xf32>
    %c0_693 = arith.constant 0 : index
    %c0_694 = arith.constant 0 : index
    %c0_695 = arith.constant 0 : index
    %1437 = vector.load %arg4[%c0_693, %c0_694, %c0_695] : memref<32x32x128xf32, #tpu.memory_space<vmem>>, vector<1x32x128xf32>
    %1438 = vector.shape_cast %1437 : vector<1x32x128xf32> to vector<32x128xf32>
    %1439 = vector.broadcast %1436 : vector<1x128xf32> to vector<32x128xf32>
    %1440 = arith.mulf %1439, %1438 : vector<32x128xf32>
    %1441 = arith.addf %1435, %1440 : vector<32x128xf32>
    %1442 = vector.extract_strided_slice %1434 {offsets = [1, 0], sizes = [1, 128], strides = [1, 1]} : vector<32x128xf32> to vector<1x128xf32>
    %c1_696 = arith.constant 1 : index
    %c0_697 = arith.constant 0 : index
    %c0_698 = arith.constant 0 : index
    %1443 = vector.load %arg4[%c1_696, %c0_697, %c0_698] : memref<32x32x128xf32, #tpu.memory_space<vmem>>, vector<1x32x128xf32>
    %1444 = vector.shape_cast %1443 : vector<1x32x128xf32> to vector<32x128xf32>
    %1445 = vector.broadcast %1442 : vector<1x128xf32> to vector<32x128xf32>
    %1446 = arith.mulf %1445, %1444 : vector<32x128xf32>
    %1447 = arith.addf %1441, %1446 : vector<32x128xf32>
    %1448 = vector.extract_strided_slice %1434 {offsets = [2, 0], sizes = [1, 128], strides = [1, 1]} : vector<32x128xf32> to vector<1x128xf32>
    %c2_699 = arith.constant 2 : index
    %c0_700 = arith.constant 0 : index
    %c0_701 = arith.constant 0 : index
    %1449 = vector.load %arg4[%c2_699, %c0_700, %c0_701] : memref<32x32x128xf32, #tpu.memory_space<vmem>>, vector<1x32x128xf32>
    %1450 = vector.shape_cast %1449 : vector<1x32x128xf32> to vector<32x128xf32>
    %1451 = vector.broadcast %1448 : vector<1x128xf32> to vector<32x128xf32>
    %1452 = arith.mulf %1451, %1450 : vector<32x128xf32>
    %1453 = arith.addf %1447, %1452 : vector<32x128xf32>
    %1454 = vector.extract_strided_slice %1434 {offsets = [3, 0], sizes = [1, 128], strides = [1, 1]} : vector<32x128xf32> to vector<1x128xf32>
    %c3_702 = arith.constant 3 : index
    %c0_703 = arith.constant 0 : index
    %c0_704 = arith.constant 0 : index
    %1455 = vector.load %arg4[%c3_702, %c0_703, %c0_704] : memref<32x32x128xf32, #tpu.memory_space<vmem>>, vector<1x32x128xf32>
    %1456 = vector.shape_cast %1455 : vector<1x32x128xf32> to vector<32x128xf32>
    %1457 = vector.broadcast %1454 : vector<1x128xf32> to vector<32x128xf32>
    %1458 = arith.mulf %1457, %1456 : vector<32x128xf32>
    %1459 = arith.addf %1453, %1458 : vector<32x128xf32>
    %1460 = vector.extract_strided_slice %1434 {offsets = [4, 0], sizes = [1, 128], strides = [1, 1]} : vector<32x128xf32> to vector<1x128xf32>
    %c4_705 = arith.constant 4 : index
    %c0_706 = arith.constant 0 : index
    %c0_707 = arith.constant 0 : index
    %1461 = vector.load %arg4[%c4_705, %c0_706, %c0_707] : memref<32x32x128xf32, #tpu.memory_space<vmem>>, vector<1x32x128xf32>
    %1462 = vector.shape_cast %1461 : vector<1x32x128xf32> to vector<32x128xf32>
    %1463 = vector.broadcast %1460 : vector<1x128xf32> to vector<32x128xf32>
    %1464 = arith.mulf %1463, %1462 : vector<32x128xf32>
    %1465 = arith.addf %1459, %1464 : vector<32x128xf32>
    %1466 = vector.extract_strided_slice %1434 {offsets = [5, 0], sizes = [1, 128], strides = [1, 1]} : vector<32x128xf32> to vector<1x128xf32>
    %c5_708 = arith.constant 5 : index
    %c0_709 = arith.constant 0 : index
    %c0_710 = arith.constant 0 : index
    %1467 = vector.load %arg4[%c5_708, %c0_709, %c0_710] : memref<32x32x128xf32, #tpu.memory_space<vmem>>, vector<1x32x128xf32>
    %1468 = vector.shape_cast %1467 : vector<1x32x128xf32> to vector<32x128xf32>
    %1469 = vector.broadcast %1466 : vector<1x128xf32> to vector<32x128xf32>
    %1470 = arith.mulf %1469, %1468 : vector<32x128xf32>
    %1471 = arith.addf %1465, %1470 : vector<32x128xf32>
    %1472 = vector.extract_strided_slice %1434 {offsets = [6, 0], sizes = [1, 128], strides = [1, 1]} : vector<32x128xf32> to vector<1x128xf32>
    %c6_711 = arith.constant 6 : index
    %c0_712 = arith.constant 0 : index
    %c0_713 = arith.constant 0 : index
    %1473 = vector.load %arg4[%c6_711, %c0_712, %c0_713] : memref<32x32x128xf32, #tpu.memory_space<vmem>>, vector<1x32x128xf32>
    %1474 = vector.shape_cast %1473 : vector<1x32x128xf32> to vector<32x128xf32>
    %1475 = vector.broadcast %1472 : vector<1x128xf32> to vector<32x128xf32>
    %1476 = arith.mulf %1475, %1474 : vector<32x128xf32>
    %1477 = arith.addf %1471, %1476 : vector<32x128xf32>
    %1478 = vector.extract_strided_slice %1434 {offsets = [7, 0], sizes = [1, 128], strides = [1, 1]} : vector<32x128xf32> to vector<1x128xf32>
    %c7_714 = arith.constant 7 : index
    %c0_715 = arith.constant 0 : index
    %c0_716 = arith.constant 0 : index
    %1479 = vector.load %arg4[%c7_714, %c0_715, %c0_716] : memref<32x32x128xf32, #tpu.memory_space<vmem>>, vector<1x32x128xf32>
    %1480 = vector.shape_cast %1479 : vector<1x32x128xf32> to vector<32x128xf32>
    %1481 = vector.broadcast %1478 : vector<1x128xf32> to vector<32x128xf32>
    %1482 = arith.mulf %1481, %1480 : vector<32x128xf32>
    %1483 = arith.addf %1477, %1482 : vector<32x128xf32>
    %1484 = vector.extract_strided_slice %1434 {offsets = [8, 0], sizes = [1, 128], strides = [1, 1]} : vector<32x128xf32> to vector<1x128xf32>
    %c8_717 = arith.constant 8 : index
    %c0_718 = arith.constant 0 : index
    %c0_719 = arith.constant 0 : index
    %1485 = vector.load %arg4[%c8_717, %c0_718, %c0_719] : memref<32x32x128xf32, #tpu.memory_space<vmem>>, vector<1x32x128xf32>
    %1486 = vector.shape_cast %1485 : vector<1x32x128xf32> to vector<32x128xf32>
    %1487 = vector.broadcast %1484 : vector<1x128xf32> to vector<32x128xf32>
    %1488 = arith.mulf %1487, %1486 : vector<32x128xf32>
    %1489 = arith.addf %1483, %1488 : vector<32x128xf32>
    %1490 = vector.extract_strided_slice %1434 {offsets = [9, 0], sizes = [1, 128], strides = [1, 1]} : vector<32x128xf32> to vector<1x128xf32>
    %c9_720 = arith.constant 9 : index
    %c0_721 = arith.constant 0 : index
    %c0_722 = arith.constant 0 : index
    %1491 = vector.load %arg4[%c9_720, %c0_721, %c0_722] : memref<32x32x128xf32, #tpu.memory_space<vmem>>, vector<1x32x128xf32>
    %1492 = vector.shape_cast %1491 : vector<1x32x128xf32> to vector<32x128xf32>
    %1493 = vector.broadcast %1490 : vector<1x128xf32> to vector<32x128xf32>
    %1494 = arith.mulf %1493, %1492 : vector<32x128xf32>
    %1495 = arith.addf %1489, %1494 : vector<32x128xf32>
    %1496 = vector.extract_strided_slice %1434 {offsets = [10, 0], sizes = [1, 128], strides = [1, 1]} : vector<32x128xf32> to vector<1x128xf32>
    %c10_723 = arith.constant 10 : index
    %c0_724 = arith.constant 0 : index
    %c0_725 = arith.constant 0 : index
    %1497 = vector.load %arg4[%c10_723, %c0_724, %c0_725] : memref<32x32x128xf32, #tpu.memory_space<vmem>>, vector<1x32x128xf32>
    %1498 = vector.shape_cast %1497 : vector<1x32x128xf32> to vector<32x128xf32>
    %1499 = vector.broadcast %1496 : vector<1x128xf32> to vector<32x128xf32>
    %1500 = arith.mulf %1499, %1498 : vector<32x128xf32>
    %1501 = arith.addf %1495, %1500 : vector<32x128xf32>
    %1502 = vector.extract_strided_slice %1434 {offsets = [11, 0], sizes = [1, 128], strides = [1, 1]} : vector<32x128xf32> to vector<1x128xf32>
    %c11_726 = arith.constant 11 : index
    %c0_727 = arith.constant 0 : index
    %c0_728 = arith.constant 0 : index
    %1503 = vector.load %arg4[%c11_726, %c0_727, %c0_728] : memref<32x32x128xf32, #tpu.memory_space<vmem>>, vector<1x32x128xf32>
    %1504 = vector.shape_cast %1503 : vector<1x32x128xf32> to vector<32x128xf32>
    %1505 = vector.broadcast %1502 : vector<1x128xf32> to vector<32x128xf32>
    %1506 = arith.mulf %1505, %1504 : vector<32x128xf32>
    %1507 = arith.addf %1501, %1506 : vector<32x128xf32>
    %1508 = vector.extract_strided_slice %1434 {offsets = [12, 0], sizes = [1, 128], strides = [1, 1]} : vector<32x128xf32> to vector<1x128xf32>
    %c12_729 = arith.constant 12 : index
    %c0_730 = arith.constant 0 : index
    %c0_731 = arith.constant 0 : index
    %1509 = vector.load %arg4[%c12_729, %c0_730, %c0_731] : memref<32x32x128xf32, #tpu.memory_space<vmem>>, vector<1x32x128xf32>
    %1510 = vector.shape_cast %1509 : vector<1x32x128xf32> to vector<32x128xf32>
    %1511 = vector.broadcast %1508 : vector<1x128xf32> to vector<32x128xf32>
    %1512 = arith.mulf %1511, %1510 : vector<32x128xf32>
    %1513 = arith.addf %1507, %1512 : vector<32x128xf32>
    %1514 = vector.extract_strided_slice %1434 {offsets = [13, 0], sizes = [1, 128], strides = [1, 1]} : vector<32x128xf32> to vector<1x128xf32>
    %c13_732 = arith.constant 13 : index
    %c0_733 = arith.constant 0 : index
    %c0_734 = arith.constant 0 : index
    %1515 = vector.load %arg4[%c13_732, %c0_733, %c0_734] : memref<32x32x128xf32, #tpu.memory_space<vmem>>, vector<1x32x128xf32>
    %1516 = vector.shape_cast %1515 : vector<1x32x128xf32> to vector<32x128xf32>
    %1517 = vector.broadcast %1514 : vector<1x128xf32> to vector<32x128xf32>
    %1518 = arith.mulf %1517, %1516 : vector<32x128xf32>
    %1519 = arith.addf %1513, %1518 : vector<32x128xf32>
    %1520 = vector.extract_strided_slice %1434 {offsets = [14, 0], sizes = [1, 128], strides = [1, 1]} : vector<32x128xf32> to vector<1x128xf32>
    %c14_735 = arith.constant 14 : index
    %c0_736 = arith.constant 0 : index
    %c0_737 = arith.constant 0 : index
    %1521 = vector.load %arg4[%c14_735, %c0_736, %c0_737] : memref<32x32x128xf32, #tpu.memory_space<vmem>>, vector<1x32x128xf32>
    %1522 = vector.shape_cast %1521 : vector<1x32x128xf32> to vector<32x128xf32>
    %1523 = vector.broadcast %1520 : vector<1x128xf32> to vector<32x128xf32>
    %1524 = arith.mulf %1523, %1522 : vector<32x128xf32>
    %1525 = arith.addf %1519, %1524 : vector<32x128xf32>
    %1526 = vector.extract_strided_slice %1434 {offsets = [15, 0], sizes = [1, 128], strides = [1, 1]} : vector<32x128xf32> to vector<1x128xf32>
    %c15_738 = arith.constant 15 : index
    %c0_739 = arith.constant 0 : index
    %c0_740 = arith.constant 0 : index
    %1527 = vector.load %arg4[%c15_738, %c0_739, %c0_740] : memref<32x32x128xf32, #tpu.memory_space<vmem>>, vector<1x32x128xf32>
    %1528 = vector.shape_cast %1527 : vector<1x32x128xf32> to vector<32x128xf32>
    %1529 = vector.broadcast %1526 : vector<1x128xf32> to vector<32x128xf32>
    %1530 = arith.mulf %1529, %1528 : vector<32x128xf32>
    %1531 = arith.addf %1525, %1530 : vector<32x128xf32>
    %1532 = vector.extract_strided_slice %1434 {offsets = [16, 0], sizes = [1, 128], strides = [1, 1]} : vector<32x128xf32> to vector<1x128xf32>
    %c16_741 = arith.constant 16 : index
    %c0_742 = arith.constant 0 : index
    %c0_743 = arith.constant 0 : index
    %1533 = vector.load %arg4[%c16_741, %c0_742, %c0_743] : memref<32x32x128xf32, #tpu.memory_space<vmem>>, vector<1x32x128xf32>
    %1534 = vector.shape_cast %1533 : vector<1x32x128xf32> to vector<32x128xf32>
    %1535 = vector.broadcast %1532 : vector<1x128xf32> to vector<32x128xf32>
    %1536 = arith.mulf %1535, %1534 : vector<32x128xf32>
    %1537 = arith.addf %1531, %1536 : vector<32x128xf32>
    %1538 = vector.extract_strided_slice %1434 {offsets = [17, 0], sizes = [1, 128], strides = [1, 1]} : vector<32x128xf32> to vector<1x128xf32>
    %c17_744 = arith.constant 17 : index
    %c0_745 = arith.constant 0 : index
    %c0_746 = arith.constant 0 : index
    %1539 = vector.load %arg4[%c17_744, %c0_745, %c0_746] : memref<32x32x128xf32, #tpu.memory_space<vmem>>, vector<1x32x128xf32>
    %1540 = vector.shape_cast %1539 : vector<1x32x128xf32> to vector<32x128xf32>
    %1541 = vector.broadcast %1538 : vector<1x128xf32> to vector<32x128xf32>
    %1542 = arith.mulf %1541, %1540 : vector<32x128xf32>
    %1543 = arith.addf %1537, %1542 : vector<32x128xf32>
    %1544 = vector.extract_strided_slice %1434 {offsets = [18, 0], sizes = [1, 128], strides = [1, 1]} : vector<32x128xf32> to vector<1x128xf32>
    %c18_747 = arith.constant 18 : index
    %c0_748 = arith.constant 0 : index
    %c0_749 = arith.constant 0 : index
    %1545 = vector.load %arg4[%c18_747, %c0_748, %c0_749] : memref<32x32x128xf32, #tpu.memory_space<vmem>>, vector<1x32x128xf32>
    %1546 = vector.shape_cast %1545 : vector<1x32x128xf32> to vector<32x128xf32>
    %1547 = vector.broadcast %1544 : vector<1x128xf32> to vector<32x128xf32>
    %1548 = arith.mulf %1547, %1546 : vector<32x128xf32>
    %1549 = arith.addf %1543, %1548 : vector<32x128xf32>
    %1550 = vector.extract_strided_slice %1434 {offsets = [19, 0], sizes = [1, 128], strides = [1, 1]} : vector<32x128xf32> to vector<1x128xf32>
    %c19_750 = arith.constant 19 : index
    %c0_751 = arith.constant 0 : index
    %c0_752 = arith.constant 0 : index
    %1551 = vector.load %arg4[%c19_750, %c0_751, %c0_752] : memref<32x32x128xf32, #tpu.memory_space<vmem>>, vector<1x32x128xf32>
    %1552 = vector.shape_cast %1551 : vector<1x32x128xf32> to vector<32x128xf32>
    %1553 = vector.broadcast %1550 : vector<1x128xf32> to vector<32x128xf32>
    %1554 = arith.mulf %1553, %1552 : vector<32x128xf32>
    %1555 = arith.addf %1549, %1554 : vector<32x128xf32>
    %1556 = vector.extract_strided_slice %1434 {offsets = [20, 0], sizes = [1, 128], strides = [1, 1]} : vector<32x128xf32> to vector<1x128xf32>
    %c20_753 = arith.constant 20 : index
    %c0_754 = arith.constant 0 : index
    %c0_755 = arith.constant 0 : index
    %1557 = vector.load %arg4[%c20_753, %c0_754, %c0_755] : memref<32x32x128xf32, #tpu.memory_space<vmem>>, vector<1x32x128xf32>
    %1558 = vector.shape_cast %1557 : vector<1x32x128xf32> to vector<32x128xf32>
    %1559 = vector.broadcast %1556 : vector<1x128xf32> to vector<32x128xf32>
    %1560 = arith.mulf %1559, %1558 : vector<32x128xf32>
    %1561 = arith.addf %1555, %1560 : vector<32x128xf32>
    %1562 = vector.extract_strided_slice %1434 {offsets = [21, 0], sizes = [1, 128], strides = [1, 1]} : vector<32x128xf32> to vector<1x128xf32>
    %c21_756 = arith.constant 21 : index
    %c0_757 = arith.constant 0 : index
    %c0_758 = arith.constant 0 : index
    %1563 = vector.load %arg4[%c21_756, %c0_757, %c0_758] : memref<32x32x128xf32, #tpu.memory_space<vmem>>, vector<1x32x128xf32>
    %1564 = vector.shape_cast %1563 : vector<1x32x128xf32> to vector<32x128xf32>
    %1565 = vector.broadcast %1562 : vector<1x128xf32> to vector<32x128xf32>
    %1566 = arith.mulf %1565, %1564 : vector<32x128xf32>
    %1567 = arith.addf %1561, %1566 : vector<32x128xf32>
    %1568 = vector.extract_strided_slice %1434 {offsets = [22, 0], sizes = [1, 128], strides = [1, 1]} : vector<32x128xf32> to vector<1x128xf32>
    %c22_759 = arith.constant 22 : index
    %c0_760 = arith.constant 0 : index
    %c0_761 = arith.constant 0 : index
    %1569 = vector.load %arg4[%c22_759, %c0_760, %c0_761] : memref<32x32x128xf32, #tpu.memory_space<vmem>>, vector<1x32x128xf32>
    %1570 = vector.shape_cast %1569 : vector<1x32x128xf32> to vector<32x128xf32>
    %1571 = vector.broadcast %1568 : vector<1x128xf32> to vector<32x128xf32>
    %1572 = arith.mulf %1571, %1570 : vector<32x128xf32>
    %1573 = arith.addf %1567, %1572 : vector<32x128xf32>
    %1574 = vector.extract_strided_slice %1434 {offsets = [23, 0], sizes = [1, 128], strides = [1, 1]} : vector<32x128xf32> to vector<1x128xf32>
    %c23_762 = arith.constant 23 : index
    %c0_763 = arith.constant 0 : index
    %c0_764 = arith.constant 0 : index
    %1575 = vector.load %arg4[%c23_762, %c0_763, %c0_764] : memref<32x32x128xf32, #tpu.memory_space<vmem>>, vector<1x32x128xf32>
    %1576 = vector.shape_cast %1575 : vector<1x32x128xf32> to vector<32x128xf32>
    %1577 = vector.broadcast %1574 : vector<1x128xf32> to vector<32x128xf32>
    %1578 = arith.mulf %1577, %1576 : vector<32x128xf32>
    %1579 = arith.addf %1573, %1578 : vector<32x128xf32>
    %1580 = vector.extract_strided_slice %1434 {offsets = [24, 0], sizes = [1, 128], strides = [1, 1]} : vector<32x128xf32> to vector<1x128xf32>
    %c24_765 = arith.constant 24 : index
    %c0_766 = arith.constant 0 : index
    %c0_767 = arith.constant 0 : index
    %1581 = vector.load %arg4[%c24_765, %c0_766, %c0_767] : memref<32x32x128xf32, #tpu.memory_space<vmem>>, vector<1x32x128xf32>
    %1582 = vector.shape_cast %1581 : vector<1x32x128xf32> to vector<32x128xf32>
    %1583 = vector.broadcast %1580 : vector<1x128xf32> to vector<32x128xf32>
    %1584 = arith.mulf %1583, %1582 : vector<32x128xf32>
    %1585 = arith.addf %1579, %1584 : vector<32x128xf32>
    %1586 = vector.extract_strided_slice %1434 {offsets = [25, 0], sizes = [1, 128], strides = [1, 1]} : vector<32x128xf32> to vector<1x128xf32>
    %c25_768 = arith.constant 25 : index
    %c0_769 = arith.constant 0 : index
    %c0_770 = arith.constant 0 : index
    %1587 = vector.load %arg4[%c25_768, %c0_769, %c0_770] : memref<32x32x128xf32, #tpu.memory_space<vmem>>, vector<1x32x128xf32>
    %1588 = vector.shape_cast %1587 : vector<1x32x128xf32> to vector<32x128xf32>
    %1589 = vector.broadcast %1586 : vector<1x128xf32> to vector<32x128xf32>
    %1590 = arith.mulf %1589, %1588 : vector<32x128xf32>
    %1591 = arith.addf %1585, %1590 : vector<32x128xf32>
    %1592 = vector.extract_strided_slice %1434 {offsets = [26, 0], sizes = [1, 128], strides = [1, 1]} : vector<32x128xf32> to vector<1x128xf32>
    %c26_771 = arith.constant 26 : index
    %c0_772 = arith.constant 0 : index
    %c0_773 = arith.constant 0 : index
    %1593 = vector.load %arg4[%c26_771, %c0_772, %c0_773] : memref<32x32x128xf32, #tpu.memory_space<vmem>>, vector<1x32x128xf32>
    %1594 = vector.shape_cast %1593 : vector<1x32x128xf32> to vector<32x128xf32>
    %1595 = vector.broadcast %1592 : vector<1x128xf32> to vector<32x128xf32>
    %1596 = arith.mulf %1595, %1594 : vector<32x128xf32>
    %1597 = arith.addf %1591, %1596 : vector<32x128xf32>
    %1598 = vector.extract_strided_slice %1434 {offsets = [27, 0], sizes = [1, 128], strides = [1, 1]} : vector<32x128xf32> to vector<1x128xf32>
    %c27_774 = arith.constant 27 : index
    %c0_775 = arith.constant 0 : index
    %c0_776 = arith.constant 0 : index
    %1599 = vector.load %arg4[%c27_774, %c0_775, %c0_776] : memref<32x32x128xf32, #tpu.memory_space<vmem>>, vector<1x32x128xf32>
    %1600 = vector.shape_cast %1599 : vector<1x32x128xf32> to vector<32x128xf32>
    %1601 = vector.broadcast %1598 : vector<1x128xf32> to vector<32x128xf32>
    %1602 = arith.mulf %1601, %1600 : vector<32x128xf32>
    %1603 = arith.addf %1597, %1602 : vector<32x128xf32>
    %1604 = vector.extract_strided_slice %1434 {offsets = [28, 0], sizes = [1, 128], strides = [1, 1]} : vector<32x128xf32> to vector<1x128xf32>
    %c28_777 = arith.constant 28 : index
    %c0_778 = arith.constant 0 : index
    %c0_779 = arith.constant 0 : index
    %1605 = vector.load %arg4[%c28_777, %c0_778, %c0_779] : memref<32x32x128xf32, #tpu.memory_space<vmem>>, vector<1x32x128xf32>
    %1606 = vector.shape_cast %1605 : vector<1x32x128xf32> to vector<32x128xf32>
    %1607 = vector.broadcast %1604 : vector<1x128xf32> to vector<32x128xf32>
    %1608 = arith.mulf %1607, %1606 : vector<32x128xf32>
    %1609 = arith.addf %1603, %1608 : vector<32x128xf32>
    %1610 = vector.extract_strided_slice %1434 {offsets = [29, 0], sizes = [1, 128], strides = [1, 1]} : vector<32x128xf32> to vector<1x128xf32>
    %c29_780 = arith.constant 29 : index
    %c0_781 = arith.constant 0 : index
    %c0_782 = arith.constant 0 : index
    %1611 = vector.load %arg4[%c29_780, %c0_781, %c0_782] : memref<32x32x128xf32, #tpu.memory_space<vmem>>, vector<1x32x128xf32>
    %1612 = vector.shape_cast %1611 : vector<1x32x128xf32> to vector<32x128xf32>
    %1613 = vector.broadcast %1610 : vector<1x128xf32> to vector<32x128xf32>
    %1614 = arith.mulf %1613, %1612 : vector<32x128xf32>
    %1615 = arith.addf %1609, %1614 : vector<32x128xf32>
    %1616 = vector.extract_strided_slice %1434 {offsets = [30, 0], sizes = [1, 128], strides = [1, 1]} : vector<32x128xf32> to vector<1x128xf32>
    %c30_783 = arith.constant 30 : index
    %c0_784 = arith.constant 0 : index
    %c0_785 = arith.constant 0 : index
    %1617 = vector.load %arg4[%c30_783, %c0_784, %c0_785] : memref<32x32x128xf32, #tpu.memory_space<vmem>>, vector<1x32x128xf32>
    %1618 = vector.shape_cast %1617 : vector<1x32x128xf32> to vector<32x128xf32>
    %1619 = vector.broadcast %1616 : vector<1x128xf32> to vector<32x128xf32>
    %1620 = arith.mulf %1619, %1618 : vector<32x128xf32>
    %1621 = arith.addf %1615, %1620 : vector<32x128xf32>
    %1622 = vector.extract_strided_slice %1434 {offsets = [31, 0], sizes = [1, 128], strides = [1, 1]} : vector<32x128xf32> to vector<1x128xf32>
    %c31_786 = arith.constant 31 : index
    %c0_787 = arith.constant 0 : index
    %c0_788 = arith.constant 0 : index
    %1623 = vector.load %arg4[%c31_786, %c0_787, %c0_788] : memref<32x32x128xf32, #tpu.memory_space<vmem>>, vector<1x32x128xf32>
    %1624 = vector.shape_cast %1623 : vector<1x32x128xf32> to vector<32x128xf32>
    %1625 = vector.broadcast %1622 : vector<1x128xf32> to vector<32x128xf32>
    %1626 = arith.mulf %1625, %1624 : vector<32x128xf32>
    %1627 = arith.addf %1621, %1626 : vector<32x128xf32>
    %1628 = vector.extract_strided_slice %2 {offsets = [0, 7], sizes = [32, 1], strides = [1, 1]} : vector<32x8xf32> to vector<32x1xf32>
    %1629 = vector.broadcast %1628 : vector<32x1xf32> to vector<32x128xf32>
    %1630 = arith.addf %1627, %1629 : vector<32x128xf32>
    %cst_789 = arith.constant 0.000000e+00 : f32
    %1631 = vector.broadcast %cst_789 : f32 to vector<32x128xf32>
    %1632 = arith.maximumf %1630, %1631 : vector<32x128xf32>
    %1633 = arith.mulf %1632, %1 : vector<32x128xf32>
    %cst_790 = arith.constant dense<0.000000e+00> : vector<128xf32>
    %1634 = vector.multi_reduction <add>, %1633, %cst_790 [0] : vector<32x128xf32> to vector<128xf32>
    %1635 = vector.shape_cast %1634 : vector<128xf32> to vector<1x128xf32>
    %1636 = tpu.concatenate %207, %411, %615, %819, %1023, %1227, %1431, %1635 in 0 : vector<1x128xf32>, vector<1x128xf32>, vector<1x128xf32>, vector<1x128xf32>, vector<1x128xf32>, vector<1x128xf32>, vector<1x128xf32>, vector<1x128xf32> -> vector<8x128xf32>
    %1637 = vector.broadcast %3 : vector<8x1xf32> to vector<8x128xf32>
    %1638 = arith.addf %1636, %1637 : vector<8x128xf32>
    %cst_791 = arith.constant dense<0xFF800000> : vector<128xf32>
    %1639 = vector.multi_reduction <maximumf>, %1638, %cst_791 [0] : vector<8x128xf32> to vector<128xf32>
    %1640 = vector.shape_cast %1639 : vector<128xf32> to vector<1x128xf32>
    %1641 = vector.broadcast %1640 : vector<1x128xf32> to vector<8x128xf32>
    %1642 = arith.subf %1638, %1641 : vector<8x128xf32>
    %1643 = math.exp %1642 : vector<8x128xf32>
    %cst_792 = arith.constant dense<0.000000e+00> : vector<128xf32>
    %1644 = vector.multi_reduction <add>, %1643, %cst_792 [0] : vector<8x128xf32> to vector<128xf32>
    %1645 = vector.shape_cast %1644 : vector<128xf32> to vector<1x128xf32>
    %1646 = vector.broadcast %1645 : vector<1x128xf32> to vector<8x128xf32>
    %1647 = arith.divf %1643, %1646 : vector<8x128xf32>
    %cst_793 = arith.constant 0.000000e+00 : f32
    %1648 = vector.broadcast %cst_793 : f32 to vector<32x128xf32>
    %1649 = vector.extract_strided_slice %1647 {offsets = [0, 0], sizes = [1, 128], strides = [1, 1]} : vector<8x128xf32> to vector<1x128xf32>
    %c0_794 = arith.constant 0 : index
    %c0_795 = arith.constant 0 : index
    %c0_796 = arith.constant 0 : index
    %1650 = vector.load %arg3[%c0_794, %c0_795, %c0_796] : memref<8x32x128xf32, #tpu.memory_space<vmem>>, vector<1x32x128xf32>
    %1651 = vector.shape_cast %1650 : vector<1x32x128xf32> to vector<32x128xf32>
    %1652 = vector.broadcast %1649 : vector<1x128xf32> to vector<32x128xf32>
    %1653 = arith.mulf %1652, %1651 : vector<32x128xf32>
    %1654 = arith.addf %1648, %1653 : vector<32x128xf32>
    %1655 = vector.extract_strided_slice %1647 {offsets = [1, 0], sizes = [1, 128], strides = [1, 1]} : vector<8x128xf32> to vector<1x128xf32>
    %c1_797 = arith.constant 1 : index
    %c0_798 = arith.constant 0 : index
    %c0_799 = arith.constant 0 : index
    %1656 = vector.load %arg3[%c1_797, %c0_798, %c0_799] : memref<8x32x128xf32, #tpu.memory_space<vmem>>, vector<1x32x128xf32>
    %1657 = vector.shape_cast %1656 : vector<1x32x128xf32> to vector<32x128xf32>
    %1658 = vector.broadcast %1655 : vector<1x128xf32> to vector<32x128xf32>
    %1659 = arith.mulf %1658, %1657 : vector<32x128xf32>
    %1660 = arith.addf %1654, %1659 : vector<32x128xf32>
    %1661 = vector.extract_strided_slice %1647 {offsets = [2, 0], sizes = [1, 128], strides = [1, 1]} : vector<8x128xf32> to vector<1x128xf32>
    %c2_800 = arith.constant 2 : index
    %c0_801 = arith.constant 0 : index
    %c0_802 = arith.constant 0 : index
    %1662 = vector.load %arg3[%c2_800, %c0_801, %c0_802] : memref<8x32x128xf32, #tpu.memory_space<vmem>>, vector<1x32x128xf32>
    %1663 = vector.shape_cast %1662 : vector<1x32x128xf32> to vector<32x128xf32>
    %1664 = vector.broadcast %1661 : vector<1x128xf32> to vector<32x128xf32>
    %1665 = arith.mulf %1664, %1663 : vector<32x128xf32>
    %1666 = arith.addf %1660, %1665 : vector<32x128xf32>
    %1667 = vector.extract_strided_slice %1647 {offsets = [3, 0], sizes = [1, 128], strides = [1, 1]} : vector<8x128xf32> to vector<1x128xf32>
    %c3_803 = arith.constant 3 : index
    %c0_804 = arith.constant 0 : index
    %c0_805 = arith.constant 0 : index
    %1668 = vector.load %arg3[%c3_803, %c0_804, %c0_805] : memref<8x32x128xf32, #tpu.memory_space<vmem>>, vector<1x32x128xf32>
    %1669 = vector.shape_cast %1668 : vector<1x32x128xf32> to vector<32x128xf32>
    %1670 = vector.broadcast %1667 : vector<1x128xf32> to vector<32x128xf32>
    %1671 = arith.mulf %1670, %1669 : vector<32x128xf32>
    %1672 = arith.addf %1666, %1671 : vector<32x128xf32>
    %1673 = vector.extract_strided_slice %1647 {offsets = [4, 0], sizes = [1, 128], strides = [1, 1]} : vector<8x128xf32> to vector<1x128xf32>
    %c4_806 = arith.constant 4 : index
    %c0_807 = arith.constant 0 : index
    %c0_808 = arith.constant 0 : index
    %1674 = vector.load %arg3[%c4_806, %c0_807, %c0_808] : memref<8x32x128xf32, #tpu.memory_space<vmem>>, vector<1x32x128xf32>
    %1675 = vector.shape_cast %1674 : vector<1x32x128xf32> to vector<32x128xf32>
    %1676 = vector.broadcast %1673 : vector<1x128xf32> to vector<32x128xf32>
    %1677 = arith.mulf %1676, %1675 : vector<32x128xf32>
    %1678 = arith.addf %1672, %1677 : vector<32x128xf32>
    %1679 = vector.extract_strided_slice %1647 {offsets = [5, 0], sizes = [1, 128], strides = [1, 1]} : vector<8x128xf32> to vector<1x128xf32>
    %c5_809 = arith.constant 5 : index
    %c0_810 = arith.constant 0 : index
    %c0_811 = arith.constant 0 : index
    %1680 = vector.load %arg3[%c5_809, %c0_810, %c0_811] : memref<8x32x128xf32, #tpu.memory_space<vmem>>, vector<1x32x128xf32>
    %1681 = vector.shape_cast %1680 : vector<1x32x128xf32> to vector<32x128xf32>
    %1682 = vector.broadcast %1679 : vector<1x128xf32> to vector<32x128xf32>
    %1683 = arith.mulf %1682, %1681 : vector<32x128xf32>
    %1684 = arith.addf %1678, %1683 : vector<32x128xf32>
    %1685 = vector.extract_strided_slice %1647 {offsets = [6, 0], sizes = [1, 128], strides = [1, 1]} : vector<8x128xf32> to vector<1x128xf32>
    %c6_812 = arith.constant 6 : index
    %c0_813 = arith.constant 0 : index
    %c0_814 = arith.constant 0 : index
    %1686 = vector.load %arg3[%c6_812, %c0_813, %c0_814] : memref<8x32x128xf32, #tpu.memory_space<vmem>>, vector<1x32x128xf32>
    %1687 = vector.shape_cast %1686 : vector<1x32x128xf32> to vector<32x128xf32>
    %1688 = vector.broadcast %1685 : vector<1x128xf32> to vector<32x128xf32>
    %1689 = arith.mulf %1688, %1687 : vector<32x128xf32>
    %1690 = arith.addf %1684, %1689 : vector<32x128xf32>
    %1691 = vector.extract_strided_slice %1647 {offsets = [7, 0], sizes = [1, 128], strides = [1, 1]} : vector<8x128xf32> to vector<1x128xf32>
    %c7_815 = arith.constant 7 : index
    %c0_816 = arith.constant 0 : index
    %c0_817 = arith.constant 0 : index
    %1692 = vector.load %arg3[%c7_815, %c0_816, %c0_817] : memref<8x32x128xf32, #tpu.memory_space<vmem>>, vector<1x32x128xf32>
    %1693 = vector.shape_cast %1692 : vector<1x32x128xf32> to vector<32x128xf32>
    %1694 = vector.broadcast %1691 : vector<1x128xf32> to vector<32x128xf32>
    %1695 = arith.mulf %1694, %1693 : vector<32x128xf32>
    %1696 = arith.addf %1690, %1695 : vector<32x128xf32>
    %1697 = tpu.concatenate %1696, %0 in 0 : vector<32x128xf32>, vector<32x128xf32> -> vector<64x128xf32>
    %c0_818 = arith.constant 0 : index
    %c0_819 = arith.constant 0 : index
    %1698 = vector.load %arg8[%c0_818, %c0_819] : memref<32x64xf32, #tpu.memory_space<vmem>>, vector<32x64xf32>
    %cst_820 = arith.constant dense<0.000000e+00> : vector<32x128xf32>
    %1699 = tpu.matmul %1698, %1697, %cst_820 {dimension_numbers = #tpu.dot_dimension_numbers<[1], [0], [0], [1], [0, 0, 1, 1], [], []>} : vector<32x64xf32>, vector<64x128xf32>, vector<32x128xf32> -> vector<32x128xf32>
    %c0_821 = arith.constant 0 : index
    %c0_822 = arith.constant 0 : index
    %1700 = vector.load %arg9[%c0_821, %c0_822] : memref<32x1xf32, #tpu.memory_space<vmem>>, vector<32x1xf32>
    %1701 = vector.broadcast %1700 : vector<32x1xf32> to vector<32x128xf32>
    %1702 = arith.addf %1699, %1701 : vector<32x128xf32>
    %cst_823 = arith.constant 0.000000e+00 : f32
    %1703 = vector.broadcast %cst_823 : f32 to vector<32x128xf32>
    %1704 = arith.maximumf %1702, %1703 : vector<32x128xf32>
    %c0_824 = arith.constant 0 : index
    %c0_825 = arith.constant 0 : index
    %1705 = vector.load %arg10[%c0_824, %c0_825] : memref<32x128xf32, #tpu.memory_space<vmem>>, vector<32x128xf32>
    tpu.vector_store %arg10[%c0_824, %c0_825], %1704 {strides = array<i32>} : memref<32x128xf32, #tpu.memory_space<vmem>>, vector<32x128xf32>,
    return
  }
  func.func @transform_0(%arg0: i32) -> (i32, i32) {
    %c0_i32 = arith.constant 0 : i32
    %c0_i32_0 = arith.constant 0 : i32
    return %c0_i32, %arg0 : i32, i32
  }
  func.func @transform_1(%arg0: i32) -> (i32, i32, i32) {
    %c0_i32 = arith.constant 0 : i32
    %c0_i32_0 = arith.constant 0 : i32
    %c0_i32_1 = arith.constant 0 : i32
    return %c0_i32, %c0_i32_0, %arg0 : i32, i32, i32
  }
  func.func @transform_2(%arg0: i32) -> (i32, i32, i32) {
    %c0_i32 = arith.constant 0 : i32
    %c0_i32_0 = arith.constant 0 : i32
    %c0_i32_1 = arith.constant 0 : i32
    return %c0_i32, %c0_i32_0, %arg0 : i32, i32, i32
  }
  func.func @transform_3(%arg0: i32) -> (i32, i32, i32) {
    %c0_i32 = arith.constant 0 : i32
    %c0_i32_0 = arith.constant 0 : i32
    %c0_i32_1 = arith.constant 0 : i32
    return %c0_i32, %c0_i32_0, %arg0 : i32, i32, i32
  }
  func.func @transform_4(%arg0: i32) -> (i32, i32) {
    %c0_i32 = arith.constant 0 : i32
    %c0_i32_0 = arith.constant 0 : i32
    return %c0_i32, %arg0 : i32, i32
  }
  func.func @transform_5(%arg0: i32) -> (i32, i32) {
    %c0_i32 = arith.constant 0 : i32
    %c0_i32_0 = arith.constant 0 : i32
    %c0_i32_1 = arith.constant 0 : i32
    return %c0_i32, %c0_i32_0 : i32, i32
  }
  func.func @transform_6(%arg0: i32) -> (i32, i32) {
    %c0_i32 = arith.constant 0 : i32
    %c0_i32_0 = arith.constant 0 : i32
    %c0_i32_1 = arith.constant 0 : i32
    return %c0_i32, %c0_i32_0 : i32, i32
  }
  func.func @transform_7(%arg0: i32) -> (i32, i32) {
    %c0_i32 = arith.constant 0 : i32
    %c0_i32_0 = arith.constant 0 : i32
    %c0_i32_1 = arith.constant 0 : i32
    return %c0_i32, %c0_i32_0 : i32, i32
  }
  func.func @transform_8(%arg0: i32) -> (i32, i32) {
    %c0_i32 = arith.constant 0 : i32
    %c0_i32_0 = arith.constant 0 : i32
    %c0_i32_1 = arith.constant 0 : i32
    return %c0_i32, %c0_i32_0 : i32, i32
  }
  func.func @transform_9(%arg0: i32) -> (i32, i32) {
    %c0_i32 = arith.constant 0 : i32
    %c0_i32_0 = arith.constant 0 : i32
    return %c0_i32, %arg0 : i32, i32
  }
}

</mosaic_0001>

<llo_original>
// kernel: gnn3_forward.1
$region0: #{gnn3_forward.1}
  #allocation0 [shape = 'u32[]', space=smem, size = 0x4, offset = 0x4, fixed_abs, tag = 'smem constant byte address 0x4 - core index']
  #allocation1 [shape = 'u32[144,128]{1,0:T(1,128)}', space=vmem, size = 0x12000, scoped, tag = 'internal scratch']
  %s0 = inlined_call_operand.hbm [shape: f32[32,640], index: 0, kind: input, shape index: {}]
  %s1 = inlined_call_operand.hbm [shape: f32[8,32,640], index: 1, kind: input, shape index: {}]
  %s2 = inlined_call_operand.hbm [shape: f32[8,32,640], index: 2, kind: input, shape index: {}]
  %s3 = inlined_call_operand.hbm [shape: f32[32,32,640], index: 3, kind: input, shape index: {}]
  %s4 = inlined_call_operand.hbm [shape: f32[32,640], index: 4, kind: input, shape index: {}]
  %s5 = inlined_call_operand.vmem [shape: f32[32,8], index: 5, kind: input, shape index: {}]
  %s6 = inlined_call_operand.vmem [shape: f32[8,1], index: 6, kind: input, shape index: {}]
  %s7 = inlined_call_operand.hbm [shape: f32[32,64], index: 7, kind: input, shape index: {}]
  %s8 = inlined_call_operand.vmem [shape: f32[32,1], index: 8, kind: input, shape index: {}]
  %s9 = inlined_call_operand.vmem [shape: f32[32,640], index: 9, kind: output, shape index: {}]
  %s10 = sld [smem:[#allocation0]]
  $region127: #{gnn3_forward.1} parent=0
    _
  %s12 = ssub.s32 1, %s10
  %s13 = scalar_select 0, %s12, %s10
  $region1: #{gnn3_forward.1} parent=0
    #allocation2 [shape = 'u8[32768]{0}', space=vmem, size = 0x8000, scoped, tag = 'input window, operand 0']
    #allocation3 [shape = 's32[2]{0}', space=sflag, size = 0x8, scoped, tag = 'scoped memory for gnn3_forward.1']
    #allocation4 [shape = 'u8[262144]{0}', space=vmem, size = 0x40000, scoped, tag = 'input window, operand 1']
    #allocation5 [shape = 's32[2]{0}', space=sflag, size = 0x8, scoped, tag = 'scoped memory for gnn3_forward.1']
    #allocation6 [shape = 'u8[262144]{0}', space=vmem, size = 0x40000, scoped, tag = 'input window, operand 2']
    #allocation7 [shape = 'u8[1048576]{0}', space=vmem, size = 0x100000, scoped, tag = 'input window, operand 3']
    #allocation8 [shape = 's32[2]{0}', space=sflag, size = 0x8, scoped, tag = 'scoped memory for gnn3_forward.1']
    #allocation9 [shape = 'u8[32768]{0}', space=vmem, size = 0x8000, scoped, tag = 'input window, operand 4']
    #allocation10 [shape = 'u8[16384]{0}', space=vmem, size = 0x4000, scoped, tag = 'input window, operand 7, single buffered']
    #allocation11 [shape = 's32[1]{0}', space=sflag, size = 0x4, scoped, tag = 'scoped memory for gnn3_forward.1']
    #allocation12 [shape = 'u8[32768]{0}', space=vmem, size = 0x8000, scoped, tag = 'output window, operand 0']
    %14 = vsyncpa [#allocation3], 0
    %s15 = scalar_lea.sflag [#allocation3], 1
    %16 = vsyncpa %s15, 0
    %17 = vsyncpa [#allocation5], 0
    %s18 = scalar_lea.sflag [#allocation5], 1
    %19 = vsyncpa %s18, 0
    %20 = vsyncpa [#allocation8], 0
    %s21 = scalar_lea.sflag [#allocation8], 1
    %22 = vsyncpa %s21, 0
    %23 = vsyncpa [#allocation11], 0
    loop: start=0, step=1, limit=7
    $region2: #{gnn3_forward.1} parent=1 // loop_pre_header
      _
    $region3: #{gnn3_forward.1} parent=1 // loop_header
      %s25 = sphi 0, %s29
      %p26 = scmp.ge.s32.totalorder %s25, 7
      %s35 = sphi 0, %s37
      %s38 = sphi 0, %s35
      %s39 = sphi 0, %s38
      %s55 = sphi 0, %s39
      %s61 = sphi 0, %s63
      %s64 = sphi 0, %s61
      %s65 = sphi 0, %s64
      %s81 = sphi 0, %s65
      %s87 = sphi 0, %s89
      %s90 = sphi 0, %s87
      %s91 = sphi 0, %s90
      %s107 = sphi 0, %s91
      %s113 = sphi 0, %s115
      %s116 = sphi 0, %s113
      %s117 = sphi 0, %s116
      %s133 = sphi 0, %s117
      %s139 = sphi 0, %s141
      %s142 = sphi 0, %s139
      %s143 = sphi 0, %s142
      %s159 = sphi 0, %s143
      %s163 = sphi 0, %s163
      %s165 = sphi 0, %s163
      %s166 = sphi 0, %s165
      %s180 = sphi 0, %s166
      %s184 = sphi 0, %s184
      %s186 = sphi 0, %s184
      %s187 = sphi 0, %s186
      %s201 = sphi 0, %s187
      %s205 = sphi 0, %s205
      %s207 = sphi 0, %s205
      %s208 = sphi 0, %s207
      %s222 = sphi 0, %s208
      %s226 = sphi 0, %s226
      %s228 = sphi 0, %s226
      %s229 = sphi 0, %s228
      %s243 = sphi 0, %s229
      %s249 = sphi 0, %s251
      %s252 = sphi 0, %s249
      %s253 = sphi 0, %s252
      %s269 = sphi 0, %s253
    $region4: #{gnn3_forward.1} parent=1 // loop_header_branch
      %28 = sbr.rel (%p26) target = $region8
    $region5: #{gnn3_forward.1} parent=1 // loop_body
      %s30 = ssub.s32 %s25, 1
      %s31 = ssub.s32 %s25, 2
      %s32 = sadd.s32 %s25, 1
      %s33 = ssub.s32 %s25, %s32
      %p34 = scmp.eq.s32.totalorder %s33, 0
      %s36 = sadd.s32 %s35, 1
      %s37 = scalar_select %p34, %s35, %s36
      %p40 = pneg %p34
      %p41 = scmp.eq.s32.totalorder %s25, 4
      %p42 = por %p40, %p41
      %p43 = scmp.ne.s32.totalorder %s35, %s38
      %p44 = scmp.eq.s32.totalorder %s25, 0
      %p45 = por %p43, %p44
      %p46 = scmp.ne.s32.totalorder %s35, %s38
      %p47 = scmp.eq.s32.totalorder %s30, 4
      %p48 = por %p46, %p47
      %p49 = scmp.ne.s32.totalorder %s38, %s39
      %p50 = scmp.eq.s32.totalorder %s30, 0
      %p51 = por %p49, %p50
      %p52 = scmp.ne.s32.totalorder %s38, %s39
      %p53 = scmp.eq.s32.totalorder %s31, 4
      %p54 = por %p52, %p53
      %p56 = scmp.ne.s32.totalorder %s39, %s55
      %p57 = scmp.eq.s32.totalorder %s31, 0
      %p58 = por %p56, %p57
      %s59 = ssub.s32 %s25, %s32
      %p60 = scmp.eq.s32.totalorder %s59, 0
      %s62 = sadd.s32 %s61, 1
      %s63 = scalar_select %p60, %s61, %s62
      %p66 = pneg %p60
      %p67 = scmp.eq.s32.totalorder %s25, 4
      %p68 = por %p66, %p67
      %p69 = scmp.ne.s32.totalorder %s61, %s64
      %p70 = scmp.eq.s32.totalorder %s25, 0
      %p71 = por %p69, %p70
      %p72 = scmp.ne.s32.totalorder %s61, %s64
      %p73 = scmp.eq.s32.totalorder %s30, 4
      %p74 = por %p72, %p73
      %p75 = scmp.ne.s32.totalorder %s64, %s65
      %p76 = scmp.eq.s32.totalorder %s30, 0
      %p77 = por %p75, %p76
      %p78 = scmp.ne.s32.totalorder %s64, %s65
      %p79 = scmp.eq.s32.totalorder %s31, 4
      %p80 = por %p78, %p79
      %p82 = scmp.ne.s32.totalorder %s65, %s81
      %p83 = scmp.eq.s32.totalorder %s31, 0
      %p84 = por %p82, %p83
      %s85 = ssub.s32 %s25, %s32
      %p86 = scmp.eq.s32.totalorder %s85, 0
      %s88 = sadd.s32 %s87, 1
      %s89 = scalar_select %p86, %s87, %s88
      %p92 = pneg %p86
      %p93 = scmp.eq.s32.totalorder %s25, 4
      %p94 = por %p92, %p93
      %p95 = scmp.ne.s32.totalorder %s87, %s90
      %p96 = scmp.eq.s32.totalorder %s25, 0
      %p97 = por %p95, %p96
      %p98 = scmp.ne.s32.totalorder %s87, %s90
      %p99 = scmp.eq.s32.totalorder %s30, 4
      %p100 = por %p98, %p99
      %p101 = scmp.ne.s32.totalorder %s90, %s91
      %p102 = scmp.eq.s32.totalorder %s30, 0
      %p103 = por %p101, %p102
      %p104 = scmp.ne.s32.totalorder %s90, %s91
      %p105 = scmp.eq.s32.totalorder %s31, 4
      %p106 = por %p104, %p105
      %p108 = scmp.ne.s32.totalorder %s91, %s107
      %p109 = scmp.eq.s32.totalorder %s31, 0
      %p110 = por %p108, %p109
      %s111 = ssub.s32 %s25, %s32
      %p112 = scmp.eq.s32.totalorder %s111, 0
      %s114 = sadd.s32 %s113, 1
      %s115 = scalar_select %p112, %s113, %s114
      %p118 = pneg %p112
      %p119 = scmp.eq.s32.totalorder %s25, 4
      %p120 = por %p118, %p119
      %p121 = scmp.ne.s32.totalorder %s113, %s116
      %p122 = scmp.eq.s32.totalorder %s25, 0
      %p123 = por %p121, %p122
      %p124 = scmp.ne.s32.totalorder %s113, %s116
      %p125 = scmp.eq.s32.totalorder %s30, 4
      %p126 = por %p124, %p125
      %p127 = scmp.ne.s32.totalorder %s116, %s117
      %p128 = scmp.eq.s32.totalorder %s30, 0
      %p129 = por %p127, %p128
      %p130 = scmp.ne.s32.totalorder %s116, %s117
      %p131 = scmp.eq.s32.totalorder %s31, 4
      %p132 = por %p130, %p131
      %p134 = scmp.ne.s32.totalorder %s117, %s133
      %p135 = scmp.eq.s32.totalorder %s31, 0
      %p136 = por %p134, %p135
      %s137 = ssub.s32 %s25, %s32
      %p138 = scmp.eq.s32.totalorder %s137, 0
      %s140 = sadd.s32 %s139, 1
      %s141 = scalar_select %p138, %s139, %s140
      %p144 = pneg %p138
      %p145 = scmp.eq.s32.totalorder %s25, 4
      %p146 = por %p144, %p145
      %p147 = scmp.ne.s32.totalorder %s139, %s142
      %p148 = scmp.eq.s32.totalorder %s25, 0
      %p149 = por %p147, %p148
      %p150 = scmp.ne.s32.totalorder %s139, %s142
      %p151 = scmp.eq.s32.totalorder %s30, 4
      %p152 = por %p150, %p151
      %p153 = scmp.ne.s32.totalorder %s142, %s143
      %p154 = scmp.eq.s32.totalorder %s30, 0
      %p155 = por %p153, %p154
      %p156 = scmp.ne.s32.totalorder %s142, %s143
      %p157 = scmp.eq.s32.totalorder %s31, 4
      %p158 = por %p156, %p157
      %p160 = scmp.ne.s32.totalorder %s143, %s159
      %p161 = scmp.eq.s32.totalorder %s31, 0
      %p162 = por %p160, %p161
      %s164 = sadd.s32 %s163, 1
      %p167 = scmp.eq.s32.totalorder %s25, 4
      %p168 = scmp.ne.s32.totalorder %s163, %s165
      %p169 = scmp.eq.s32.totalorder %s25, 0
      %p170 = por %p168, %p169
      %p171 = scmp.ne.s32.totalorder %s163, %s165
      %p172 = scmp.eq.s32.totalorder %s30, 4
      %p173 = por %p171, %p172
      %p174 = scmp.ne.s32.totalorder %s165, %s166
      %p175 = scmp.eq.s32.totalorder %s30, 0
      %p176 = por %p174, %p175
      %p177 = scmp.ne.s32.totalorder %s165, %s166
      %p178 = scmp.eq.s32.totalorder %s31, 4
      %p179 = por %p177, %p178
      %p181 = scmp.ne.s32.totalorder %s166, %s180
      %p182 = scmp.eq.s32.totalorder %s31, 0
      %p183 = por %p181, %p182
      %s185 = sadd.s32 %s184, 1
      %p188 = scmp.eq.s32.totalorder %s25, 4
      %p189 = scmp.ne.s32.totalorder %s184, %s186
      %p190 = scmp.eq.s32.totalorder %s25, 0
      %p191 = por %p189, %p190
      %p192 = scmp.ne.s32.totalorder %s184, %s186
      %p193 = scmp.eq.s32.totalorder %s30, 4
      %p194 = por %p192, %p193
      %p195 = scmp.ne.s32.totalorder %s186, %s187
      %p196 = scmp.eq.s32.totalorder %s30, 0
      %p197 = por %p195, %p196
      %p198 = scmp.ne.s32.totalorder %s186, %s187
      %p199 = scmp.eq.s32.totalorder %s31, 4
      %p200 = por %p198, %p199
      %p202 = scmp.ne.s32.totalorder %s187, %s201
      %p203 = scmp.eq.s32.totalorder %s31, 0
      %p204 = por %p202, %p203
      %s206 = sadd.s32 %s205, 1
      %p209 = scmp.eq.s32.totalorder %s25, 4
      %p210 = scmp.ne.s32.totalorder %s205, %s207
      %p211 = scmp.eq.s32.totalorder %s25, 0
      %p212 = por %p210, %p211
      %p213 = scmp.ne.s32.totalorder %s205, %s207
      %p214 = scmp.eq.s32.totalorder %s30, 4
      %p215 = por %p213, %p214
      %p216 = scmp.ne.s32.totalorder %s207, %s208
      %p217 = scmp.eq.s32.totalorder %s30, 0
      %p218 = por %p216, %p217
      %p219 = scmp.ne.s32.totalorder %s207, %s208
      %p220 = scmp.eq.s32.totalorder %s31, 4
      %p221 = por %p219, %p220
      %p223 = scmp.ne.s32.totalorder %s208, %s222
      %p224 = scmp.eq.s32.totalorder %s31, 0
      %p225 = por %p223, %p224
      %s227 = sadd.s32 %s226, 1
      %p230 = scmp.eq.s32.totalorder %s25, 4
      %p231 = scmp.ne.s32.totalorder %s226, %s228
      %p232 = scmp.eq.s32.totalorder %s25, 0
      %p233 = por %p231, %p232
      %p234 = scmp.ne.s32.totalorder %s226, %s228
      %p235 = scmp.eq.s32.totalorder %s30, 4
      %p236 = por %p234, %p235
      %p237 = scmp.ne.s32.totalorder %s228, %s229
      %p238 = scmp.eq.s32.totalorder %s30, 0
      %p239 = por %p237, %p238
      %p240 = scmp.ne.s32.totalorder %s228, %s229
      %p241 = scmp.eq.s32.totalorder %s31, 4
      %p242 = por %p240, %p241
      %p244 = scmp.ne.s32.totalorder %s229, %s243
      %p245 = scmp.eq.s32.totalorder %s31, 0
      %p246 = por %p244, %p245
      %s247 = ssub.s32 %s25, %s32
      %p248 = scmp.eq.s32.totalorder %s247, 0
      %s250 = sadd.s32 %s249, 1
      %s251 = scalar_select %p248, %s249, %s250
      %p254 = pneg %p248
      %p255 = scmp.eq.s32.totalorder %s25, 4
      %p256 = por %p254, %p255
      %p257 = scmp.ne.s32.totalorder %s249, %s252
      %p258 = scmp.eq.s32.totalorder %s25, 0
      %p259 = por %p257, %p258
      %p260 = scmp.ne.s32.totalorder %s249, %s252
      %p261 = scmp.eq.s32.totalorder %s30, 4
      %p262 = por %p260, %p261
      %p263 = scmp.ne.s32.totalorder %s252, %s253
      %p264 = scmp.eq.s32.totalorder %s30, 0
      %p265 = por %p263, %p264
      %p266 = scmp.ne.s32.totalorder %s252, %s253
      %p267 = scmp.eq.s32.totalorder %s31, 4
      %p268 = por %p266, %p267
      %p270 = scmp.ne.s32.totalorder %s253, %s269
      %p271 = scmp.eq.s32.totalorder %s31, 0
      %p272 = por %p270, %p271
      %p273 = scmp.le.s32.totalorder 1, %s25
      %p274 = scmp.lt.s32.totalorder %s25, 6
      %p275 = pnand %p273, %p274
      %p276 = pneg %p275
      // Predicated region
      $region9: #{gnn3_forward.1} parent=5 // pred_check
        _
      $region10: #{gnn3_forward.1} parent=5 // pred_check_branch
        %278 = sbr.rel (%p275) target = $region12
      $region11: #{gnn3_forward.1} parent=5 // pred_region
        %s279 = ssub.s32 %s25, 1
        // Predicated region
        $region13: #{gnn3_forward.1} parent=11 // pred_check
          %p280 = pneg %p176
        $region14: #{gnn3_forward.1} parent=11 // pred_check_branch
          %282 = sbr.rel (%p280) target = $region16
        $region15: #{gnn3_forward.1} parent=11 // pred_region
          _
        $region16: #{gnn3_forward.1} parent=11 // pred_fallthru
          _
        // Predicated region
        $region17: #{gnn3_forward.1} parent=11 // pred_check
          %p283 = pneg %p197
        $region18: #{gnn3_forward.1} parent=11 // pred_check_branch
          %285 = sbr.rel (%p283) target = $region20
        $region19: #{gnn3_forward.1} parent=11 // pred_region
          _
        $region20: #{gnn3_forward.1} parent=11 // pred_fallthru
          _
        // Predicated region
        $region21: #{gnn3_forward.1} parent=11 // pred_check
          %p286 = pneg %p218
        $region22: #{gnn3_forward.1} parent=11 // pred_check_branch
          %288 = sbr.rel (%p286) target = $region24
        $region23: #{gnn3_forward.1} parent=11 // pred_region
          %s290 = ssub.s32 512, 512
          %291 = vsyncadd [#allocation11], %s290
          %s292 = sshll.u32 [#allocation10], 4
          %s293 = int_to_ptr.vmem [resolvable:$true] %s292
          %298 = dma.hbm_to_vmem [thread:$0]  %s7, 512, %s293, [#allocation11], 128, 128, 8
        $region24: #{gnn3_forward.1} parent=11 // pred_fallthru
          _
        // Predicated region
        $region25: #{gnn3_forward.1} parent=11 // pred_check
          %p299 = pneg %p239
        $region26: #{gnn3_forward.1} parent=11 // pred_check_branch
          %301 = sbr.rel (%p299) target = $region28
        $region27: #{gnn3_forward.1} parent=11 // pred_region
          _
        $region28: #{gnn3_forward.1} parent=11 // pred_fallthru
          _
      $region12: #{gnn3_forward.1} parent=5 // pred_fallthru
        _
      %p302 = scmp.lt.s32.totalorder %s25, 5
      // Predicated region
      $region29: #{gnn3_forward.1} parent=5 // pred_check
        %p303 = pneg %p302
      $region30: #{gnn3_forward.1} parent=5 // pred_check_branch
        %305 = sbr.rel (%p303) target = $region32
      $region31: #{gnn3_forward.1} parent=5 // pred_region
        // Predicated region
        $region33: #{gnn3_forward.1} parent=31 // pred_check
          %p306 = pneg %p45
        $region34: #{gnn3_forward.1} parent=31 // pred_check_branch
          %308 = sbr.rel (%p306) target = $region36
        $region35: #{gnn3_forward.1} parent=31 // pred_region
          %s309 = sand.u32 %s35, 1
          %s310 = scalar_lea.sflag [#allocation3], %s309
          %s311 = sand.u32 %s35, 1
          %s312 = smul.addr %s311, 32
          %s313 = scalar_lea.vmem [#allocation2], %s312
          %s315 = ssub.s32 512, 512
          %316 = vsyncadd %s310, %s315
          %s317 = smul.addr %s25, 128
          %s318 = scalar_lea.hbm %s0, %s317
          %s319 = sshll.u32 %s313, 4
          %s320 = int_to_ptr.vmem [resolvable:$true] %s319
          %325 = dma.hbm_to_vmem [thread:$0]  %s318, 512, %s320, %s310, 640, 128, 8
        $region36: #{gnn3_forward.1} parent=31 // pred_fallthru
          _
        // Predicated region
        $region37: #{gnn3_forward.1} parent=31 // pred_check
          %p326 = pneg %p71
        $region38: #{gnn3_forward.1} parent=31 // pred_check_branch
          %328 = sbr.rel (%p326) target = $region40
        $region39: #{gnn3_forward.1} parent=31 // pred_region
          %s329 = sand.u32 %s25, 1
          %s330 = scalar_lea.sflag [#allocation5], %s329
          %s331 = sand.u32 %s61, 1
          %s332 = smul.addr %s331, 256
          %s333 = scalar_lea.vmem [#allocation4], %s332
          %s335 = ssub.s32 4096, 4096
          %336 = vsyncadd %s330, %s335
          %s337 = smul.addr %s25, 128
          %s338 = scalar_lea.hbm %s1, %s337
          %s339 = sshll.u32 %s333, 4
          %s340 = int_to_ptr.vmem [resolvable:$true] %s339
          %345 = dma.hbm_to_vmem [thread:$0]  %s338, 4096, %s340, %s330, 640, 128, 8
        $region40: #{gnn3_forward.1} parent=31 // pred_fallthru
          _
        // Predicated region
        $region41: #{gnn3_forward.1} parent=31 // pred_check
          %p346 = pneg %p97
        $region42: #{gnn3_forward.1} parent=31 // pred_check_branch
          %348 = sbr.rel (%p346) target = $region44
        $region43: #{gnn3_forward.1} parent=31 // pred_region
          %s349 = sand.u32 %s25, 1
          %s350 = scalar_lea.sflag [#allocation5], %s349
          %s351 = sand.u32 %s87, 1
          %s352 = smul.addr %s351, 256
          %s353 = scalar_lea.vmem [#allocation6], %s352
          %s355 = ssub.s32 4096, 4096
          %356 = vsyncadd %s350, %s355
          %s357 = smul.addr %s25, 128
          %s358 = scalar_lea.hbm %s2, %s357
          %s359 = sshll.u32 %s353, 4
          %s360 = int_to_ptr.vmem [resolvable:$true] %s359
          %365 = dma.hbm_to_vmem [thread:$0]  %s358, 4096, %s360, %s350, 640, 128, 8
        $region44: #{gnn3_forward.1} parent=31 // pred_fallthru
          _
        // Predicated region
        $region45: #{gnn3_forward.1} parent=31 // pred_check
          %p366 = pneg %p123
        $region46: #{gnn3_forward.1} parent=31 // pred_check_branch
          %368 = sbr.rel (%p366) target = $region48
        $region47: #{gnn3_forward.1} parent=31 // pred_region
          %s369 = sand.u32 %s25, 1
          %s370 = scalar_lea.sflag [#allocation8], %s369
          %s371 = sand.u32 %s113, 1
          %s372 = smul.addr %s371, 1024
          %s373 = scalar_lea.vmem [#allocation7], %s372
          %s375 = ssub.s32 16384, 16384
          %376 = vsyncadd %s370, %s375
          %s377 = smul.addr %s25, 128
          %s378 = scalar_lea.hbm %s3, %s377
          %s379 = sshll.u32 %s373, 4
          %s380 = int_to_ptr.vmem [resolvable:$true] %s379
          %385 = dma.hbm_to_vmem [thread:$0]  %s378, 16384, %s380, %s370, 640, 128, 8
        $region48: #{gnn3_forward.1} parent=31 // pred_fallthru
          _
        // Predicated region
        $region49: #{gnn3_forward.1} parent=31 // pred_check
          %p386 = pneg %p149
        $region50: #{gnn3_forward.1} parent=31 // pred_check_branch
          %388 = sbr.rel (%p386) target = $region52
        $region51: #{gnn3_forward.1} parent=31 // pred_region
          %s389 = sand.u32 %s25, 1
          %s390 = scalar_lea.sflag [#allocation8], %s389
          %s391 = sand.u32 %s139, 1
          %s392 = smul.addr %s391, 32
          %s393 = scalar_lea.vmem [#allocation9], %s392
          %s395 = ssub.s32 512, 512
          %396 = vsyncadd %s390, %s395
          %s397 = smul.addr %s25, 128
          %s398 = scalar_lea.hbm %s4, %s397
          %s399 = sshll.u32 %s393, 4
          %s400 = int_to_ptr.vmem [resolvable:$true] %s399
          %405 = dma.hbm_to_vmem [thread:$0]  %s398, 512, %s400, %s390, 640, 128, 8
        $region52: #{gnn3_forward.1} parent=31 // pred_fallthru
          _
      $region32: #{gnn3_forward.1} parent=5 // pred_fallthru
        _
      %p406 = scmp.le.s32.totalorder 1, %s25
      %p407 = scmp.lt.s32.totalorder %s25, 6
      %p408 = pnand %p406, %p407
      %p409 = pneg %p408
      // Predicated region
      $region53: #{gnn3_forward.1} parent=5 // pred_check
        _
      $region54: #{gnn3_forward.1} parent=5 // pred_check_branch
        %411 = sbr.rel (%p408) target = $region56
      $region55: #{gnn3_forward.1} parent=5 // pred_region
        %s412 = ssub.s32 %s25, 1
        %s413 = sand.u32 %s38, 1
        %s414 = scalar_lea.sflag [#allocation3], %s413
        %s415 = sand.u32 %s38, 1
        %s416 = smul.addr %s415, 32
        %s417 = scalar_lea.vmem [#allocation2], %s416
        // Predicated region
        $region57: #{gnn3_forward.1} parent=55 // pred_check
          %p418 = pneg %p51
        $region58: #{gnn3_forward.1} parent=55 // pred_check_branch
          %420 = sbr.rel (%p418) target = $region60
        $region59: #{gnn3_forward.1} parent=55 // pred_region
          %421 = dma.done %s414, 512
        $region60: #{gnn3_forward.1} parent=55 // pred_fallthru
          _
        %s422 = sand.u32 %s30, 1
        %s423 = scalar_lea.sflag [#allocation5], %s422
        %s424 = sand.u32 %s64, 1
        %s425 = smul.addr %s424, 256
        %s426 = scalar_lea.vmem [#allocation4], %s425
        // Predicated region
        $region61: #{gnn3_forward.1} parent=55 // pred_check
          %p427 = pneg %p77
        $region62: #{gnn3_forward.1} parent=55 // pred_check_branch
          %429 = sbr.rel (%p427) target = $region64
        $region63: #{gnn3_forward.1} parent=55 // pred_region
          %430 = dma.done %s423, 4096
        $region64: #{gnn3_forward.1} parent=55 // pred_fallthru
          _
        %s431 = sand.u32 %s30, 1
        %s432 = scalar_lea.sflag [#allocation5], %s431
        %s433 = sand.u32 %s90, 1
        %s434 = smul.addr %s433, 256
        %s435 = scalar_lea.vmem [#allocation6], %s434
        // Predicated region
        $region65: #{gnn3_forward.1} parent=55 // pred_check
          %p436 = pneg %p103
        $region66: #{gnn3_forward.1} parent=55 // pred_check_branch
          %438 = sbr.rel (%p436) target = $region68
        $region67: #{gnn3_forward.1} parent=55 // pred_region
          %439 = dma.done %s432, 4096
        $region68: #{gnn3_forward.1} parent=55 // pred_fallthru
          _
        %s440 = sand.u32 %s30, 1
        %s441 = scalar_lea.sflag [#allocation8], %s440
        %s442 = sand.u32 %s116, 1
        %s443 = smul.addr %s442, 1024
        %s444 = scalar_lea.vmem [#allocation7], %s443
        // Predicated region
        $region69: #{gnn3_forward.1} parent=55 // pred_check
          %p445 = pneg %p129
        $region70: #{gnn3_forward.1} parent=55 // pred_check_branch
          %447 = sbr.rel (%p445) target = $region72
        $region71: #{gnn3_forward.1} parent=55 // pred_region
          %448 = dma.done %s441, 16384
        $region72: #{gnn3_forward.1} parent=55 // pred_fallthru
          _
        %s449 = sand.u32 %s30, 1
        %s450 = scalar_lea.sflag [#allocation8], %s449
        %s451 = sand.u32 %s142, 1
        %s452 = smul.addr %s451, 32
        %s453 = scalar_lea.vmem [#allocation9], %s452
        // Predicated region
        $region73: #{gnn3_forward.1} parent=55 // pred_check
          %p454 = pneg %p155
        $region74: #{gnn3_forward.1} parent=55 // pred_check_branch
          %456 = sbr.rel (%p454) target = $region76
        $region75: #{gnn3_forward.1} parent=55 // pred_region
          %457 = dma.done %s450, 512
        $region76: #{gnn3_forward.1} parent=55 // pred_fallthru
          _
        // Predicated region
        $region77: #{gnn3_forward.1} parent=55 // pred_check
          %p458 = pneg %p218
        $region78: #{gnn3_forward.1} parent=55 // pred_check_branch
          %460 = sbr.rel (%p458) target = $region80
        $region79: #{gnn3_forward.1} parent=55 // pred_region
          %461 = dma.done [#allocation11], 512
        $region80: #{gnn3_forward.1} parent=55 // pred_fallthru
          _
        %s462 = sand.u32 %s38, 1
        %s463 = scalar_lea.sflag [#allocation3], %s462
        %s464 = sand.u32 %s38, 1
        %s465 = smul.addr %s464, 32
        %s466 = scalar_lea.vmem [#allocation2], %s465
        %p467 = pneg %p51
        %p468 = pneg %p48
        %s469 = sand.u32 %s30, 1
        %s470 = scalar_lea.sflag [#allocation5], %s469
        %s471 = sand.u32 %s64, 1
        %s472 = smul.addr %s471, 256
        %s473 = scalar_lea.vmem [#allocation4], %s472
        %p474 = pneg %p77
        %p475 = pneg %p74
        %s476 = sand.u32 %s30, 1
        %s477 = scalar_lea.sflag [#allocation5], %s476
        %s478 = sand.u32 %s90, 1
        %s479 = smul.addr %s478, 256
        %s480 = scalar_lea.vmem [#allocation6], %s479
        %p481 = pneg %p103
        %p482 = pneg %p100
        %s483 = sand.u32 %s30, 1
        %s484 = scalar_lea.sflag [#allocation8], %s483
        %s485 = sand.u32 %s116, 1
        %s486 = smul.addr %s485, 1024
        %s487 = scalar_lea.vmem [#allocation7], %s486
        %p488 = pneg %p129
        %p489 = pneg %p126
        %s490 = sand.u32 %s30, 1
        %s491 = scalar_lea.sflag [#allocation8], %s490
        %s492 = sand.u32 %s142, 1
        %s493 = smul.addr %s492, 32
        %s494 = scalar_lea.vmem [#allocation9], %s493
        %p495 = pneg %p155
        %p496 = pneg %p152
        %p497 = pneg %p176
        %p498 = pneg %p173
        %p499 = pneg %p197
        %p500 = pneg %p194
        %p501 = pneg %p218
        %p502 = pneg %p215
        %p503 = pneg %p239
        %p504 = pneg %p236
        %p505 = pneg %p265
        %p506 = pneg %p262
        %s507 = sand.u32 %s252, 1
        %s508 = sand.u32 %s252, 1
        %s509 = smul.addr %s508, 32
        %s510 = scalar_lea.vmem [#allocation12], %s509
        %v511 = vld [vmem:[%s417] sm:$0xff]
        %v512 = vld [vmem:[%s417 + $0x8] sm:$0xff]
        %v513 = vld [vmem:[%s417 + $0x10] sm:$0xff]
        %v514 = vld [vmem:[%s417 + $0x18] sm:$0xff]
        %v515 = vld [vmem:[%s453] sm:$0xff]
        %v516 = vld [vmem:[%s453 + $0x8] sm:$0xff]
        %v517 = vld [vmem:[%s453 + $0x10] sm:$0xff]
        %v518 = vld [vmem:[%s453 + $0x18] sm:$0xff]
        %v519 = vld [vmem:[%s5] sm:$0xff]
        %v520 = vld [vmem:[%s5 + $0x8] sm:$0xff]
        %v521 = vld [vmem:[%s5 + $0x10] sm:$0xff]
        %v522 = vld [vmem:[%s5 + $0x18] sm:$0xff]
        %v523 = vld [vmem:[%s6] sm:$0xff]
        %v524 = vld [vmem:[%s426] sm:$0xff]
        %v525 = vld [vmem:[%s426 + $0x8] sm:$0xff]
        %v526 = vld [vmem:[%s426 + $0x10] sm:$0xff]
        %v527 = vld [vmem:[%s426 + $0x18] sm:$0xff]
        %v528 = vmul.f32 %v511, %v524
        %v529 = vmul.f32 %v512, %v525
        %v530 = vmul.f32 %v513, %v526
        %v531 = vmul.f32 %v514, %v527
        %v532 = vld [vmem:[%s444] sm:$0xff]
        %v533 = vld [vmem:[%s444 + $0x8] sm:$0xff]
        %v534 = vld [vmem:[%s444 + $0x10] sm:$0xff]
        %v535 = vld [vmem:[%s444 + $0x18] sm:$0xff]
        %v536 = vlaneseq
        %v537 = vshrl.u32 %v536, 7
        %v538 = vsub.s32 0, %v537
        %v539 = vrot.slane %v528, %v538
        %v540 = vmul.f32 %v539, %v532
        %v541 = vmul.f32 %v539, %v533
        %v542 = vmul.f32 %v539, %v534
        %v543 = vmul.f32 %v539, %v535
        %v544 = vadd.f32 %v540, 0.0
        %v545 = vadd.f32 %v541, 0.0
        %v546 = vadd.f32 %v542, 0.0
        %v547 = vadd.f32 %v543, 0.0
        %s548 = scalar_lea.vmem %s444, 32 [#allocation7]
        %v549 = vld [vmem:[%s548] sm:$0xff]
        %v550 = vld [vmem:[%s548 + $0x8] sm:$0xff]
        %v551 = vld [vmem:[%s548 + $0x10] sm:$0xff]
        %v552 = vld [vmem:[%s548 + $0x18] sm:$0xff]
        %v553 = vlaneseq
        %v554 = vshrl.u32 %v553, 7
        %v555 = vsub.s32 1, %v554
        %v556 = vrot.slane %v528, %v555
        %v557 = vmul.f32 %v556, %v549
        %v558 = vmul.f32 %v556, %v550
        %v559 = vmul.f32 %v556, %v551
        %v560 = vmul.f32 %v556, %v552
        %v561 = vadd.f32 %v544, %v557
        %v562 = vadd.f32 %v545, %v558
        %v563 = vadd.f32 %v546, %v559
        %v564 = vadd.f32 %v547, %v560
        %s565 = scalar_lea.vmem %s444, 64 [#allocation7]
        %v566 = vld [vmem:[%s565] sm:$0xff]
        %v567 = vld [vmem:[%s565 + $0x8] sm:$0xff]
        %v568 = vld [vmem:[%s565 + $0x10] sm:$0xff]
        %v569 = vld [vmem:[%s565 + $0x18] sm:$0xff]
        %v570 = vlaneseq
        %v571 = vshrl.u32 %v570, 7
        %v572 = vsub.s32 2, %v571
        %v573 = vrot.slane %v528, %v572
        %v574 = vmul.f32 %v573, %v566
        %v575 = vmul.f32 %v573, %v567
        %v576 = vmul.f32 %v573, %v568
        %v577 = vmul.f32 %v573, %v569
        %v578 = vadd.f32 %v561, %v574
        %v579 = vadd.f32 %v562, %v575
        %v580 = vadd.f32 %v563, %v576
        %v581 = vadd.f32 %v564, %v577
        %s582 = scalar_lea.vmem %s444, 96 [#allocation7]
        %v583 = vld [vmem:[%s582] sm:$0xff]
        %v584 = vld [vmem:[%s582 + $0x8] sm:$0xff]
        %v585 = vld [vmem:[%s582 + $0x10] sm:$0xff]
        %v586 = vld [vmem:[%s582 + $0x18] sm:$0xff]
        %v587 = vlaneseq
        %v588 = vshrl.u32 %v587, 7
        %v589 = vsub.s32 3, %v588
        %v590 = vrot.slane %v528, %v589
        %v591 = vmul.f32 %v590, %v583
        %v592 = vmul.f32 %v590, %v584
        %v593 = vmul.f32 %v590, %v585
        %v594 = vmul.f32 %v590, %v586
        %v595 = vadd.f32 %v578, %v591
        %v596 = vadd.f32 %v579, %v592
        %v597 = vadd.f32 %v580, %v593
        %v598 = vadd.f32 %v581, %v594
        %s599 = scalar_lea.vmem %s444, 128 [#allocation7]
        %v600 = vld [vmem:[%s599] sm:$0xff]
        %v601 = vld [vmem:[%s599 + $0x8] sm:$0xff]
        %v602 = vld [vmem:[%s599 + $0x10] sm:$0xff]
        %v603 = vld [vmem:[%s599 + $0x18] sm:$0xff]
        %v604 = vlaneseq
        %v605 = vshrl.u32 %v604, 7
        %v606 = vsub.s32 4, %v605
        %v607 = vrot.slane %v528, %v606
        %v608 = vmul.f32 %v607, %v600
        %v609 = vmul.f32 %v607, %v601
        %v610 = vmul.f32 %v607, %v602
        %v611 = vmul.f32 %v607, %v603
        %v612 = vadd.f32 %v595, %v608
        %v613 = vadd.f32 %v596, %v609
        %v614 = vadd.f32 %v597, %v610
        %v615 = vadd.f32 %v598, %v611
        %s616 = scalar_lea.vmem %s444, 160 [#allocation7]
        %v617 = vld [vmem:[%s616] sm:$0xff]
        %v618 = vld [vmem:[%s616 + $0x8] sm:$0xff]
        %v619 = vld [vmem:[%s616 + $0x10] sm:$0xff]
        %v620 = vld [vmem:[%s616 + $0x18] sm:$0xff]
        %v621 = vlaneseq
        %v622 = vshrl.u32 %v621, 7
        %v623 = vsub.s32 5, %v622
        %v624 = vrot.slane %v528, %v623
        %v625 = vmul.f32 %v624, %v617
        %v626 = vmul.f32 %v624, %v618
        %v627 = vmul.f32 %v624, %v619
        %v628 = vmul.f32 %v624, %v620
        %v629 = vadd.f32 %v612, %v625
        %v630 = vadd.f32 %v613, %v626
        %v631 = vadd.f32 %v614, %v627
        %v632 = vadd.f32 %v615, %v628
        %s633 = scalar_lea.vmem %s444, 192 [#allocation7]
        %v634 = vld [vmem:[%s633] sm:$0xff]
        %v635 = vld [vmem:[%s633 + $0x8] sm:$0xff]
        %v636 = vld [vmem:[%s633 + $0x10] sm:$0xff]
        %v637 = vld [vmem:[%s633 + $0x18] sm:$0xff]
        %v638 = vlaneseq
        %v639 = vshrl.u32 %v638, 7
        %v640 = vsub.s32 6, %v639
        %v641 = vrot.slane %v528, %v640
        %v642 = vmul.f32 %v641, %v634
        %v643 = vmul.f32 %v641, %v635
        %v644 = vmul.f32 %v641, %v636
        %v645 = vmul.f32 %v641, %v637
        %v646 = vadd.f32 %v629, %v642
        %v647 = vadd.f32 %v630, %v643
        %v648 = vadd.f32 %v631, %v644
        %v649 = vadd.f32 %v632, %v645
        %s650 = scalar_lea.vmem %s444, 224 [#allocation7]
        %v651 = vld [vmem:[%s650] sm:$0xff]
        %v652 = vld [vmem:[%s650 + $0x8] sm:$0xff]
        %v653 = vld [vmem:[%s650 + $0x10] sm:$0xff]
        %v654 = vld [vmem:[%s650 + $0x18] sm:$0xff]
        %v655 = vlaneseq
        %v656 = vshrl.u32 %v655, 7
        %v657 = vsub.s32 7, %v656
        %v658 = vrot.slane %v528, %v657
        %v659 = vmul.f32 %v658, %v651
        %v660 = vmul.f32 %v658, %v652
        %v661 = vmul.f32 %v658, %v653
        %v662 = vmul.f32 %v658, %v654
        %v663 = vadd.f32 %v646, %v659
        %v664 = vadd.f32 %v647, %v660
        %v665 = vadd.f32 %v648, %v661
        %v666 = vadd.f32 %v649, %v662
        %s667 = scalar_lea.vmem %s444, 256 [#allocation7]
        %v668 = vld [vmem:[%s667] sm:$0xff]
        %v669 = vld [vmem:[%s667 + $0x8] sm:$0xff]
        %v670 = vld [vmem:[%s667 + $0x10] sm:$0xff]
        %v671 = vld [vmem:[%s667 + $0x18] sm:$0xff]
        %v672 = vlaneseq
        %v673 = vshrl.u32 %v672, 7
        %v674 = vsub.s32 0, %v673
        %v675 = vrot.slane %v529, %v674
        %v676 = vmul.f32 %v675, %v668
        %v677 = vmul.f32 %v675, %v669
        %v678 = vmul.f32 %v675, %v670
        %v679 = vmul.f32 %v675, %v671
        %v680 = vadd.f32 %v663, %v676
        %v681 = vadd.f32 %v664, %v677
        %v682 = vadd.f32 %v665, %v678
        %v683 = vadd.f32 %v666, %v679
        %s684 = scalar_lea.vmem %s444, 288 [#allocation7]
        %v685 = vld [vmem:[%s684] sm:$0xff]
        %v686 = vld [vmem:[%s684 + $0x8] sm:$0xff]
        %v687 = vld [vmem:[%s684 + $0x10] sm:$0xff]
        %v688 = vld [vmem:[%s684 + $0x18] sm:$0xff]
        %v689 = vlaneseq
        %v690 = vshrl.u32 %v689, 7
        %v691 = vsub.s32 1, %v690
        %v692 = vrot.slane %v529, %v691
        %v693 = vmul.f32 %v692, %v685
        %v694 = vmul.f32 %v692, %v686
        %v695 = vmul.f32 %v692, %v687
        %v696 = vmul.f32 %v692, %v688
        %v697 = vadd.f32 %v680, %v693
        %v698 = vadd.f32 %v681, %v694
        %v699 = vadd.f32 %v682, %v695
        %v700 = vadd.f32 %v683, %v696
        %s701 = scalar_lea.vmem %s444, 320 [#allocation7]
        %v702 = vld [vmem:[%s701] sm:$0xff]
        %v703 = vld [vmem:[%s701 + $0x8] sm:$0xff]
        %v704 = vld [vmem:[%s701 + $0x10] sm:$0xff]
        %v705 = vld [vmem:[%s701 + $0x18] sm:$0xff]
        %v706 = vlaneseq
        %v707 = vshrl.u32 %v706, 7
        %v708 = vsub.s32 2, %v707
        %v709 = vrot.slane %v529, %v708
        %v710 = vmul.f32 %v709, %v702
        %v711 = vmul.f32 %v709, %v703
        %v712 = vmul.f32 %v709, %v704
        %v713 = vmul.f32 %v709, %v705
        %v714 = vadd.f32 %v697, %v710
        %v715 = vadd.f32 %v698, %v711
        %v716 = vadd.f32 %v699, %v712
        %v717 = vadd.f32 %v700, %v713
        %s718 = scalar_lea.vmem %s444, 352 [#allocation7]
        %v719 = vld [vmem:[%s718] sm:$0xff]
        %v720 = vld [vmem:[%s718 + $0x8] sm:$0xff]
        %v721 = vld [vmem:[%s718 + $0x10] sm:$0xff]
        %v722 = vld [vmem:[%s718 + $0x18] sm:$0xff]
        %v723 = vlaneseq
        %v724 = vshrl.u32 %v723, 7
        %v725 = vsub.s32 3, %v724
        %v726 = vrot.slane %v529, %v725
        %v727 = vmul.f32 %v726, %v719
        %v728 = vmul.f32 %v726, %v720
        %v729 = vmul.f32 %v726, %v721
        %v730 = vmul.f32 %v726, %v722
        %v731 = vadd.f32 %v714, %v727
        %v732 = vadd.f32 %v715, %v728
        %v733 = vadd.f32 %v716, %v729
        %v734 = vadd.f32 %v717, %v730
        %s735 = scalar_lea.vmem %s444, 384 [#allocation7]
        %v736 = vld [vmem:[%s735] sm:$0xff]
        %v737 = vld [vmem:[%s735 + $0x8] sm:$0xff]
        %v738 = vld [vmem:[%s735 + $0x10] sm:$0xff]
        %v739 = vld [vmem:[%s735 + $0x18] sm:$0xff]
        %v740 = vlaneseq
        %v741 = vshrl.u32 %v740, 7
        %v742 = vsub.s32 4, %v741
        %v743 = vrot.slane %v529, %v742
        %v744 = vmul.f32 %v743, %v736
        %v745 = vmul.f32 %v743, %v737
        %v746 = vmul.f32 %v743, %v738
        %v747 = vmul.f32 %v743, %v739
        %v748 = vadd.f32 %v731, %v744
        %v749 = vadd.f32 %v732, %v745
        %v750 = vadd.f32 %v733, %v746
        %v751 = vadd.f32 %v734, %v747
        %s752 = scalar_lea.vmem %s444, 416 [#allocation7]
        %v753 = vld [vmem:[%s752] sm:$0xff]
        %v754 = vld [vmem:[%s752 + $0x8] sm:$0xff]
        %v755 = vld [vmem:[%s752 + $0x10] sm:$0xff]
        %v756 = vld [vmem:[%s752 + $0x18] sm:$0xff]
        %v757 = vlaneseq
        %v758 = vshrl.u32 %v757, 7
        %v759 = vsub.s32 5, %v758
        %v760 = vrot.slane %v529, %v759
        %v761 = vmul.f32 %v760, %v753
        %v762 = vmul.f32 %v760, %v754
        %v763 = vmul.f32 %v760, %v755
        %v764 = vmul.f32 %v760, %v756
        %v765 = vadd.f32 %v748, %v761
        %v766 = vadd.f32 %v749, %v762
        %v767 = vadd.f32 %v750, %v763
        %v768 = vadd.f32 %v751, %v764
        %s769 = scalar_lea.vmem %s444, 448 [#allocation7]
        %v770 = vld [vmem:[%s769] sm:$0xff]
        %v771 = vld [vmem:[%s769 + $0x8] sm:$0xff]
        %v772 = vld [vmem:[%s769 + $0x10] sm:$0xff]
        %v773 = vld [vmem:[%s769 + $0x18] sm:$0xff]
        %v774 = vlaneseq
        %v775 = vshrl.u32 %v774, 7
        %v776 = vsub.s32 6, %v775
        %v777 = vrot.slane %v529, %v776
        %v778 = vmul.f32 %v777, %v770
        %v779 = vmul.f32 %v777, %v771
        %v780 = vmul.f32 %v777, %v772
        %v781 = vmul.f32 %v777, %v773
        %v782 = vadd.f32 %v765, %v778
        %v783 = vadd.f32 %v766, %v779
        %v784 = vadd.f32 %v767, %v780
        %v785 = vadd.f32 %v768, %v781
        %s786 = scalar_lea.vmem %s444, 480 [#allocation7]
        %v787 = vld [vmem:[%s786] sm:$0xff]
        %v788 = vld [vmem:[%s786 + $0x8] sm:$0xff]
        %v789 = vld [vmem:[%s786 + $0x10] sm:$0xff]
        %v790 = vld [vmem:[%s786 + $0x18] sm:$0xff]
        %v791 = vlaneseq
        %v792 = vshrl.u32 %v791, 7
        %v793 = vsub.s32 7, %v792
        %v794 = vrot.slane %v529, %v793
        %v795 = vmul.f32 %v794, %v787
        %v796 = vmul.f32 %v794, %v788
        %v797 = vmul.f32 %v794, %v789
        %v798 = vmul.f32 %v794, %v790
        %v799 = vadd.f32 %v782, %v795
        %v800 = vadd.f32 %v783, %v796
        %v801 = vadd.f32 %v784, %v797
        %v802 = vadd.f32 %v785, %v798
        %s803 = scalar_lea.vmem %s444, 512 [#allocation7]
        %v804 = vld [vmem:[%s803] sm:$0xff]
        %v805 = vld [vmem:[%s803 + $0x8] sm:$0xff]
        %v806 = vld [vmem:[%s803 + $0x10] sm:$0xff]
        %v807 = vld [vmem:[%s803 + $0x18] sm:$0xff]
        %v808 = vlaneseq
        %v809 = vshrl.u32 %v808, 7
        %v810 = vsub.s32 0, %v809
        %v811 = vrot.slane %v530, %v810
        %v812 = vmul.f32 %v811, %v804
        %v813 = vmul.f32 %v811, %v805
        %v814 = vmul.f32 %v811, %v806
        %v815 = vmul.f32 %v811, %v807
        %v816 = vadd.f32 %v799, %v812
        %v817 = vadd.f32 %v800, %v813
        %v818 = vadd.f32 %v801, %v814
        %v819 = vadd.f32 %v802, %v815
        %s820 = scalar_lea.vmem %s444, 544 [#allocation7]
        %v821 = vld [vmem:[%s820] sm:$0xff]
        %v822 = vld [vmem:[%s820 + $0x8] sm:$0xff]
        %v823 = vld [vmem:[%s820 + $0x10] sm:$0xff]
        %v824 = vld [vmem:[%s820 + $0x18] sm:$0xff]
        %v825 = vlaneseq
        %v826 = vshrl.u32 %v825, 7
        %v827 = vsub.s32 1, %v826
        %v828 = vrot.slane %v530, %v827
        %v829 = vmul.f32 %v828, %v821
        %v830 = vmul.f32 %v828, %v822
        %v831 = vmul.f32 %v828, %v823
        %v832 = vmul.f32 %v828, %v824
        %v833 = vadd.f32 %v816, %v829
        %v834 = vadd.f32 %v817, %v830
        %v835 = vadd.f32 %v818, %v831
        %v836 = vadd.f32 %v819, %v832
        %s837 = scalar_lea.vmem %s444, 576 [#allocation7]
        %v838 = vld [vmem:[%s837] sm:$0xff]
        %v839 = vld [vmem:[%s837 + $0x8] sm:$0xff]
        %v840 = vld [vmem:[%s837 + $0x10] sm:$0xff]
        %v841 = vld [vmem:[%s837 + $0x18] sm:$0xff]
        %v842 = vlaneseq
        %v843 = vshrl.u32 %v842, 7
        %v844 = vsub.s32 2, %v843
        %v845 = vrot.slane %v530, %v844
        %v846 = vmul.f32 %v845, %v838
        %v847 = vmul.f32 %v845, %v839
        %v848 = vmul.f32 %v845, %v840
        %v849 = vmul.f32 %v845, %v841
        %v850 = vadd.f32 %v833, %v846
        %v851 = vadd.f32 %v834, %v847
        %v852 = vadd.f32 %v835, %v848
        %v853 = vadd.f32 %v836, %v849
        %s854 = scalar_lea.vmem %s444, 608 [#allocation7]
        %v855 = vld [vmem:[%s854] sm:$0xff]
        %v856 = vld [vmem:[%s854 + $0x8] sm:$0xff]
        %v857 = vld [vmem:[%s854 + $0x10] sm:$0xff]
        %v858 = vld [vmem:[%s854 + $0x18] sm:$0xff]
        %v859 = vlaneseq
        %v860 = vshrl.u32 %v859, 7
        %v861 = vsub.s32 3, %v860
        %v862 = vrot.slane %v530, %v861
        %v863 = vmul.f32 %v862, %v855
        %v864 = vmul.f32 %v862, %v856
        %v865 = vmul.f32 %v862, %v857
        %v866 = vmul.f32 %v862, %v858
        %v867 = vadd.f32 %v850, %v863
        %v868 = vadd.f32 %v851, %v864
        %v869 = vadd.f32 %v852, %v865
        %v870 = vadd.f32 %v853, %v866
        %s871 = scalar_lea.vmem %s444, 640 [#allocation7]
        %v872 = vld [vmem:[%s871] sm:$0xff]
        %v873 = vld [vmem:[%s871 + $0x8] sm:$0xff]
        %v874 = vld [vmem:[%s871 + $0x10] sm:$0xff]
        %v875 = vld [vmem:[%s871 + $0x18] sm:$0xff]
        %v876 = vlaneseq
        %v877 = vshrl.u32 %v876, 7
        %v878 = vsub.s32 4, %v877
        %v879 = vrot.slane %v530, %v878
        %v880 = vmul.f32 %v879, %v872
        %v881 = vmul.f32 %v879, %v873
        %v882 = vmul.f32 %v879, %v874
        %v883 = vmul.f32 %v879, %v875
        %v884 = vadd.f32 %v867, %v880
        %v885 = vadd.f32 %v868, %v881
        %v886 = vadd.f32 %v869, %v882
        %v887 = vadd.f32 %v870, %v883
        %s888 = scalar_lea.vmem %s444, 672 [#allocation7]
        %v889 = vld [vmem:[%s888] sm:$0xff]
        %v890 = vld [vmem:[%s888 + $0x8] sm:$0xff]
        %v891 = vld [vmem:[%s888 + $0x10] sm:$0xff]
        %v892 = vld [vmem:[%s888 + $0x18] sm:$0xff]
        %v893 = vlaneseq
        %v894 = vshrl.u32 %v893, 7
        %v895 = vsub.s32 5, %v894
        %v896 = vrot.slane %v530, %v895
        %v897 = vmul.f32 %v896, %v889
        %v898 = vmul.f32 %v896, %v890
        %v899 = vmul.f32 %v896, %v891
        %v900 = vmul.f32 %v896, %v892
        %v901 = vadd.f32 %v884, %v897
        %v902 = vadd.f32 %v885, %v898
        %v903 = vadd.f32 %v886, %v899
        %v904 = vadd.f32 %v887, %v900
        %s905 = scalar_lea.vmem %s444, 704 [#allocation7]
        %v906 = vld [vmem:[%s905] sm:$0xff]
        %v907 = vld [vmem:[%s905 + $0x8] sm:$0xff]
        %v908 = vld [vmem:[%s905 + $0x10] sm:$0xff]
        %v909 = vld [vmem:[%s905 + $0x18] sm:$0xff]
        %v910 = vlaneseq
        %v911 = vshrl.u32 %v910, 7
        %v912 = vsub.s32 6, %v911
        %v913 = vrot.slane %v530, %v912
        %v914 = vmul.f32 %v913, %v906
        %v915 = vmul.f32 %v913, %v907
        %v916 = vmul.f32 %v913, %v908
        %v917 = vmul.f32 %v913, %v909
        %v918 = vadd.f32 %v901, %v914
        %v919 = vadd.f32 %v902, %v915
        %v920 = vadd.f32 %v903, %v916
        %v921 = vadd.f32 %v904, %v917
        %s922 = scalar_lea.vmem %s444, 736 [#allocation7]
        %v923 = vld [vmem:[%s922] sm:$0xff]
        %v924 = vld [vmem:[%s922 + $0x8] sm:$0xff]
        %v925 = vld [vmem:[%s922 + $0x10] sm:$0xff]
        %v926 = vld [vmem:[%s922 + $0x18] sm:$0xff]
        %v927 = vlaneseq
        %v928 = vshrl.u32 %v927, 7
        %v929 = vsub.s32 7, %v928
        %v930 = vrot.slane %v530, %v929
        %v931 = vmul.f32 %v930, %v923
        %v932 = vmul.f32 %v930, %v924
        %v933 = vmul.f32 %v930, %v925
        %v934 = vmul.f32 %v930, %v926
        %v935 = vadd.f32 %v918, %v931
        %v936 = vadd.f32 %v919, %v932
        %v937 = vadd.f32 %v920, %v933
        %v938 = vadd.f32 %v921, %v934
        %s939 = scalar_lea.vmem %s444, 768 [#allocation7]
        %v940 = vld [vmem:[%s939] sm:$0xff]
        %v941 = vld [vmem:[%s939 + $0x8] sm:$0xff]
        %v942 = vld [vmem:[%s939 + $0x10] sm:$0xff]
        %v943 = vld [vmem:[%s939 + $0x18] sm:$0xff]
        %v944 = vlaneseq
        %v945 = vshrl.u32 %v944, 7
        %v946 = vsub.s32 0, %v945
        %v947 = vrot.slane %v531, %v946
        %v948 = vmul.f32 %v947, %v940
        %v949 = vmul.f32 %v947, %v941
        %v950 = vmul.f32 %v947, %v942
        %v951 = vmul.f32 %v947, %v943
        %v952 = vadd.f32 %v935, %v948
        %v953 = vadd.f32 %v936, %v949
        %v954 = vadd.f32 %v937, %v950
        %v955 = vadd.f32 %v938, %v951
        %s956 = scalar_lea.vmem %s444, 800 [#allocation7]
        %v957 = vld [vmem:[%s956] sm:$0xff]
        %v958 = vld [vmem:[%s956 + $0x8] sm:$0xff]
        %v959 = vld [vmem:[%s956 + $0x10] sm:$0xff]
        %v960 = vld [vmem:[%s956 + $0x18] sm:$0xff]
        %v961 = vlaneseq
        %v962 = vshrl.u32 %v961, 7
        %v963 = vsub.s32 1, %v962
        %v964 = vrot.slane %v531, %v963
        %v965 = vmul.f32 %v964, %v957
        %v966 = vmul.f32 %v964, %v958
        %v967 = vmul.f32 %v964, %v959
        %v968 = vmul.f32 %v964, %v960
        %v969 = vadd.f32 %v952, %v965
        %v970 = vadd.f32 %v953, %v966
        %v971 = vadd.f32 %v954, %v967
        %v972 = vadd.f32 %v955, %v968
        %s973 = scalar_lea.vmem %s444, 832 [#allocation7]
        %v974 = vld [vmem:[%s973] sm:$0xff]
        %v975 = vld [vmem:[%s973 + $0x8] sm:$0xff]
        %v976 = vld [vmem:[%s973 + $0x10] sm:$0xff]
        %v977 = vld [vmem:[%s973 + $0x18] sm:$0xff]
        %v978 = vlaneseq
        %v979 = vshrl.u32 %v978, 7
        %v980 = vsub.s32 2, %v979
        %v981 = vrot.slane %v531, %v980
        %v982 = vmul.f32 %v981, %v974
        %v983 = vmul.f32 %v981, %v975
        %v984 = vmul.f32 %v981, %v976
        %v985 = vmul.f32 %v981, %v977
        %v986 = vadd.f32 %v969, %v982
        %v987 = vadd.f32 %v970, %v983
        %v988 = vadd.f32 %v971, %v984
        %v989 = vadd.f32 %v972, %v985
        %s990 = scalar_lea.vmem %s444, 864 [#allocation7]
        %v991 = vld [vmem:[%s990] sm:$0xff]
        %v992 = vld [vmem:[%s990 + $0x8] sm:$0xff]
        %v993 = vld [vmem:[%s990 + $0x10] sm:$0xff]
        %v994 = vld [vmem:[%s990 + $0x18] sm:$0xff]
        %v995 = vlaneseq
        %v996 = vshrl.u32 %v995, 7
        %v997 = vsub.s32 3, %v996
        %v998 = vrot.slane %v531, %v997
        %v999 = vmul.f32 %v998, %v991
        %v1000 = vmul.f32 %v998, %v992
        %v1001 = vmul.f32 %v998, %v993
        %v1002 = vmul.f32 %v998, %v994
        %v1003 = vadd.f32 %v986, %v999
        %v1004 = vadd.f32 %v987, %v1000
        %v1005 = vadd.f32 %v988, %v1001
        %v1006 = vadd.f32 %v989, %v1002
        %s1007 = scalar_lea.vmem %s444, 896 [#allocation7]
        %v1008 = vld [vmem:[%s1007] sm:$0xff]
        %v1009 = vld [vmem:[%s1007 + $0x8] sm:$0xff]
        %v1010 = vld [vmem:[%s1007 + $0x10] sm:$0xff]
        %v1011 = vld [vmem:[%s1007 + $0x18] sm:$0xff]
        %v1012 = vlaneseq
        %v1013 = vshrl.u32 %v1012, 7
        %v1014 = vsub.s32 4, %v1013
        %v1015 = vrot.slane %v531, %v1014
        %v1016 = vmul.f32 %v1015, %v1008
        %v1017 = vmul.f32 %v1015, %v1009
        %v1018 = vmul.f32 %v1015, %v1010
        %v1019 = vmul.f32 %v1015, %v1011
        %v1020 = vadd.f32 %v1003, %v1016
        %v1021 = vadd.f32 %v1004, %v1017
        %v1022 = vadd.f32 %v1005, %v1018
        %v1023 = vadd.f32 %v1006, %v1019
        %s1024 = scalar_lea.vmem %s444, 928 [#allocation7]
        %v1025 = vld [vmem:[%s1024] sm:$0xff]
        %v1026 = vld [vmem:[%s1024 + $0x8] sm:$0xff]
        %v1027 = vld [vmem:[%s1024 + $0x10] sm:$0xff]
        %v1028 = vld [vmem:[%s1024 + $0x18] sm:$0xff]
        %v1029 = vlaneseq
        %v1030 = vshrl.u32 %v1029, 7
        %v1031 = vsub.s32 5, %v1030
        %v1032 = vrot.slane %v531, %v1031
        %v1033 = vmul.f32 %v1032, %v1025
        %v1034 = vmul.f32 %v1032, %v1026
        %v1035 = vmul.f32 %v1032, %v1027
        %v1036 = vmul.f32 %v1032, %v1028
        %v1037 = vadd.f32 %v1020, %v1033
        %v1038 = vadd.f32 %v1021, %v1034
        %v1039 = vadd.f32 %v1022, %v1035
        %v1040 = vadd.f32 %v1023, %v1036
        %s1041 = scalar_lea.vmem %s444, 960 [#allocation7]
        %v1042 = vld [vmem:[%s1041] sm:$0xff]
        %v1043 = vld [vmem:[%s1041 + $0x8] sm:$0xff]
        %v1044 = vld [vmem:[%s1041 + $0x10] sm:$0xff]
        %v1045 = vld [vmem:[%s1041 + $0x18] sm:$0xff]
        %v1046 = vlaneseq
        %v1047 = vshrl.u32 %v1046, 7
        %v1048 = vsub.s32 6, %v1047
        %v1049 = vrot.slane %v531, %v1048
        %v1050 = vmul.f32 %v1049, %v1042
        %v1051 = vmul.f32 %v1049, %v1043
        %v1052 = vmul.f32 %v1049, %v1044
        %v1053 = vmul.f32 %v1049, %v1045
        %v1054 = vadd.f32 %v1037, %v1050
        %v1055 = vadd.f32 %v1038, %v1051
        %v1056 = vadd.f32 %v1039, %v1052
        %v1057 = vadd.f32 %v1040, %v1053
        %s1058 = scalar_lea.vmem %s444, 992 [#allocation7]
        %v1059 = vld [vmem:[%s1058] sm:$0xff]
        %v1060 = vld [vmem:[%s1058 + $0x8] sm:$0xff]
        %v1061 = vld [vmem:[%s1058 + $0x10] sm:$0xff]
        %v1062 = vld [vmem:[%s1058 + $0x18] sm:$0xff]
        %v1063 = vlaneseq
        %v1064 = vshrl.u32 %v1063, 7
        %v1065 = vsub.s32 7, %v1064
        %v1066 = vrot.slane %v531, %v1065
        %v1067 = vmul.f32 %v1066, %v1059
        %v1068 = vmul.f32 %v1066, %v1060
        %v1069 = vmul.f32 %v1066, %v1061
        %v1070 = vmul.f32 %v1066, %v1062
        %v1071 = vadd.f32 %v1054, %v1067
        %v1072 = vadd.f32 %v1055, %v1068
        %v1073 = vadd.f32 %v1056, %v1069
        %v1074 = vadd.f32 %v1057, %v1070
        %1076 = vset.pattern.permute.xlu0 0
        %1077 = vperm.xlu0 %1076, %v519
        %v1078 = vpop.permute.xlu0 %1077
        %1081 = vset.pattern.permute.xlu0 0
        %1082 = vperm.xlu0 %1081, %v520
        %v1083 = vpop.permute.xlu0 %1082
        %1086 = vset.pattern.permute.xlu0 0
        %1087 = vperm.xlu0 %1086, %v521
        %v1088 = vpop.permute.xlu0 %1087
        %1091 = vset.pattern.permute.xlu0 0
        %1092 = vperm.xlu0 %1091, %v522
        %v1093 = vpop.permute.xlu0 %1092
        %v1095 = vadd.f32 %v1071, %v1078
        %v1096 = vadd.f32 %v1072, %v1083
        %v1097 = vadd.f32 %v1073, %v1088
        %v1098 = vadd.f32 %v1074, %v1093
        %v1099 = vmax.f32 %v1095, 0.0
        %v1100 = vmax.f32 %v1096, 0.0
        %v1101 = vmax.f32 %v1097, 0.0
        %v1102 = vmax.f32 %v1098, 0.0
        %v1103 = vmul.f32 %v1099, %v515
        %v1104 = vmul.f32 %v1100, %v516
        %v1105 = vmul.f32 %v1101, %v517
        %v1106 = vmul.f32 %v1102, %v518
        %v1107 = vadd.f32 %v1103, %v1104
        %v1108 = vadd.f32 %v1107, %v1105
        %v1109 = vadd.f32 %v1108, %v1106
        %v1110 = vrot.slane %v1109, 4
        %v1111 = vadd.f32 %v1109, %v1110
        %v1112 = vrot.slane %v1111, 2
        %v1113 = vadd.f32 %v1111, %v1112
        %v1114 = vrot.slane %v1113, 1
        %v1115 = vadd.f32 %v1113, %v1114
        %s1116 = scalar_lea.vmem %s426, 32 [#allocation4]
        %v1117 = vld [vmem:[%s1116] sm:$0xff]
        %v1118 = vld [vmem:[%s1116 + $0x8] sm:$0xff]
        %v1119 = vld [vmem:[%s1116 + $0x10] sm:$0xff]
        %v1120 = vld [vmem:[%s1116 + $0x18] sm:$0xff]
        %v1121 = vmul.f32 %v511, %v1117
        %v1122 = vmul.f32 %v512, %v1118
        %v1123 = vmul.f32 %v513, %v1119
        %v1124 = vmul.f32 %v514, %v1120
        %v1125 = vlaneseq
        %v1126 = vshrl.u32 %v1125, 7
        %v1127 = vsub.s32 0, %v1126
        %v1128 = vrot.slane %v1121, %v1127
        %v1129 = vmul.f32 %v1128, %v532
        %v1130 = vmul.f32 %v1128, %v533
        %v1131 = vmul.f32 %v1128, %v534
        %v1132 = vmul.f32 %v1128, %v535
        %v1133 = vadd.f32 %v1129, 0.0
        %v1134 = vadd.f32 %v1130, 0.0
        %v1135 = vadd.f32 %v1131, 0.0
        %v1136 = vadd.f32 %v1132, 0.0
        %v1137 = vlaneseq
        %v1138 = vshrl.u32 %v1137, 7
        %v1139 = vsub.s32 1, %v1138
        %v1140 = vrot.slane %v1121, %v1139
        %v1141 = vmul.f32 %v1140, %v549
        %v1142 = vmul.f32 %v1140, %v550
        %v1143 = vmul.f32 %v1140, %v551
        %v1144 = vmul.f32 %v1140, %v552
        %v1145 = vadd.f32 %v1133, %v1141
        %v1146 = vadd.f32 %v1134, %v1142
        %v1147 = vadd.f32 %v1135, %v1143
        %v1148 = vadd.f32 %v1136, %v1144
        %v1149 = vlaneseq
        %v1150 = vshrl.u32 %v1149, 7
        %v1151 = vsub.s32 2, %v1150
        %v1152 = vrot.slane %v1121, %v1151
        %v1153 = vmul.f32 %v1152, %v566
        %v1154 = vmul.f32 %v1152, %v567
        %v1155 = vmul.f32 %v1152, %v568
        %v1156 = vmul.f32 %v1152, %v569
        %v1157 = vadd.f32 %v1145, %v1153
        %v1158 = vadd.f32 %v1146, %v1154
        %v1159 = vadd.f32 %v1147, %v1155
        %v1160 = vadd.f32 %v1148, %v1156
        %v1161 = vlaneseq
        %v1162 = vshrl.u32 %v1161, 7
        %v1163 = vsub.s32 3, %v1162
        %v1164 = vrot.slane %v1121, %v1163
        %v1165 = vmul.f32 %v1164, %v583
        %v1166 = vmul.f32 %v1164, %v584
        %v1167 = vmul.f32 %v1164, %v585
        %v1168 = vmul.f32 %v1164, %v586
        %v1169 = vadd.f32 %v1157, %v1165
        %v1170 = vadd.f32 %v1158, %v1166
        %v1171 = vadd.f32 %v1159, %v1167
        %v1172 = vadd.f32 %v1160, %v1168
        %v1173 = vlaneseq
        %v1174 = vshrl.u32 %v1173, 7
        %v1175 = vsub.s32 4, %v1174
        %v1176 = vrot.slane %v1121, %v1175
        %v1177 = vmul.f32 %v1176, %v600
        %v1178 = vmul.f32 %v1176, %v601
        %v1179 = vmul.f32 %v1176, %v602
        %v1180 = vmul.f32 %v1176, %v603
        %v1181 = vadd.f32 %v1169, %v1177
        %v1182 = vadd.f32 %v1170, %v1178
        %v1183 = vadd.f32 %v1171, %v1179
        %v1184 = vadd.f32 %v1172, %v1180
        %v1185 = vlaneseq
        %v1186 = vshrl.u32 %v1185, 7
        %v1187 = vsub.s32 5, %v1186
        %v1188 = vrot.slane %v1121, %v1187
        %v1189 = vmul.f32 %v1188, %v617
        %v1190 = vmul.f32 %v1188, %v618
        %v1191 = vmul.f32 %v1188, %v619
        %v1192 = vmul.f32 %v1188, %v620
        %v1193 = vadd.f32 %v1181, %v1189
        %v1194 = vadd.f32 %v1182, %v1190
        %v1195 = vadd.f32 %v1183, %v1191
        %v1196 = vadd.f32 %v1184, %v1192
        %v1197 = vlaneseq
        %v1198 = vshrl.u32 %v1197, 7
        %v1199 = vsub.s32 6, %v1198
        %v1200 = vrot.slane %v1121, %v1199
        %v1201 = vmul.f32 %v1200, %v634
        %v1202 = vmul.f32 %v1200, %v635
        %v1203 = vmul.f32 %v1200, %v636
        %v1204 = vmul.f32 %v1200, %v637
        %v1205 = vadd.f32 %v1193, %v1201
        %v1206 = vadd.f32 %v1194, %v1202
        %v1207 = vadd.f32 %v1195, %v1203
        %v1208 = vadd.f32 %v1196, %v1204
        %v1209 = vlaneseq
        %v1210 = vshrl.u32 %v1209, 7
        %v1211 = vsub.s32 7, %v1210
        %v1212 = vrot.slane %v1121, %v1211
        %v1213 = vmul.f32 %v1212, %v651
        %v1214 = vmul.f32 %v1212, %v652
        %v1215 = vmul.f32 %v1212, %v653
        %v1216 = vmul.f32 %v1212, %v654
        %v1217 = vadd.f32 %v1205, %v1213
        %v1218 = vadd.f32 %v1206, %v1214
        %v1219 = vadd.f32 %v1207, %v1215
        %v1220 = vadd.f32 %v1208, %v1216
        %v1221 = vlaneseq
        %v1222 = vshrl.u32 %v1221, 7
        %v1223 = vsub.s32 0, %v1222
        %v1224 = vrot.slane %v1122, %v1223
        %v1225 = vmul.f32 %v1224, %v668
        %v1226 = vmul.f32 %v1224, %v669
        %v1227 = vmul.f32 %v1224, %v670
        %v1228 = vmul.f32 %v1224, %v671
        %v1229 = vadd.f32 %v1217, %v1225
        %v1230 = vadd.f32 %v1218, %v1226
        %v1231 = vadd.f32 %v1219, %v1227
        %v1232 = vadd.f32 %v1220, %v1228
        %v1233 = vlaneseq
        %v1234 = vshrl.u32 %v1233, 7
        %v1235 = vsub.s32 1, %v1234
        %v1236 = vrot.slane %v1122, %v1235
        %v1237 = vmul.f32 %v1236, %v685
        %v1238 = vmul.f32 %v1236, %v686
        %v1239 = vmul.f32 %v1236, %v687
        %v1240 = vmul.f32 %v1236, %v688
        %v1241 = vadd.f32 %v1229, %v1237
        %v1242 = vadd.f32 %v1230, %v1238
        %v1243 = vadd.f32 %v1231, %v1239
        %v1244 = vadd.f32 %v1232, %v1240
        %v1245 = vlaneseq
        %v1246 = vshrl.u32 %v1245, 7
        %v1247 = vsub.s32 2, %v1246
        %v1248 = vrot.slane %v1122, %v1247
        %v1249 = vmul.f32 %v1248, %v702
        %v1250 = vmul.f32 %v1248, %v703
        %v1251 = vmul.f32 %v1248, %v704
        %v1252 = vmul.f32 %v1248, %v705
        %v1253 = vadd.f32 %v1241, %v1249
        %v1254 = vadd.f32 %v1242, %v1250
        %v1255 = vadd.f32 %v1243, %v1251
        %v1256 = vadd.f32 %v1244, %v1252
        %v1257 = vlaneseq
        %v1258 = vshrl.u32 %v1257, 7
        %v1259 = vsub.s32 3, %v1258
        %v1260 = vrot.slane %v1122, %v1259
        %v1261 = vmul.f32 %v1260, %v719
        %v1262 = vmul.f32 %v1260, %v720
        %v1263 = vmul.f32 %v1260, %v721
        %v1264 = vmul.f32 %v1260, %v722
        %v1265 = vadd.f32 %v1253, %v1261
        %v1266 = vadd.f32 %v1254, %v1262
        %v1267 = vadd.f32 %v1255, %v1263
        %v1268 = vadd.f32 %v1256, %v1264
        %v1269 = vlaneseq
        %v1270 = vshrl.u32 %v1269, 7
        %v1271 = vsub.s32 4, %v1270
        %v1272 = vrot.slane %v1122, %v1271
        %v1273 = vmul.f32 %v1272, %v736
        %v1274 = vmul.f32 %v1272, %v737
        %v1275 = vmul.f32 %v1272, %v738
        %v1276 = vmul.f32 %v1272, %v739
        %v1277 = vadd.f32 %v1265, %v1273
        %v1278 = vadd.f32 %v1266, %v1274
        %v1279 = vadd.f32 %v1267, %v1275
        %v1280 = vadd.f32 %v1268, %v1276
        %v1281 = vlaneseq
        %v1282 = vshrl.u32 %v1281, 7
        %v1283 = vsub.s32 5, %v1282
        %v1284 = vrot.slane %v1122, %v1283
        %v1285 = vmul.f32 %v1284, %v753
        %v1286 = vmul.f32 %v1284, %v754
        %v1287 = vmul.f32 %v1284, %v755
        %v1288 = vmul.f32 %v1284, %v756
        %v1289 = vadd.f32 %v1277, %v1285
        %v1290 = vadd.f32 %v1278, %v1286
        %v1291 = vadd.f32 %v1279, %v1287
        %v1292 = vadd.f32 %v1280, %v1288
        %v1293 = vlaneseq
        %v1294 = vshrl.u32 %v1293, 7
        %v1295 = vsub.s32 6, %v1294
        %v1296 = vrot.slane %v1122, %v1295
        %v1297 = vmul.f32 %v1296, %v770
        %v1298 = vmul.f32 %v1296, %v771
        %v1299 = vmul.f32 %v1296, %v772
        %v1300 = vmul.f32 %v1296, %v773
        %v1301 = vadd.f32 %v1289, %v1297
        %v1302 = vadd.f32 %v1290, %v1298
        %v1303 = vadd.f32 %v1291, %v1299
        %v1304 = vadd.f32 %v1292, %v1300
        %v1305 = vlaneseq
        %v1306 = vshrl.u32 %v1305, 7
        %v1307 = vsub.s32 7, %v1306
        %v1308 = vrot.slane %v1122, %v1307
        %v1309 = vmul.f32 %v1308, %v787
        %v1310 = vmul.f32 %v1308, %v788
        %v1311 = vmul.f32 %v1308, %v789
        %v1312 = vmul.f32 %v1308, %v790
        %v1313 = vadd.f32 %v1301, %v1309
        %v1314 = vadd.f32 %v1302, %v1310
        %v1315 = vadd.f32 %v1303, %v1311
        %v1316 = vadd.f32 %v1304, %v1312
        %v1317 = vlaneseq
        %v1318 = vshrl.u32 %v1317, 7
        %v1319 = vsub.s32 0, %v1318
        %v1320 = vrot.slane %v1123, %v1319
        %v1321 = vmul.f32 %v1320, %v804
        %v1322 = vmul.f32 %v1320, %v805
        %v1323 = vmul.f32 %v1320, %v806
        %v1324 = vmul.f32 %v1320, %v807
        %v1325 = vadd.f32 %v1313, %v1321
        %v1326 = vadd.f32 %v1314, %v1322
        %v1327 = vadd.f32 %v1315, %v1323
        %v1328 = vadd.f32 %v1316, %v1324
        %v1329 = vlaneseq
        %v1330 = vshrl.u32 %v1329, 7
        %v1331 = vsub.s32 1, %v1330
        %v1332 = vrot.slane %v1123, %v1331
        %v1333 = vmul.f32 %v1332, %v821
        %v1334 = vmul.f32 %v1332, %v822
        %v1335 = vmul.f32 %v1332, %v823
        %v1336 = vmul.f32 %v1332, %v824
        %v1337 = vadd.f32 %v1325, %v1333
        %v1338 = vadd.f32 %v1326, %v1334
        %v1339 = vadd.f32 %v1327, %v1335
        %v1340 = vadd.f32 %v1328, %v1336
        %v1341 = vlaneseq
        %v1342 = vshrl.u32 %v1341, 7
        %v1343 = vsub.s32 2, %v1342
        %v1344 = vrot.slane %v1123, %v1343
        %v1345 = vmul.f32 %v1344, %v838
        %v1346 = vmul.f32 %v1344, %v839
        %v1347 = vmul.f32 %v1344, %v840
        %v1348 = vmul.f32 %v1344, %v841
        %v1349 = vadd.f32 %v1337, %v1345
        %v1350 = vadd.f32 %v1338, %v1346
        %v1351 = vadd.f32 %v1339, %v1347
        %v1352 = vadd.f32 %v1340, %v1348
        %v1353 = vlaneseq
        %v1354 = vshrl.u32 %v1353, 7
        %v1355 = vsub.s32 3, %v1354
        %v1356 = vrot.slane %v1123, %v1355
        %v1357 = vmul.f32 %v1356, %v855
        %v1358 = vmul.f32 %v1356, %v856
        %v1359 = vmul.f32 %v1356, %v857
        %v1360 = vmul.f32 %v1356, %v858
        %v1361 = vadd.f32 %v1349, %v1357
        %v1362 = vadd.f32 %v1350, %v1358
        %v1363 = vadd.f32 %v1351, %v1359
        %v1364 = vadd.f32 %v1352, %v1360
        %v1365 = vlaneseq
        %v1366 = vshrl.u32 %v1365, 7
        %v1367 = vsub.s32 4, %v1366
        %v1368 = vrot.slane %v1123, %v1367
        %v1369 = vmul.f32 %v1368, %v872
        %v1370 = vmul.f32 %v1368, %v873
        %v1371 = vmul.f32 %v1368, %v874
        %v1372 = vmul.f32 %v1368, %v875
        %v1373 = vadd.f32 %v1361, %v1369
        %v1374 = vadd.f32 %v1362, %v1370
        %v1375 = vadd.f32 %v1363, %v1371
        %v1376 = vadd.f32 %v1364, %v1372
        %v1377 = vlaneseq
        %v1378 = vshrl.u32 %v1377, 7
        %v1379 = vsub.s32 5, %v1378
        %v1380 = vrot.slane %v1123, %v1379
        %v1381 = vmul.f32 %v1380, %v889
        %v1382 = vmul.f32 %v1380, %v890
        %v1383 = vmul.f32 %v1380, %v891
        %v1384 = vmul.f32 %v1380, %v892
        %v1385 = vadd.f32 %v1373, %v1381
        %v1386 = vadd.f32 %v1374, %v1382
        %v1387 = vadd.f32 %v1375, %v1383
        %v1388 = vadd.f32 %v1376, %v1384
        %v1389 = vlaneseq
        %v1390 = vshrl.u32 %v1389, 7
        %v1391 = vsub.s32 6, %v1390
        %v1392 = vrot.slane %v1123, %v1391
        %v1393 = vmul.f32 %v1392, %v906
        %v1394 = vmul.f32 %v1392, %v907
        %v1395 = vmul.f32 %v1392, %v908
        %v1396 = vmul.f32 %v1392, %v909
        %v1397 = vadd.f32 %v1385, %v1393
        %v1398 = vadd.f32 %v1386, %v1394
        %v1399 = vadd.f32 %v1387, %v1395
        %v1400 = vadd.f32 %v1388, %v1396
        %v1401 = vlaneseq
        %v1402 = vshrl.u32 %v1401, 7
        %v1403 = vsub.s32 7, %v1402
        %v1404 = vrot.slane %v1123, %v1403
        %v1405 = vmul.f32 %v1404, %v923
        %v1406 = vmul.f32 %v1404, %v924
        %v1407 = vmul.f32 %v1404, %v925
        %v1408 = vmul.f32 %v1404, %v926
        %v1409 = vadd.f32 %v1397, %v1405
        %v1410 = vadd.f32 %v1398, %v1406
        %v1411 = vadd.f32 %v1399, %v1407
        %v1412 = vadd.f32 %v1400, %v1408
        %v1413 = vlaneseq
        %v1414 = vshrl.u32 %v1413, 7
        %v1415 = vsub.s32 0, %v1414
        %v1416 = vrot.slane %v1124, %v1415
        %v1417 = vmul.f32 %v1416, %v940
        %v1418 = vmul.f32 %v1416, %v941
        %v1419 = vmul.f32 %v1416, %v942
        %v1420 = vmul.f32 %v1416, %v943
        %v1421 = vadd.f32 %v1409, %v1417
        %v1422 = vadd.f32 %v1410, %v1418
        %v1423 = vadd.f32 %v1411, %v1419
        %v1424 = vadd.f32 %v1412, %v1420
        %v1425 = vlaneseq
        %v1426 = vshrl.u32 %v1425, 7
        %v1427 = vsub.s32 1, %v1426
        %v1428 = vrot.slane %v1124, %v1427
        %v1429 = vmul.f32 %v1428, %v957
        %v1430 = vmul.f32 %v1428, %v958
        %v1431 = vmul.f32 %v1428, %v959
        %v1432 = vmul.f32 %v1428, %v960
        %v1433 = vadd.f32 %v1421, %v1429
        %v1434 = vadd.f32 %v1422, %v1430
        %v1435 = vadd.f32 %v1423, %v1431
        %v1436 = vadd.f32 %v1424, %v1432
        %v1437 = vlaneseq
        %v1438 = vshrl.u32 %v1437, 7
        %v1439 = vsub.s32 2, %v1438
        %v1440 = vrot.slane %v1124, %v1439
        %v1441 = vmul.f32 %v1440, %v974
        %v1442 = vmul.f32 %v1440, %v975
        %v1443 = vmul.f32 %v1440, %v976
        %v1444 = vmul.f32 %v1440, %v977
        %v1445 = vadd.f32 %v1433, %v1441
        %v1446 = vadd.f32 %v1434, %v1442
        %v1447 = vadd.f32 %v1435, %v1443
        %v1448 = vadd.f32 %v1436, %v1444
        %v1449 = vlaneseq
        %v1450 = vshrl.u32 %v1449, 7
        %v1451 = vsub.s32 3, %v1450
        %v1452 = vrot.slane %v1124, %v1451
        %v1453 = vmul.f32 %v1452, %v991
        %v1454 = vmul.f32 %v1452, %v992
        %v1455 = vmul.f32 %v1452, %v993
        %v1456 = vmul.f32 %v1452, %v994
        %v1457 = vadd.f32 %v1445, %v1453
        %v1458 = vadd.f32 %v1446, %v1454
        %v1459 = vadd.f32 %v1447, %v1455
        %v1460 = vadd.f32 %v1448, %v1456
        %v1461 = vlaneseq
        %v1462 = vshrl.u32 %v1461, 7
        %v1463 = vsub.s32 4, %v1462
        %v1464 = vrot.slane %v1124, %v1463
        %v1465 = vmul.f32 %v1464, %v1008
        %v1466 = vmul.f32 %v1464, %v1009
        %v1467 = vmul.f32 %v1464, %v1010
        %v1468 = vmul.f32 %v1464, %v1011
        %v1469 = vadd.f32 %v1457, %v1465
        %v1470 = vadd.f32 %v1458, %v1466
        %v1471 = vadd.f32 %v1459, %v1467
        %v1472 = vadd.f32 %v1460, %v1468
        %v1473 = vlaneseq
        %v1474 = vshrl.u32 %v1473, 7
        %v1475 = vsub.s32 5, %v1474
        %v1476 = vrot.slane %v1124, %v1475
        %v1477 = vmul.f32 %v1476, %v1025
        %v1478 = vmul.f32 %v1476, %v1026
        %v1479 = vmul.f32 %v1476, %v1027
        %v1480 = vmul.f32 %v1476, %v1028
        %v1481 = vadd.f32 %v1469, %v1477
        %v1482 = vadd.f32 %v1470, %v1478
        %v1483 = vadd.f32 %v1471, %v1479
        %v1484 = vadd.f32 %v1472, %v1480
        %v1485 = vlaneseq
        %v1486 = vshrl.u32 %v1485, 7
        %v1487 = vsub.s32 6, %v1486
        %v1488 = vrot.slane %v1124, %v1487
        %v1489 = vmul.f32 %v1488, %v1042
        %v1490 = vmul.f32 %v1488, %v1043
        %v1491 = vmul.f32 %v1488, %v1044
        %v1492 = vmul.f32 %v1488, %v1045
        %v1493 = vadd.f32 %v1481, %v1489
        %v1494 = vadd.f32 %v1482, %v1490
        %v1495 = vadd.f32 %v1483, %v1491
        %v1496 = vadd.f32 %v1484, %v1492
        %v1497 = vlaneseq
        %v1498 = vshrl.u32 %v1497, 7
        %v1499 = vsub.s32 7, %v1498
        %v1500 = vrot.slane %v1124, %v1499
        %v1501 = vmul.f32 %v1500, %v1059
        %v1502 = vmul.f32 %v1500, %v1060
        %v1503 = vmul.f32 %v1500, %v1061
        %v1504 = vmul.f32 %v1500, %v1062
        %v1505 = vadd.f32 %v1493, %v1501
        %v1506 = vadd.f32 %v1494, %v1502
        %v1507 = vadd.f32 %v1495, %v1503
        %v1508 = vadd.f32 %v1496, %v1504
        %1509 = vset.pattern.permute.xlu0 1
        %1510 = vperm.xlu0 %1509, %v519
        %v1511 = vpop.permute.xlu0 %1510
        %1513 = vset.pattern.permute.xlu0 1
        %1514 = vperm.xlu0 %1513, %v520
        %v1515 = vpop.permute.xlu0 %1514
        %1517 = vset.pattern.permute.xlu0 1
        %1518 = vperm.xlu0 %1517, %v521
        %v1519 = vpop.permute.xlu0 %1518
        %1521 = vset.pattern.permute.xlu0 1
        %1522 = vperm.xlu0 %1521, %v522
        %v1523 = vpop.permute.xlu0 %1522
        %v1525 = vadd.f32 %v1505, %v1511
        %v1526 = vadd.f32 %v1506, %v1515
        %v1527 = vadd.f32 %v1507, %v1519
        %v1528 = vadd.f32 %v1508, %v1523
        %v1529 = vmax.f32 %v1525, 0.0
        %v1530 = vmax.f32 %v1526, 0.0
        %v1531 = vmax.f32 %v1527, 0.0
        %v1532 = vmax.f32 %v1528, 0.0
        %v1533 = vmul.f32 %v1529, %v515
        %v1534 = vmul.f32 %v1530, %v516
        %v1535 = vmul.f32 %v1531, %v517
        %v1536 = vmul.f32 %v1532, %v518
        %v1537 = vadd.f32 %v1533, %v1534
        %v1538 = vadd.f32 %v1537, %v1535
        %v1539 = vadd.f32 %v1538, %v1536
        %v1540 = vrot.slane %v1539, 4
        %v1541 = vadd.f32 %v1539, %v1540
        %v1542 = vrot.slane %v1541, 2
        %v1543 = vadd.f32 %v1541, %v1542
        %v1544 = vrot.slane %v1543, 1
        %v1545 = vadd.f32 %v1543, %v1544
        %s1546 = scalar_lea.vmem %s426, 64 [#allocation4]
        %v1547 = vld [vmem:[%s1546] sm:$0xff]
        %v1548 = vld [vmem:[%s1546 + $0x8] sm:$0xff]
        %v1549 = vld [vmem:[%s1546 + $0x10] sm:$0xff]
        %v1550 = vld [vmem:[%s1546 + $0x18] sm:$0xff]
        %v1551 = vmul.f32 %v511, %v1547
        %v1552 = vmul.f32 %v512, %v1548
        %v1553 = vmul.f32 %v513, %v1549
        %v1554 = vmul.f32 %v514, %v1550
        %v1555 = vlaneseq
        %v1556 = vshrl.u32 %v1555, 7
        %v1557 = vsub.s32 0, %v1556
        %v1558 = vrot.slane %v1551, %v1557
        %v1559 = vmul.f32 %v1558, %v532
        %v1560 = vmul.f32 %v1558, %v533
        %v1561 = vmul.f32 %v1558, %v534
        %v1562 = vmul.f32 %v1558, %v535
        %v1563 = vadd.f32 %v1559, 0.0
        %v1564 = vadd.f32 %v1560, 0.0
        %v1565 = vadd.f32 %v1561, 0.0
        %v1566 = vadd.f32 %v1562, 0.0
        %v1567 = vlaneseq
        %v1568 = vshrl.u32 %v1567, 7
        %v1569 = vsub.s32 1, %v1568
        %v1570 = vrot.slane %v1551, %v1569
        %v1571 = vmul.f32 %v1570, %v549
        %v1572 = vmul.f32 %v1570, %v550
        %v1573 = vmul.f32 %v1570, %v551
        %v1574 = vmul.f32 %v1570, %v552
        %v1575 = vadd.f32 %v1563, %v1571
        %v1576 = vadd.f32 %v1564, %v1572
        %v1577 = vadd.f32 %v1565, %v1573
        %v1578 = vadd.f32 %v1566, %v1574
        %v1579 = vlaneseq
        %v1580 = vshrl.u32 %v1579, 7
        %v1581 = vsub.s32 2, %v1580
        %v1582 = vrot.slane %v1551, %v1581
        %v1583 = vmul.f32 %v1582, %v566
        %v1584 = vmul.f32 %v1582, %v567
        %v1585 = vmul.f32 %v1582, %v568
        %v1586 = vmul.f32 %v1582, %v569
        %v1587 = vadd.f32 %v1575, %v1583
        %v1588 = vadd.f32 %v1576, %v1584
        %v1589 = vadd.f32 %v1577, %v1585
        %v1590 = vadd.f32 %v1578, %v1586
        %v1591 = vlaneseq
        %v1592 = vshrl.u32 %v1591, 7
        %v1593 = vsub.s32 3, %v1592
        %v1594 = vrot.slane %v1551, %v1593
        %v1595 = vmul.f32 %v1594, %v583
        %v1596 = vmul.f32 %v1594, %v584
        %v1597 = vmul.f32 %v1594, %v585
        %v1598 = vmul.f32 %v1594, %v586
        %v1599 = vadd.f32 %v1587, %v1595
        %v1600 = vadd.f32 %v1588, %v1596
        %v1601 = vadd.f32 %v1589, %v1597
        %v1602 = vadd.f32 %v1590, %v1598
        %v1603 = vlaneseq
        %v1604 = vshrl.u32 %v1603, 7
        %v1605 = vsub.s32 4, %v1604
        %v1606 = vrot.slane %v1551, %v1605
        %v1607 = vmul.f32 %v1606, %v600
        %v1608 = vmul.f32 %v1606, %v601
        %v1609 = vmul.f32 %v1606, %v602
        %v1610 = vmul.f32 %v1606, %v603
        %v1611 = vadd.f32 %v1599, %v1607
        %v1612 = vadd.f32 %v1600, %v1608
        %v1613 = vadd.f32 %v1601, %v1609
        %v1614 = vadd.f32 %v1602, %v1610
        %v1615 = vlaneseq
        %v1616 = vshrl.u32 %v1615, 7
        %v1617 = vsub.s32 5, %v1616
        %v1618 = vrot.slane %v1551, %v1617
        %v1619 = vmul.f32 %v1618, %v617
        %v1620 = vmul.f32 %v1618, %v618
        %v1621 = vmul.f32 %v1618, %v619
        %v1622 = vmul.f32 %v1618, %v620
        %v1623 = vadd.f32 %v1611, %v1619
        %v1624 = vadd.f32 %v1612, %v1620
        %v1625 = vadd.f32 %v1613, %v1621
        %v1626 = vadd.f32 %v1614, %v1622
        %v1627 = vlaneseq
        %v1628 = vshrl.u32 %v1627, 7
        %v1629 = vsub.s32 6, %v1628
        %v1630 = vrot.slane %v1551, %v1629
        %v1631 = vmul.f32 %v1630, %v634
        %v1632 = vmul.f32 %v1630, %v635
        %v1633 = vmul.f32 %v1630, %v636
        %v1634 = vmul.f32 %v1630, %v637
        %v1635 = vadd.f32 %v1623, %v1631
        %v1636 = vadd.f32 %v1624, %v1632
        %v1637 = vadd.f32 %v1625, %v1633
        %v1638 = vadd.f32 %v1626, %v1634
        %v1639 = vlaneseq
        %v1640 = vshrl.u32 %v1639, 7
        %v1641 = vsub.s32 7, %v1640
        %v1642 = vrot.slane %v1551, %v1641
        %v1643 = vmul.f32 %v1642, %v651
        %v1644 = vmul.f32 %v1642, %v652
        %v1645 = vmul.f32 %v1642, %v653
        %v1646 = vmul.f32 %v1642, %v654
        %v1647 = vadd.f32 %v1635, %v1643
        %v1648 = vadd.f32 %v1636, %v1644
        %v1649 = vadd.f32 %v1637, %v1645
        %v1650 = vadd.f32 %v1638, %v1646
        %v1651 = vlaneseq
        %v1652 = vshrl.u32 %v1651, 7
        %v1653 = vsub.s32 0, %v1652
        %v1654 = vrot.slane %v1552, %v1653
        %v1655 = vmul.f32 %v1654, %v668
        %v1656 = vmul.f32 %v1654, %v669
        %v1657 = vmul.f32 %v1654, %v670
        %v1658 = vmul.f32 %v1654, %v671
        %v1659 = vadd.f32 %v1647, %v1655
        %v1660 = vadd.f32 %v1648, %v1656
        %v1661 = vadd.f32 %v1649, %v1657
        %v1662 = vadd.f32 %v1650, %v1658
        %v1663 = vlaneseq
        %v1664 = vshrl.u32 %v1663, 7
        %v1665 = vsub.s32 1, %v1664
        %v1666 = vrot.slane %v1552, %v1665
        %v1667 = vmul.f32 %v1666, %v685
        %v1668 = vmul.f32 %v1666, %v686
        %v1669 = vmul.f32 %v1666, %v687
        %v1670 = vmul.f32 %v1666, %v688
        %v1671 = vadd.f32 %v1659, %v1667
        %v1672 = vadd.f32 %v1660, %v1668
        %v1673 = vadd.f32 %v1661, %v1669
        %v1674 = vadd.f32 %v1662, %v1670
        %v1675 = vlaneseq
        %v1676 = vshrl.u32 %v1675, 7
        %v1677 = vsub.s32 2, %v1676
        %v1678 = vrot.slane %v1552, %v1677
        %v1679 = vmul.f32 %v1678, %v702
        %v1680 = vmul.f32 %v1678, %v703
        %v1681 = vmul.f32 %v1678, %v704
        %v1682 = vmul.f32 %v1678, %v705
        %v1683 = vadd.f32 %v1671, %v1679
        %v1684 = vadd.f32 %v1672, %v1680
        %v1685 = vadd.f32 %v1673, %v1681
        %v1686 = vadd.f32 %v1674, %v1682
        %v1687 = vlaneseq
        %v1688 = vshrl.u32 %v1687, 7
        %v1689 = vsub.s32 3, %v1688
        %v1690 = vrot.slane %v1552, %v1689
        %v1691 = vmul.f32 %v1690, %v719
        %v1692 = vmul.f32 %v1690, %v720
        %v1693 = vmul.f32 %v1690, %v721
        %v1694 = vmul.f32 %v1690, %v722
        %v1695 = vadd.f32 %v1683, %v1691
        %v1696 = vadd.f32 %v1684, %v1692
        %v1697 = vadd.f32 %v1685, %v1693
        %v1698 = vadd.f32 %v1686, %v1694
        %v1699 = vlaneseq
        %v1700 = vshrl.u32 %v1699, 7
        %v1701 = vsub.s32 4, %v1700
        %v1702 = vrot.slane %v1552, %v1701
        %v1703 = vmul.f32 %v1702, %v736
        %v1704 = vmul.f32 %v1702, %v737
        %v1705 = vmul.f32 %v1702, %v738
        %v1706 = vmul.f32 %v1702, %v739
        %v1707 = vadd.f32 %v1695, %v1703
        %v1708 = vadd.f32 %v1696, %v1704
        %v1709 = vadd.f32 %v1697, %v1705
        %v1710 = vadd.f32 %v1698, %v1706
        %v1711 = vlaneseq
        %v1712 = vshrl.u32 %v1711, 7
        %v1713 = vsub.s32 5, %v1712
        %v1714 = vrot.slane %v1552, %v1713
        %v1715 = vmul.f32 %v1714, %v753
        %v1716 = vmul.f32 %v1714, %v754
        %v1717 = vmul.f32 %v1714, %v755
        %v1718 = vmul.f32 %v1714, %v756
        %v1719 = vadd.f32 %v1707, %v1715
        %v1720 = vadd.f32 %v1708, %v1716
        %v1721 = vadd.f32 %v1709, %v1717
        %v1722 = vadd.f32 %v1710, %v1718
        %v1723 = vlaneseq
        %v1724 = vshrl.u32 %v1723, 7
        %v1725 = vsub.s32 6, %v1724
        %v1726 = vrot.slane %v1552, %v1725
        %v1727 = vmul.f32 %v1726, %v770
        %v1728 = vmul.f32 %v1726, %v771
        %v1729 = vmul.f32 %v1726, %v772
        %v1730 = vmul.f32 %v1726, %v773
        %v1731 = vadd.f32 %v1719, %v1727
        %v1732 = vadd.f32 %v1720, %v1728
        %v1733 = vadd.f32 %v1721, %v1729
        %v1734 = vadd.f32 %v1722, %v1730
        %v1735 = vlaneseq
        %v1736 = vshrl.u32 %v1735, 7
        %v1737 = vsub.s32 7, %v1736
        %v1738 = vrot.slane %v1552, %v1737
        %v1739 = vmul.f32 %v1738, %v787
        %v1740 = vmul.f32 %v1738, %v788
        %v1741 = vmul.f32 %v1738, %v789
        %v1742 = vmul.f32 %v1738, %v790
        %v1743 = vadd.f32 %v1731, %v1739
        %v1744 = vadd.f32 %v1732, %v1740
        %v1745 = vadd.f32 %v1733, %v1741
        %v1746 = vadd.f32 %v1734, %v1742
        %v1747 = vlaneseq
        %v1748 = vshrl.u32 %v1747, 7
        %v1749 = vsub.s32 0, %v1748
        %v1750 = vrot.slane %v1553, %v1749
        %v1751 = vmul.f32 %v1750, %v804
        %v1752 = vmul.f32 %v1750, %v805
        %v1753 = vmul.f32 %v1750, %v806
        %v1754 = vmul.f32 %v1750, %v807
        %v1755 = vadd.f32 %v1743, %v1751
        %v1756 = vadd.f32 %v1744, %v1752
        %v1757 = vadd.f32 %v1745, %v1753
        %v1758 = vadd.f32 %v1746, %v1754
        %v1759 = vlaneseq
        %v1760 = vshrl.u32 %v1759, 7
        %v1761 = vsub.s32 1, %v1760
        %v1762 = vrot.slane %v1553, %v1761
        %v1763 = vmul.f32 %v1762, %v821
        %v1764 = vmul.f32 %v1762, %v822
        %v1765 = vmul.f32 %v1762, %v823
        %v1766 = vmul.f32 %v1762, %v824
        %v1767 = vadd.f32 %v1755, %v1763
        %v1768 = vadd.f32 %v1756, %v1764
        %v1769 = vadd.f32 %v1757, %v1765
        %v1770 = vadd.f32 %v1758, %v1766
        %v1771 = vlaneseq
        %v1772 = vshrl.u32 %v1771, 7
        %v1773 = vsub.s32 2, %v1772
        %v1774 = vrot.slane %v1553, %v1773
        %v1775 = vmul.f32 %v1774, %v838
        %v1776 = vmul.f32 %v1774, %v839
        %v1777 = vmul.f32 %v1774, %v840
        %v1778 = vmul.f32 %v1774, %v841
        %v1779 = vadd.f32 %v1767, %v1775
        %v1780 = vadd.f32 %v1768, %v1776
        %v1781 = vadd.f32 %v1769, %v1777
        %v1782 = vadd.f32 %v1770, %v1778
        %v1783 = vlaneseq
        %v1784 = vshrl.u32 %v1783, 7
        %v1785 = vsub.s32 3, %v1784
        %v1786 = vrot.slane %v1553, %v1785
        %v1787 = vmul.f32 %v1786, %v855
        %v1788 = vmul.f32 %v1786, %v856
        %v1789 = vmul.f32 %v1786, %v857
        %v1790 = vmul.f32 %v1786, %v858
        %v1791 = vadd.f32 %v1779, %v1787
        %v1792 = vadd.f32 %v1780, %v1788
        %v1793 = vadd.f32 %v1781, %v1789
        %v1794 = vadd.f32 %v1782, %v1790
        %v1795 = vlaneseq
        %v1796 = vshrl.u32 %v1795, 7
        %v1797 = vsub.s32 4, %v1796
        %v1798 = vrot.slane %v1553, %v1797
        %v1799 = vmul.f32 %v1798, %v872
        %v1800 = vmul.f32 %v1798, %v873
        %v1801 = vmul.f32 %v1798, %v874
        %v1802 = vmul.f32 %v1798, %v875
        %v1803 = vadd.f32 %v1791, %v1799
        %v1804 = vadd.f32 %v1792, %v1800
        %v1805 = vadd.f32 %v1793, %v1801
        %v1806 = vadd.f32 %v1794, %v1802
        %v1807 = vlaneseq
        %v1808 = vshrl.u32 %v1807, 7
        %v1809 = vsub.s32 5, %v1808
        %v1810 = vrot.slane %v1553, %v1809
        %v1811 = vmul.f32 %v1810, %v889
        %v1812 = vmul.f32 %v1810, %v890
        %v1813 = vmul.f32 %v1810, %v891
        %v1814 = vmul.f32 %v1810, %v892
        %v1815 = vadd.f32 %v1803, %v1811
        %v1816 = vadd.f32 %v1804, %v1812
        %v1817 = vadd.f32 %v1805, %v1813
        %v1818 = vadd.f32 %v1806, %v1814
        %v1819 = vlaneseq
        %v1820 = vshrl.u32 %v1819, 7
        %v1821 = vsub.s32 6, %v1820
        %v1822 = vrot.slane %v1553, %v1821
        %v1823 = vmul.f32 %v1822, %v906
        %v1824 = vmul.f32 %v1822, %v907
        %v1825 = vmul.f32 %v1822, %v908
        %v1826 = vmul.f32 %v1822, %v909
        %v1827 = vadd.f32 %v1815, %v1823
        %v1828 = vadd.f32 %v1816, %v1824
        %v1829 = vadd.f32 %v1817, %v1825
        %v1830 = vadd.f32 %v1818, %v1826
        %v1831 = vlaneseq
        %v1832 = vshrl.u32 %v1831, 7
        %v1833 = vsub.s32 7, %v1832
        %v1834 = vrot.slane %v1553, %v1833
        %v1835 = vmul.f32 %v1834, %v923
        %v1836 = vmul.f32 %v1834, %v924
        %v1837 = vmul.f32 %v1834, %v925
        %v1838 = vmul.f32 %v1834, %v926
        %v1839 = vadd.f32 %v1827, %v1835
        %v1840 = vadd.f32 %v1828, %v1836
        %v1841 = vadd.f32 %v1829, %v1837
        %v1842 = vadd.f32 %v1830, %v1838
        %v1843 = vlaneseq
        %v1844 = vshrl.u32 %v1843, 7
        %v1845 = vsub.s32 0, %v1844
        %v1846 = vrot.slane %v1554, %v1845
        %v1847 = vmul.f32 %v1846, %v940
        %v1848 = vmul.f32 %v1846, %v941
        %v1849 = vmul.f32 %v1846, %v942
        %v1850 = vmul.f32 %v1846, %v943
        %v1851 = vadd.f32 %v1839, %v1847
        %v1852 = vadd.f32 %v1840, %v1848
        %v1853 = vadd.f32 %v1841, %v1849
        %v1854 = vadd.f32 %v1842, %v1850
        %v1855 = vlaneseq
        %v1856 = vshrl.u32 %v1855, 7
        %v1857 = vsub.s32 1, %v1856
        %v1858 = vrot.slane %v1554, %v1857
        %v1859 = vmul.f32 %v1858, %v957
        %v1860 = vmul.f32 %v1858, %v958
        %v1861 = vmul.f32 %v1858, %v959
        %v1862 = vmul.f32 %v1858, %v960
        %v1863 = vadd.f32 %v1851, %v1859
        %v1864 = vadd.f32 %v1852, %v1860
        %v1865 = vadd.f32 %v1853, %v1861
        %v1866 = vadd.f32 %v1854, %v1862
        %v1867 = vlaneseq
        %v1868 = vshrl.u32 %v1867, 7
        %v1869 = vsub.s32 2, %v1868
        %v1870 = vrot.slane %v1554, %v1869
        %v1871 = vmul.f32 %v1870, %v974
        %v1872 = vmul.f32 %v1870, %v975
        %v1873 = vmul.f32 %v1870, %v976
        %v1874 = vmul.f32 %v1870, %v977
        %v1875 = vadd.f32 %v1863, %v1871
        %v1876 = vadd.f32 %v1864, %v1872
        %v1877 = vadd.f32 %v1865, %v1873
        %v1878 = vadd.f32 %v1866, %v1874
        %v1879 = vlaneseq
        %v1880 = vshrl.u32 %v1879, 7
        %v1881 = vsub.s32 3, %v1880
        %v1882 = vrot.slane %v1554, %v1881
        %v1883 = vmul.f32 %v1882, %v991
        %v1884 = vmul.f32 %v1882, %v992
        %v1885 = vmul.f32 %v1882, %v993
        %v1886 = vmul.f32 %v1882, %v994
        %v1887 = vadd.f32 %v1875, %v1883
        %v1888 = vadd.f32 %v1876, %v1884
        %v1889 = vadd.f32 %v1877, %v1885
        %v1890 = vadd.f32 %v1878, %v1886
        %v1891 = vlaneseq
        %v1892 = vshrl.u32 %v1891, 7
        %v1893 = vsub.s32 4, %v1892
        %v1894 = vrot.slane %v1554, %v1893
        %v1895 = vmul.f32 %v1894, %v1008
        %v1896 = vmul.f32 %v1894, %v1009
        %v1897 = vmul.f32 %v1894, %v1010
        %v1898 = vmul.f32 %v1894, %v1011
        %v1899 = vadd.f32 %v1887, %v1895
        %v1900 = vadd.f32 %v1888, %v1896
        %v1901 = vadd.f32 %v1889, %v1897
        %v1902 = vadd.f32 %v1890, %v1898
        %v1903 = vlaneseq
        %v1904 = vshrl.u32 %v1903, 7
        %v1905 = vsub.s32 5, %v1904
        %v1906 = vrot.slane %v1554, %v1905
        %v1907 = vmul.f32 %v1906, %v1025
        %v1908 = vmul.f32 %v1906, %v1026
        %v1909 = vmul.f32 %v1906, %v1027
        %v1910 = vmul.f32 %v1906, %v1028
        %v1911 = vadd.f32 %v1899, %v1907
        %v1912 = vadd.f32 %v1900, %v1908
        %v1913 = vadd.f32 %v1901, %v1909
        %v1914 = vadd.f32 %v1902, %v1910
        %v1915 = vlaneseq
        %v1916 = vshrl.u32 %v1915, 7
        %v1917 = vsub.s32 6, %v1916
        %v1918 = vrot.slane %v1554, %v1917
        %v1919 = vmul.f32 %v1918, %v1042
        %v1920 = vmul.f32 %v1918, %v1043
        %v1921 = vmul.f32 %v1918, %v1044
        %v1922 = vmul.f32 %v1918, %v1045
        %v1923 = vadd.f32 %v1911, %v1919
        %v1924 = vadd.f32 %v1912, %v1920
        %v1925 = vadd.f32 %v1913, %v1921
        %v1926 = vadd.f32 %v1914, %v1922
        %v1927 = vlaneseq
        %v1928 = vshrl.u32 %v1927, 7
        %v1929 = vsub.s32 7, %v1928
        %v1930 = vrot.slane %v1554, %v1929
        %v1931 = vmul.f32 %v1930, %v1059
        %v1932 = vmul.f32 %v1930, %v1060
        %v1933 = vmul.f32 %v1930, %v1061
        %v1934 = vmul.f32 %v1930, %v1062
        %v1935 = vadd.f32 %v1923, %v1931
        %v1936 = vadd.f32 %v1924, %v1932
        %v1937 = vadd.f32 %v1925, %v1933
        %v1938 = vadd.f32 %v1926, %v1934
        %1939 = vset.pattern.permute.xlu0 2
        %1940 = vperm.xlu0 %1939, %v519
        %v1941 = vpop.permute.xlu0 %1940
        %1943 = vset.pattern.permute.xlu0 2
        %1944 = vperm.xlu0 %1943, %v520
        %v1945 = vpop.permute.xlu0 %1944
        %1947 = vset.pattern.permute.xlu0 2
        %1948 = vperm.xlu0 %1947, %v521
        %v1949 = vpop.permute.xlu0 %1948
        %1951 = vset.pattern.permute.xlu0 2
        %1952 = vperm.xlu0 %1951, %v522
        %v1953 = vpop.permute.xlu0 %1952
        %v1955 = vadd.f32 %v1935, %v1941
        %v1956 = vadd.f32 %v1936, %v1945
        %v1957 = vadd.f32 %v1937, %v1949
        %v1958 = vadd.f32 %v1938, %v1953
        %v1959 = vmax.f32 %v1955, 0.0
        %v1960 = vmax.f32 %v1956, 0.0
        %v1961 = vmax.f32 %v1957, 0.0
        %v1962 = vmax.f32 %v1958, 0.0
        %v1963 = vmul.f32 %v1959, %v515
        %v1964 = vmul.f32 %v1960, %v516
        %v1965 = vmul.f32 %v1961, %v517
        %v1966 = vmul.f32 %v1962, %v518
        %v1967 = vadd.f32 %v1963, %v1964
        %v1968 = vadd.f32 %v1967, %v1965
        %v1969 = vadd.f32 %v1968, %v1966
        %v1970 = vrot.slane %v1969, 4
        %v1971 = vadd.f32 %v1969, %v1970
        %v1972 = vrot.slane %v1971, 2
        %v1973 = vadd.f32 %v1971, %v1972
        %v1974 = vrot.slane %v1973, 1
        %v1975 = vadd.f32 %v1973, %v1974
        %s1976 = scalar_lea.vmem %s426, 96 [#allocation4]
        %v1977 = vld [vmem:[%s1976] sm:$0xff]
        %v1978 = vld [vmem:[%s1976 + $0x8] sm:$0xff]
        %v1979 = vld [vmem:[%s1976 + $0x10] sm:$0xff]
        %v1980 = vld [vmem:[%s1976 + $0x18] sm:$0xff]
        %v1981 = vmul.f32 %v511, %v1977
        %v1982 = vmul.f32 %v512, %v1978
        %v1983 = vmul.f32 %v513, %v1979
        %v1984 = vmul.f32 %v514, %v1980
        %v1985 = vlaneseq
        %v1986 = vshrl.u32 %v1985, 7
        %v1987 = vsub.s32 0, %v1986
        %v1988 = vrot.slane %v1981, %v1987
        %v1989 = vmul.f32 %v1988, %v532
        %v1990 = vmul.f32 %v1988, %v533
        %v1991 = vmul.f32 %v1988, %v534
        %v1992 = vmul.f32 %v1988, %v535
        %v1993 = vadd.f32 %v1989, 0.0
        %v1994 = vadd.f32 %v1990, 0.0
        %v1995 = vadd.f32 %v1991, 0.0
        %v1996 = vadd.f32 %v1992, 0.0
        %v1997 = vlaneseq
        %v1998 = vshrl.u32 %v1997, 7
        %v1999 = vsub.s32 1, %v1998
        %v2000 = vrot.slane %v1981, %v1999
        %v2001 = vmul.f32 %v2000, %v549
        %v2002 = vmul.f32 %v2000, %v550
        %v2003 = vmul.f32 %v2000, %v551
        %v2004 = vmul.f32 %v2000, %v552
        %v2005 = vadd.f32 %v1993, %v2001
        %v2006 = vadd.f32 %v1994, %v2002
        %v2007 = vadd.f32 %v1995, %v2003
        %v2008 = vadd.f32 %v1996, %v2004
        %v2009 = vlaneseq
        %v2010 = vshrl.u32 %v2009, 7
        %v2011 = vsub.s32 2, %v2010
        %v2012 = vrot.slane %v1981, %v2011
        %v2013 = vmul.f32 %v2012, %v566
        %v2014 = vmul.f32 %v2012, %v567
        %v2015 = vmul.f32 %v2012, %v568
        %v2016 = vmul.f32 %v2012, %v569
        %v2017 = vadd.f32 %v2005, %v2013
        %v2018 = vadd.f32 %v2006, %v2014
        %v2019 = vadd.f32 %v2007, %v2015
        %v2020 = vadd.f32 %v2008, %v2016
        %v2021 = vlaneseq
        %v2022 = vshrl.u32 %v2021, 7
        %v2023 = vsub.s32 3, %v2022
        %v2024 = vrot.slane %v1981, %v2023
        %v2025 = vmul.f32 %v2024, %v583
        %v2026 = vmul.f32 %v2024, %v584
        %v2027 = vmul.f32 %v2024, %v585
        %v2028 = vmul.f32 %v2024, %v586
        %v2029 = vadd.f32 %v2017, %v2025
        %v2030 = vadd.f32 %v2018, %v2026
        %v2031 = vadd.f32 %v2019, %v2027
        %v2032 = vadd.f32 %v2020, %v2028
        %v2033 = vlaneseq
        %v2034 = vshrl.u32 %v2033, 7
        %v2035 = vsub.s32 4, %v2034
        %v2036 = vrot.slane %v1981, %v2035
        %v2037 = vmul.f32 %v2036, %v600
        %v2038 = vmul.f32 %v2036, %v601
        %v2039 = vmul.f32 %v2036, %v602
        %v2040 = vmul.f32 %v2036, %v603
        %v2041 = vadd.f32 %v2029, %v2037
        %v2042 = vadd.f32 %v2030, %v2038
        %v2043 = vadd.f32 %v2031, %v2039
        %v2044 = vadd.f32 %v2032, %v2040
        %v2045 = vlaneseq
        %v2046 = vshrl.u32 %v2045, 7
        %v2047 = vsub.s32 5, %v2046
        %v2048 = vrot.slane %v1981, %v2047
        %v2049 = vmul.f32 %v2048, %v617
        %v2050 = vmul.f32 %v2048, %v618
        %v2051 = vmul.f32 %v2048, %v619
        %v2052 = vmul.f32 %v2048, %v620
        %v2053 = vadd.f32 %v2041, %v2049
        %v2054 = vadd.f32 %v2042, %v2050
        %v2055 = vadd.f32 %v2043, %v2051
        %v2056 = vadd.f32 %v2044, %v2052
        %v2057 = vlaneseq
        %v2058 = vshrl.u32 %v2057, 7
        %v2059 = vsub.s32 6, %v2058
        %v2060 = vrot.slane %v1981, %v2059
        %v2061 = vmul.f32 %v2060, %v634
        %v2062 = vmul.f32 %v2060, %v635
        %v2063 = vmul.f32 %v2060, %v636
        %v2064 = vmul.f32 %v2060, %v637
        %v2065 = vadd.f32 %v2053, %v2061
        %v2066 = vadd.f32 %v2054, %v2062
        %v2067 = vadd.f32 %v2055, %v2063
        %v2068 = vadd.f32 %v2056, %v2064
        %v2069 = vlaneseq
        %v2070 = vshrl.u32 %v2069, 7
        %v2071 = vsub.s32 7, %v2070
        %v2072 = vrot.slane %v1981, %v2071
        %v2073 = vmul.f32 %v2072, %v651
        %v2074 = vmul.f32 %v2072, %v652
        %v2075 = vmul.f32 %v2072, %v653
        %v2076 = vmul.f32 %v2072, %v654
        %v2077 = vadd.f32 %v2065, %v2073
        %v2078 = vadd.f32 %v2066, %v2074
        %v2079 = vadd.f32 %v2067, %v2075
        %v2080 = vadd.f32 %v2068, %v2076
        %v2081 = vlaneseq
        %v2082 = vshrl.u32 %v2081, 7
        %v2083 = vsub.s32 0, %v2082
        %v2084 = vrot.slane %v1982, %v2083
        %v2085 = vmul.f32 %v2084, %v668
        %v2086 = vmul.f32 %v2084, %v669
        %v2087 = vmul.f32 %v2084, %v670
        %v2088 = vmul.f32 %v2084, %v671
        %v2089 = vadd.f32 %v2077, %v2085
        %v2090 = vadd.f32 %v2078, %v2086
        %v2091 = vadd.f32 %v2079, %v2087
        %v2092 = vadd.f32 %v2080, %v2088
        %v2093 = vlaneseq
        %v2094 = vshrl.u32 %v2093, 7
        %v2095 = vsub.s32 1, %v2094
        %v2096 = vrot.slane %v1982, %v2095
        %v2097 = vmul.f32 %v2096, %v685
        %v2098 = vmul.f32 %v2096, %v686
        %v2099 = vmul.f32 %v2096, %v687
        %v2100 = vmul.f32 %v2096, %v688
        %v2101 = vadd.f32 %v2089, %v2097
        %v2102 = vadd.f32 %v2090, %v2098
        %v2103 = vadd.f32 %v2091, %v2099
        %v2104 = vadd.f32 %v2092, %v2100
        %v2105 = vlaneseq
        %v2106 = vshrl.u32 %v2105, 7
        %v2107 = vsub.s32 2, %v2106
        %v2108 = vrot.slane %v1982, %v2107
        %v2109 = vmul.f32 %v2108, %v702
        %v2110 = vmul.f32 %v2108, %v703
        %v2111 = vmul.f32 %v2108, %v704
        %v2112 = vmul.f32 %v2108, %v705
        %v2113 = vadd.f32 %v2101, %v2109
        %v2114 = vadd.f32 %v2102, %v2110
        %v2115 = vadd.f32 %v2103, %v2111
        %v2116 = vadd.f32 %v2104, %v2112
        %v2117 = vlaneseq
        %v2118 = vshrl.u32 %v2117, 7
        %v2119 = vsub.s32 3, %v2118
        %v2120 = vrot.slane %v1982, %v2119
        %v2121 = vmul.f32 %v2120, %v719
        %v2122 = vmul.f32 %v2120, %v720
        %v2123 = vmul.f32 %v2120, %v721
        %v2124 = vmul.f32 %v2120, %v722
        %v2125 = vadd.f32 %v2113, %v2121
        %v2126 = vadd.f32 %v2114, %v2122
        %v2127 = vadd.f32 %v2115, %v2123
        %v2128 = vadd.f32 %v2116, %v2124
        %v2129 = vlaneseq
        %v2130 = vshrl.u32 %v2129, 7
        %v2131 = vsub.s32 4, %v2130
        %v2132 = vrot.slane %v1982, %v2131
        %v2133 = vmul.f32 %v2132, %v736
        %v2134 = vmul.f32 %v2132, %v737
        %v2135 = vmul.f32 %v2132, %v738
        %v2136 = vmul.f32 %v2132, %v739
        %v2137 = vadd.f32 %v2125, %v2133
        %v2138 = vadd.f32 %v2126, %v2134
        %v2139 = vadd.f32 %v2127, %v2135
        %v2140 = vadd.f32 %v2128, %v2136
        %v2141 = vlaneseq
        %v2142 = vshrl.u32 %v2141, 7
        %v2143 = vsub.s32 5, %v2142
        %v2144 = vrot.slane %v1982, %v2143
        %v2145 = vmul.f32 %v2144, %v753
        %v2146 = vmul.f32 %v2144, %v754
        %v2147 = vmul.f32 %v2144, %v755
        %v2148 = vmul.f32 %v2144, %v756
        %v2149 = vadd.f32 %v2137, %v2145
        %v2150 = vadd.f32 %v2138, %v2146
        %v2151 = vadd.f32 %v2139, %v2147
        %v2152 = vadd.f32 %v2140, %v2148
        %v2153 = vlaneseq
        %v2154 = vshrl.u32 %v2153, 7
        %v2155 = vsub.s32 6, %v2154
        %v2156 = vrot.slane %v1982, %v2155
        %v2157 = vmul.f32 %v2156, %v770
        %v2158 = vmul.f32 %v2156, %v771
        %v2159 = vmul.f32 %v2156, %v772
        %v2160 = vmul.f32 %v2156, %v773
        %v2161 = vadd.f32 %v2149, %v2157
        %v2162 = vadd.f32 %v2150, %v2158
        %v2163 = vadd.f32 %v2151, %v2159
        %v2164 = vadd.f32 %v2152, %v2160
        %v2165 = vlaneseq
        %v2166 = vshrl.u32 %v2165, 7
        %v2167 = vsub.s32 7, %v2166
        %v2168 = vrot.slane %v1982, %v2167
        %v2169 = vmul.f32 %v2168, %v787
        %v2170 = vmul.f32 %v2168, %v788
        %v2171 = vmul.f32 %v2168, %v789
        %v2172 = vmul.f32 %v2168, %v790
        %v2173 = vadd.f32 %v2161, %v2169
        %v2174 = vadd.f32 %v2162, %v2170
        %v2175 = vadd.f32 %v2163, %v2171
        %v2176 = vadd.f32 %v2164, %v2172
        %v2177 = vlaneseq
        %v2178 = vshrl.u32 %v2177, 7
        %v2179 = vsub.s32 0, %v2178
        %v2180 = vrot.slane %v1983, %v2179
        %v2181 = vmul.f32 %v2180, %v804
        %v2182 = vmul.f32 %v2180, %v805
        %v2183 = vmul.f32 %v2180, %v806
        %v2184 = vmul.f32 %v2180, %v807
        %v2185 = vadd.f32 %v2173, %v2181
        %v2186 = vadd.f32 %v2174, %v2182
        %v2187 = vadd.f32 %v2175, %v2183
        %v2188 = vadd.f32 %v2176, %v2184
        %v2189 = vlaneseq
        %v2190 = vshrl.u32 %v2189, 7
        %v2191 = vsub.s32 1, %v2190
        %v2192 = vrot.slane %v1983, %v2191
        %v2193 = vmul.f32 %v2192, %v821
        %v2194 = vmul.f32 %v2192, %v822
        %v2195 = vmul.f32 %v2192, %v823
        %v2196 = vmul.f32 %v2192, %v824
        %v2197 = vadd.f32 %v2185, %v2193
        %v2198 = vadd.f32 %v2186, %v2194
        %v2199 = vadd.f32 %v2187, %v2195
        %v2200 = vadd.f32 %v2188, %v2196
        %v2201 = vlaneseq
        %v2202 = vshrl.u32 %v2201, 7
        %v2203 = vsub.s32 2, %v2202
        %v2204 = vrot.slane %v1983, %v2203
        %v2205 = vmul.f32 %v2204, %v838
        %v2206 = vmul.f32 %v2204, %v839
        %v2207 = vmul.f32 %v2204, %v840
        %v2208 = vmul.f32 %v2204, %v841
        %v2209 = vadd.f32 %v2197, %v2205
        %v2210 = vadd.f32 %v2198, %v2206
        %v2211 = vadd.f32 %v2199, %v2207
        %v2212 = vadd.f32 %v2200, %v2208
        %v2213 = vlaneseq
        %v2214 = vshrl.u32 %v2213, 7
        %v2215 = vsub.s32 3, %v2214
        %v2216 = vrot.slane %v1983, %v2215
        %v2217 = vmul.f32 %v2216, %v855
        %v2218 = vmul.f32 %v2216, %v856
        %v2219 = vmul.f32 %v2216, %v857
        %v2220 = vmul.f32 %v2216, %v858
        %v2221 = vadd.f32 %v2209, %v2217
        %v2222 = vadd.f32 %v2210, %v2218
        %v2223 = vadd.f32 %v2211, %v2219
        %v2224 = vadd.f32 %v2212, %v2220
        %v2225 = vlaneseq
        %v2226 = vshrl.u32 %v2225, 7
        %v2227 = vsub.s32 4, %v2226
        %v2228 = vrot.slane %v1983, %v2227
        %v2229 = vmul.f32 %v2228, %v872
        %v2230 = vmul.f32 %v2228, %v873
        %v2231 = vmul.f32 %v2228, %v874
        %v2232 = vmul.f32 %v2228, %v875
        %v2233 = vadd.f32 %v2221, %v2229
        %v2234 = vadd.f32 %v2222, %v2230
        %v2235 = vadd.f32 %v2223, %v2231
        %v2236 = vadd.f32 %v2224, %v2232
        %v2237 = vlaneseq
        %v2238 = vshrl.u32 %v2237, 7
        %v2239 = vsub.s32 5, %v2238
        %v2240 = vrot.slane %v1983, %v2239
        %v2241 = vmul.f32 %v2240, %v889
        %v2242 = vmul.f32 %v2240, %v890
        %v2243 = vmul.f32 %v2240, %v891
        %v2244 = vmul.f32 %v2240, %v892
        %v2245 = vadd.f32 %v2233, %v2241
        %v2246 = vadd.f32 %v2234, %v2242
        %v2247 = vadd.f32 %v2235, %v2243
        %v2248 = vadd.f32 %v2236, %v2244
        %v2249 = vlaneseq
        %v2250 = vshrl.u32 %v2249, 7
        %v2251 = vsub.s32 6, %v2250
        %v2252 = vrot.slane %v1983, %v2251
        %v2253 = vmul.f32 %v2252, %v906
        %v2254 = vmul.f32 %v2252, %v907
        %v2255 = vmul.f32 %v2252, %v908
        %v2256 = vmul.f32 %v2252, %v909
        %v2257 = vadd.f32 %v2245, %v2253
        %v2258 = vadd.f32 %v2246, %v2254
        %v2259 = vadd.f32 %v2247, %v2255
        %v2260 = vadd.f32 %v2248, %v2256
        %v2261 = vlaneseq
        %v2262 = vshrl.u32 %v2261, 7
        %v2263 = vsub.s32 7, %v2262
        %v2264 = vrot.slane %v1983, %v2263
        %v2265 = vmul.f32 %v2264, %v923
        %v2266 = vmul.f32 %v2264, %v924
        %v2267 = vmul.f32 %v2264, %v925
        %v2268 = vmul.f32 %v2264, %v926
        %v2269 = vadd.f32 %v2257, %v2265
        %v2270 = vadd.f32 %v2258, %v2266
        %v2271 = vadd.f32 %v2259, %v2267
        %v2272 = vadd.f32 %v2260, %v2268
        %v2273 = vlaneseq
        %v2274 = vshrl.u32 %v2273, 7
        %v2275 = vsub.s32 0, %v2274
        %v2276 = vrot.slane %v1984, %v2275
        %v2277 = vmul.f32 %v2276, %v940
        %v2278 = vmul.f32 %v2276, %v941
        %v2279 = vmul.f32 %v2276, %v942
        %v2280 = vmul.f32 %v2276, %v943
        %v2281 = vadd.f32 %v2269, %v2277
        %v2282 = vadd.f32 %v2270, %v2278
        %v2283 = vadd.f32 %v2271, %v2279
        %v2284 = vadd.f32 %v2272, %v2280
        %v2285 = vlaneseq
        %v2286 = vshrl.u32 %v2285, 7
        %v2287 = vsub.s32 1, %v2286
        %v2288 = vrot.slane %v1984, %v2287
        %v2289 = vmul.f32 %v2288, %v957
        %v2290 = vmul.f32 %v2288, %v958
        %v2291 = vmul.f32 %v2288, %v959
        %v2292 = vmul.f32 %v2288, %v960
        %v2293 = vadd.f32 %v2281, %v2289
        %v2294 = vadd.f32 %v2282, %v2290
        %v2295 = vadd.f32 %v2283, %v2291
        %v2296 = vadd.f32 %v2284, %v2292
        %v2297 = vlaneseq
        %v2298 = vshrl.u32 %v2297, 7
        %v2299 = vsub.s32 2, %v2298
        %v2300 = vrot.slane %v1984, %v2299
        %v2301 = vmul.f32 %v2300, %v974
        %v2302 = vmul.f32 %v2300, %v975
        %v2303 = vmul.f32 %v2300, %v976
        %v2304 = vmul.f32 %v2300, %v977
        %v2305 = vadd.f32 %v2293, %v2301
        %v2306 = vadd.f32 %v2294, %v2302
        %v2307 = vadd.f32 %v2295, %v2303
        %v2308 = vadd.f32 %v2296, %v2304
        %v2309 = vlaneseq
        %v2310 = vshrl.u32 %v2309, 7
        %v2311 = vsub.s32 3, %v2310
        %v2312 = vrot.slane %v1984, %v2311
        %v2313 = vmul.f32 %v2312, %v991
        %v2314 = vmul.f32 %v2312, %v992
        %v2315 = vmul.f32 %v2312, %v993
        %v2316 = vmul.f32 %v2312, %v994
        %v2317 = vadd.f32 %v2305, %v2313
        %v2318 = vadd.f32 %v2306, %v2314
        %v2319 = vadd.f32 %v2307, %v2315
        %v2320 = vadd.f32 %v2308, %v2316
        %v2321 = vlaneseq
        %v2322 = vshrl.u32 %v2321, 7
        %v2323 = vsub.s32 4, %v2322
        %v2324 = vrot.slane %v1984, %v2323
        %v2325 = vmul.f32 %v2324, %v1008
        %v2326 = vmul.f32 %v2324, %v1009
        %v2327 = vmul.f32 %v2324, %v1010
        %v2328 = vmul.f32 %v2324, %v1011
        %v2329 = vadd.f32 %v2317, %v2325
        %v2330 = vadd.f32 %v2318, %v2326
        %v2331 = vadd.f32 %v2319, %v2327
        %v2332 = vadd.f32 %v2320, %v2328
        %v2333 = vlaneseq
        %v2334 = vshrl.u32 %v2333, 7
        %v2335 = vsub.s32 5, %v2334
        %v2336 = vrot.slane %v1984, %v2335
        %v2337 = vmul.f32 %v2336, %v1025
        %v2338 = vmul.f32 %v2336, %v1026
        %v2339 = vmul.f32 %v2336, %v1027
        %v2340 = vmul.f32 %v2336, %v1028
        %v2341 = vadd.f32 %v2329, %v2337
        %v2342 = vadd.f32 %v2330, %v2338
        %v2343 = vadd.f32 %v2331, %v2339
        %v2344 = vadd.f32 %v2332, %v2340
        %v2345 = vlaneseq
        %v2346 = vshrl.u32 %v2345, 7
        %v2347 = vsub.s32 6, %v2346
        %v2348 = vrot.slane %v1984, %v2347
        %v2349 = vmul.f32 %v2348, %v1042
        %v2350 = vmul.f32 %v2348, %v1043
        %v2351 = vmul.f32 %v2348, %v1044
        %v2352 = vmul.f32 %v2348, %v1045
        %v2353 = vadd.f32 %v2341, %v2349
        %v2354 = vadd.f32 %v2342, %v2350
        %v2355 = vadd.f32 %v2343, %v2351
        %v2356 = vadd.f32 %v2344, %v2352
        %v2357 = vlaneseq
        %v2358 = vshrl.u32 %v2357, 7
        %v2359 = vsub.s32 7, %v2358
        %v2360 = vrot.slane %v1984, %v2359
        %v2361 = vmul.f32 %v2360, %v1059
        %v2362 = vmul.f32 %v2360, %v1060
        %v2363 = vmul.f32 %v2360, %v1061
        %v2364 = vmul.f32 %v2360, %v1062
        %v2365 = vadd.f32 %v2353, %v2361
        %v2366 = vadd.f32 %v2354, %v2362
        %v2367 = vadd.f32 %v2355, %v2363
        %v2368 = vadd.f32 %v2356, %v2364
        %2369 = vset.pattern.permute.xlu0 3
        %2370 = vperm.xlu0 %2369, %v519
        %v2371 = vpop.permute.xlu0 %2370
        %2373 = vset.pattern.permute.xlu0 3
        %2374 = vperm.xlu0 %2373, %v520
        %v2375 = vpop.permute.xlu0 %2374
        %2377 = vset.pattern.permute.xlu0 3
        %2378 = vperm.xlu0 %2377, %v521
        %v2379 = vpop.permute.xlu0 %2378
        %2381 = vset.pattern.permute.xlu0 3
        %2382 = vperm.xlu0 %2381, %v522
        %v2383 = vpop.permute.xlu0 %2382
        %v2385 = vadd.f32 %v2365, %v2371
        %v2386 = vadd.f32 %v2366, %v2375
        %v2387 = vadd.f32 %v2367, %v2379
        %v2388 = vadd.f32 %v2368, %v2383
        %v2389 = vmax.f32 %v2385, 0.0
        %v2390 = vmax.f32 %v2386, 0.0
        %v2391 = vmax.f32 %v2387, 0.0
        %v2392 = vmax.f32 %v2388, 0.0
        %v2393 = vmul.f32 %v2389, %v515
        %v2394 = vmul.f32 %v2390, %v516
        %v2395 = vmul.f32 %v2391, %v517
        %v2396 = vmul.f32 %v2392, %v518
        %v2397 = vadd.f32 %v2393, %v2394
        %v2398 = vadd.f32 %v2397, %v2395
        %v2399 = vadd.f32 %v2398, %v2396
        %v2400 = vrot.slane %v2399, 4
        %v2401 = vadd.f32 %v2399, %v2400
        %v2402 = vrot.slane %v2401, 2
        %v2403 = vadd.f32 %v2401, %v2402
        %v2404 = vrot.slane %v2403, 1
        %v2405 = vadd.f32 %v2403, %v2404
        %s2406 = scalar_lea.vmem %s426, 128 [#allocation4]
        %v2407 = vld [vmem:[%s2406] sm:$0xff]
        %v2408 = vld [vmem:[%s2406 + $0x8] sm:$0xff]
        %v2409 = vld [vmem:[%s2406 + $0x10] sm:$0xff]
        %v2410 = vld [vmem:[%s2406 + $0x18] sm:$0xff]
        %v2411 = vmul.f32 %v511, %v2407
        %v2412 = vmul.f32 %v512, %v2408
        %v2413 = vmul.f32 %v513, %v2409
        %v2414 = vmul.f32 %v514, %v2410
        %v2415 = vlaneseq
        %v2416 = vshrl.u32 %v2415, 7
        %v2417 = vsub.s32 0, %v2416
        %v2418 = vrot.slane %v2411, %v2417
        %v2419 = vmul.f32 %v2418, %v532
        %v2420 = vmul.f32 %v2418, %v533
        %v2421 = vmul.f32 %v2418, %v534
        %v2422 = vmul.f32 %v2418, %v535
        %v2423 = vadd.f32 %v2419, 0.0
        %v2424 = vadd.f32 %v2420, 0.0
        %v2425 = vadd.f32 %v2421, 0.0
        %v2426 = vadd.f32 %v2422, 0.0
        %v2427 = vlaneseq
        %v2428 = vshrl.u32 %v2427, 7
        %v2429 = vsub.s32 1, %v2428
        %v2430 = vrot.slane %v2411, %v2429
        %v2431 = vmul.f32 %v2430, %v549
        %v2432 = vmul.f32 %v2430, %v550
        %v2433 = vmul.f32 %v2430, %v551
        %v2434 = vmul.f32 %v2430, %v552
        %v2435 = vadd.f32 %v2423, %v2431
        %v2436 = vadd.f32 %v2424, %v2432
        %v2437 = vadd.f32 %v2425, %v2433
        %v2438 = vadd.f32 %v2426, %v2434
        %v2439 = vlaneseq
        %v2440 = vshrl.u32 %v2439, 7
        %v2441 = vsub.s32 2, %v2440
        %v2442 = vrot.slane %v2411, %v2441
        %v2443 = vmul.f32 %v2442, %v566
        %v2444 = vmul.f32 %v2442, %v567
        %v2445 = vmul.f32 %v2442, %v568
        %v2446 = vmul.f32 %v2442, %v569
        %v2447 = vadd.f32 %v2435, %v2443
        %v2448 = vadd.f32 %v2436, %v2444
        %v2449 = vadd.f32 %v2437, %v2445
        %v2450 = vadd.f32 %v2438, %v2446
        %v2451 = vlaneseq
        %v2452 = vshrl.u32 %v2451, 7
        %v2453 = vsub.s32 3, %v2452
        %v2454 = vrot.slane %v2411, %v2453
        %v2455 = vmul.f32 %v2454, %v583
        %v2456 = vmul.f32 %v2454, %v584
        %v2457 = vmul.f32 %v2454, %v585
        %v2458 = vmul.f32 %v2454, %v586
        %v2459 = vadd.f32 %v2447, %v2455
        %v2460 = vadd.f32 %v2448, %v2456
        %v2461 = vadd.f32 %v2449, %v2457
        %v2462 = vadd.f32 %v2450, %v2458
        %v2463 = vlaneseq
        %v2464 = vshrl.u32 %v2463, 7
        %v2465 = vsub.s32 4, %v2464
        %v2466 = vrot.slane %v2411, %v2465
        %v2467 = vmul.f32 %v2466, %v600
        %v2468 = vmul.f32 %v2466, %v601
        %v2469 = vmul.f32 %v2466, %v602
        %v2470 = vmul.f32 %v2466, %v603
        %v2471 = vadd.f32 %v2459, %v2467
        %v2472 = vadd.f32 %v2460, %v2468
        %v2473 = vadd.f32 %v2461, %v2469
        %v2474 = vadd.f32 %v2462, %v2470
        %v2475 = vlaneseq
        %v2476 = vshrl.u32 %v2475, 7
        %v2477 = vsub.s32 5, %v2476
        %v2478 = vrot.slane %v2411, %v2477
        %v2479 = vmul.f32 %v2478, %v617
        %v2480 = vmul.f32 %v2478, %v618
        %v2481 = vmul.f32 %v2478, %v619
        %v2482 = vmul.f32 %v2478, %v620
        %v2483 = vadd.f32 %v2471, %v2479
        %v2484 = vadd.f32 %v2472, %v2480
        %v2485 = vadd.f32 %v2473, %v2481
        %v2486 = vadd.f32 %v2474, %v2482
        %v2487 = vlaneseq
        %v2488 = vshrl.u32 %v2487, 7
        %v2489 = vsub.s32 6, %v2488
        %v2490 = vrot.slane %v2411, %v2489
        %v2491 = vmul.f32 %v2490, %v634
        %v2492 = vmul.f32 %v2490, %v635
        %v2493 = vmul.f32 %v2490, %v636
        %v2494 = vmul.f32 %v2490, %v637
        %v2495 = vadd.f32 %v2483, %v2491
        %v2496 = vadd.f32 %v2484, %v2492
        %v2497 = vadd.f32 %v2485, %v2493
        %v2498 = vadd.f32 %v2486, %v2494
        %v2499 = vlaneseq
        %v2500 = vshrl.u32 %v2499, 7
        %v2501 = vsub.s32 7, %v2500
        %v2502 = vrot.slane %v2411, %v2501
        %v2503 = vmul.f32 %v2502, %v651
        %v2504 = vmul.f32 %v2502, %v652
        %v2505 = vmul.f32 %v2502, %v653
        %v2506 = vmul.f32 %v2502, %v654
        %v2507 = vadd.f32 %v2495, %v2503
        %v2508 = vadd.f32 %v2496, %v2504
        %v2509 = vadd.f32 %v2497, %v2505
        %v2510 = vadd.f32 %v2498, %v2506
        %v2511 = vlaneseq
        %v2512 = vshrl.u32 %v2511, 7
        %v2513 = vsub.s32 0, %v2512
        %v2514 = vrot.slane %v2412, %v2513
        %v2515 = vmul.f32 %v2514, %v668
        %v2516 = vmul.f32 %v2514, %v669
        %v2517 = vmul.f32 %v2514, %v670
        %v2518 = vmul.f32 %v2514, %v671
        %v2519 = vadd.f32 %v2507, %v2515
        %v2520 = vadd.f32 %v2508, %v2516
        %v2521 = vadd.f32 %v2509, %v2517
        %v2522 = vadd.f32 %v2510, %v2518
        %v2523 = vlaneseq
        %v2524 = vshrl.u32 %v2523, 7
        %v2525 = vsub.s32 1, %v2524
        %v2526 = vrot.slane %v2412, %v2525
        %v2527 = vmul.f32 %v2526, %v685
        %v2528 = vmul.f32 %v2526, %v686
        %v2529 = vmul.f32 %v2526, %v687
        %v2530 = vmul.f32 %v2526, %v688
        %v2531 = vadd.f32 %v2519, %v2527
        %v2532 = vadd.f32 %v2520, %v2528
        %v2533 = vadd.f32 %v2521, %v2529
        %v2534 = vadd.f32 %v2522, %v2530
        %v2535 = vlaneseq
        %v2536 = vshrl.u32 %v2535, 7
        %v2537 = vsub.s32 2, %v2536
        %v2538 = vrot.slane %v2412, %v2537
        %v2539 = vmul.f32 %v2538, %v702
        %v2540 = vmul.f32 %v2538, %v703
        %v2541 = vmul.f32 %v2538, %v704
        %v2542 = vmul.f32 %v2538, %v705
        %v2543 = vadd.f32 %v2531, %v2539
        %v2544 = vadd.f32 %v2532, %v2540
        %v2545 = vadd.f32 %v2533, %v2541
        %v2546 = vadd.f32 %v2534, %v2542
        %v2547 = vlaneseq
        %v2548 = vshrl.u32 %v2547, 7
        %v2549 = vsub.s32 3, %v2548
        %v2550 = vrot.slane %v2412, %v2549
        %v2551 = vmul.f32 %v2550, %v719
        %v2552 = vmul.f32 %v2550, %v720
        %v2553 = vmul.f32 %v2550, %v721
        %v2554 = vmul.f32 %v2550, %v722
        %v2555 = vadd.f32 %v2543, %v2551
        %v2556 = vadd.f32 %v2544, %v2552
        %v2557 = vadd.f32 %v2545, %v2553
        %v2558 = vadd.f32 %v2546, %v2554
        %v2559 = vlaneseq
        %v2560 = vshrl.u32 %v2559, 7
        %v2561 = vsub.s32 4, %v2560
        %v2562 = vrot.slane %v2412, %v2561
        %v2563 = vmul.f32 %v2562, %v736
        %v2564 = vmul.f32 %v2562, %v737
        %v2565 = vmul.f32 %v2562, %v738
        %v2566 = vmul.f32 %v2562, %v739
        %v2567 = vadd.f32 %v2555, %v2563
        %v2568 = vadd.f32 %v2556, %v2564
        %v2569 = vadd.f32 %v2557, %v2565
        %v2570 = vadd.f32 %v2558, %v2566
        %v2571 = vlaneseq
        %v2572 = vshrl.u32 %v2571, 7
        %v2573 = vsub.s32 5, %v2572
        %v2574 = vrot.slane %v2412, %v2573
        %v2575 = vmul.f32 %v2574, %v753
        %v2576 = vmul.f32 %v2574, %v754
        %v2577 = vmul.f32 %v2574, %v755
        %v2578 = vmul.f32 %v2574, %v756
        %v2579 = vadd.f32 %v2567, %v2575
        %v2580 = vadd.f32 %v2568, %v2576
        %v2581 = vadd.f32 %v2569, %v2577
        %v2582 = vadd.f32 %v2570, %v2578
        %v2583 = vlaneseq
        %v2584 = vshrl.u32 %v2583, 7
        %v2585 = vsub.s32 6, %v2584
        %v2586 = vrot.slane %v2412, %v2585
        %v2587 = vmul.f32 %v2586, %v770
        %v2588 = vmul.f32 %v2586, %v771
        %v2589 = vmul.f32 %v2586, %v772
        %v2590 = vmul.f32 %v2586, %v773
        %v2591 = vadd.f32 %v2579, %v2587
        %v2592 = vadd.f32 %v2580, %v2588
        %v2593 = vadd.f32 %v2581, %v2589
        %v2594 = vadd.f32 %v2582, %v2590
        %v2595 = vlaneseq
        %v2596 = vshrl.u32 %v2595, 7
        %v2597 = vsub.s32 7, %v2596
        %v2598 = vrot.slane %v2412, %v2597
        %v2599 = vmul.f32 %v2598, %v787
        %v2600 = vmul.f32 %v2598, %v788
        %v2601 = vmul.f32 %v2598, %v789
        %v2602 = vmul.f32 %v2598, %v790
        %v2603 = vadd.f32 %v2591, %v2599
        %v2604 = vadd.f32 %v2592, %v2600
        %v2605 = vadd.f32 %v2593, %v2601
        %v2606 = vadd.f32 %v2594, %v2602
        %v2607 = vlaneseq
        %v2608 = vshrl.u32 %v2607, 7
        %v2609 = vsub.s32 0, %v2608
        %v2610 = vrot.slane %v2413, %v2609
        %v2611 = vmul.f32 %v2610, %v804
        %v2612 = vmul.f32 %v2610, %v805
        %v2613 = vmul.f32 %v2610, %v806
        %v2614 = vmul.f32 %v2610, %v807
        %v2615 = vadd.f32 %v2603, %v2611
        %v2616 = vadd.f32 %v2604, %v2612
        %v2617 = vadd.f32 %v2605, %v2613
        %v2618 = vadd.f32 %v2606, %v2614
        %v2619 = vlaneseq
        %v2620 = vshrl.u32 %v2619, 7
        %v2621 = vsub.s32 1, %v2620
        %v2622 = vrot.slane %v2413, %v2621
        %v2623 = vmul.f32 %v2622, %v821
        %v2624 = vmul.f32 %v2622, %v822
        %v2625 = vmul.f32 %v2622, %v823
        %v2626 = vmul.f32 %v2622, %v824
        %v2627 = vadd.f32 %v2615, %v2623
        %v2628 = vadd.f32 %v2616, %v2624
        %v2629 = vadd.f32 %v2617, %v2625
        %v2630 = vadd.f32 %v2618, %v2626
        %v2631 = vlaneseq
        %v2632 = vshrl.u32 %v2631, 7
        %v2633 = vsub.s32 2, %v2632
        %v2634 = vrot.slane %v2413, %v2633
        %v2635 = vmul.f32 %v2634, %v838
        %v2636 = vmul.f32 %v2634, %v839
        %v2637 = vmul.f32 %v2634, %v840
        %v2638 = vmul.f32 %v2634, %v841
        %v2639 = vadd.f32 %v2627, %v2635
        %v2640 = vadd.f32 %v2628, %v2636
        %v2641 = vadd.f32 %v2629, %v2637
        %v2642 = vadd.f32 %v2630, %v2638
        %v2643 = vlaneseq
        %v2644 = vshrl.u32 %v2643, 7
        %v2645 = vsub.s32 3, %v2644
        %v2646 = vrot.slane %v2413, %v2645
        %v2647 = vmul.f32 %v2646, %v855
        %v2648 = vmul.f32 %v2646, %v856
        %v2649 = vmul.f32 %v2646, %v857
        %v2650 = vmul.f32 %v2646, %v858
        %v2651 = vadd.f32 %v2639, %v2647
        %v2652 = vadd.f32 %v2640, %v2648
        %v2653 = vadd.f32 %v2641, %v2649
        %v2654 = vadd.f32 %v2642, %v2650
        %v2655 = vlaneseq
        %v2656 = vshrl.u32 %v2655, 7
        %v2657 = vsub.s32 4, %v2656
        %v2658 = vrot.slane %v2413, %v2657
        %v2659 = vmul.f32 %v2658, %v872
        %v2660 = vmul.f32 %v2658, %v873
        %v2661 = vmul.f32 %v2658, %v874
        %v2662 = vmul.f32 %v2658, %v875
        %v2663 = vadd.f32 %v2651, %v2659
        %v2664 = vadd.f32 %v2652, %v2660
        %v2665 = vadd.f32 %v2653, %v2661
        %v2666 = vadd.f32 %v2654, %v2662
        %v2667 = vlaneseq
        %v2668 = vshrl.u32 %v2667, 7
        %v2669 = vsub.s32 5, %v2668
        %v2670 = vrot.slane %v2413, %v2669
        %v2671 = vmul.f32 %v2670, %v889
        %v2672 = vmul.f32 %v2670, %v890
        %v2673 = vmul.f32 %v2670, %v891
        %v2674 = vmul.f32 %v2670, %v892
        %v2675 = vadd.f32 %v2663, %v2671
        %v2676 = vadd.f32 %v2664, %v2672
        %v2677 = vadd.f32 %v2665, %v2673
        %v2678 = vadd.f32 %v2666, %v2674
        %v2679 = vlaneseq
        %v2680 = vshrl.u32 %v2679, 7
        %v2681 = vsub.s32 6, %v2680
        %v2682 = vrot.slane %v2413, %v2681
        %v2683 = vmul.f32 %v2682, %v906
        %v2684 = vmul.f32 %v2682, %v907
        %v2685 = vmul.f32 %v2682, %v908
        %v2686 = vmul.f32 %v2682, %v909
        %v2687 = vadd.f32 %v2675, %v2683
        %v2688 = vadd.f32 %v2676, %v2684
        %v2689 = vadd.f32 %v2677, %v2685
        %v2690 = vadd.f32 %v2678, %v2686
        %v2691 = vlaneseq
        %v2692 = vshrl.u32 %v2691, 7
        %v2693 = vsub.s32 7, %v2692
        %v2694 = vrot.slane %v2413, %v2693
        %v2695 = vmul.f32 %v2694, %v923
        %v2696 = vmul.f32 %v2694, %v924
        %v2697 = vmul.f32 %v2694, %v925
        %v2698 = vmul.f32 %v2694, %v926
        %v2699 = vadd.f32 %v2687, %v2695
        %v2700 = vadd.f32 %v2688, %v2696
        %v2701 = vadd.f32 %v2689, %v2697
        %v2702 = vadd.f32 %v2690, %v2698
        %v2703 = vlaneseq
        %v2704 = vshrl.u32 %v2703, 7
        %v2705 = vsub.s32 0, %v2704
        %v2706 = vrot.slane %v2414, %v2705
        %v2707 = vmul.f32 %v2706, %v940
        %v2708 = vmul.f32 %v2706, %v941
        %v2709 = vmul.f32 %v2706, %v942
        %v2710 = vmul.f32 %v2706, %v943
        %v2711 = vadd.f32 %v2699, %v2707
        %v2712 = vadd.f32 %v2700, %v2708
        %v2713 = vadd.f32 %v2701, %v2709
        %v2714 = vadd.f32 %v2702, %v2710
        %v2715 = vlaneseq
        %v2716 = vshrl.u32 %v2715, 7
        %v2717 = vsub.s32 1, %v2716
        %v2718 = vrot.slane %v2414, %v2717
        %v2719 = vmul.f32 %v2718, %v957
        %v2720 = vmul.f32 %v2718, %v958
        %v2721 = vmul.f32 %v2718, %v959
        %v2722 = vmul.f32 %v2718, %v960
        %v2723 = vadd.f32 %v2711, %v2719
        %v2724 = vadd.f32 %v2712, %v2720
        %v2725 = vadd.f32 %v2713, %v2721
        %v2726 = vadd.f32 %v2714, %v2722
        %v2727 = vlaneseq
        %v2728 = vshrl.u32 %v2727, 7
        %v2729 = vsub.s32 2, %v2728
        %v2730 = vrot.slane %v2414, %v2729
        %v2731 = vmul.f32 %v2730, %v974
        %v2732 = vmul.f32 %v2730, %v975
        %v2733 = vmul.f32 %v2730, %v976
        %v2734 = vmul.f32 %v2730, %v977
        %v2735 = vadd.f32 %v2723, %v2731
        %v2736 = vadd.f32 %v2724, %v2732
        %v2737 = vadd.f32 %v2725, %v2733
        %v2738 = vadd.f32 %v2726, %v2734
        %v2739 = vlaneseq
        %v2740 = vshrl.u32 %v2739, 7
        %v2741 = vsub.s32 3, %v2740
        %v2742 = vrot.slane %v2414, %v2741
        %v2743 = vmul.f32 %v2742, %v991
        %v2744 = vmul.f32 %v2742, %v992
        %v2745 = vmul.f32 %v2742, %v993
        %v2746 = vmul.f32 %v2742, %v994
        %v2747 = vadd.f32 %v2735, %v2743
        %v2748 = vadd.f32 %v2736, %v2744
        %v2749 = vadd.f32 %v2737, %v2745
        %v2750 = vadd.f32 %v2738, %v2746
        %v2751 = vlaneseq
        %v2752 = vshrl.u32 %v2751, 7
        %v2753 = vsub.s32 4, %v2752
        %v2754 = vrot.slane %v2414, %v2753
        %v2755 = vmul.f32 %v2754, %v1008
        %v2756 = vmul.f32 %v2754, %v1009
        %v2757 = vmul.f32 %v2754, %v1010
        %v2758 = vmul.f32 %v2754, %v1011
        %v2759 = vadd.f32 %v2747, %v2755
        %v2760 = vadd.f32 %v2748, %v2756
        %v2761 = vadd.f32 %v2749, %v2757
        %v2762 = vadd.f32 %v2750, %v2758
        %v2763 = vlaneseq
        %v2764 = vshrl.u32 %v2763, 7
        %v2765 = vsub.s32 5, %v2764
        %v2766 = vrot.slane %v2414, %v2765
        %v2767 = vmul.f32 %v2766, %v1025
        %v2768 = vmul.f32 %v2766, %v1026
        %v2769 = vmul.f32 %v2766, %v1027
        %v2770 = vmul.f32 %v2766, %v1028
        %v2771 = vadd.f32 %v2759, %v2767
        %v2772 = vadd.f32 %v2760, %v2768
        %v2773 = vadd.f32 %v2761, %v2769
        %v2774 = vadd.f32 %v2762, %v2770
        %v2775 = vlaneseq
        %v2776 = vshrl.u32 %v2775, 7
        %v2777 = vsub.s32 6, %v2776
        %v2778 = vrot.slane %v2414, %v2777
        %v2779 = vmul.f32 %v2778, %v1042
        %v2780 = vmul.f32 %v2778, %v1043
        %v2781 = vmul.f32 %v2778, %v1044
        %v2782 = vmul.f32 %v2778, %v1045
        %v2783 = vadd.f32 %v2771, %v2779
        %v2784 = vadd.f32 %v2772, %v2780
        %v2785 = vadd.f32 %v2773, %v2781
        %v2786 = vadd.f32 %v2774, %v2782
        %v2787 = vlaneseq
        %v2788 = vshrl.u32 %v2787, 7
        %v2789 = vsub.s32 7, %v2788
        %v2790 = vrot.slane %v2414, %v2789
        %v2791 = vmul.f32 %v2790, %v1059
        %v2792 = vmul.f32 %v2790, %v1060
        %v2793 = vmul.f32 %v2790, %v1061
        %v2794 = vmul.f32 %v2790, %v1062
        %v2795 = vadd.f32 %v2783, %v2791
        %v2796 = vadd.f32 %v2784, %v2792
        %v2797 = vadd.f32 %v2785, %v2793
        %v2798 = vadd.f32 %v2786, %v2794
        %2799 = vset.pattern.permute.xlu0 4
        %2800 = vperm.xlu0 %2799, %v519
        %v2801 = vpop.permute.xlu0 %2800
        %2803 = vset.pattern.permute.xlu0 4
        %2804 = vperm.xlu0 %2803, %v520
        %v2805 = vpop.permute.xlu0 %2804
        %2807 = vset.pattern.permute.xlu0 4
        %2808 = vperm.xlu0 %2807, %v521
        %v2809 = vpop.permute.xlu0 %2808
        %2811 = vset.pattern.permute.xlu0 4
        %2812 = vperm.xlu0 %2811, %v522
        %v2813 = vpop.permute.xlu0 %2812
        %v2815 = vadd.f32 %v2795, %v2801
        %v2816 = vadd.f32 %v2796, %v2805
        %v2817 = vadd.f32 %v2797, %v2809
        %v2818 = vadd.f32 %v2798, %v2813
        %v2819 = vmax.f32 %v2815, 0.0
        %v2820 = vmax.f32 %v2816, 0.0
        %v2821 = vmax.f32 %v2817, 0.0
        %v2822 = vmax.f32 %v2818, 0.0
        %v2823 = vmul.f32 %v2819, %v515
        %v2824 = vmul.f32 %v2820, %v516
        %v2825 = vmul.f32 %v2821, %v517
        %v2826 = vmul.f32 %v2822, %v518
        %v2827 = vadd.f32 %v2823, %v2824
        %v2828 = vadd.f32 %v2827, %v2825
        %v2829 = vadd.f32 %v2828, %v2826
        %v2830 = vrot.slane %v2829, 4
        %v2831 = vadd.f32 %v2829, %v2830
        %v2832 = vrot.slane %v2831, 2
        %v2833 = vadd.f32 %v2831, %v2832
        %v2834 = vrot.slane %v2833, 1
        %v2835 = vadd.f32 %v2833, %v2834
        %s2836 = scalar_lea.vmem %s426, 160 [#allocation4]
        %v2837 = vld [vmem:[%s2836] sm:$0xff]
        %v2838 = vld [vmem:[%s2836 + $0x8] sm:$0xff]
        %v2839 = vld [vmem:[%s2836 + $0x10] sm:$0xff]
        %v2840 = vld [vmem:[%s2836 + $0x18] sm:$0xff]
        %v2841 = vmul.f32 %v511, %v2837
        %v2842 = vmul.f32 %v512, %v2838
        %v2843 = vmul.f32 %v513, %v2839
        %v2844 = vmul.f32 %v514, %v2840
        %v2845 = vlaneseq
        %v2846 = vshrl.u32 %v2845, 7
        %v2847 = vsub.s32 0, %v2846
        %v2848 = vrot.slane %v2841, %v2847
        %v2849 = vmul.f32 %v2848, %v532
        %v2850 = vmul.f32 %v2848, %v533
        %v2851 = vmul.f32 %v2848, %v534
        %v2852 = vmul.f32 %v2848, %v535
        %v2853 = vadd.f32 %v2849, 0.0
        %v2854 = vadd.f32 %v2850, 0.0
        %v2855 = vadd.f32 %v2851, 0.0
        %v2856 = vadd.f32 %v2852, 0.0
        %v2857 = vlaneseq
        %v2858 = vshrl.u32 %v2857, 7
        %v2859 = vsub.s32 1, %v2858
        %v2860 = vrot.slane %v2841, %v2859
        %v2861 = vmul.f32 %v2860, %v549
        %v2862 = vmul.f32 %v2860, %v550
        %v2863 = vmul.f32 %v2860, %v551
        %v2864 = vmul.f32 %v2860, %v552
        %v2865 = vadd.f32 %v2853, %v2861
        %v2866 = vadd.f32 %v2854, %v2862
        %v2867 = vadd.f32 %v2855, %v2863
        %v2868 = vadd.f32 %v2856, %v2864
        %v2869 = vlaneseq
        %v2870 = vshrl.u32 %v2869, 7
        %v2871 = vsub.s32 2, %v2870
        %v2872 = vrot.slane %v2841, %v2871
        %v2873 = vmul.f32 %v2872, %v566
        %v2874 = vmul.f32 %v2872, %v567
        %v2875 = vmul.f32 %v2872, %v568
        %v2876 = vmul.f32 %v2872, %v569
        %v2877 = vadd.f32 %v2865, %v2873
        %v2878 = vadd.f32 %v2866, %v2874
        %v2879 = vadd.f32 %v2867, %v2875
        %v2880 = vadd.f32 %v2868, %v2876
        %v2881 = vlaneseq
        %v2882 = vshrl.u32 %v2881, 7
        %v2883 = vsub.s32 3, %v2882
        %v2884 = vrot.slane %v2841, %v2883
        %v2885 = vmul.f32 %v2884, %v583
        %v2886 = vmul.f32 %v2884, %v584
        %v2887 = vmul.f32 %v2884, %v585
        %v2888 = vmul.f32 %v2884, %v586
        %v2889 = vadd.f32 %v2877, %v2885
        %v2890 = vadd.f32 %v2878, %v2886
        %v2891 = vadd.f32 %v2879, %v2887
        %v2892 = vadd.f32 %v2880, %v2888
        %v2893 = vlaneseq
        %v2894 = vshrl.u32 %v2893, 7
        %v2895 = vsub.s32 4, %v2894
        %v2896 = vrot.slane %v2841, %v2895
        %v2897 = vmul.f32 %v2896, %v600
        %v2898 = vmul.f32 %v2896, %v601
        %v2899 = vmul.f32 %v2896, %v602
        %v2900 = vmul.f32 %v2896, %v603
        %v2901 = vadd.f32 %v2889, %v2897
        %v2902 = vadd.f32 %v2890, %v2898
        %v2903 = vadd.f32 %v2891, %v2899
        %v2904 = vadd.f32 %v2892, %v2900
        %v2905 = vlaneseq
        %v2906 = vshrl.u32 %v2905, 7
        %v2907 = vsub.s32 5, %v2906
        %v2908 = vrot.slane %v2841, %v2907
        %v2909 = vmul.f32 %v2908, %v617
        %v2910 = vmul.f32 %v2908, %v618
        %v2911 = vmul.f32 %v2908, %v619
        %v2912 = vmul.f32 %v2908, %v620
        %v2913 = vadd.f32 %v2901, %v2909
        %v2914 = vadd.f32 %v2902, %v2910
        %v2915 = vadd.f32 %v2903, %v2911
        %v2916 = vadd.f32 %v2904, %v2912
        %v2917 = vlaneseq
        %v2918 = vshrl.u32 %v2917, 7
        %v2919 = vsub.s32 6, %v2918
        %v2920 = vrot.slane %v2841, %v2919
        %v2921 = vmul.f32 %v2920, %v634
        %v2922 = vmul.f32 %v2920, %v635
        %v2923 = vmul.f32 %v2920, %v636
        %v2924 = vmul.f32 %v2920, %v637
        %v2925 = vadd.f32 %v2913, %v2921
        %v2926 = vadd.f32 %v2914, %v2922
        %v2927 = vadd.f32 %v2915, %v2923
        %v2928 = vadd.f32 %v2916, %v2924
        %v2929 = vlaneseq
        %v2930 = vshrl.u32 %v2929, 7
        %v2931 = vsub.s32 7, %v2930
        %v2932 = vrot.slane %v2841, %v2931
        %v2933 = vmul.f32 %v2932, %v651
        %v2934 = vmul.f32 %v2932, %v652
        %v2935 = vmul.f32 %v2932, %v653
        %v2936 = vmul.f32 %v2932, %v654
        %v2937 = vadd.f32 %v2925, %v2933
        %v2938 = vadd.f32 %v2926, %v2934
        %v2939 = vadd.f32 %v2927, %v2935
        %v2940 = vadd.f32 %v2928, %v2936
        %v2941 = vlaneseq
        %v2942 = vshrl.u32 %v2941, 7
        %v2943 = vsub.s32 0, %v2942
        %v2944 = vrot.slane %v2842, %v2943
        %v2945 = vmul.f32 %v2944, %v668
        %v2946 = vmul.f32 %v2944, %v669
        %v2947 = vmul.f32 %v2944, %v670
        %v2948 = vmul.f32 %v2944, %v671
        %v2949 = vadd.f32 %v2937, %v2945
        %v2950 = vadd.f32 %v2938, %v2946
        %v2951 = vadd.f32 %v2939, %v2947
        %v2952 = vadd.f32 %v2940, %v2948
        %v2953 = vlaneseq
        %v2954 = vshrl.u32 %v2953, 7
        %v2955 = vsub.s32 1, %v2954
        %v2956 = vrot.slane %v2842, %v2955
        %v2957 = vmul.f32 %v2956, %v685
        %v2958 = vmul.f32 %v2956, %v686
        %v2959 = vmul.f32 %v2956, %v687
        %v2960 = vmul.f32 %v2956, %v688
        %v2961 = vadd.f32 %v2949, %v2957
        %v2962 = vadd.f32 %v2950, %v2958
        %v2963 = vadd.f32 %v2951, %v2959
        %v2964 = vadd.f32 %v2952, %v2960
        %v2965 = vlaneseq
        %v2966 = vshrl.u32 %v2965, 7
        %v2967 = vsub.s32 2, %v2966
        %v2968 = vrot.slane %v2842, %v2967
        %v2969 = vmul.f32 %v2968, %v702
        %v2970 = vmul.f32 %v2968, %v703
        %v2971 = vmul.f32 %v2968, %v704
        %v2972 = vmul.f32 %v2968, %v705
        %v2973 = vadd.f32 %v2961, %v2969
        %v2974 = vadd.f32 %v2962, %v2970
        %v2975 = vadd.f32 %v2963, %v2971
        %v2976 = vadd.f32 %v2964, %v2972
        %v2977 = vlaneseq
        %v2978 = vshrl.u32 %v2977, 7
        %v2979 = vsub.s32 3, %v2978
        %v2980 = vrot.slane %v2842, %v2979
        %v2981 = vmul.f32 %v2980, %v719
        %v2982 = vmul.f32 %v2980, %v720
        %v2983 = vmul.f32 %v2980, %v721
        %v2984 = vmul.f32 %v2980, %v722
        %v2985 = vadd.f32 %v2973, %v2981
        %v2986 = vadd.f32 %v2974, %v2982
        %v2987 = vadd.f32 %v2975, %v2983
        %v2988 = vadd.f32 %v2976, %v2984
        %v2989 = vlaneseq
        %v2990 = vshrl.u32 %v2989, 7
        %v2991 = vsub.s32 4, %v2990
        %v2992 = vrot.slane %v2842, %v2991
        %v2993 = vmul.f32 %v2992, %v736
        %v2994 = vmul.f32 %v2992, %v737
        %v2995 = vmul.f32 %v2992, %v738
        %v2996 = vmul.f32 %v2992, %v739
        %v2997 = vadd.f32 %v2985, %v2993
        %v2998 = vadd.f32 %v2986, %v2994
        %v2999 = vadd.f32 %v2987, %v2995
        %v3000 = vadd.f32 %v2988, %v2996
        %v3001 = vlaneseq
        %v3002 = vshrl.u32 %v3001, 7
        %v3003 = vsub.s32 5, %v3002
        %v3004 = vrot.slane %v2842, %v3003
        %v3005 = vmul.f32 %v3004, %v753
        %v3006 = vmul.f32 %v3004, %v754
        %v3007 = vmul.f32 %v3004, %v755
        %v3008 = vmul.f32 %v3004, %v756
        %v3009 = vadd.f32 %v2997, %v3005
        %v3010 = vadd.f32 %v2998, %v3006
        %v3011 = vadd.f32 %v2999, %v3007
        %v3012 = vadd.f32 %v3000, %v3008
        %v3013 = vlaneseq
        %v3014 = vshrl.u32 %v3013, 7
        %v3015 = vsub.s32 6, %v3014
        %v3016 = vrot.slane %v2842, %v3015
        %v3017 = vmul.f32 %v3016, %v770
        %v3018 = vmul.f32 %v3016, %v771
        %v3019 = vmul.f32 %v3016, %v772
        %v3020 = vmul.f32 %v3016, %v773
        %v3021 = vadd.f32 %v3009, %v3017
        %v3022 = vadd.f32 %v3010, %v3018
        %v3023 = vadd.f32 %v3011, %v3019
        %v3024 = vadd.f32 %v3012, %v3020
        %v3025 = vlaneseq
        %v3026 = vshrl.u32 %v3025, 7
        %v3027 = vsub.s32 7, %v3026
        %v3028 = vrot.slane %v2842, %v3027
        %v3029 = vmul.f32 %v3028, %v787
        %v3030 = vmul.f32 %v3028, %v788
        %v3031 = vmul.f32 %v3028, %v789
        %v3032 = vmul.f32 %v3028, %v790
        %v3033 = vadd.f32 %v3021, %v3029
        %v3034 = vadd.f32 %v3022, %v3030
        %v3035 = vadd.f32 %v3023, %v3031
        %v3036 = vadd.f32 %v3024, %v3032
        %v3037 = vlaneseq
        %v3038 = vshrl.u32 %v3037, 7
        %v3039 = vsub.s32 0, %v3038
        %v3040 = vrot.slane %v2843, %v3039
        %v3041 = vmul.f32 %v3040, %v804
        %v3042 = vmul.f32 %v3040, %v805
        %v3043 = vmul.f32 %v3040, %v806
        %v3044 = vmul.f32 %v3040, %v807
        %v3045 = vadd.f32 %v3033, %v3041
        %v3046 = vadd.f32 %v3034, %v3042
        %v3047 = vadd.f32 %v3035, %v3043
        %v3048 = vadd.f32 %v3036, %v3044
        %v3049 = vlaneseq
        %v3050 = vshrl.u32 %v3049, 7
        %v3051 = vsub.s32 1, %v3050
        %v3052 = vrot.slane %v2843, %v3051
        %v3053 = vmul.f32 %v3052, %v821
        %v3054 = vmul.f32 %v3052, %v822
        %v3055 = vmul.f32 %v3052, %v823
        %v3056 = vmul.f32 %v3052, %v824
        %v3057 = vadd.f32 %v3045, %v3053
        %v3058 = vadd.f32 %v3046, %v3054
        %v3059 = vadd.f32 %v3047, %v3055
        %v3060 = vadd.f32 %v3048, %v3056
        %v3061 = vlaneseq
        %v3062 = vshrl.u32 %v3061, 7
        %v3063 = vsub.s32 2, %v3062
        %v3064 = vrot.slane %v2843, %v3063
        %v3065 = vmul.f32 %v3064, %v838
        %v3066 = vmul.f32 %v3064, %v839
        %v3067 = vmul.f32 %v3064, %v840
        %v3068 = vmul.f32 %v3064, %v841
        %v3069 = vadd.f32 %v3057, %v3065
        %v3070 = vadd.f32 %v3058, %v3066
        %v3071 = vadd.f32 %v3059, %v3067
        %v3072 = vadd.f32 %v3060, %v3068
        %v3073 = vlaneseq
        %v3074 = vshrl.u32 %v3073, 7
        %v3075 = vsub.s32 3, %v3074
        %v3076 = vrot.slane %v2843, %v3075
        %v3077 = vmul.f32 %v3076, %v855
        %v3078 = vmul.f32 %v3076, %v856
        %v3079 = vmul.f32 %v3076, %v857
        %v3080 = vmul.f32 %v3076, %v858
        %v3081 = vadd.f32 %v3069, %v3077
        %v3082 = vadd.f32 %v3070, %v3078
        %v3083 = vadd.f32 %v3071, %v3079
        %v3084 = vadd.f32 %v3072, %v3080
        %v3085 = vlaneseq
        %v3086 = vshrl.u32 %v3085, 7
        %v3087 = vsub.s32 4, %v3086
        %v3088 = vrot.slane %v2843, %v3087
        %v3089 = vmul.f32 %v3088, %v872
        %v3090 = vmul.f32 %v3088, %v873
        %v3091 = vmul.f32 %v3088, %v874
        %v3092 = vmul.f32 %v3088, %v875
        %v3093 = vadd.f32 %v3081, %v3089
        %v3094 = vadd.f32 %v3082, %v3090
        %v3095 = vadd.f32 %v3083, %v3091
        %v3096 = vadd.f32 %v3084, %v3092
        %v3097 = vlaneseq
        %v3098 = vshrl.u32 %v3097, 7
        %v3099 = vsub.s32 5, %v3098
        %v3100 = vrot.slane %v2843, %v3099
        %v3101 = vmul.f32 %v3100, %v889
        %v3102 = vmul.f32 %v3100, %v890
        %v3103 = vmul.f32 %v3100, %v891
        %v3104 = vmul.f32 %v3100, %v892
        %v3105 = vadd.f32 %v3093, %v3101
        %v3106 = vadd.f32 %v3094, %v3102
        %v3107 = vadd.f32 %v3095, %v3103
        %v3108 = vadd.f32 %v3096, %v3104
        %v3109 = vlaneseq
        %v3110 = vshrl.u32 %v3109, 7
        %v3111 = vsub.s32 6, %v3110
        %v3112 = vrot.slane %v2843, %v3111
        %v3113 = vmul.f32 %v3112, %v906
        %v3114 = vmul.f32 %v3112, %v907
        %v3115 = vmul.f32 %v3112, %v908
        %v3116 = vmul.f32 %v3112, %v909
        %v3117 = vadd.f32 %v3105, %v3113
        %v3118 = vadd.f32 %v3106, %v3114
        %v3119 = vadd.f32 %v3107, %v3115
        %v3120 = vadd.f32 %v3108, %v3116
        %v3121 = vlaneseq
        %v3122 = vshrl.u32 %v3121, 7
        %v3123 = vsub.s32 7, %v3122
        %v3124 = vrot.slane %v2843, %v3123
        %v3125 = vmul.f32 %v3124, %v923
        %v3126 = vmul.f32 %v3124, %v924
        %v3127 = vmul.f32 %v3124, %v925
        %v3128 = vmul.f32 %v3124, %v926
        %v3129 = vadd.f32 %v3117, %v3125
        %v3130 = vadd.f32 %v3118, %v3126
        %v3131 = vadd.f32 %v3119, %v3127
        %v3132 = vadd.f32 %v3120, %v3128
        %v3133 = vlaneseq
        %v3134 = vshrl.u32 %v3133, 7
        %v3135 = vsub.s32 0, %v3134
        %v3136 = vrot.slane %v2844, %v3135
        %v3137 = vmul.f32 %v3136, %v940
        %v3138 = vmul.f32 %v3136, %v941
        %v3139 = vmul.f32 %v3136, %v942
        %v3140 = vmul.f32 %v3136, %v943
        %v3141 = vadd.f32 %v3129, %v3137
        %v3142 = vadd.f32 %v3130, %v3138
        %v3143 = vadd.f32 %v3131, %v3139
        %v3144 = vadd.f32 %v3132, %v3140
        %v3145 = vlaneseq
        %v3146 = vshrl.u32 %v3145, 7
        %v3147 = vsub.s32 1, %v3146
        %v3148 = vrot.slane %v2844, %v3147
        %v3149 = vmul.f32 %v3148, %v957
        %v3150 = vmul.f32 %v3148, %v958
        %v3151 = vmul.f32 %v3148, %v959
        %v3152 = vmul.f32 %v3148, %v960
        %v3153 = vadd.f32 %v3141, %v3149
        %v3154 = vadd.f32 %v3142, %v3150
        %v3155 = vadd.f32 %v3143, %v3151
        %v3156 = vadd.f32 %v3144, %v3152
        %v3157 = vlaneseq
        %v3158 = vshrl.u32 %v3157, 7
        %v3159 = vsub.s32 2, %v3158
        %v3160 = vrot.slane %v2844, %v3159
        %v3161 = vmul.f32 %v3160, %v974
        %v3162 = vmul.f32 %v3160, %v975
        %v3163 = vmul.f32 %v3160, %v976
        %v3164 = vmul.f32 %v3160, %v977
        %v3165 = vadd.f32 %v3153, %v3161
        %v3166 = vadd.f32 %v3154, %v3162
        %v3167 = vadd.f32 %v3155, %v3163
        %v3168 = vadd.f32 %v3156, %v3164
        %v3169 = vlaneseq
        %v3170 = vshrl.u32 %v3169, 7
        %v3171 = vsub.s32 3, %v3170
        %v3172 = vrot.slane %v2844, %v3171
        %v3173 = vmul.f32 %v3172, %v991
        %v3174 = vmul.f32 %v3172, %v992
        %v3175 = vmul.f32 %v3172, %v993
        %v3176 = vmul.f32 %v3172, %v994
        %v3177 = vadd.f32 %v3165, %v3173
        %v3178 = vadd.f32 %v3166, %v3174
        %v3179 = vadd.f32 %v3167, %v3175
        %v3180 = vadd.f32 %v3168, %v3176
        %v3181 = vlaneseq
        %v3182 = vshrl.u32 %v3181, 7
        %v3183 = vsub.s32 4, %v3182
        %v3184 = vrot.slane %v2844, %v3183
        %v3185 = vmul.f32 %v3184, %v1008
        %v3186 = vmul.f32 %v3184, %v1009
        %v3187 = vmul.f32 %v3184, %v1010
        %v3188 = vmul.f32 %v3184, %v1011
        %v3189 = vadd.f32 %v3177, %v3185
        %v3190 = vadd.f32 %v3178, %v3186
        %v3191 = vadd.f32 %v3179, %v3187
        %v3192 = vadd.f32 %v3180, %v3188
        %v3193 = vlaneseq
        %v3194 = vshrl.u32 %v3193, 7
        %v3195 = vsub.s32 5, %v3194
        %v3196 = vrot.slane %v2844, %v3195
        %v3197 = vmul.f32 %v3196, %v1025
        %v3198 = vmul.f32 %v3196, %v1026
        %v3199 = vmul.f32 %v3196, %v1027
        %v3200 = vmul.f32 %v3196, %v1028
        %v3201 = vadd.f32 %v3189, %v3197
        %v3202 = vadd.f32 %v3190, %v3198
        %v3203 = vadd.f32 %v3191, %v3199
        %v3204 = vadd.f32 %v3192, %v3200
        %v3205 = vlaneseq
        %v3206 = vshrl.u32 %v3205, 7
        %v3207 = vsub.s32 6, %v3206
        %v3208 = vrot.slane %v2844, %v3207
        %v3209 = vmul.f32 %v3208, %v1042
        %v3210 = vmul.f32 %v3208, %v1043
        %v3211 = vmul.f32 %v3208, %v1044
        %v3212 = vmul.f32 %v3208, %v1045
        %v3213 = vadd.f32 %v3201, %v3209
        %v3214 = vadd.f32 %v3202, %v3210
        %v3215 = vadd.f32 %v3203, %v3211
        %v3216 = vadd.f32 %v3204, %v3212
        %v3217 = vlaneseq
        %v3218 = vshrl.u32 %v3217, 7
        %v3219 = vsub.s32 7, %v3218
        %v3220 = vrot.slane %v2844, %v3219
        %v3221 = vmul.f32 %v3220, %v1059
        %v3222 = vmul.f32 %v3220, %v1060
        %v3223 = vmul.f32 %v3220, %v1061
        %v3224 = vmul.f32 %v3220, %v1062
        %v3225 = vadd.f32 %v3213, %v3221
        %v3226 = vadd.f32 %v3214, %v3222
        %v3227 = vadd.f32 %v3215, %v3223
        %v3228 = vadd.f32 %v3216, %v3224
        %3229 = vset.pattern.permute.xlu0 5
        %3230 = vperm.xlu0 %3229, %v519
        %v3231 = vpop.permute.xlu0 %3230
        %3233 = vset.pattern.permute.xlu0 5
        %3234 = vperm.xlu0 %3233, %v520
        %v3235 = vpop.permute.xlu0 %3234
        %3237 = vset.pattern.permute.xlu0 5
        %3238 = vperm.xlu0 %3237, %v521
        %v3239 = vpop.permute.xlu0 %3238
        %3241 = vset.pattern.permute.xlu0 5
        %3242 = vperm.xlu0 %3241, %v522
        %v3243 = vpop.permute.xlu0 %3242
        %v3245 = vadd.f32 %v3225, %v3231
        %v3246 = vadd.f32 %v3226, %v3235
        %v3247 = vadd.f32 %v3227, %v3239
        %v3248 = vadd.f32 %v3228, %v3243
        %v3249 = vmax.f32 %v3245, 0.0
        %v3250 = vmax.f32 %v3246, 0.0
        %v3251 = vmax.f32 %v3247, 0.0
        %v3252 = vmax.f32 %v3248, 0.0
        %v3253 = vmul.f32 %v3249, %v515
        %v3254 = vmul.f32 %v3250, %v516
        %v3255 = vmul.f32 %v3251, %v517
        %v3256 = vmul.f32 %v3252, %v518
        %v3257 = vadd.f32 %v3253, %v3254
        %v3258 = vadd.f32 %v3257, %v3255
        %v3259 = vadd.f32 %v3258, %v3256
        %v3260 = vrot.slane %v3259, 4
        %v3261 = vadd.f32 %v3259, %v3260
        %v3262 = vrot.slane %v3261, 2
        %v3263 = vadd.f32 %v3261, %v3262
        %v3264 = vrot.slane %v3263, 1
        %v3265 = vadd.f32 %v3263, %v3264
        %s3266 = scalar_lea.vmem %s426, 192 [#allocation4]
        %v3267 = vld [vmem:[%s3266] sm:$0xff]
        %v3268 = vld [vmem:[%s3266 + $0x8] sm:$0xff]
        %v3269 = vld [vmem:[%s3266 + $0x10] sm:$0xff]
        %v3270 = vld [vmem:[%s3266 + $0x18] sm:$0xff]
        %v3271 = vmul.f32 %v511, %v3267
        %v3272 = vmul.f32 %v512, %v3268
        %v3273 = vmul.f32 %v513, %v3269
        %v3274 = vmul.f32 %v514, %v3270
        %v3275 = vlaneseq
        %v3276 = vshrl.u32 %v3275, 7
        %v3277 = vsub.s32 0, %v3276
        %v3278 = vrot.slane %v3271, %v3277
        %v3279 = vmul.f32 %v3278, %v532
        %v3280 = vmul.f32 %v3278, %v533
        %v3281 = vmul.f32 %v3278, %v534
        %v3282 = vmul.f32 %v3278, %v535
        %v3283 = vadd.f32 %v3279, 0.0
        %v3284 = vadd.f32 %v3280, 0.0
        %v3285 = vadd.f32 %v3281, 0.0
        %v3286 = vadd.f32 %v3282, 0.0
        %v3287 = vlaneseq
        %v3288 = vshrl.u32 %v3287, 7
        %v3289 = vsub.s32 1, %v3288
        %v3290 = vrot.slane %v3271, %v3289
        %v3291 = vmul.f32 %v3290, %v549
        %v3292 = vmul.f32 %v3290, %v550
        %v3293 = vmul.f32 %v3290, %v551
        %v3294 = vmul.f32 %v3290, %v552
        %v3295 = vadd.f32 %v3283, %v3291
        %v3296 = vadd.f32 %v3284, %v3292
        %v3297 = vadd.f32 %v3285, %v3293
        %v3298 = vadd.f32 %v3286, %v3294
        %v3299 = vlaneseq
        %v3300 = vshrl.u32 %v3299, 7
        %v3301 = vsub.s32 2, %v3300
        %v3302 = vrot.slane %v3271, %v3301
        %v3303 = vmul.f32 %v3302, %v566
        %v3304 = vmul.f32 %v3302, %v567
        %v3305 = vmul.f32 %v3302, %v568
        %v3306 = vmul.f32 %v3302, %v569
        %v3307 = vadd.f32 %v3295, %v3303
        %v3308 = vadd.f32 %v3296, %v3304
        %v3309 = vadd.f32 %v3297, %v3305
        %v3310 = vadd.f32 %v3298, %v3306
        %v3311 = vlaneseq
        %v3312 = vshrl.u32 %v3311, 7
        %v3313 = vsub.s32 3, %v3312
        %v3314 = vrot.slane %v3271, %v3313
        %v3315 = vmul.f32 %v3314, %v583
        %v3316 = vmul.f32 %v3314, %v584
        %v3317 = vmul.f32 %v3314, %v585
        %v3318 = vmul.f32 %v3314, %v586
        %v3319 = vadd.f32 %v3307, %v3315
        %v3320 = vadd.f32 %v3308, %v3316
        %v3321 = vadd.f32 %v3309, %v3317
        %v3322 = vadd.f32 %v3310, %v3318
        %v3323 = vlaneseq
        %v3324 = vshrl.u32 %v3323, 7
        %v3325 = vsub.s32 4, %v3324
        %v3326 = vrot.slane %v3271, %v3325
        %v3327 = vmul.f32 %v3326, %v600
        %v3328 = vmul.f32 %v3326, %v601
        %v3329 = vmul.f32 %v3326, %v602
        %v3330 = vmul.f32 %v3326, %v603
        %v3331 = vadd.f32 %v3319, %v3327
        %v3332 = vadd.f32 %v3320, %v3328
        %v3333 = vadd.f32 %v3321, %v3329
        %v3334 = vadd.f32 %v3322, %v3330
        %v3335 = vlaneseq
        %v3336 = vshrl.u32 %v3335, 7
        %v3337 = vsub.s32 5, %v3336
        %v3338 = vrot.slane %v3271, %v3337
        %v3339 = vmul.f32 %v3338, %v617
        %v3340 = vmul.f32 %v3338, %v618
        %v3341 = vmul.f32 %v3338, %v619
        %v3342 = vmul.f32 %v3338, %v620
        %v3343 = vadd.f32 %v3331, %v3339
        %v3344 = vadd.f32 %v3332, %v3340
        %v3345 = vadd.f32 %v3333, %v3341
        %v3346 = vadd.f32 %v3334, %v3342
        %v3347 = vlaneseq
        %v3348 = vshrl.u32 %v3347, 7
        %v3349 = vsub.s32 6, %v3348
        %v3350 = vrot.slane %v3271, %v3349
        %v3351 = vmul.f32 %v3350, %v634
        %v3352 = vmul.f32 %v3350, %v635
        %v3353 = vmul.f32 %v3350, %v636
        %v3354 = vmul.f32 %v3350, %v637
        %v3355 = vadd.f32 %v3343, %v3351
        %v3356 = vadd.f32 %v3344, %v3352
        %v3357 = vadd.f32 %v3345, %v3353
        %v3358 = vadd.f32 %v3346, %v3354
        %v3359 = vlaneseq
        %v3360 = vshrl.u32 %v3359, 7
        %v3361 = vsub.s32 7, %v3360
        %v3362 = vrot.slane %v3271, %v3361
        %v3363 = vmul.f32 %v3362, %v651
        %v3364 = vmul.f32 %v3362, %v652
        %v3365 = vmul.f32 %v3362, %v653
        %v3366 = vmul.f32 %v3362, %v654
        %v3367 = vadd.f32 %v3355, %v3363
        %v3368 = vadd.f32 %v3356, %v3364
        %v3369 = vadd.f32 %v3357, %v3365
        %v3370 = vadd.f32 %v3358, %v3366
        %v3371 = vlaneseq
        %v3372 = vshrl.u32 %v3371, 7
        %v3373 = vsub.s32 0, %v3372
        %v3374 = vrot.slane %v3272, %v3373
        %v3375 = vmul.f32 %v3374, %v668
        %v3376 = vmul.f32 %v3374, %v669
        %v3377 = vmul.f32 %v3374, %v670
        %v3378 = vmul.f32 %v3374, %v671
        %v3379 = vadd.f32 %v3367, %v3375
        %v3380 = vadd.f32 %v3368, %v3376
        %v3381 = vadd.f32 %v3369, %v3377
        %v3382 = vadd.f32 %v3370, %v3378
        %v3383 = vlaneseq
        %v3384 = vshrl.u32 %v3383, 7
        %v3385 = vsub.s32 1, %v3384
        %v3386 = vrot.slane %v3272, %v3385
        %v3387 = vmul.f32 %v3386, %v685
        %v3388 = vmul.f32 %v3386, %v686
        %v3389 = vmul.f32 %v3386, %v687
        %v3390 = vmul.f32 %v3386, %v688
        %v3391 = vadd.f32 %v3379, %v3387
        %v3392 = vadd.f32 %v3380, %v3388
        %v3393 = vadd.f32 %v3381, %v3389
        %v3394 = vadd.f32 %v3382, %v3390
        %v3395 = vlaneseq
        %v3396 = vshrl.u32 %v3395, 7
        %v3397 = vsub.s32 2, %v3396
        %v3398 = vrot.slane %v3272, %v3397
        %v3399 = vmul.f32 %v3398, %v702
        %v3400 = vmul.f32 %v3398, %v703
        %v3401 = vmul.f32 %v3398, %v704
        %v3402 = vmul.f32 %v3398, %v705
        %v3403 = vadd.f32 %v3391, %v3399
        %v3404 = vadd.f32 %v3392, %v3400
        %v3405 = vadd.f32 %v3393, %v3401
        %v3406 = vadd.f32 %v3394, %v3402
        %v3407 = vlaneseq
        %v3408 = vshrl.u32 %v3407, 7
        %v3409 = vsub.s32 3, %v3408
        %v3410 = vrot.slane %v3272, %v3409
        %v3411 = vmul.f32 %v3410, %v719
        %v3412 = vmul.f32 %v3410, %v720
        %v3413 = vmul.f32 %v3410, %v721
        %v3414 = vmul.f32 %v3410, %v722
        %v3415 = vadd.f32 %v3403, %v3411
        %v3416 = vadd.f32 %v3404, %v3412
        %v3417 = vadd.f32 %v3405, %v3413
        %v3418 = vadd.f32 %v3406, %v3414
        %v3419 = vlaneseq
        %v3420 = vshrl.u32 %v3419, 7
        %v3421 = vsub.s32 4, %v3420
        %v3422 = vrot.slane %v3272, %v3421
        %v3423 = vmul.f32 %v3422, %v736
        %v3424 = vmul.f32 %v3422, %v737
        %v3425 = vmul.f32 %v3422, %v738
        %v3426 = vmul.f32 %v3422, %v739
        %v3427 = vadd.f32 %v3415, %v3423
        %v3428 = vadd.f32 %v3416, %v3424
        %v3429 = vadd.f32 %v3417, %v3425
        %v3430 = vadd.f32 %v3418, %v3426
        %v3431 = vlaneseq
        %v3432 = vshrl.u32 %v3431, 7
        %v3433 = vsub.s32 5, %v3432
        %v3434 = vrot.slane %v3272, %v3433
        %v3435 = vmul.f32 %v3434, %v753
        %v3436 = vmul.f32 %v3434, %v754
        %v3437 = vmul.f32 %v3434, %v755
        %v3438 = vmul.f32 %v3434, %v756
        %v3439 = vadd.f32 %v3427, %v3435
        %v3440 = vadd.f32 %v3428, %v3436
        %v3441 = vadd.f32 %v3429, %v3437
        %v3442 = vadd.f32 %v3430, %v3438
        %v3443 = vlaneseq
        %v3444 = vshrl.u32 %v3443, 7
        %v3445 = vsub.s32 6, %v3444
        %v3446 = vrot.slane %v3272, %v3445
        %v3447 = vmul.f32 %v3446, %v770
        %v3448 = vmul.f32 %v3446, %v771
        %v3449 = vmul.f32 %v3446, %v772
        %v3450 = vmul.f32 %v3446, %v773
        %v3451 = vadd.f32 %v3439, %v3447
        %v3452 = vadd.f32 %v3440, %v3448
        %v3453 = vadd.f32 %v3441, %v3449
        %v3454 = vadd.f32 %v3442, %v3450
        %v3455 = vlaneseq
        %v3456 = vshrl.u32 %v3455, 7
        %v3457 = vsub.s32 7, %v3456
        %v3458 = vrot.slane %v3272, %v3457
        %v3459 = vmul.f32 %v3458, %v787
        %v3460 = vmul.f32 %v3458, %v788
        %v3461 = vmul.f32 %v3458, %v789
        %v3462 = vmul.f32 %v3458, %v790
        %v3463 = vadd.f32 %v3451, %v3459
        %v3464 = vadd.f32 %v3452, %v3460
        %v3465 = vadd.f32 %v3453, %v3461
        %v3466 = vadd.f32 %v3454, %v3462
        %v3467 = vlaneseq
        %v3468 = vshrl.u32 %v3467, 7
        %v3469 = vsub.s32 0, %v3468
        %v3470 = vrot.slane %v3273, %v3469
        %v3471 = vmul.f32 %v3470, %v804
        %v3472 = vmul.f32 %v3470, %v805
        %v3473 = vmul.f32 %v3470, %v806
        %v3474 = vmul.f32 %v3470, %v807
        %v3475 = vadd.f32 %v3463, %v3471
        %v3476 = vadd.f32 %v3464, %v3472
        %v3477 = vadd.f32 %v3465, %v3473
        %v3478 = vadd.f32 %v3466, %v3474
        %v3479 = vlaneseq
        %v3480 = vshrl.u32 %v3479, 7
        %v3481 = vsub.s32 1, %v3480
        %v3482 = vrot.slane %v3273, %v3481
        %v3483 = vmul.f32 %v3482, %v821
        %v3484 = vmul.f32 %v3482, %v822
        %v3485 = vmul.f32 %v3482, %v823
        %v3486 = vmul.f32 %v3482, %v824
        %v3487 = vadd.f32 %v3475, %v3483
        %v3488 = vadd.f32 %v3476, %v3484
        %v3489 = vadd.f32 %v3477, %v3485
        %v3490 = vadd.f32 %v3478, %v3486
        %v3491 = vlaneseq
        %v3492 = vshrl.u32 %v3491, 7
        %v3493 = vsub.s32 2, %v3492
        %v3494 = vrot.slane %v3273, %v3493
        %v3495 = vmul.f32 %v3494, %v838
        %v3496 = vmul.f32 %v3494, %v839
        %v3497 = vmul.f32 %v3494, %v840
        %v3498 = vmul.f32 %v3494, %v841
        %v3499 = vadd.f32 %v3487, %v3495
        %v3500 = vadd.f32 %v3488, %v3496
        %v3501 = vadd.f32 %v3489, %v3497
        %v3502 = vadd.f32 %v3490, %v3498
        %v3503 = vlaneseq
        %v3504 = vshrl.u32 %v3503, 7
        %v3505 = vsub.s32 3, %v3504
        %v3506 = vrot.slane %v3273, %v3505
        %v3507 = vmul.f32 %v3506, %v855
        %v3508 = vmul.f32 %v3506, %v856
        %v3509 = vmul.f32 %v3506, %v857
        %v3510 = vmul.f32 %v3506, %v858
        %v3511 = vadd.f32 %v3499, %v3507
        %v3512 = vadd.f32 %v3500, %v3508
        %v3513 = vadd.f32 %v3501, %v3509
        %v3514 = vadd.f32 %v3502, %v3510
        %v3515 = vlaneseq
        %v3516 = vshrl.u32 %v3515, 7
        %v3517 = vsub.s32 4, %v3516
        %v3518 = vrot.slane %v3273, %v3517
        %v3519 = vmul.f32 %v3518, %v872
        %v3520 = vmul.f32 %v3518, %v873
        %v3521 = vmul.f32 %v3518, %v874
        %v3522 = vmul.f32 %v3518, %v875
        %v3523 = vadd.f32 %v3511, %v3519
        %v3524 = vadd.f32 %v3512, %v3520
        %v3525 = vadd.f32 %v3513, %v3521
        %v3526 = vadd.f32 %v3514, %v3522
        %v3527 = vlaneseq
        %v3528 = vshrl.u32 %v3527, 7
        %v3529 = vsub.s32 5, %v3528
        %v3530 = vrot.slane %v3273, %v3529
        %v3531 = vmul.f32 %v3530, %v889
        %v3532 = vmul.f32 %v3530, %v890
        %v3533 = vmul.f32 %v3530, %v891
        %v3534 = vmul.f32 %v3530, %v892
        %v3535 = vadd.f32 %v3523, %v3531
        %v3536 = vadd.f32 %v3524, %v3532
        %v3537 = vadd.f32 %v3525, %v3533
        %v3538 = vadd.f32 %v3526, %v3534
        %v3539 = vlaneseq
        %v3540 = vshrl.u32 %v3539, 7
        %v3541 = vsub.s32 6, %v3540
        %v3542 = vrot.slane %v3273, %v3541
        %v3543 = vmul.f32 %v3542, %v906
        %v3544 = vmul.f32 %v3542, %v907
        %v3545 = vmul.f32 %v3542, %v908
        %v3546 = vmul.f32 %v3542, %v909
        %v3547 = vadd.f32 %v3535, %v3543
        %v3548 = vadd.f32 %v3536, %v3544
        %v3549 = vadd.f32 %v3537, %v3545
        %v3550 = vadd.f32 %v3538, %v3546
        %v3551 = vlaneseq
        %v3552 = vshrl.u32 %v3551, 7
        %v3553 = vsub.s32 7, %v3552
        %v3554 = vrot.slane %v3273, %v3553
        %v3555 = vmul.f32 %v3554, %v923
        %v3556 = vmul.f32 %v3554, %v924
        %v3557 = vmul.f32 %v3554, %v925
        %v3558 = vmul.f32 %v3554, %v926
        %v3559 = vadd.f32 %v3547, %v3555
        %v3560 = vadd.f32 %v3548, %v3556
        %v3561 = vadd.f32 %v3549, %v3557
        %v3562 = vadd.f32 %v3550, %v3558
        %v3563 = vlaneseq
        %v3564 = vshrl.u32 %v3563, 7
        %v3565 = vsub.s32 0, %v3564
        %v3566 = vrot.slane %v3274, %v3565
        %v3567 = vmul.f32 %v3566, %v940
        %v3568 = vmul.f32 %v3566, %v941
        %v3569 = vmul.f32 %v3566, %v942
        %v3570 = vmul.f32 %v3566, %v943
        %v3571 = vadd.f32 %v3559, %v3567
        %v3572 = vadd.f32 %v3560, %v3568
        %v3573 = vadd.f32 %v3561, %v3569
        %v3574 = vadd.f32 %v3562, %v3570
        %v3575 = vlaneseq
        %v3576 = vshrl.u32 %v3575, 7
        %v3577 = vsub.s32 1, %v3576
        %v3578 = vrot.slane %v3274, %v3577
        %v3579 = vmul.f32 %v3578, %v957
        %v3580 = vmul.f32 %v3578, %v958
        %v3581 = vmul.f32 %v3578, %v959
        %v3582 = vmul.f32 %v3578, %v960
        %v3583 = vadd.f32 %v3571, %v3579
        %v3584 = vadd.f32 %v3572, %v3580
        %v3585 = vadd.f32 %v3573, %v3581
        %v3586 = vadd.f32 %v3574, %v3582
        %v3587 = vlaneseq
        %v3588 = vshrl.u32 %v3587, 7
        %v3589 = vsub.s32 2, %v3588
        %v3590 = vrot.slane %v3274, %v3589
        %v3591 = vmul.f32 %v3590, %v974
        %v3592 = vmul.f32 %v3590, %v975
        %v3593 = vmul.f32 %v3590, %v976
        %v3594 = vmul.f32 %v3590, %v977
        %v3595 = vadd.f32 %v3583, %v3591
        %v3596 = vadd.f32 %v3584, %v3592
        %v3597 = vadd.f32 %v3585, %v3593
        %v3598 = vadd.f32 %v3586, %v3594
        %v3599 = vlaneseq
        %v3600 = vshrl.u32 %v3599, 7
        %v3601 = vsub.s32 3, %v3600
        %v3602 = vrot.slane %v3274, %v3601
        %v3603 = vmul.f32 %v3602, %v991
        %v3604 = vmul.f32 %v3602, %v992
        %v3605 = vmul.f32 %v3602, %v993
        %v3606 = vmul.f32 %v3602, %v994
        %v3607 = vadd.f32 %v3595, %v3603
        %v3608 = vadd.f32 %v3596, %v3604
        %v3609 = vadd.f32 %v3597, %v3605
        %v3610 = vadd.f32 %v3598, %v3606
        %v3611 = vlaneseq
        %v3612 = vshrl.u32 %v3611, 7
        %v3613 = vsub.s32 4, %v3612
        %v3614 = vrot.slane %v3274, %v3613
        %v3615 = vmul.f32 %v3614, %v1008
        %v3616 = vmul.f32 %v3614, %v1009
        %v3617 = vmul.f32 %v3614, %v1010
        %v3618 = vmul.f32 %v3614, %v1011
        %v3619 = vadd.f32 %v3607, %v3615
        %v3620 = vadd.f32 %v3608, %v3616
        %v3621 = vadd.f32 %v3609, %v3617
        %v3622 = vadd.f32 %v3610, %v3618
        %v3623 = vlaneseq
        %v3624 = vshrl.u32 %v3623, 7
        %v3625 = vsub.s32 5, %v3624
        %v3626 = vrot.slane %v3274, %v3625
        %v3627 = vmul.f32 %v3626, %v1025
        %v3628 = vmul.f32 %v3626, %v1026
        %v3629 = vmul.f32 %v3626, %v1027
        %v3630 = vmul.f32 %v3626, %v1028
        %v3631 = vadd.f32 %v3619, %v3627
        %v3632 = vadd.f32 %v3620, %v3628
        %v3633 = vadd.f32 %v3621, %v3629
        %v3634 = vadd.f32 %v3622, %v3630
        %v3635 = vlaneseq
        %v3636 = vshrl.u32 %v3635, 7
        %v3637 = vsub.s32 6, %v3636
        %v3638 = vrot.slane %v3274, %v3637
        %v3639 = vmul.f32 %v3638, %v1042
        %v3640 = vmul.f32 %v3638, %v1043
        %v3641 = vmul.f32 %v3638, %v1044
        %v3642 = vmul.f32 %v3638, %v1045
        %v3643 = vadd.f32 %v3631, %v3639
        %v3644 = vadd.f32 %v3632, %v3640
        %v3645 = vadd.f32 %v3633, %v3641
        %v3646 = vadd.f32 %v3634, %v3642
        %v3647 = vlaneseq
        %v3648 = vshrl.u32 %v3647, 7
        %v3649 = vsub.s32 7, %v3648
        %v3650 = vrot.slane %v3274, %v3649
        %v3651 = vmul.f32 %v3650, %v1059
        %v3652 = vmul.f32 %v3650, %v1060
        %v3653 = vmul.f32 %v3650, %v1061
        %v3654 = vmul.f32 %v3650, %v1062
        %v3655 = vadd.f32 %v3643, %v3651
        %v3656 = vadd.f32 %v3644, %v3652
        %v3657 = vadd.f32 %v3645, %v3653
        %v3658 = vadd.f32 %v3646, %v3654
        %3659 = vset.pattern.permute.xlu0 6
        %3660 = vperm.xlu0 %3659, %v519
        %v3661 = vpop.permute.xlu0 %3660
        %3663 = vset.pattern.permute.xlu0 6
        %3664 = vperm.xlu0 %3663, %v520
        %v3665 = vpop.permute.xlu0 %3664
        %3667 = vset.pattern.permute.xlu0 6
        %3668 = vperm.xlu0 %3667, %v521
        %v3669 = vpop.permute.xlu0 %3668
        %3671 = vset.pattern.permute.xlu0 6
        %3672 = vperm.xlu0 %3671, %v522
        %v3673 = vpop.permute.xlu0 %3672
        %v3675 = vadd.f32 %v3655, %v3661
        %v3676 = vadd.f32 %v3656, %v3665
        %v3677 = vadd.f32 %v3657, %v3669
        %v3678 = vadd.f32 %v3658, %v3673
        %v3679 = vmax.f32 %v3675, 0.0
        %v3680 = vmax.f32 %v3676, 0.0
        %v3681 = vmax.f32 %v3677, 0.0
        %v3682 = vmax.f32 %v3678, 0.0
        %v3683 = vmul.f32 %v3679, %v515
        %v3684 = vmul.f32 %v3680, %v516
        %v3685 = vmul.f32 %v3681, %v517
        %v3686 = vmul.f32 %v3682, %v518
        %v3687 = vadd.f32 %v3683, %v3684
        %v3688 = vadd.f32 %v3687, %v3685
        %v3689 = vadd.f32 %v3688, %v3686
        %v3690 = vrot.slane %v3689, 4
        %v3691 = vadd.f32 %v3689, %v3690
        %v3692 = vrot.slane %v3691, 2
        %v3693 = vadd.f32 %v3691, %v3692
        %v3694 = vrot.slane %v3693, 1
        %v3695 = vadd.f32 %v3693, %v3694
        %s3696 = scalar_lea.vmem %s426, 224 [#allocation4]
        %v3697 = vld [vmem:[%s3696] sm:$0xff]
        %v3698 = vld [vmem:[%s3696 + $0x8] sm:$0xff]
        %v3699 = vld [vmem:[%s3696 + $0x10] sm:$0xff]
        %v3700 = vld [vmem:[%s3696 + $0x18] sm:$0xff]
        %v3701 = vmul.f32 %v511, %v3697
        %v3702 = vmul.f32 %v512, %v3698
        %v3703 = vmul.f32 %v513, %v3699
        %v3704 = vmul.f32 %v514, %v3700
        %v3705 = vlaneseq
        %v3706 = vshrl.u32 %v3705, 7
        %v3707 = vsub.s32 0, %v3706
        %v3708 = vrot.slane %v3701, %v3707
        %v3709 = vmul.f32 %v3708, %v532
        %v3710 = vmul.f32 %v3708, %v533
        %v3711 = vmul.f32 %v3708, %v534
        %v3712 = vmul.f32 %v3708, %v535
        %v3713 = vadd.f32 %v3709, 0.0
        %v3714 = vadd.f32 %v3710, 0.0
        %v3715 = vadd.f32 %v3711, 0.0
        %v3716 = vadd.f32 %v3712, 0.0
        %v3717 = vlaneseq
        %v3718 = vshrl.u32 %v3717, 7
        %v3719 = vsub.s32 1, %v3718
        %v3720 = vrot.slane %v3701, %v3719
        %v3721 = vmul.f32 %v3720, %v549
        %v3722 = vmul.f32 %v3720, %v550
        %v3723 = vmul.f32 %v3720, %v551
        %v3724 = vmul.f32 %v3720, %v552
        %v3725 = vadd.f32 %v3713, %v3721
        %v3726 = vadd.f32 %v3714, %v3722
        %v3727 = vadd.f32 %v3715, %v3723
        %v3728 = vadd.f32 %v3716, %v3724
        %v3729 = vlaneseq
        %v3730 = vshrl.u32 %v3729, 7
        %v3731 = vsub.s32 2, %v3730
        %v3732 = vrot.slane %v3701, %v3731
        %v3733 = vmul.f32 %v3732, %v566
        %v3734 = vmul.f32 %v3732, %v567
        %v3735 = vmul.f32 %v3732, %v568
        %v3736 = vmul.f32 %v3732, %v569
        %v3737 = vadd.f32 %v3725, %v3733
        %v3738 = vadd.f32 %v3726, %v3734
        %v3739 = vadd.f32 %v3727, %v3735
        %v3740 = vadd.f32 %v3728, %v3736
        %v3741 = vlaneseq
        %v3742 = vshrl.u32 %v3741, 7
        %v3743 = vsub.s32 3, %v3742
        %v3744 = vrot.slane %v3701, %v3743
        %v3745 = vmul.f32 %v3744, %v583
        %v3746 = vmul.f32 %v3744, %v584
        %v3747 = vmul.f32 %v3744, %v585
        %v3748 = vmul.f32 %v3744, %v586
        %v3749 = vadd.f32 %v3737, %v3745
        %v3750 = vadd.f32 %v3738, %v3746
        %v3751 = vadd.f32 %v3739, %v3747
        %v3752 = vadd.f32 %v3740, %v3748
        %v3753 = vlaneseq
        %v3754 = vshrl.u32 %v3753, 7
        %v3755 = vsub.s32 4, %v3754
        %v3756 = vrot.slane %v3701, %v3755
        %v3757 = vmul.f32 %v3756, %v600
        %v3758 = vmul.f32 %v3756, %v601
        %v3759 = vmul.f32 %v3756, %v602
        %v3760 = vmul.f32 %v3756, %v603
        %v3761 = vadd.f32 %v3749, %v3757
        %v3762 = vadd.f32 %v3750, %v3758
        %v3763 = vadd.f32 %v3751, %v3759
        %v3764 = vadd.f32 %v3752, %v3760
        %v3765 = vlaneseq
        %v3766 = vshrl.u32 %v3765, 7
        %v3767 = vsub.s32 5, %v3766
        %v3768 = vrot.slane %v3701, %v3767
        %v3769 = vmul.f32 %v3768, %v617
        %v3770 = vmul.f32 %v3768, %v618
        %v3771 = vmul.f32 %v3768, %v619
        %v3772 = vmul.f32 %v3768, %v620
        %v3773 = vadd.f32 %v3761, %v3769
        %v3774 = vadd.f32 %v3762, %v3770
        %v3775 = vadd.f32 %v3763, %v3771
        %v3776 = vadd.f32 %v3764, %v3772
        %v3777 = vlaneseq
        %v3778 = vshrl.u32 %v3777, 7
        %v3779 = vsub.s32 6, %v3778
        %v3780 = vrot.slane %v3701, %v3779
        %v3781 = vmul.f32 %v3780, %v634
        %v3782 = vmul.f32 %v3780, %v635
        %v3783 = vmul.f32 %v3780, %v636
        %v3784 = vmul.f32 %v3780, %v637
        %v3785 = vadd.f32 %v3773, %v3781
        %v3786 = vadd.f32 %v3774, %v3782
        %v3787 = vadd.f32 %v3775, %v3783
        %v3788 = vadd.f32 %v3776, %v3784
        %v3789 = vlaneseq
        %v3790 = vshrl.u32 %v3789, 7
        %v3791 = vsub.s32 7, %v3790
        %v3792 = vrot.slane %v3701, %v3791
        %v3793 = vmul.f32 %v3792, %v651
        %v3794 = vmul.f32 %v3792, %v652
        %v3795 = vmul.f32 %v3792, %v653
        %v3796 = vmul.f32 %v3792, %v654
        %v3797 = vadd.f32 %v3785, %v3793
        %v3798 = vadd.f32 %v3786, %v3794
        %v3799 = vadd.f32 %v3787, %v3795
        %v3800 = vadd.f32 %v3788, %v3796
        %v3801 = vlaneseq
        %v3802 = vshrl.u32 %v3801, 7
        %v3803 = vsub.s32 0, %v3802
        %v3804 = vrot.slane %v3702, %v3803
        %v3805 = vmul.f32 %v3804, %v668
        %v3806 = vmul.f32 %v3804, %v669
        %v3807 = vmul.f32 %v3804, %v670
        %v3808 = vmul.f32 %v3804, %v671
        %v3809 = vadd.f32 %v3797, %v3805
        %v3810 = vadd.f32 %v3798, %v3806
        %v3811 = vadd.f32 %v3799, %v3807
        %v3812 = vadd.f32 %v3800, %v3808
        %v3813 = vlaneseq
        %v3814 = vshrl.u32 %v3813, 7
        %v3815 = vsub.s32 1, %v3814
        %v3816 = vrot.slane %v3702, %v3815
        %v3817 = vmul.f32 %v3816, %v685
        %v3818 = vmul.f32 %v3816, %v686
        %v3819 = vmul.f32 %v3816, %v687
        %v3820 = vmul.f32 %v3816, %v688
        %v3821 = vadd.f32 %v3809, %v3817
        %v3822 = vadd.f32 %v3810, %v3818
        %v3823 = vadd.f32 %v3811, %v3819
        %v3824 = vadd.f32 %v3812, %v3820
        %v3825 = vlaneseq
        %v3826 = vshrl.u32 %v3825, 7
        %v3827 = vsub.s32 2, %v3826
        %v3828 = vrot.slane %v3702, %v3827
        %v3829 = vmul.f32 %v3828, %v702
        %v3830 = vmul.f32 %v3828, %v703
        %v3831 = vmul.f32 %v3828, %v704
        %v3832 = vmul.f32 %v3828, %v705
        %v3833 = vadd.f32 %v3821, %v3829
        %v3834 = vadd.f32 %v3822, %v3830
        %v3835 = vadd.f32 %v3823, %v3831
        %v3836 = vadd.f32 %v3824, %v3832
        %v3837 = vlaneseq
        %v3838 = vshrl.u32 %v3837, 7
        %v3839 = vsub.s32 3, %v3838
        %v3840 = vrot.slane %v3702, %v3839
        %v3841 = vmul.f32 %v3840, %v719
        %v3842 = vmul.f32 %v3840, %v720
        %v3843 = vmul.f32 %v3840, %v721
        %v3844 = vmul.f32 %v3840, %v722
        %v3845 = vadd.f32 %v3833, %v3841
        %v3846 = vadd.f32 %v3834, %v3842
        %v3847 = vadd.f32 %v3835, %v3843
        %v3848 = vadd.f32 %v3836, %v3844
        %v3849 = vlaneseq
        %v3850 = vshrl.u32 %v3849, 7
        %v3851 = vsub.s32 4, %v3850
        %v3852 = vrot.slane %v3702, %v3851
        %v3853 = vmul.f32 %v3852, %v736
        %v3854 = vmul.f32 %v3852, %v737
        %v3855 = vmul.f32 %v3852, %v738
        %v3856 = vmul.f32 %v3852, %v739
        %v3857 = vadd.f32 %v3845, %v3853
        %v3858 = vadd.f32 %v3846, %v3854
        %v3859 = vadd.f32 %v3847, %v3855
        %v3860 = vadd.f32 %v3848, %v3856
        %v3861 = vlaneseq
        %v3862 = vshrl.u32 %v3861, 7
        %v3863 = vsub.s32 5, %v3862
        %v3864 = vrot.slane %v3702, %v3863
        %v3865 = vmul.f32 %v3864, %v753
        %v3866 = vmul.f32 %v3864, %v754
        %v3867 = vmul.f32 %v3864, %v755
        %v3868 = vmul.f32 %v3864, %v756
        %v3869 = vadd.f32 %v3857, %v3865
        %v3870 = vadd.f32 %v3858, %v3866
        %v3871 = vadd.f32 %v3859, %v3867
        %v3872 = vadd.f32 %v3860, %v3868
        %v3873 = vlaneseq
        %v3874 = vshrl.u32 %v3873, 7
        %v3875 = vsub.s32 6, %v3874
        %v3876 = vrot.slane %v3702, %v3875
        %v3877 = vmul.f32 %v3876, %v770
        %v3878 = vmul.f32 %v3876, %v771
        %v3879 = vmul.f32 %v3876, %v772
        %v3880 = vmul.f32 %v3876, %v773
        %v3881 = vadd.f32 %v3869, %v3877
        %v3882 = vadd.f32 %v3870, %v3878
        %v3883 = vadd.f32 %v3871, %v3879
        %v3884 = vadd.f32 %v3872, %v3880
        %v3885 = vlaneseq
        %v3886 = vshrl.u32 %v3885, 7
        %v3887 = vsub.s32 7, %v3886
        %v3888 = vrot.slane %v3702, %v3887
        %v3889 = vmul.f32 %v3888, %v787
        %v3890 = vmul.f32 %v3888, %v788
        %v3891 = vmul.f32 %v3888, %v789
        %v3892 = vmul.f32 %v3888, %v790
        %v3893 = vadd.f32 %v3881, %v3889
        %v3894 = vadd.f32 %v3882, %v3890
        %v3895 = vadd.f32 %v3883, %v3891
        %v3896 = vadd.f32 %v3884, %v3892
        %v3897 = vlaneseq
        %v3898 = vshrl.u32 %v3897, 7
        %v3899 = vsub.s32 0, %v3898
        %v3900 = vrot.slane %v3703, %v3899
        %v3901 = vmul.f32 %v3900, %v804
        %v3902 = vmul.f32 %v3900, %v805
        %v3903 = vmul.f32 %v3900, %v806
        %v3904 = vmul.f32 %v3900, %v807
        %v3905 = vadd.f32 %v3893, %v3901
        %v3906 = vadd.f32 %v3894, %v3902
        %v3907 = vadd.f32 %v3895, %v3903
        %v3908 = vadd.f32 %v3896, %v3904
        %v3909 = vlaneseq
        %v3910 = vshrl.u32 %v3909, 7
        %v3911 = vsub.s32 1, %v3910
        %v3912 = vrot.slane %v3703, %v3911
        %v3913 = vmul.f32 %v3912, %v821
        %v3914 = vmul.f32 %v3912, %v822
        %v3915 = vmul.f32 %v3912, %v823
        %v3916 = vmul.f32 %v3912, %v824
        %v3917 = vadd.f32 %v3905, %v3913
        %v3918 = vadd.f32 %v3906, %v3914
        %v3919 = vadd.f32 %v3907, %v3915
        %v3920 = vadd.f32 %v3908, %v3916
        %v3921 = vlaneseq
        %v3922 = vshrl.u32 %v3921, 7
        %v3923 = vsub.s32 2, %v3922
        %v3924 = vrot.slane %v3703, %v3923
        %v3925 = vmul.f32 %v3924, %v838
        %v3926 = vmul.f32 %v3924, %v839
        %v3927 = vmul.f32 %v3924, %v840
        %v3928 = vmul.f32 %v3924, %v841
        %v3929 = vadd.f32 %v3917, %v3925
        %v3930 = vadd.f32 %v3918, %v3926
        %v3931 = vadd.f32 %v3919, %v3927
        %v3932 = vadd.f32 %v3920, %v3928
        %v3933 = vlaneseq
        %v3934 = vshrl.u32 %v3933, 7
        %v3935 = vsub.s32 3, %v3934
        %v3936 = vrot.slane %v3703, %v3935
        %v3937 = vmul.f32 %v3936, %v855
        %v3938 = vmul.f32 %v3936, %v856
        %v3939 = vmul.f32 %v3936, %v857
        %v3940 = vmul.f32 %v3936, %v858
        %v3941 = vadd.f32 %v3929, %v3937
        %v3942 = vadd.f32 %v3930, %v3938
        %v3943 = vadd.f32 %v3931, %v3939
        %v3944 = vadd.f32 %v3932, %v3940
        %v3945 = vlaneseq
        %v3946 = vshrl.u32 %v3945, 7
        %v3947 = vsub.s32 4, %v3946
        %v3948 = vrot.slane %v3703, %v3947
        %v3949 = vmul.f32 %v3948, %v872
        %v3950 = vmul.f32 %v3948, %v873
        %v3951 = vmul.f32 %v3948, %v874
        %v3952 = vmul.f32 %v3948, %v875
        %v3953 = vadd.f32 %v3941, %v3949
        %v3954 = vadd.f32 %v3942, %v3950
        %v3955 = vadd.f32 %v3943, %v3951
        %v3956 = vadd.f32 %v3944, %v3952
        %v3957 = vlaneseq
        %v3958 = vshrl.u32 %v3957, 7
        %v3959 = vsub.s32 5, %v3958
        %v3960 = vrot.slane %v3703, %v3959
        %v3961 = vmul.f32 %v3960, %v889
        %v3962 = vmul.f32 %v3960, %v890
        %v3963 = vmul.f32 %v3960, %v891
        %v3964 = vmul.f32 %v3960, %v892
        %v3965 = vadd.f32 %v3953, %v3961
        %v3966 = vadd.f32 %v3954, %v3962
        %v3967 = vadd.f32 %v3955, %v3963
        %v3968 = vadd.f32 %v3956, %v3964
        %v3969 = vlaneseq
        %v3970 = vshrl.u32 %v3969, 7
        %v3971 = vsub.s32 6, %v3970
        %v3972 = vrot.slane %v3703, %v3971
        %v3973 = vmul.f32 %v3972, %v906
        %v3974 = vmul.f32 %v3972, %v907
        %v3975 = vmul.f32 %v3972, %v908
        %v3976 = vmul.f32 %v3972, %v909
        %v3977 = vadd.f32 %v3965, %v3973
        %v3978 = vadd.f32 %v3966, %v3974
        %v3979 = vadd.f32 %v3967, %v3975
        %v3980 = vadd.f32 %v3968, %v3976
        %v3981 = vlaneseq
        %v3982 = vshrl.u32 %v3981, 7
        %v3983 = vsub.s32 7, %v3982
        %v3984 = vrot.slane %v3703, %v3983
        %v3985 = vmul.f32 %v3984, %v923
        %v3986 = vmul.f32 %v3984, %v924
        %v3987 = vmul.f32 %v3984, %v925
        %v3988 = vmul.f32 %v3984, %v926
        %v3989 = vadd.f32 %v3977, %v3985
        %v3990 = vadd.f32 %v3978, %v3986
        %v3991 = vadd.f32 %v3979, %v3987
        %v3992 = vadd.f32 %v3980, %v3988
        %v3993 = vlaneseq
        %v3994 = vshrl.u32 %v3993, 7
        %v3995 = vsub.s32 0, %v3994
        %v3996 = vrot.slane %v3704, %v3995
        %v3997 = vmul.f32 %v3996, %v940
        %v3998 = vmul.f32 %v3996, %v941
        %v3999 = vmul.f32 %v3996, %v942
        %v4000 = vmul.f32 %v3996, %v943
        %v4001 = vadd.f32 %v3989, %v3997
        %v4002 = vadd.f32 %v3990, %v3998
        %v4003 = vadd.f32 %v3991, %v3999
        %v4004 = vadd.f32 %v3992, %v4000
        %v4005 = vlaneseq
        %v4006 = vshrl.u32 %v4005, 7
        %v4007 = vsub.s32 1, %v4006
        %v4008 = vrot.slane %v3704, %v4007
        %v4009 = vmul.f32 %v4008, %v957
        %v4010 = vmul.f32 %v4008, %v958
        %v4011 = vmul.f32 %v4008, %v959
        %v4012 = vmul.f32 %v4008, %v960
        %v4013 = vadd.f32 %v4001, %v4009
        %v4014 = vadd.f32 %v4002, %v4010
        %v4015 = vadd.f32 %v4003, %v4011
        %v4016 = vadd.f32 %v4004, %v4012
        %v4017 = vlaneseq
        %v4018 = vshrl.u32 %v4017, 7
        %v4019 = vsub.s32 2, %v4018
        %v4020 = vrot.slane %v3704, %v4019
        %v4021 = vmul.f32 %v4020, %v974
        %v4022 = vmul.f32 %v4020, %v975
        %v4023 = vmul.f32 %v4020, %v976
        %v4024 = vmul.f32 %v4020, %v977
        %v4025 = vadd.f32 %v4013, %v4021
        %v4026 = vadd.f32 %v4014, %v4022
        %v4027 = vadd.f32 %v4015, %v4023
        %v4028 = vadd.f32 %v4016, %v4024
        %v4029 = vlaneseq
        %v4030 = vshrl.u32 %v4029, 7
        %v4031 = vsub.s32 3, %v4030
        %v4032 = vrot.slane %v3704, %v4031
        %v4033 = vmul.f32 %v4032, %v991
        %v4034 = vmul.f32 %v4032, %v992
        %v4035 = vmul.f32 %v4032, %v993
        %v4036 = vmul.f32 %v4032, %v994
        %v4037 = vadd.f32 %v4025, %v4033
        %v4038 = vadd.f32 %v4026, %v4034
        %v4039 = vadd.f32 %v4027, %v4035
        %v4040 = vadd.f32 %v4028, %v4036
        %v4041 = vlaneseq
        %v4042 = vshrl.u32 %v4041, 7
        %v4043 = vsub.s32 4, %v4042
        %v4044 = vrot.slane %v3704, %v4043
        %v4045 = vmul.f32 %v4044, %v1008
        %v4046 = vmul.f32 %v4044, %v1009
        %v4047 = vmul.f32 %v4044, %v1010
        %v4048 = vmul.f32 %v4044, %v1011
        %v4049 = vadd.f32 %v4037, %v4045
        %v4050 = vadd.f32 %v4038, %v4046
        %v4051 = vadd.f32 %v4039, %v4047
        %v4052 = vadd.f32 %v4040, %v4048
        %v4053 = vlaneseq
        %v4054 = vshrl.u32 %v4053, 7
        %v4055 = vsub.s32 5, %v4054
        %v4056 = vrot.slane %v3704, %v4055
        %v4057 = vmul.f32 %v4056, %v1025
        %v4058 = vmul.f32 %v4056, %v1026
        %v4059 = vmul.f32 %v4056, %v1027
        %v4060 = vmul.f32 %v4056, %v1028
        %v4061 = vadd.f32 %v4049, %v4057
        %v4062 = vadd.f32 %v4050, %v4058
        %v4063 = vadd.f32 %v4051, %v4059
        %v4064 = vadd.f32 %v4052, %v4060
        %v4065 = vlaneseq
        %v4066 = vshrl.u32 %v4065, 7
        %v4067 = vsub.s32 6, %v4066
        %v4068 = vrot.slane %v3704, %v4067
        %v4069 = vmul.f32 %v4068, %v1042
        %v4070 = vmul.f32 %v4068, %v1043
        %v4071 = vmul.f32 %v4068, %v1044
        %v4072 = vmul.f32 %v4068, %v1045
        %v4073 = vadd.f32 %v4061, %v4069
        %v4074 = vadd.f32 %v4062, %v4070
        %v4075 = vadd.f32 %v4063, %v4071
        %v4076 = vadd.f32 %v4064, %v4072
        %v4077 = vlaneseq
        %v4078 = vshrl.u32 %v4077, 7
        %v4079 = vsub.s32 7, %v4078
        %v4080 = vrot.slane %v3704, %v4079
        %v4081 = vmul.f32 %v4080, %v1059
        %v4082 = vmul.f32 %v4080, %v1060
        %v4083 = vmul.f32 %v4080, %v1061
        %v4084 = vmul.f32 %v4080, %v1062
        %v4085 = vadd.f32 %v4073, %v4081
        %v4086 = vadd.f32 %v4074, %v4082
        %v4087 = vadd.f32 %v4075, %v4083
        %v4088 = vadd.f32 %v4076, %v4084
        %4089 = vset.pattern.permute.xlu0 7
        %4090 = vperm.xlu0 %4089, %v519
        %v4091 = vpop.permute.xlu0 %4090
        %4093 = vset.pattern.permute.xlu0 7
        %4094 = vperm.xlu0 %4093, %v520
        %v4095 = vpop.permute.xlu0 %4094
        %4097 = vset.pattern.permute.xlu0 7
        %4098 = vperm.xlu0 %4097, %v521
        %v4099 = vpop.permute.xlu0 %4098
        %4101 = vset.pattern.permute.xlu0 7
        %4102 = vperm.xlu0 %4101, %v522
        %v4103 = vpop.permute.xlu0 %4102
        %v4105 = vadd.f32 %v4085, %v4091
        %v4106 = vadd.f32 %v4086, %v4095
        %v4107 = vadd.f32 %v4087, %v4099
        %v4108 = vadd.f32 %v4088, %v4103
        %v4109 = vmax.f32 %v4105, 0.0
        %v4110 = vmax.f32 %v4106, 0.0
        %v4111 = vmax.f32 %v4107, 0.0
        %v4112 = vmax.f32 %v4108, 0.0
        %v4113 = vmul.f32 %v4109, %v515
        %v4114 = vmul.f32 %v4110, %v516
        %v4115 = vmul.f32 %v4111, %v517
        %v4116 = vmul.f32 %v4112, %v518
        %v4117 = vadd.f32 %v4113, %v4114
        %v4118 = vadd.f32 %v4117, %v4115
        %v4119 = vadd.f32 %v4118, %v4116
        %v4120 = vrot.slane %v4119, 4
        %v4121 = vadd.f32 %v4119, %v4120
        %v4122 = vrot.slane %v4121, 2
        %v4123 = vadd.f32 %v4121, %v4122
        %v4124 = vrot.slane %v4123, 1
        %v4125 = vadd.f32 %v4123, %v4124
        %vm4126 = vcmask 1040384
        %v4127 = vsel %vm4126, %v1115, %v1545
        %vm4128 = vcmask 1041408
        %v4129 = vsel %vm4128, %v4127, %v1975
        %vm4130 = vcmask 1042432
        %v4131 = vsel %vm4130, %v4129, %v2405
        %vm4132 = vcmask 1043456
        %v4133 = vsel %vm4132, %v4131, %v2835
        %vm4134 = vcmask 1044480
        %v4135 = vsel %vm4134, %v4133, %v3265
        %vm4136 = vcmask 1045504
        %v4137 = vsel %vm4136, %v4135, %v3695
        %vm4138 = vcmask 1046528
        %v4139 = vsel %vm4138, %v4137, %v4125
        %4141 = vset.pattern.permute.xlu0 0
        %4142 = vperm.xlu0 %4141, %v523
        %v4143 = vpop.permute.xlu0 %4142
        %v4145 = vadd.f32 %v4139, %v4143
        %v4146 = vrot.slane %v4145, 4
        %v4147 = vmax.f32 %v4145, %v4146
        %v4148 = vrot.slane %v4147, 2
        %v4149 = vmax.f32 %v4147, %v4148
        %v4150 = vrot.slane %v4149, 1
        %v4151 = vmax.f32 %v4149, %v4150
        %v4152 = vsub.f32 %v4145, %v4151
        %v4153 = vmul.f32 %v4152, 1.442695
        %v4154 = vpow.pop %v4153
        %v4155 = vrot.slane %v4154, 4
        %v4156 = vadd.f32 %v4154, %v4155
        %v4157 = vrot.slane %v4156, 2
        %v4158 = vadd.f32 %v4156, %v4157
        %v4159 = vrot.slane %v4158, 1
        %v4160 = vadd.f32 %v4158, %v4159
        %v4161 = vrcp.pop %v4160
        %v4162 = vmul.f32 %v4154, %v4161
        %v4163 = vld [vmem:[%s435] sm:$0xff]
        %v4164 = vld [vmem:[%s435 + $0x8] sm:$0xff]
        %v4165 = vld [vmem:[%s435 + $0x10] sm:$0xff]
        %v4166 = vld [vmem:[%s435 + $0x18] sm:$0xff]
        %v4167 = vlaneseq
        %v4168 = vshrl.u32 %v4167, 7
        %v4169 = vsub.s32 0, %v4168
        %v4170 = vrot.slane %v4162, %v4169
        %v4171 = vmul.f32 %v4170, %v4163
        %v4172 = vmul.f32 %v4170, %v4164
        %v4173 = vmul.f32 %v4170, %v4165
        %v4174 = vmul.f32 %v4170, %v4166
        %v4175 = vadd.f32 %v4171, 0.0
        %v4176 = vadd.f32 %v4172, 0.0
        %v4177 = vadd.f32 %v4173, 0.0
        %v4178 = vadd.f32 %v4174, 0.0
        %s4179 = scalar_lea.vmem %s435, 32 [#allocation6]
        %v4180 = vld [vmem:[%s4179] sm:$0xff]
        %v4181 = vld [vmem:[%s4179 + $0x8] sm:$0xff]
        %v4182 = vld [vmem:[%s4179 + $0x10] sm:$0xff]
        %v4183 = vld [vmem:[%s4179 + $0x18] sm:$0xff]
        %v4184 = vlaneseq
        %v4185 = vshrl.u32 %v4184, 7
        %v4186 = vsub.s32 1, %v4185
        %v4187 = vrot.slane %v4162, %v4186
        %v4188 = vmul.f32 %v4187, %v4180
        %v4189 = vmul.f32 %v4187, %v4181
        %v4190 = vmul.f32 %v4187, %v4182
        %v4191 = vmul.f32 %v4187, %v4183
        %v4192 = vadd.f32 %v4175, %v4188
        %v4193 = vadd.f32 %v4176, %v4189
        %v4194 = vadd.f32 %v4177, %v4190
        %v4195 = vadd.f32 %v4178, %v4191
        %s4196 = scalar_lea.vmem %s435, 64 [#allocation6]
        %v4197 = vld [vmem:[%s4196] sm:$0xff]
        %v4198 = vld [vmem:[%s4196 + $0x8] sm:$0xff]
        %v4199 = vld [vmem:[%s4196 + $0x10] sm:$0xff]
        %v4200 = vld [vmem:[%s4196 + $0x18] sm:$0xff]
        %v4201 = vlaneseq
        %v4202 = vshrl.u32 %v4201, 7
        %v4203 = vsub.s32 2, %v4202
        %v4204 = vrot.slane %v4162, %v4203
        %v4205 = vmul.f32 %v4204, %v4197
        %v4206 = vmul.f32 %v4204, %v4198
        %v4207 = vmul.f32 %v4204, %v4199
        %v4208 = vmul.f32 %v4204, %v4200
        %v4209 = vadd.f32 %v4192, %v4205
        %v4210 = vadd.f32 %v4193, %v4206
        %v4211 = vadd.f32 %v4194, %v4207
        %v4212 = vadd.f32 %v4195, %v4208
        %s4213 = scalar_lea.vmem %s435, 96 [#allocation6]
        %v4214 = vld [vmem:[%s4213] sm:$0xff]
        %v4215 = vld [vmem:[%s4213 + $0x8] sm:$0xff]
        %v4216 = vld [vmem:[%s4213 + $0x10] sm:$0xff]
        %v4217 = vld [vmem:[%s4213 + $0x18] sm:$0xff]
        %v4218 = vlaneseq
        %v4219 = vshrl.u32 %v4218, 7
        %v4220 = vsub.s32 3, %v4219
        %v4221 = vrot.slane %v4162, %v4220
        %v4222 = vmul.f32 %v4221, %v4214
        %v4223 = vmul.f32 %v4221, %v4215
        %v4224 = vmul.f32 %v4221, %v4216
        %v4225 = vmul.f32 %v4221, %v4217
        %v4226 = vadd.f32 %v4209, %v4222
        %v4227 = vadd.f32 %v4210, %v4223
        %v4228 = vadd.f32 %v4211, %v4224
        %v4229 = vadd.f32 %v4212, %v4225
        %s4230 = scalar_lea.vmem %s435, 128 [#allocation6]
        %v4231 = vld [vmem:[%s4230] sm:$0xff]
        %v4232 = vld [vmem:[%s4230 + $0x8] sm:$0xff]
        %v4233 = vld [vmem:[%s4230 + $0x10] sm:$0xff]
        %v4234 = vld [vmem:[%s4230 + $0x18] sm:$0xff]
        %v4235 = vlaneseq
        %v4236 = vshrl.u32 %v4235, 7
        %v4237 = vsub.s32 4, %v4236
        %v4238 = vrot.slane %v4162, %v4237
        %v4239 = vmul.f32 %v4238, %v4231
        %v4240 = vmul.f32 %v4238, %v4232
        %v4241 = vmul.f32 %v4238, %v4233
        %v4242 = vmul.f32 %v4238, %v4234
        %v4243 = vadd.f32 %v4226, %v4239
        %v4244 = vadd.f32 %v4227, %v4240
        %v4245 = vadd.f32 %v4228, %v4241
        %v4246 = vadd.f32 %v4229, %v4242
        %s4247 = scalar_lea.vmem %s435, 160 [#allocation6]
        %v4248 = vld [vmem:[%s4247] sm:$0xff]
        %v4249 = vld [vmem:[%s4247 + $0x8] sm:$0xff]
        %v4250 = vld [vmem:[%s4247 + $0x10] sm:$0xff]
        %v4251 = vld [vmem:[%s4247 + $0x18] sm:$0xff]
        %v4252 = vlaneseq
        %v4253 = vshrl.u32 %v4252, 7
        %v4254 = vsub.s32 5, %v4253
        %v4255 = vrot.slane %v4162, %v4254
        %v4256 = vmul.f32 %v4255, %v4248
        %v4257 = vmul.f32 %v4255, %v4249
        %v4258 = vmul.f32 %v4255, %v4250
        %v4259 = vmul.f32 %v4255, %v4251
        %v4260 = vadd.f32 %v4243, %v4256
        %v4261 = vadd.f32 %v4244, %v4257
        %v4262 = vadd.f32 %v4245, %v4258
        %v4263 = vadd.f32 %v4246, %v4259
        %s4264 = scalar_lea.vmem %s435, 192 [#allocation6]
        %v4265 = vld [vmem:[%s4264] sm:$0xff]
        %v4266 = vld [vmem:[%s4264 + $0x8] sm:$0xff]
        %v4267 = vld [vmem:[%s4264 + $0x10] sm:$0xff]
        %v4268 = vld [vmem:[%s4264 + $0x18] sm:$0xff]
        %v4269 = vlaneseq
        %v4270 = vshrl.u32 %v4269, 7
        %v4271 = vsub.s32 6, %v4270
        %v4272 = vrot.slane %v4162, %v4271
        %v4273 = vmul.f32 %v4272, %v4265
        %v4274 = vmul.f32 %v4272, %v4266
        %v4275 = vmul.f32 %v4272, %v4267
        %v4276 = vmul.f32 %v4272, %v4268
        %v4277 = vadd.f32 %v4260, %v4273
        %v4278 = vadd.f32 %v4261, %v4274
        %v4279 = vadd.f32 %v4262, %v4275
        %v4280 = vadd.f32 %v4263, %v4276
        %s4281 = scalar_lea.vmem %s435, 224 [#allocation6]
        %v4282 = vld [vmem:[%s4281] sm:$0xff]
        %v4283 = vld [vmem:[%s4281 + $0x8] sm:$0xff]
        %v4284 = vld [vmem:[%s4281 + $0x10] sm:$0xff]
        %v4285 = vld [vmem:[%s4281 + $0x18] sm:$0xff]
        %v4286 = vlaneseq
        %v4287 = vshrl.u32 %v4286, 7
        %v4288 = vsub.s32 7, %v4287
        %v4289 = vrot.slane %v4162, %v4288
        %v4290 = vmul.f32 %v4289, %v4282
        %v4291 = vmul.f32 %v4289, %v4283
        %v4292 = vmul.f32 %v4289, %v4284
        %v4293 = vmul.f32 %v4289, %v4285
        %v4294 = vadd.f32 %v4277, %v4290
        %v4295 = vadd.f32 %v4278, %v4291
        %v4296 = vadd.f32 %v4279, %v4292
        %v4297 = vadd.f32 %v4280, %v4293
        %v4298 = vld [vmem:[#allocation10] sm:$0xff]
        %v4299 = vld [vmem:[#allocation10 + $0x8] sm:$0xff]
        %v4300 = vld [vmem:[#allocation10 + $0x10] sm:$0xff]
        %v4301 = vld [vmem:[#allocation10 + $0x18] sm:$0xff]
        %v4302 = vld [vmem:[%s8] sm:$0xff]
        %v4303 = vld [vmem:[%s8 + $0x8] sm:$0xff]
        %v4304 = vld [vmem:[%s8 + $0x10] sm:$0xff]
        %v4305 = vld [vmem:[%s8 + $0x18] sm:$0xff]
        %4307 = vset.pattern.permute.xlu0 0
        %4308 = vperm.xlu0 %4307, %v4302
        %v4309 = vpop.permute.xlu0 %4308
        %4312 = vset.pattern.permute.xlu0 0
        %4313 = vperm.xlu0 %4312, %v4303
        %v4314 = vpop.permute.xlu0 %4313
        %4317 = vset.pattern.permute.xlu0 0
        %4318 = vperm.xlu0 %4317, %v4304
        %v4319 = vpop.permute.xlu0 %4318
        %4322 = vset.pattern.permute.xlu0 0
        %4323 = vperm.xlu0 %4322, %v4305
        %v4324 = vpop.permute.xlu0 %4323
        %vm4326 = vcmask 523264
        %v4328 = vsel %vm4326, %v4298, 0
        %v4331 = vsel %vm4326, %v4299, 0
        %v4334 = vsel %vm4326, %v4300, 0
        %v4337 = vsel %vm4326, %v4301, 0
        %4339 = vmatprep.subr.mxu0 0.0
        %4340 = vmatpush1.msra.mxu0 %v4294
        %4341 = vmatprep.subr.mxu0 0.0
        %4342 = vmatpush1.msra.mxu0 %v4295
        %4343 = vmatprep.subr.mxu0 0.0
        %4344 = vmatpush1.msra.mxu0 %v4296
        %4345 = vmatprep.subr.mxu0 0.0
        %4346 = vmatpush1.msra.mxu0 %v4297
        %4347 = vmatprep.subr.mxu0 0.0
        %4348 = vmatpush1.msra.mxu0 %v511
        %4349 = vmatprep.subr.mxu0 0.0
        %4350 = vmatpush1.msra.mxu0 %v512
        %4351 = vmatprep.subr.mxu0 0.0
        %4352 = vmatpush1.msra.mxu0 %v513
        %4353 = vmatprep.subr.mxu0 0.0
        %4354 = vmatpush1.msra.mxu0 %v514
        %4355 = vmatprep.subr.mxu0 0.0
        %4356 = vmatpush1.msra.mxu0 0.0
        %4357 = vmatprep.subr.mxu0 0.0
        %4358 = vmatpush1.msra.mxu0 0.0
        %4359 = vmatprep.subr.mxu0 0.0
        %4360 = vmatpush1.msra.mxu0 0.0
        %4361 = vmatprep.subr.mxu0 0.0
        %4362 = vmatpush1.msra.mxu0 0.0
        %4363 = vmatprep.subr.mxu0 0.0
        %4364 = vmatpush1.msra.mxu0 0.0
        %4365 = vmatprep.subr.mxu0 0.0
        %4366 = vmatpush1.msra.mxu0 0.0
        %4367 = vmatprep.subr.mxu0 0.0
        %4368 = vmatpush1.msra.mxu0 0.0
        %4369 = vmatprep.subr.mxu0 0.0
        %4370 = vmatpush1.msra.mxu0 0.0
        %4371 = vmatprep.subr.mxu0 0.0
        %4372 = vmatpush1.msra.mxu0 0.0
        %4373 = vmatprep.subr.mxu0 0.0
        %4374 = vmatpush1.msra.mxu0 0.0
        %4375 = vmatprep.subr.mxu0 0.0
        %4376 = vmatpush1.msra.mxu0 0.0
        %4377 = vmatprep.subr.mxu0 0.0
        %4378 = vmatpush1.msra.mxu0 0.0
        %4379 = vmatprep.subr.mxu0 0.0
        %4380 = vmatpush1.msra.mxu0 0.0
        %4381 = vmatprep.subr.mxu0 0.0
        %4382 = vmatpush1.msra.mxu0 0.0
        %4383 = vmatprep.subr.mxu0 0.0
        %4384 = vmatpush1.msra.mxu0 0.0
        %4385 = vmatprep.subr.mxu0 0.0
        %4386 = vmatpush1.msra.mxu0 0.0
        %4387 = vmatprep.subr.mxu0 0.0
        %4388 = vmatpush1.msra.mxu0 0.0
        %4389 = vmatprep.subr.mxu0 0.0
        %4390 = vmatpush1.msra.mxu0 0.0
        %4391 = vmatprep.subr.mxu0 0.0
        %4392 = vmatpush1.msra.mxu0 0.0
        %4393 = vmatprep.subr.mxu0 0.0
        %4394 = vmatpush1.msra.mxu0 0.0
        %4395 = vmatprep.subr.mxu0 0.0
        %4396 = vmatpush1.msra.mxu0 0.0
        %4397 = vmatprep.subr.mxu0 0.0
        %4398 = vmatpush1.msra.mxu0 0.0
        %4399 = vmatprep.subr.mxu0 0.0
        %4400 = vmatpush1.msra.mxu0 0.0
        %4401 = vmatprep.subr.mxu0 0.0
        %4402 = vmatpush1.msra.mxu0 0.0
        %4403 = vmatprep.mubr.f32.mxu0 0.0
        %4404 = vmatmul.mubr.f32.gmra.mrb[0].mxu0 %v4328
        %v4405 = vpop.f32.mrb[0].mxu0
        %v4406 = vadd.f32 %v4309, %v4405
        %v4407 = vpop.f32.mrb[0].mxu0
        %4408 = vmatprep.mubr.f32.mxu0 0.0
        %4409 = vmatmul.mubr.f32.gmra.mrb[0].mxu0 %v4331
        %v4410 = vpop.f32.mrb[0].mxu0
        %v4411 = vadd.f32 %v4314, %v4410
        %v4412 = vpop.f32.mrb[0].mxu0
        %4413 = vmatprep.mubr.f32.mxu0 0.0
        %4414 = vmatmul.mubr.f32.gmra.mrb[0].mxu0 %v4334
        %v4415 = vpop.f32.mrb[0].mxu0
        %v4416 = vadd.f32 %v4319, %v4415
        %v4417 = vpop.f32.mrb[0].mxu0
        %4418 = vmatprep.mubr.f32.mxu0 0.0
        %4419 = vmatmul.mubr.f32.gmra.mrb[0].mxu0 %v4337
        %v4420 = vpop.f32.mrb[0].mxu0
        %v4421 = vadd.f32 %v4324, %v4420
        %v4422 = vpop.f32.mrb[0].mxu0
        %4423 = vdwg.mxu0
        %v4424 = vmax.f32 %v4406, 0.0
        %v4425 = vmax.f32 %v4411, 0.0
        %v4426 = vmax.f32 %v4416, 0.0
        %v4427 = vmax.f32 %v4421, 0.0
        %4428 = vst [vmem:[%s510] sm:$0xff] %v4424
        %4429 = vst [vmem:[%s510 + $0x8] sm:$0xff] %v4425
        %4430 = vst [vmem:[%s510 + $0x10] sm:$0xff] %v4426
        %4431 = vst [vmem:[%s510 + $0x18] sm:$0xff] %v4427
        %s4432 = sand.u32 %s252, 1
        %s4433 = sand.u32 %s252, 1
        %s4434 = smul.addr %s4433, 32
        %s4435 = scalar_lea.vmem [#allocation12], %s4434
        // Predicated region
        $region81: #{gnn3_forward.1} parent=55 // pred_check
          %p4436 = pneg %p262
        $region82: #{gnn3_forward.1} parent=55 // pred_check_branch
          %4438 = sbr.rel (%p4436) target = $region84
        $region83: #{gnn3_forward.1} parent=55 // pred_region
          %s4439 = smul.addr %s30, 8
          %s4440 = scalar_lea.vmem %s9, %s4439
          // Predicated region
          $region85: #{gnn3_forward.1} parent=83 // pred_check
            _
          $region86: #{gnn3_forward.1} parent=83 // pred_check_branch
            %4442 = sbr.rel (0) target = $region88
          $region87: #{gnn3_forward.1} parent=83 // pred_region
            // Predicated region
            $region89: #{gnn3_forward.1} parent=87 // pred_check
              _
            $region90: #{gnn3_forward.1} parent=87 // pred_check_branch
              %4444 = sbr.rel (0) target = $region92
            $region91: #{gnn3_forward.1} parent=87 // pred_region
              // Predicated region
              $region104: #{gnn3_forward.1} parent=91 // pred_check
                _
              $region105: #{gnn3_forward.1} parent=91 // pred_check_branch
                %4465 = sbr.rel (0) target = $region107
              $region106: #{gnn3_forward.1} parent=91 // pred_region
                loop: start=0, step=1, limit=1
                $region108: #{gnn3_forward.1} parent=106 // loop_pre_header
                  _
                $region109: #{gnn3_forward.1} parent=106 // loop_header
                  %s4467 = sphi 0, %s4471
                  %p4468 = scmp.ge.s32.totalorder %s4467, 1
                  %s4472 = sphi %s4435, %s4435
                  %s4473 = sphi %s4440, %s4440
                $region110: #{gnn3_forward.1} parent=106 // loop_header_branch
                  %4470 = sbr.rel (%p4468) target = $region114
                $region111: #{gnn3_forward.1} parent=106 // loop_body
                  %v4474 = vld [vmem:[%s4472] sm:$0xff]
                  %4475 = vst [vmem:[%s4473] sm:$0xff] %v4474
                  %v4476 = vld [vmem:[%s4472 + $0x8] sm:$0xff]
                  %4477 = vst [vmem:[%s4473 + $0x28] sm:$0xff] %v4476
                  %v4478 = vld [vmem:[%s4472 + $0x10] sm:$0xff]
                  %4479 = vst [vmem:[%s4473 + $0x50] sm:$0xff] %v4478
                  %v4480 = vld [vmem:[%s4472 + $0x18] sm:$0xff]
                  %4481 = vst [vmem:[%s4473 + $0x78] sm:$0xff] %v4480
                $region112: #{gnn3_forward.1} parent=106 // loop_footer
                  %s4471 = sadd.s32 1, %s4467
                $region113: #{gnn3_forward.1} parent=106 // loop_footer_branch
                  %4466 = sbr.rel target = $region109
                $region114: #{gnn3_forward.1} parent=106 // loop_exit
                  _
              $region107: #{gnn3_forward.1} parent=91 // pred_fallthru
                _
              // Predicated region
              $region115: #{gnn3_forward.1} parent=91 // pred_check
                _
              $region116: #{gnn3_forward.1} parent=91 // pred_check_branch
                %4483 = sbr.rel target = $region118
              $region117: #{gnn3_forward.1} parent=91 // pred_region
                _
              $region118: #{gnn3_forward.1} parent=91 // pred_fallthru
                _
            $region92: #{gnn3_forward.1} parent=87 // pred_fallthru
              _
            // Predicated region
            $region93: #{gnn3_forward.1} parent=87 // pred_check
              _
            $region94: #{gnn3_forward.1} parent=87 // pred_check_branch
              %4446 = sbr.rel target = $region96
            $region95: #{gnn3_forward.1} parent=87 // pred_region
              loop: start=0, step=1, limit=1
              $region97: #{gnn3_forward.1} parent=95 // loop_pre_header
                _
              $region98: #{gnn3_forward.1} parent=95 // loop_header
                %s4449 = sphi 0, %s4453
                %p4450 = scmp.ge.s32.totalorder %s4449, 1
                %s4454 = sphi %s4435, %s4435
                %s4455 = sphi %s4440, %s4440
              $region99: #{gnn3_forward.1} parent=95 // loop_header_branch
                %4452 = sbr.rel (%p4450) target = $region103
              $region100: #{gnn3_forward.1} parent=95 // loop_body
                %v4456 = vld [vmem:[%s4454] sm:$0xff]
                %4457 = vst [vmem:[%s4455] sm:$0xff] %v4456
                %v4458 = vld [vmem:[%s4454 + $0x8] sm:$0xff]
                %4459 = vst [vmem:[%s4455 + $0x28] sm:$0xff] %v4458
                %v4460 = vld [vmem:[%s4454 + $0x10] sm:$0xff]
                %4461 = vst [vmem:[%s4455 + $0x50] sm:$0xff] %v4460
                %v4462 = vld [vmem:[%s4454 + $0x18] sm:$0xff]
                %4463 = vst [vmem:[%s4455 + $0x78] sm:$0xff] %v4462
              $region101: #{gnn3_forward.1} parent=95 // loop_footer
                %s4453 = sadd.s32 1, %s4449
              $region102: #{gnn3_forward.1} parent=95 // loop_footer_branch
                %4448 = sbr.rel target = $region98
              $region103: #{gnn3_forward.1} parent=95 // loop_exit
                _
            $region96: #{gnn3_forward.1} parent=87 // pred_fallthru
              _
          $region88: #{gnn3_forward.1} parent=83 // pred_fallthru
            _
          %4484 = vnop
        $region84: #{gnn3_forward.1} parent=55 // pred_fallthru
          _
      $region56: #{gnn3_forward.1} parent=5 // pred_fallthru
        _
      %p4485 = scmp.le.s32.totalorder 2, %s25
      // Predicated region
      $region119: #{gnn3_forward.1} parent=5 // pred_check
        %p4486 = pneg %p4485
      $region120: #{gnn3_forward.1} parent=5 // pred_check_branch
        %4488 = sbr.rel (%p4486) target = $region122
      $region121: #{gnn3_forward.1} parent=5 // pred_region
        %s4489 = ssub.s32 %s25, 2
        // Predicated region
        $region123: #{gnn3_forward.1} parent=121 // pred_check
          %p4490 = pneg %p268
        $region124: #{gnn3_forward.1} parent=121 // pred_check_branch
          %4492 = sbr.rel (%p4490) target = $region126
        $region125: #{gnn3_forward.1} parent=121 // pred_region
          %s4493 = sand.u32 %s253, 1
          %s4494 = sand.u32 %s253, 1
          %s4495 = smul.addr %s4494, 32
          %s4496 = scalar_lea.vmem [#allocation12], %s4495
        $region126: #{gnn3_forward.1} parent=121 // pred_fallthru
          _
      $region122: #{gnn3_forward.1} parent=5 // pred_fallthru
        _
    $region6: #{gnn3_forward.1} parent=1 // loop_footer
      %s29 = sadd.s32 1, %s25
    $region7: #{gnn3_forward.1} parent=1 // loop_footer_branch
      %24 = sbr.rel target = $region3
    $region8: #{gnn3_forward.1} parent=1 // loop_exit
      _
    %4497 = vsyncpa [#allocation3], 1
    %s4498 = scalar_lea.sflag [#allocation3], 1
    %4499 = vsyncpa %s4498, 1
    %4500 = vsyncpa [#allocation5], 1
    %s4501 = scalar_lea.sflag [#allocation5], 1
    %4502 = vsyncpa %s4501, 1
    %4503 = vsyncpa [#allocation8], 1
    %s4504 = scalar_lea.sflag [#allocation8], 1
    %4505 = vsyncpa %s4504, 1
    %4506 = vsyncpa [#allocation11], 1

</llo_original>
